<compile_context>
chip_gen: v7x
topology: tpu7x:2x2x1
jax: 0.10.0
libtpu: 0.0.40
codegen_flags: <defaults>
</compile_context>

<pallas_src>
import functools
import math

import jax
import jax.numpy as jnp
import numpy as np
from jax.experimental import pallas as pl
from jax.experimental.pallas import tpu as pltpu

EPS = 1e-5      # nn.LayerNorm default
LANE = 128


def _round_up(x, m):
    return (x + m - 1) // m * m


# ----------------------------------------------------------------------------
# Kernel: one batch tile (bt elements, bt*N token rows) per grid step.
# ----------------------------------------------------------------------------
def swin_block_kernel(
    x_ref,        # (bt*N, D)             bf16   token-major activations (unpadded)
    wa_ref,       # (D, 3*Dp+Mp+Cp)       bf16   wq|wk|wv|w1|wc fused slab
    w2_ref,       # (Mp, D)               bf16   second MLP weight (rows zero-padded)
    bias_ref,     # (1, 8*Dp+Mp+Cp)       f32    all biases + LN params, lane-aligned segs
    pool_ref,     # (P, N)                bf16   adaptive-avg-pool matrix (rows sum to 1)
    o_ref,        # (bt*P, Cp)            f32    pooled + 1x1-conv output (lane-dense)
    *, n, d, dp, mp, cp,
):
    rows = x_ref.shape[0]
    bt = rows // n
    f32 = jnp.float32
    bf = jnp.bfloat16

    # Static, lane-aligned offsets into the fused bias/LN row (dp, mp, cp are
    # multiples of 128, so every segment start is lane-aligned).
    off_ln1g, off_ln1b = 0 * dp, 1 * dp
    off_ln2g, off_ln2b = 2 * dp, 3 * dp
    off_bqkv = 4 * dp
    off_bm1 = 7 * dp
    off_bm2 = 7 * dp + mp
    off_bc = 8 * dp + mp

    ln1_g = bias_ref[:, off_ln1g:off_ln1g + d]
    ln1_b = bias_ref[:, off_ln1b:off_ln1b + d]
    ln2_g = bias_ref[:, off_ln2g:off_ln2g + d]
    ln2_b = bias_ref[:, off_ln2b:off_ln2b + d]
    b_qkv = bias_ref[:, off_bqkv:off_bqkv + 3 * dp]
    b_m1 = bias_ref[:, off_bm1:off_bm1 + mp]
    b_m2 = bias_ref[:, off_bm2:off_bm2 + d]
    b_c = bias_ref[:, off_bc:off_bc + cp]

    def layernorm(xr, g, b):
        # Stable two-pass variance over the real channel width d.
        mu = jnp.mean(xr, axis=-1, keepdims=True)
        var = jnp.mean(jnp.square(xr - mu), axis=-1, keepdims=True)
        return (xr - mu) * jax.lax.rsqrt(var + EPS) * g + b

    x = x_ref[...].astype(f32)                                  # (bt*n, d)

    # ---- LayerNorm 1 + fused QKV projection (1/sqrt(d) folded into wq/bq) ----
    xn = layernorm(x, ln1_g, ln1_b)
    qkv = jnp.dot(xn.astype(bf), wa_ref[:, :3 * dp],
                  preferred_element_type=f32) + b_qkv           # (bt*n, 3*dp)
    q = qkv[:, 0 * dp:1 * dp].astype(bf).reshape(bt, n, dp)     # pad lanes exactly 0
    k = qkv[:, 1 * dp:2 * dp].astype(bf).reshape(bt, n, dp)
    v = qkv[:, 2 * dp:2 * dp + d].astype(bf).reshape(bt, n, d)

    # ---- self attention (contract over last dims; zero-padded q/k lanes are exact) ----
    s = jnp.einsum("bqd,bkd->bqk", q, k, preferred_element_type=f32)  # (bt, n, n)
    s = s - jnp.max(s, axis=-1, keepdims=True)
    p = jnp.exp(s)
    p = p / jnp.sum(p, axis=-1, keepdims=True)                  # exact softmax denom
    attn = jnp.einsum("bqk,bkd->bqd", p.astype(bf), v,
                      preferred_element_type=f32)               # (bt, n, d)
    x = x + attn.reshape(rows, d)                               # residual 1

    # ---- LayerNorm 2 + MLP (tanh GELU -> EUP; padded h lanes stay exactly 0) ----
    xn2 = layernorm(x, ln2_g, ln2_b)
    h = jnp.dot(xn2.astype(bf), wa_ref[:, 3 * dp:3 * dp + mp],
                preferred_element_type=f32) + b_m1              # (bt*n, mp)
    h = jax.nn.gelu(h, approximate=True)
    h = jnp.dot(h.astype(bf), w2_ref[...], preferred_element_type=f32) + b_m2
    x = x + h                                                   # residual 2

    # ---- adaptive avg pool (batched matmul) then 1x1 conv on the pooled rows.
    # Pooling and the pointwise conv commute (pool rows sum to 1). ----
    pool = pool_ref[...]                                        # (P, n) bf16
    pnum = pool.shape[0]
    pool_b = jnp.broadcast_to(pool, (bt, pnum, n))
    xp = jnp.einsum("bpn,bnd->bpd", pool_b, x.astype(bf).reshape(bt, n, d),
                    preferred_element_type=f32)                 # (bt, P, d)
    o_ref[...] = jnp.dot(xp.reshape(bt * pnum, d).astype(bf),
                         wa_ref[:, 3 * dp + mp:],
                         preferred_element_type=f32) + b_c      # (bt*P, cp) lane-dense


# ----------------------------------------------------------------------------
# Wrapper
# ----------------------------------------------------------------------------
def _pick_batch_tile(batch):
    """v7x has 2 TensorCores -> keep the parallel grid a multiple of 2.
    Single-TC chips (v5e/v6e) do best with a single grid step."""
    kind = ""
    try:
        kind = jax.devices()[0].device_kind.lower()
    except Exception:
        pass
    n_tc = 2 if "7" in kind else 1
    bt = max(1, batch // n_tc) if batch >= n_tc else batch
    while batch % bt:
        bt -= 1
    return bt


def swin_transformer_block(x_nchw, params, output_size, *, batch_tile=None):
    B, C, H, W = x_nchw.shape
    N, D = H * W, C
    Cout = params["conv_w"].shape[1]
    M = params["mlp_w1"].shape[1]
    o = output_size

    assert H == W, "module assumes square spatial input (it takes sqrt of N)"
    # TODO(synk): PyTorch adaptive pooling with ragged (non-divisible) windows
    # is not implemented; require uniform block averages.
    assert H % o == 0 and W % o == 0
    bh, bw = H // o, W // o
    P = o * o

    Dp = _round_up(D, LANE)
    Mp = _round_up(M, LANE)
    Cp = _round_up(Cout, LANE)

    bt = _pick_batch_tile(B) if batch_tile is None else max(1, min(batch_tile, B))
    while B % bt:
        bt -= 1

    bf = jnp.bfloat16
    f32 = jnp.float32

    # Token-major x: view(B,C,N).permute(0,2,1), streamed unpadded in bf16.
    x_tok = x_nchw.reshape(B, C, N).transpose(0, 2, 1).reshape(B * N, D).astype(bf)

    def pad_cols(a, cols):
        a = a.astype(f32)
        return jnp.pad(a, ((0, 0), (0, cols - a.shape[1])))

    scale = 1.0 / math.sqrt(D)

    # Fused weight slab: every weight whose contraction dim is D (wq|wk|wv|w1|wc).
    wa = jnp.concatenate([
        pad_cols(params["wq"] * scale, Dp),
        pad_cols(params["wk"], Dp),
        pad_cols(params["wv"], Dp),
        pad_cols(params["mlp_w1"], Mp),
        pad_cols(params["conv_w"], Cp),
    ], axis=1).astype(bf)                                       # (D, 3*Dp+Mp+Cp)

    # Second MLP weight (contracts over mlp_dim), rows zero-padded to Mp.
    w2 = jnp.pad(params["mlp_w2"].astype(f32), ((0, Mp - M), (0, 0))).astype(bf)

    # One fused f32 row for all biases / LN params; every segment starts at a
    # multiple of Dp (>=128) so in-kernel slices are lane-aligned.
    def seg(v, width):
        v = v.astype(f32).reshape(1, -1)
        return jnp.pad(v, ((0, 0), (0, width - v.shape[1])))

    bias_row = jnp.concatenate([
        seg(params["ln1_g"], Dp), seg(params["ln1_b"], Dp),
        seg(params["ln2_g"], Dp), seg(params["ln2_b"], Dp),
        seg(params["bq"] * scale, Dp), seg(params["bk"], Dp), seg(params["bv"], Dp),
        seg(params["mlp_b1"], Mp), seg(params["mlp_b2"], Dp),
        seg(params["conv_b"], Cp),
    ], axis=1)                                                  # (1, 8*Dp+Mp+Cp)

    # Adaptive-avg-pool matrix (P, N): row p averages the tokens of output cell p.
    hi = np.arange(H)[:, None] // bh
    wi = np.arange(W)[None, :] // bw
    bucket = (hi * o + wi).reshape(N)
    pool_np = (np.arange(P)[:, None] == bucket[None, :]).astype(np.float32) / float(bh * bw)
    pool = jnp.asarray(pool_np, dtype=bf)

    inputs = (x_tok, wa, w2, bias_row, pool)

    def inv_spec(a):
        # Grid-invariant parameter: constant index_map, single-buffered.
        return pl.BlockSpec(a.shape, lambda i: (0, 0), pipeline_mode=pl.Buffered(1))

    in_specs = [pl.BlockSpec((bt * N, D), lambda i: (i, 0)),
                inv_spec(wa), inv_spec(w2), inv_spec(bias_row), inv_spec(pool)]
    out_specs = pl.BlockSpec((bt * P, Cp), lambda i: (i, 0))

    # VMEM budget from actual buffer sizes (double-buffered x/out, single-buffered
    # params, plus in-kernel intermediates), with 2x headroom, clamped to [16, 64] MiB.
    def nbytes(a):
        return int(np.prod(a.shape)) * a.dtype.itemsize
    x_block = bt * N * D * 2
    out_block = bt * P * Cp * 4
    invariants = nbytes(wa) + nbytes(w2) + nbytes(bias_row) + nbytes(pool)
    intermediates = (bt * N * (3 * Dp + Mp + 2 * D) * 4
                     + 2 * bt * N * N * 4
                     + bt * P * (D + Cp) * 4)
    vmem_limit = int(min(64 * 1024 * 1024,
                         max(16 * 1024 * 1024,
                             2 * (2 * x_block + invariants + 2 * out_block
                                  + intermediates))))

    flops = int(2 * B * N * D * 3 * Dp            # qkv
                + 2 * B * N * N * (Dp + D)        # scores + p@v
                + 2 * B * N * 2 * D * Mp          # mlp
                + 2 * B * P * N * D               # pool
                + 2 * B * P * D * Cp)             # 1x1 conv
    transcendentals = int(B * N * (N + Mp) + 2 * B * N)
    bytes_accessed = int(nbytes(x_tok) + invariants + B * P * Cp * 4)

    out2 = pl.pallas_call(
        functools.partial(swin_block_kernel, n=N, d=D, dp=Dp, mp=Mp, cp=Cp),
        out_shape=jax.ShapeDtypeStruct((B * P, Cp), jnp.float32),
        grid=(B // bt,),
        in_specs=in_specs,
        out_specs=out_specs,
        compiler_params=pltpu.CompilerParams(
            dimension_semantics=("parallel",),
            vmem_limit_bytes=vmem_limit,
        ),
        cost_estimate=pl.CostEstimate(flops=flops,
                                      transcendentals=transcendentals,
                                      bytes_accessed=bytes_accessed),
    )(*inputs)

    # (B*P, Cp) -> (B, P, Cout) -> NCHW (B, Cout, o, o)
    out = out2.reshape(B, P, Cp)[:, :, :Cout]
    return out.transpose(0, 2, 1).reshape(B, Cout, o, o)


# ----------------------------------------------------------------------------
# Pure-JAX f32 reference (matches the PyTorch module semantics)
# ----------------------------------------------------------------------------
def reference(x_nchw, params, output_size):
    B, C, H, W = x_nchw.shape
    N = H * W
    x = x_nchw.reshape(B, C, N).transpose(0, 2, 1).astype(jnp.float32)

    def ln(x, g, b):
        mu = jnp.mean(x, axis=-1, keepdims=True)
        var = jnp.mean((x - mu) ** 2, axis=-1, keepdims=True)
        return (x - mu) * jax.lax.rsqrt(var + EPS) * g + b

    xn = ln(x, params["ln1_g"][0], params["ln1_b"][0])
    q = xn @ params["wq"] + params["bq"][0]
    k = xn @ params["wk"] + params["bk"][0]
    v = xn @ params["wv"] + params["bv"][0]
    s = (q @ jnp.swapaxes(k, -1, -2)) / jnp.sqrt(jnp.float32(C))
    p = jax.nn.softmax(s, axis=-1)
    x = x + p @ v

    xn2 = ln(x, params["ln2_g"][0], params["ln2_b"][0])
    h = xn2 @ params["mlp_w1"] + params["mlp_b1"][0]
    h = jax.nn.gelu(h, approximate=False)
    h = h @ params["mlp_w2"] + params["mlp_b2"][0]
    x = x + h

    y = x @ params["conv_w"] + params["conv_b"][0]          # (B, N, Cout)
    y = y.transpose(0, 2, 1).reshape(B, -1, H, W)           # NCHW
    o = output_size
    bh, bw = H // o, W // o
    y = y.reshape(B, y.shape[1], o, bh, o, bw).mean(axis=(3, 5))
    return y


# ----------------------------------------------------------------------------
# Deterministic parameter construction + demo
# ----------------------------------------------------------------------------
def make_params(key, dim, mlp_dim, output_dim):
    ks = jax.random.split(key, 12)
    sc = 0.1

    def w(k, shape):
        return (sc * jax.random.normal(k, shape)).astype(jnp.float32)

    return {
        "ln1_g": jnp.ones((1, dim), jnp.float32) + w(ks[0], (1, dim)),
        "ln1_b": w(ks[1], (1, dim)),
        "wq": w(ks[2], (dim, dim)), "bq": w(ks[3], (1, dim)),
        "wk": w(ks[4], (dim, dim)), "bk": w(ks[5], (1, dim)),
        "wv": w(ks[6], (dim, dim)), "bv": w(ks[7], (1, dim)),
        "ln2_g": jnp.ones((1, dim), jnp.float32) + w(ks[8], (1, dim)),
        "ln2_b": w(ks[9], (1, dim)),
        "mlp_w1": w(ks[10], (dim, mlp_dim)), "mlp_b1": w(ks[11], (1, mlp_dim)),
        "mlp_w2": w(jax.random.fold_in(key, 100), (mlp_dim, dim)),
        "mlp_b2": w(jax.random.fold_in(key, 101), (1, dim)),
        "conv_w": w(jax.random.fold_in(key, 102), (dim, output_dim)),
        "conv_b": w(jax.random.fold_in(key, 103), (1, output_dim)),
    }


if __name__ == "__main__":
    B, dim, H, W = 8, 32, 8, 8
    mlp_dim, output_dim, output_size = 64, 16, 4

    key = jax.random.PRNGKey(0)
    kx, kp = jax.random.split(key)
    x = jax.random.normal(kx, (B, dim, H, W), dtype=jnp.float32)
    params = make_params(kp, dim, mlp_dim, output_dim)

    out = jax.block_until_ready(swin_transformer_block(x, params, output_size))
    ref = jax.block_until_ready(reference(x, params, output_size))

    # Tolerance loosened vs the f32 reference: bf16 activation/weight operands
    # (f32 MXU accumulation) and tanh-GELU vs exact erf-GELU.
    np.testing.assert_allclose(np.asarray(out), np.asarray(ref),
                               rtol=4e-2, atol=4e-2)
    assert out.shape == (B, output_dim, output_size, output_size)

    print("KERNEL_OK")
</pallas_src>

<mosaic_0001>
module attributes {stable_mosaic.version = 11 : i64} {
  func.func @swin_block_kernel(%arg0: i32, %arg1: memref<512x32xbf16, #tpu.memory_space<vmem>>, %arg2: memref<32x640xbf16, #tpu.memory_space<vmem>>, %arg3: memref<128x32xbf16, #tpu.memory_space<vmem>>, %arg4: memref<1x1280xf32, #tpu.memory_space<vmem>>, %arg5: memref<16x64xbf16, #tpu.memory_space<vmem>>, %arg6: memref<128x128xf32, #tpu.memory_space<vmem>>) attributes {dimension_semantics = [#tpu.dimension_semantics<parallel>], iteration_bounds = array<i64: 1>, scalar_prefetch = 0 : i64, scratch_operands = 0 : i64, tpu.core_type = #tpu.core_type<tc>, window_params = [{transform_indices = @transform_0, window_bounds = array<i64: 512, 32>}, {pipeline_mode = #tpu.pipeline_mode<synchronous>, transform_indices = @transform_1, window_bounds = array<i64: 32, 640>}, {pipeline_mode = #tpu.pipeline_mode<synchronous>, transform_indices = @transform_2, window_bounds = array<i64: 128, 32>}, {pipeline_mode = #tpu.pipeline_mode<synchronous>, transform_indices = @transform_3, window_bounds = array<i64: 1, 1280>}, {pipeline_mode = #tpu.pipeline_mode<synchronous>, transform_indices = @transform_4, window_bounds = array<i64: 16, 64>}, {transform_indices = @transform_5, window_bounds = array<i64: 128, 128>}]} {
    %c0 = arith.constant 0 : index
    %c0_0 = arith.constant 0 : index
    %0 = vector.load %arg4[%c0, %c0_0] : memref<1x1280xf32, #tpu.memory_space<vmem>>, vector<1x32xf32>
    %c0_1 = arith.constant 0 : index
    %c128 = arith.constant 128 : index
    %1 = vector.load %arg4[%c0_1, %c128] : memref<1x1280xf32, #tpu.memory_space<vmem>>, vector<1x32xf32>
    %c0_2 = arith.constant 0 : index
    %c256 = arith.constant 256 : index
    %2 = vector.load %arg4[%c0_2, %c256] : memref<1x1280xf32, #tpu.memory_space<vmem>>, vector<1x32xf32>
    %c0_3 = arith.constant 0 : index
    %c384 = arith.constant 384 : index
    %3 = vector.load %arg4[%c0_3, %c384] : memref<1x1280xf32, #tpu.memory_space<vmem>>, vector<1x32xf32>
    %c0_4 = arith.constant 0 : index
    %c512 = arith.constant 512 : index
    %4 = vector.load %arg4[%c0_4, %c512] : memref<1x1280xf32, #tpu.memory_space<vmem>>, vector<1x384xf32>
    %c0_5 = arith.constant 0 : index
    %c896 = arith.constant 896 : index
    %5 = vector.load %arg4[%c0_5, %c896] : memref<1x1280xf32, #tpu.memory_space<vmem>>, vector<1x128xf32>
    %c0_6 = arith.constant 0 : index
    %c1024 = arith.constant 1024 : index
    %6 = vector.load %arg4[%c0_6, %c1024] : memref<1x1280xf32, #tpu.memory_space<vmem>>, vector<1x32xf32>
    %c0_7 = arith.constant 0 : index
    %c1152 = arith.constant 1152 : index
    %7 = vector.load %arg4[%c0_7, %c1152] : memref<1x1280xf32, #tpu.memory_space<vmem>>, vector<1x128xf32>
    %c0_8 = arith.constant 0 : index
    %c0_9 = arith.constant 0 : index
    %8 = vector.load %arg1[%c0_8, %c0_9] : memref<512x32xbf16, #tpu.memory_space<vmem>>, vector<512x32xbf16>
    %9 = arith.extf %8 : vector<512x32xbf16> to vector<512x32xf32>
    %cst = arith.constant dense<0.000000e+00> : vector<512xf32>
    %10 = vector.multi_reduction <add>, %9, %cst [1] : vector<512x32xf32> to vector<512xf32>
    %11 = vector.shape_cast %10 : vector<512xf32> to vector<512x1xf32>
    %cst_10 = arith.constant 3.200000e+01 : f32
    %12 = vector.broadcast %cst_10 : f32 to vector<512x1xf32>
    %13 = arith.divf %11, %12 : vector<512x1xf32>
    %14 = vector.broadcast %13 : vector<512x1xf32> to vector<512x32xf32>
    %15 = arith.subf %9, %14 : vector<512x32xf32>
    %16 = arith.mulf %15, %15 : vector<512x32xf32>
    %cst_11 = arith.constant dense<0.000000e+00> : vector<512xf32>
    %17 = vector.multi_reduction <add>, %16, %cst_11 [1] : vector<512x32xf32> to vector<512xf32>
    %18 = vector.shape_cast %17 : vector<512xf32> to vector<512x1xf32>
    %cst_12 = arith.constant 3.200000e+01 : f32
    %19 = vector.broadcast %cst_12 : f32 to vector<512x1xf32>
    %20 = arith.divf %18, %19 : vector<512x1xf32>
    %21 = vector.broadcast %13 : vector<512x1xf32> to vector<512x32xf32>
    %22 = arith.subf %9, %21 : vector<512x32xf32>
    %cst_13 = arith.constant 9.99999974E-6 : f32
    %23 = vector.broadcast %cst_13 : f32 to vector<512x1xf32>
    %24 = arith.addf %20, %23 : vector<512x1xf32>
    %25 = math.rsqrt %24 : vector<512x1xf32>
    %26 = vector.broadcast %25 : vector<512x1xf32> to vector<512x32xf32>
    %27 = arith.mulf %22, %26 : vector<512x32xf32>
    %28 = vector.broadcast %0 : vector<1x32xf32> to vector<512x32xf32>
    %29 = arith.mulf %27, %28 : vector<512x32xf32>
    %30 = vector.broadcast %1 : vector<1x32xf32> to vector<512x32xf32>
    %31 = arith.addf %29, %30 : vector<512x32xf32>
    %32 = arith.truncf %31 : vector<512x32xf32> to vector<512x32xbf16>
    %c0_14 = arith.constant 0 : index
    %c0_15 = arith.constant 0 : index
    %33 = vector.load %arg2[%c0_14, %c0_15] : memref<32x640xbf16, #tpu.memory_space<vmem>>, vector<32x384xbf16>
    %cst_16 = arith.constant dense<0.000000e+00> : vector<512x384xf32>
    %34 = tpu.matmul %32, %33, %cst_16 {dimension_numbers = #tpu.dot_dimension_numbers<[1], [0], [0], [1], [0, 0, 1, 1], [], []>} : vector<512x32xbf16>, vector<32x384xbf16>, vector<512x384xf32> -> vector<512x384xf32>
    %35 = vector.broadcast %4 : vector<1x384xf32> to vector<512x384xf32>
    %36 = arith.addf %34, %35 : vector<512x384xf32>
    %37 = vector.extract_strided_slice %36 {offsets = [0, 0], sizes = [512, 128], strides = [1, 1]} : vector<512x384xf32> to vector<512x128xf32>
    %38 = arith.truncf %37 : vector<512x128xf32> to vector<512x128xbf16>
    %39 = vector.shape_cast %38 : vector<512x128xbf16> to vector<8x64x128xbf16>
    %40 = vector.extract_strided_slice %36 {offsets = [0, 128], sizes = [512, 128], strides = [1, 1]} : vector<512x384xf32> to vector<512x128xf32>
    %41 = arith.truncf %40 : vector<512x128xf32> to vector<512x128xbf16>
    %42 = vector.shape_cast %41 : vector<512x128xbf16> to vector<8x64x128xbf16>
    %43 = vector.extract_strided_slice %36 {offsets = [0, 256], sizes = [512, 32], strides = [1, 1]} : vector<512x384xf32> to vector<512x32xf32>
    %44 = arith.truncf %43 : vector<512x32xf32> to vector<512x32xbf16>
    %45 = vector.shape_cast %44 : vector<512x32xbf16> to vector<8x64x32xbf16>
    "tpu.trace_start"() <{level = 10 : i32, message = "bqd,bkd->bqk"}> : () -> ()
    %cst_17 = arith.constant dense<0.000000e+00> : vector<8x64x64xf32>
    %46 = tpu.matmul %39, %42, %cst_17 {dimension_numbers = #tpu.dot_dimension_numbers<[2], [2], [1], [1], [0, 0, 0, 1, 1, 1], [0], [0]>} : vector<8x64x128xbf16>, vector<8x64x128xbf16>, vector<8x64x64xf32> -> vector<8x64x64xf32>
    "tpu.trace_stop"() : () -> ()
    %cst_18 = arith.constant dense<0xFF800000> : vector<8x64xf32>
    %47 = vector.multi_reduction <maximumf>, %46, %cst_18 [2] : vector<8x64x64xf32> to vector<8x64xf32>
    %48 = vector.shape_cast %47 : vector<8x64xf32> to vector<8x64x1xf32>
    %49 = vector.broadcast %48 : vector<8x64x1xf32> to vector<8x64x64xf32>
    %50 = arith.subf %46, %49 : vector<8x64x64xf32>
    %51 = math.exp %50 : vector<8x64x64xf32>
    %cst_19 = arith.constant dense<0.000000e+00> : vector<8x64xf32>
    %52 = vector.multi_reduction <add>, %51, %cst_19 [2] : vector<8x64x64xf32> to vector<8x64xf32>
    %53 = vector.shape_cast %52 : vector<8x64xf32> to vector<8x64x1xf32>
    %54 = vector.broadcast %53 : vector<8x64x1xf32> to vector<8x64x64xf32>
    %55 = arith.divf %51, %54 : vector<8x64x64xf32>
    %56 = arith.truncf %55 : vector<8x64x64xf32> to vector<8x64x64xbf16>
    "tpu.trace_start"() <{level = 10 : i32, message = "bqk,bkd->bqd"}> : () -> ()
    %cst_20 = arith.constant dense<0.000000e+00> : vector<8x64x32xf32>
    %57 = tpu.matmul %56, %45, %cst_20 {dimension_numbers = #tpu.dot_dimension_numbers<[2], [1], [1], [2], [0, 0, 0, 1, 1, 2], [0], [0]>} : vector<8x64x64xbf16>, vector<8x64x32xbf16>, vector<8x64x32xf32> -> vector<8x64x32xf32>
    "tpu.trace_stop"() : () -> ()
    %58 = vector.shape_cast %57 : vector<8x64x32xf32> to vector<512x32xf32>
    %59 = arith.addf %9, %58 : vector<512x32xf32>
    %cst_21 = arith.constant dense<0.000000e+00> : vector<512xf32>
    %60 = vector.multi_reduction <add>, %59, %cst_21 [1] : vector<512x32xf32> to vector<512xf32>
    %61 = vector.shape_cast %60 : vector<512xf32> to vector<512x1xf32>
    %cst_22 = arith.constant 3.200000e+01 : f32
    %62 = vector.broadcast %cst_22 : f32 to vector<512x1xf32>
    %63 = arith.divf %61, %62 : vector<512x1xf32>
    %64 = vector.broadcast %63 : vector<512x1xf32> to vector<512x32xf32>
    %65 = arith.subf %59, %64 : vector<512x32xf32>
    %66 = arith.mulf %65, %65 : vector<512x32xf32>
    %cst_23 = arith.constant dense<0.000000e+00> : vector<512xf32>
    %67 = vector.multi_reduction <add>, %66, %cst_23 [1] : vector<512x32xf32> to vector<512xf32>
    %68 = vector.shape_cast %67 : vector<512xf32> to vector<512x1xf32>
    %cst_24 = arith.constant 3.200000e+01 : f32
    %69 = vector.broadcast %cst_24 : f32 to vector<512x1xf32>
    %70 = arith.divf %68, %69 : vector<512x1xf32>
    %71 = vector.broadcast %63 : vector<512x1xf32> to vector<512x32xf32>
    %72 = arith.subf %59, %71 : vector<512x32xf32>
    %cst_25 = arith.constant 9.99999974E-6 : f32
    %73 = vector.broadcast %cst_25 : f32 to vector<512x1xf32>
    %74 = arith.addf %70, %73 : vector<512x1xf32>
    %75 = math.rsqrt %74 : vector<512x1xf32>
    %76 = vector.broadcast %75 : vector<512x1xf32> to vector<512x32xf32>
    %77 = arith.mulf %72, %76 : vector<512x32xf32>
    %78 = vector.broadcast %2 : vector<1x32xf32> to vector<512x32xf32>
    %79 = arith.mulf %77, %78 : vector<512x32xf32>
    %80 = vector.broadcast %3 : vector<1x32xf32> to vector<512x32xf32>
    %81 = arith.addf %79, %80 : vector<512x32xf32>
    %82 = arith.truncf %81 : vector<512x32xf32> to vector<512x32xbf16>
    %c0_26 = arith.constant 0 : index
    %c384_27 = arith.constant 384 : index
    %83 = vector.load %arg2[%c0_26, %c384_27] : memref<32x640xbf16, #tpu.memory_space<vmem>>, vector<32x128xbf16>
    %cst_28 = arith.constant dense<0.000000e+00> : vector<512x128xf32>
    %84 = tpu.matmul %82, %83, %cst_28 {dimension_numbers = #tpu.dot_dimension_numbers<[1], [0], [0], [1], [0, 0, 1, 1], [], []>} : vector<512x32xbf16>, vector<32x128xbf16>, vector<512x128xf32> -> vector<512x128xf32>
    %85 = vector.broadcast %5 : vector<1x128xf32> to vector<512x128xf32>
    %86 = arith.addf %84, %85 : vector<512x128xf32>
    %87 = arith.mulf %86, %86 : vector<512x128xf32>
    %88 = arith.mulf %86, %87 : vector<512x128xf32>
    %cst_29 = arith.constant 4.471500e-02 : f32
    %89 = vector.broadcast %cst_29 : f32 to vector<512x128xf32>
    %90 = arith.mulf %89, %88 : vector<512x128xf32>
    %91 = arith.addf %86, %90 : vector<512x128xf32>
    %cst_30 = arith.constant 0.797884583 : f32
    %92 = vector.broadcast %cst_30 : f32 to vector<512x128xf32>
    %93 = arith.mulf %92, %91 : vector<512x128xf32>
    %94 = math.tanh %93 : vector<512x128xf32>
    %cst_31 = arith.constant 1.000000e+00 : f32
    %95 = vector.broadcast %cst_31 : f32 to vector<512x128xf32>
    %96 = arith.addf %95, %94 : vector<512x128xf32>
    %cst_32 = arith.constant 5.000000e-01 : f32
    %97 = vector.broadcast %cst_32 : f32 to vector<512x128xf32>
    %98 = arith.mulf %97, %96 : vector<512x128xf32>
    %99 = arith.mulf %86, %98 : vector<512x128xf32>
    %100 = arith.truncf %99 : vector<512x128xf32> to vector<512x128xbf16>
    %c0_33 = arith.constant 0 : index
    %c0_34 = arith.constant 0 : index
    %101 = vector.load %arg3[%c0_33, %c0_34] : memref<128x32xbf16, #tpu.memory_space<vmem>>, vector<128x32xbf16>
    %cst_35 = arith.constant dense<0.000000e+00> : vector<512x32xf32>
    %102 = tpu.matmul %100, %101, %cst_35 {dimension_numbers = #tpu.dot_dimension_numbers<[1], [0], [0], [1], [0, 0, 1, 1], [], []>} : vector<512x128xbf16>, vector<128x32xbf16>, vector<512x32xf32> -> vector<512x32xf32>
    %103 = vector.broadcast %6 : vector<1x32xf32> to vector<512x32xf32>
    %104 = arith.addf %102, %103 : vector<512x32xf32>
    %105 = arith.addf %59, %104 : vector<512x32xf32>
    %c0_36 = arith.constant 0 : index
    %c0_37 = arith.constant 0 : index
    %106 = vector.load %arg5[%c0_36, %c0_37] : memref<16x64xbf16, #tpu.memory_space<vmem>>, vector<16x64xbf16>
    %107 = vector.shape_cast %106 : vector<16x64xbf16> to vector<1x16x64xbf16>
    %108 = vector.broadcast %107 : vector<1x16x64xbf16> to vector<8x16x64xbf16>
    %109 = arith.truncf %105 : vector<512x32xf32> to vector<512x32xbf16>
    %110 = vector.shape_cast %109 : vector<512x32xbf16> to vector<8x64x32xbf16>
    "tpu.trace_start"() <{level = 10 : i32, message = "bpn,bnd->bpd"}> : () -> ()
    %cst_38 = arith.constant dense<0.000000e+00> : vector<8x16x32xf32>
    %111 = tpu.matmul %108, %110, %cst_38 {dimension_numbers = #tpu.dot_dimension_numbers<[2], [1], [1], [2], [0, 0, 0, 1, 1, 2], [0], [0]>} : vector<8x16x64xbf16>, vector<8x64x32xbf16>, vector<8x16x32xf32> -> vector<8x16x32xf32>
    "tpu.trace_stop"() : () -> ()
    %112 = vector.shape_cast %111 : vector<8x16x32xf32> to vector<128x32xf32>
    %113 = arith.truncf %112 : vector<128x32xf32> to vector<128x32xbf16>
    %c0_39 = arith.constant 0 : index
    %c512_40 = arith.constant 512 : index
    %114 = vector.load %arg2[%c0_39, %c512_40] : memref<32x640xbf16, #tpu.memory_space<vmem>>, vector<32x128xbf16>
    %cst_41 = arith.constant dense<0.000000e+00> : vector<128x128xf32>
    %115 = tpu.matmul %113, %114, %cst_41 {dimension_numbers = #tpu.dot_dimension_numbers<[1], [0], [0], [1], [0, 0, 1, 1], [], []>} : vector<128x32xbf16>, vector<32x128xbf16>, vector<128x128xf32> -> vector<128x128xf32>
    %116 = vector.broadcast %7 : vector<1x128xf32> to vector<128x128xf32>
    %117 = arith.addf %115, %116 : vector<128x128xf32>
    %c0_42 = arith.constant 0 : index
    %c0_43 = arith.constant 0 : index
    %118 = vector.load %arg6[%c0_42, %c0_43] : memref<128x128xf32, #tpu.memory_space<vmem>>, vector<128x128xf32>
    tpu.vector_store %arg6[%c0_42, %c0_43], %117 {strides = array<i32>} : memref<128x128xf32, #tpu.memory_space<vmem>>, vector<128x128xf32>,
    return
  }
  func.func @transform_0(%arg0: i32) -> (i32, i32) {
    %c0_i32 = arith.constant 0 : i32
    %c0_i32_0 = arith.constant 0 : i32
    return %arg0, %c0_i32 : i32, i32
  }
  func.func @transform_1(%arg0: i32) -> (i32, i32) {
    %c0_i32 = arith.constant 0 : i32
    %c0_i32_0 = arith.constant 0 : i32
    %c0_i32_1 = arith.constant 0 : i32
    return %c0_i32, %c0_i32_0 : i32, i32
  }
  func.func @transform_2(%arg0: i32) -> (i32, i32) {
    %c0_i32 = arith.constant 0 : i32
    %c0_i32_0 = arith.constant 0 : i32
    %c0_i32_1 = arith.constant 0 : i32
    return %c0_i32, %c0_i32_0 : i32, i32
  }
  func.func @transform_3(%arg0: i32) -> (i32, i32) {
    %c0_i32 = arith.constant 0 : i32
    %c0_i32_0 = arith.constant 0 : i32
    %c0_i32_1 = arith.constant 0 : i32
    return %c0_i32, %c0_i32_0 : i32, i32
  }
  func.func @transform_4(%arg0: i32) -> (i32, i32) {
    %c0_i32 = arith.constant 0 : i32
    %c0_i32_0 = arith.constant 0 : i32
    %c0_i32_1 = arith.constant 0 : i32
    return %c0_i32, %c0_i32_0 : i32, i32
  }
  func.func @transform_5(%arg0: i32) -> (i32, i32) {
    %c0_i32 = arith.constant 0 : i32
    %c0_i32_0 = arith.constant 0 : i32
    return %arg0, %c0_i32 : i32, i32
  }
}

</mosaic_0001>

<llo_original>
// kernel: tpu_custom_call.1
$region0: #{tpu_custom_call.1}
  #allocation0 [shape = 'u32[]', space=smem, size = 0x4, offset = 0x4, fixed_abs, tag = 'smem constant byte address 0x4 - core index']
  #allocation1 [shape = 'u32[144,128]{1,0:T(1,128)}', space=vmem, size = 0x12000, scoped, tag = 'internal scratch']
  %s0 = inlined_call_operand.vmem [shape: bf16[512,32], index: 0, kind: input, shape index: {}]
  %s1 = inlined_call_operand.vmem [shape: bf16[32,640], index: 1, kind: input, shape index: {}]
  %s2 = inlined_call_operand.vmem [shape: bf16[128,32], index: 2, kind: input, shape index: {}]
  %s3 = inlined_call_operand.vmem [shape: f32[1,1280], index: 3, kind: input, shape index: {}]
  %s4 = inlined_call_operand.vmem [shape: bf16[16,64], index: 4, kind: input, shape index: {}]
  %s5 = inlined_call_operand.hbm [shape: f32[128,128], index: 5, kind: output, shape index: {}]
  %s6 = sld [smem:[#allocation0]]
  $region30: #{tpu_custom_call.1} parent=0
    _
  %s8 = ssub.s32 1, %s6
  %s9 = scalar_select 0, %s8, %s6
  $region1: #{tpu_custom_call.1} parent=0
    #allocation2 [shape = 'u8[65536]{0}', space=vmem, size = 0x10000, scoped, tag = 'output window, operand 0, single buffered']
    #allocation3 [shape = 's32[1]{0}', space=sflag, size = 0x4, scoped, tag = 'scoped memory for tpu_custom_call.1']
    %10 = vsyncpa [#allocation3], 0
    // Predicated region
    $region2: #{tpu_custom_call.1} parent=1 // pred_check
      _
    $region3: #{tpu_custom_call.1} parent=1 // pred_check_branch
      %12 = sbr.rel (0) target = $region5
    $region4: #{tpu_custom_call.1} parent=1 // pred_region
      _
    $region5: #{tpu_custom_call.1} parent=1 // pred_fallthru
      _
    // Predicated region
    $region6: #{tpu_custom_call.1} parent=1 // pred_check
      _
    $region7: #{tpu_custom_call.1} parent=1 // pred_check_branch
      %14 = sbr.rel (0) target = $region9
    $region8: #{tpu_custom_call.1} parent=1 // pred_region
      _
    $region9: #{tpu_custom_call.1} parent=1 // pred_fallthru
      _
    // Predicated region
    $region10: #{tpu_custom_call.1} parent=1 // pred_check
      _
    $region11: #{tpu_custom_call.1} parent=1 // pred_check_branch
      %16 = sbr.rel (0) target = $region13
    $region12: #{tpu_custom_call.1} parent=1 // pred_region
      _
    $region13: #{tpu_custom_call.1} parent=1 // pred_fallthru
      _
    // Predicated region
    $region14: #{tpu_custom_call.1} parent=1 // pred_check
      _
    $region15: #{tpu_custom_call.1} parent=1 // pred_check_branch
      %18 = sbr.rel (0) target = $region17
    $region16: #{tpu_custom_call.1} parent=1 // pred_region
      _
    $region17: #{tpu_custom_call.1} parent=1 // pred_fallthru
      _
    // Predicated region
    $region18: #{tpu_custom_call.1} parent=1 // pred_check
      _
    $region19: #{tpu_custom_call.1} parent=1 // pred_check_branch
      %20 = sbr.rel (0) target = $region21
    $region20: #{tpu_custom_call.1} parent=1 // pred_region
      _
    $region21: #{tpu_custom_call.1} parent=1 // pred_fallthru
      _
    %v22 = vld [vmem:[%s3] sm:$0x1]
    %v23 = vld [vmem:[%s3 + $0x1] sm:$0x1]
    %v24 = vld [vmem:[%s3 + $0x2] sm:$0x1]
    %v25 = vld [vmem:[%s3 + $0x3] sm:$0x1]
    %v26 = vld [vmem:[%s3 + $0x4] sm:$0x7]
    %v27 = vld [vmem:[%s3 + $0x7] sm:$0x1]
    %v28 = vld [vmem:[%s3 + $0x8] sm:$0x1]
    %v29 = vld [vmem:[%s3 + $0x9] sm:$0x1]
    %v30 = vld [vmem:[%s0] sm:$0xf]
    %v31 = vld [vmem:[%s0 + $0x4] sm:$0xf]
    %v32 = vld [vmem:[%s0 + $0x8] sm:$0xf]
    %v33 = vld [vmem:[%s0 + $0xc] sm:$0xf]
    %v34 = vld [vmem:[%s0 + $0x10] sm:$0xf]
    %v35 = vld [vmem:[%s0 + $0x14] sm:$0xf]
    %v36 = vld [vmem:[%s0 + $0x18] sm:$0xf]
    %v37 = vld [vmem:[%s0 + $0x1c] sm:$0xf]
    %v38 = vld [vmem:[%s0 + $0x20] sm:$0xf]
    %v39 = vld [vmem:[%s0 + $0x24] sm:$0xf]
    %v40 = vld [vmem:[%s0 + $0x28] sm:$0xf]
    %v41 = vld [vmem:[%s0 + $0x2c] sm:$0xf]
    %v42 = vld [vmem:[%s0 + $0x30] sm:$0xf]
    %v43 = vld [vmem:[%s0 + $0x34] sm:$0xf]
    %v44 = vld [vmem:[%s0 + $0x38] sm:$0xf]
    %v45 = vld [vmem:[%s0 + $0x3c] sm:$0xf]
    %v46 = vld [vmem:[%s0 + $0x40] sm:$0xf]
    %v47 = vld [vmem:[%s0 + $0x44] sm:$0xf]
    %v48 = vld [vmem:[%s0 + $0x48] sm:$0xf]
    %v49 = vld [vmem:[%s0 + $0x4c] sm:$0xf]
    %v50 = vld [vmem:[%s0 + $0x50] sm:$0xf]
    %v51 = vld [vmem:[%s0 + $0x54] sm:$0xf]
    %v52 = vld [vmem:[%s0 + $0x58] sm:$0xf]
    %v53 = vld [vmem:[%s0 + $0x5c] sm:$0xf]
    %v54 = vld [vmem:[%s0 + $0x60] sm:$0xf]
    %v55 = vld [vmem:[%s0 + $0x64] sm:$0xf]
    %v56 = vld [vmem:[%s0 + $0x68] sm:$0xf]
    %v57 = vld [vmem:[%s0 + $0x6c] sm:$0xf]
    %v58 = vld [vmem:[%s0 + $0x70] sm:$0xf]
    %v59 = vld [vmem:[%s0 + $0x74] sm:$0xf]
    %v60 = vld [vmem:[%s0 + $0x78] sm:$0xf]
    %v61 = vld [vmem:[%s0 + $0x7c] sm:$0xf]
    %v62 = vld [vmem:[%s0 + $0x80] sm:$0xf]
    %v63 = vld [vmem:[%s0 + $0x84] sm:$0xf]
    %v64 = vld [vmem:[%s0 + $0x88] sm:$0xf]
    %v65 = vld [vmem:[%s0 + $0x8c] sm:$0xf]
    %v66 = vld [vmem:[%s0 + $0x90] sm:$0xf]
    %v67 = vld [vmem:[%s0 + $0x94] sm:$0xf]
    %v68 = vld [vmem:[%s0 + $0x98] sm:$0xf]
    %v69 = vld [vmem:[%s0 + $0x9c] sm:$0xf]
    %v70 = vld [vmem:[%s0 + $0xa0] sm:$0xf]
    %v71 = vld [vmem:[%s0 + $0xa4] sm:$0xf]
    %v72 = vld [vmem:[%s0 + $0xa8] sm:$0xf]
    %v73 = vld [vmem:[%s0 + $0xac] sm:$0xf]
    %v74 = vld [vmem:[%s0 + $0xb0] sm:$0xf]
    %v75 = vld [vmem:[%s0 + $0xb4] sm:$0xf]
    %v76 = vld [vmem:[%s0 + $0xb8] sm:$0xf]
    %v77 = vld [vmem:[%s0 + $0xbc] sm:$0xf]
    %v78 = vld [vmem:[%s0 + $0xc0] sm:$0xf]
    %v79 = vld [vmem:[%s0 + $0xc4] sm:$0xf]
    %v80 = vld [vmem:[%s0 + $0xc8] sm:$0xf]
    %v81 = vld [vmem:[%s0 + $0xcc] sm:$0xf]
    %v82 = vld [vmem:[%s0 + $0xd0] sm:$0xf]
    %v83 = vld [vmem:[%s0 + $0xd4] sm:$0xf]
    %v84 = vld [vmem:[%s0 + $0xd8] sm:$0xf]
    %v85 = vld [vmem:[%s0 + $0xdc] sm:$0xf]
    %v86 = vld [vmem:[%s0 + $0xe0] sm:$0xf]
    %v87 = vld [vmem:[%s0 + $0xe4] sm:$0xf]
    %v88 = vld [vmem:[%s0 + $0xe8] sm:$0xf]
    %v89 = vld [vmem:[%s0 + $0xec] sm:$0xf]
    %v90 = vld [vmem:[%s0 + $0xf0] sm:$0xf]
    %v91 = vld [vmem:[%s0 + $0xf4] sm:$0xf]
    %v92 = vld [vmem:[%s0 + $0xf8] sm:$0xf]
    %v93 = vld [vmem:[%s0 + $0xfc] sm:$0xf]
    %v94 = vunpack.c.l.bf16 %v30
    %v95 = vunpack.c.l.bf16 %v31
    %v96 = vunpack.c.l.bf16 %v32
    %v97 = vunpack.c.l.bf16 %v33
    %v98 = vunpack.c.l.bf16 %v34
    %v99 = vunpack.c.l.bf16 %v35
    %v100 = vunpack.c.l.bf16 %v36
    %v101 = vunpack.c.l.bf16 %v37
    %v102 = vunpack.c.l.bf16 %v38
    %v103 = vunpack.c.l.bf16 %v39
    %v104 = vunpack.c.l.bf16 %v40
    %v105 = vunpack.c.l.bf16 %v41
    %v106 = vunpack.c.l.bf16 %v42
    %v107 = vunpack.c.l.bf16 %v43
    %v108 = vunpack.c.l.bf16 %v44
    %v109 = vunpack.c.l.bf16 %v45
    %v110 = vunpack.c.l.bf16 %v46
    %v111 = vunpack.c.l.bf16 %v47
    %v112 = vunpack.c.l.bf16 %v48
    %v113 = vunpack.c.l.bf16 %v49
    %v114 = vunpack.c.l.bf16 %v50
    %v115 = vunpack.c.l.bf16 %v51
    %v116 = vunpack.c.l.bf16 %v52
    %v117 = vunpack.c.l.bf16 %v53
    %v118 = vunpack.c.l.bf16 %v54
    %v119 = vunpack.c.l.bf16 %v55
    %v120 = vunpack.c.l.bf16 %v56
    %v121 = vunpack.c.l.bf16 %v57
    %v122 = vunpack.c.l.bf16 %v58
    %v123 = vunpack.c.l.bf16 %v59
    %v124 = vunpack.c.l.bf16 %v60
    %v125 = vunpack.c.l.bf16 %v61
    %v126 = vunpack.c.l.bf16 %v62
    %v127 = vunpack.c.l.bf16 %v63
    %v128 = vunpack.c.l.bf16 %v64
    %v129 = vunpack.c.l.bf16 %v65
    %v130 = vunpack.c.l.bf16 %v66
    %v131 = vunpack.c.l.bf16 %v67
    %v132 = vunpack.c.l.bf16 %v68
    %v133 = vunpack.c.l.bf16 %v69
    %v134 = vunpack.c.l.bf16 %v70
    %v135 = vunpack.c.l.bf16 %v71
    %v136 = vunpack.c.l.bf16 %v72
    %v137 = vunpack.c.l.bf16 %v73
    %v138 = vunpack.c.l.bf16 %v74
    %v139 = vunpack.c.l.bf16 %v75
    %v140 = vunpack.c.l.bf16 %v76
    %v141 = vunpack.c.l.bf16 %v77
    %v142 = vunpack.c.l.bf16 %v78
    %v143 = vunpack.c.l.bf16 %v79
    %v144 = vunpack.c.l.bf16 %v80
    %v145 = vunpack.c.l.bf16 %v81
    %v146 = vunpack.c.l.bf16 %v82
    %v147 = vunpack.c.l.bf16 %v83
    %v148 = vunpack.c.l.bf16 %v84
    %v149 = vunpack.c.l.bf16 %v85
    %v150 = vunpack.c.l.bf16 %v86
    %v151 = vunpack.c.l.bf16 %v87
    %v152 = vunpack.c.l.bf16 %v88
    %v153 = vunpack.c.l.bf16 %v89
    %v154 = vunpack.c.l.bf16 %v90
    %v155 = vunpack.c.l.bf16 %v91
    %v156 = vunpack.c.l.bf16 %v92
    %v157 = vunpack.c.l.bf16 %v93
    %vm158 = vcmask 261120
    %v159 = vsel %vm158, %v94, 0.0
    %160 = vadd.xlane.f32.xlu0 %v159
    %v161 = vpop.xlane.xlu0 %160
    %v162 = vsel %vm158, %v95, 0.0
    %163 = vadd.xlane.f32.xlu0 %v162
    %v164 = vpop.xlane.xlu0 %163
    %v165 = vsel %vm158, %v96, 0.0
    %166 = vadd.xlane.f32.xlu0 %v165
    %v167 = vpop.xlane.xlu0 %166
    %v168 = vsel %vm158, %v97, 0.0
    %169 = vadd.xlane.f32.xlu0 %v168
    %v170 = vpop.xlane.xlu0 %169
    %v171 = vsel %vm158, %v98, 0.0
    %172 = vadd.xlane.f32.xlu0 %v171
    %v173 = vpop.xlane.xlu0 %172
    %v174 = vsel %vm158, %v99, 0.0
    %175 = vadd.xlane.f32.xlu0 %v174
    %v176 = vpop.xlane.xlu0 %175
    %v177 = vsel %vm158, %v100, 0.0
    %178 = vadd.xlane.f32.xlu0 %v177
    %v179 = vpop.xlane.xlu0 %178
    %v180 = vsel %vm158, %v101, 0.0
    %181 = vadd.xlane.f32.xlu0 %v180
    %v182 = vpop.xlane.xlu0 %181
    %v183 = vsel %vm158, %v102, 0.0
    %184 = vadd.xlane.f32.xlu0 %v183
    %v185 = vpop.xlane.xlu0 %184
    %v186 = vsel %vm158, %v103, 0.0
    %187 = vadd.xlane.f32.xlu0 %v186
    %v188 = vpop.xlane.xlu0 %187
    %v189 = vsel %vm158, %v104, 0.0
    %190 = vadd.xlane.f32.xlu0 %v189
    %v191 = vpop.xlane.xlu0 %190
    %v192 = vsel %vm158, %v105, 0.0
    %193 = vadd.xlane.f32.xlu0 %v192
    %v194 = vpop.xlane.xlu0 %193
    %v195 = vsel %vm158, %v106, 0.0
    %196 = vadd.xlane.f32.xlu0 %v195
    %v197 = vpop.xlane.xlu0 %196
    %v198 = vsel %vm158, %v107, 0.0
    %199 = vadd.xlane.f32.xlu0 %v198
    %v200 = vpop.xlane.xlu0 %199
    %v201 = vsel %vm158, %v108, 0.0
    %202 = vadd.xlane.f32.xlu0 %v201
    %v203 = vpop.xlane.xlu0 %202
    %v204 = vsel %vm158, %v109, 0.0
    %205 = vadd.xlane.f32.xlu0 %v204
    %v206 = vpop.xlane.xlu0 %205
    %v207 = vsel %vm158, %v110, 0.0
    %208 = vadd.xlane.f32.xlu0 %v207
    %v209 = vpop.xlane.xlu0 %208
    %v210 = vsel %vm158, %v111, 0.0
    %211 = vadd.xlane.f32.xlu0 %v210
    %v212 = vpop.xlane.xlu0 %211
    %v213 = vsel %vm158, %v112, 0.0
    %214 = vadd.xlane.f32.xlu0 %v213
    %v215 = vpop.xlane.xlu0 %214
    %v216 = vsel %vm158, %v113, 0.0
    %217 = vadd.xlane.f32.xlu0 %v216
    %v218 = vpop.xlane.xlu0 %217
    %v219 = vsel %vm158, %v114, 0.0
    %220 = vadd.xlane.f32.xlu0 %v219
    %v221 = vpop.xlane.xlu0 %220
    %v222 = vsel %vm158, %v115, 0.0
    %223 = vadd.xlane.f32.xlu0 %v222
    %v224 = vpop.xlane.xlu0 %223
    %v225 = vsel %vm158, %v116, 0.0
    %226 = vadd.xlane.f32.xlu0 %v225
    %v227 = vpop.xlane.xlu0 %226
    %v228 = vsel %vm158, %v117, 0.0
    %229 = vadd.xlane.f32.xlu0 %v228
    %v230 = vpop.xlane.xlu0 %229
    %v231 = vsel %vm158, %v118, 0.0
    %232 = vadd.xlane.f32.xlu0 %v231
    %v233 = vpop.xlane.xlu0 %232
    %v234 = vsel %vm158, %v119, 0.0
    %235 = vadd.xlane.f32.xlu0 %v234
    %v236 = vpop.xlane.xlu0 %235
    %v237 = vsel %vm158, %v120, 0.0
    %238 = vadd.xlane.f32.xlu0 %v237
    %v239 = vpop.xlane.xlu0 %238
    %v240 = vsel %vm158, %v121, 0.0
    %241 = vadd.xlane.f32.xlu0 %v240
    %v242 = vpop.xlane.xlu0 %241
    %v243 = vsel %vm158, %v122, 0.0
    %244 = vadd.xlane.f32.xlu0 %v243
    %v245 = vpop.xlane.xlu0 %244
    %v246 = vsel %vm158, %v123, 0.0
    %247 = vadd.xlane.f32.xlu0 %v246
    %v248 = vpop.xlane.xlu0 %247
    %v249 = vsel %vm158, %v124, 0.0
    %250 = vadd.xlane.f32.xlu0 %v249
    %v251 = vpop.xlane.xlu0 %250
    %v252 = vsel %vm158, %v125, 0.0
    %253 = vadd.xlane.f32.xlu0 %v252
    %v254 = vpop.xlane.xlu0 %253
    %v255 = vsel %vm158, %v126, 0.0
    %256 = vadd.xlane.f32.xlu0 %v255
    %v257 = vpop.xlane.xlu0 %256
    %v258 = vsel %vm158, %v127, 0.0
    %259 = vadd.xlane.f32.xlu0 %v258
    %v260 = vpop.xlane.xlu0 %259
    %v261 = vsel %vm158, %v128, 0.0
    %262 = vadd.xlane.f32.xlu0 %v261
    %v263 = vpop.xlane.xlu0 %262
    %v264 = vsel %vm158, %v129, 0.0
    %265 = vadd.xlane.f32.xlu0 %v264
    %v266 = vpop.xlane.xlu0 %265
    %v267 = vsel %vm158, %v130, 0.0
    %268 = vadd.xlane.f32.xlu0 %v267
    %v269 = vpop.xlane.xlu0 %268
    %v270 = vsel %vm158, %v131, 0.0
    %271 = vadd.xlane.f32.xlu0 %v270
    %v272 = vpop.xlane.xlu0 %271
    %v273 = vsel %vm158, %v132, 0.0
    %274 = vadd.xlane.f32.xlu0 %v273
    %v275 = vpop.xlane.xlu0 %274
    %v276 = vsel %vm158, %v133, 0.0
    %277 = vadd.xlane.f32.xlu0 %v276
    %v278 = vpop.xlane.xlu0 %277
    %v279 = vsel %vm158, %v134, 0.0
    %280 = vadd.xlane.f32.xlu0 %v279
    %v281 = vpop.xlane.xlu0 %280
    %v282 = vsel %vm158, %v135, 0.0
    %283 = vadd.xlane.f32.xlu0 %v282
    %v284 = vpop.xlane.xlu0 %283
    %v285 = vsel %vm158, %v136, 0.0
    %286 = vadd.xlane.f32.xlu0 %v285
    %v287 = vpop.xlane.xlu0 %286
    %v288 = vsel %vm158, %v137, 0.0
    %289 = vadd.xlane.f32.xlu0 %v288
    %v290 = vpop.xlane.xlu0 %289
    %v291 = vsel %vm158, %v138, 0.0
    %292 = vadd.xlane.f32.xlu0 %v291
    %v293 = vpop.xlane.xlu0 %292
    %v294 = vsel %vm158, %v139, 0.0
    %295 = vadd.xlane.f32.xlu0 %v294
    %v296 = vpop.xlane.xlu0 %295
    %v297 = vsel %vm158, %v140, 0.0
    %298 = vadd.xlane.f32.xlu0 %v297
    %v299 = vpop.xlane.xlu0 %298
    %v300 = vsel %vm158, %v141, 0.0
    %301 = vadd.xlane.f32.xlu0 %v300
    %v302 = vpop.xlane.xlu0 %301
    %v303 = vsel %vm158, %v142, 0.0
    %304 = vadd.xlane.f32.xlu0 %v303
    %v305 = vpop.xlane.xlu0 %304
    %v306 = vsel %vm158, %v143, 0.0
    %307 = vadd.xlane.f32.xlu0 %v306
    %v308 = vpop.xlane.xlu0 %307
    %v309 = vsel %vm158, %v144, 0.0
    %310 = vadd.xlane.f32.xlu0 %v309
    %v311 = vpop.xlane.xlu0 %310
    %v312 = vsel %vm158, %v145, 0.0
    %313 = vadd.xlane.f32.xlu0 %v312
    %v314 = vpop.xlane.xlu0 %313
    %v315 = vsel %vm158, %v146, 0.0
    %316 = vadd.xlane.f32.xlu0 %v315
    %v317 = vpop.xlane.xlu0 %316
    %v318 = vsel %vm158, %v147, 0.0
    %319 = vadd.xlane.f32.xlu0 %v318
    %v320 = vpop.xlane.xlu0 %319
    %v321 = vsel %vm158, %v148, 0.0
    %322 = vadd.xlane.f32.xlu0 %v321
    %v323 = vpop.xlane.xlu0 %322
    %v324 = vsel %vm158, %v149, 0.0
    %325 = vadd.xlane.f32.xlu0 %v324
    %v326 = vpop.xlane.xlu0 %325
    %v327 = vsel %vm158, %v150, 0.0
    %328 = vadd.xlane.f32.xlu0 %v327
    %v329 = vpop.xlane.xlu0 %328
    %v330 = vsel %vm158, %v151, 0.0
    %331 = vadd.xlane.f32.xlu0 %v330
    %v332 = vpop.xlane.xlu0 %331
    %v333 = vsel %vm158, %v152, 0.0
    %334 = vadd.xlane.f32.xlu0 %v333
    %v335 = vpop.xlane.xlu0 %334
    %v336 = vsel %vm158, %v153, 0.0
    %337 = vadd.xlane.f32.xlu0 %v336
    %v338 = vpop.xlane.xlu0 %337
    %v339 = vsel %vm158, %v154, 0.0
    %340 = vadd.xlane.f32.xlu0 %v339
    %v341 = vpop.xlane.xlu0 %340
    %v342 = vsel %vm158, %v155, 0.0
    %343 = vadd.xlane.f32.xlu0 %v342
    %v344 = vpop.xlane.xlu0 %343
    %v345 = vsel %vm158, %v156, 0.0
    %346 = vadd.xlane.f32.xlu0 %v345
    %v347 = vpop.xlane.xlu0 %346
    %v348 = vsel %vm158, %v157, 0.0
    %349 = vadd.xlane.f32.xlu0 %v348
    %v350 = vpop.xlane.xlu0 %349
    %v351 = vrcp.pop 32.0
    %v352 = vmul.f32 %v161, %v351
    %v353 = vmul.f32 %v164, %v351
    %v354 = vmul.f32 %v167, %v351
    %v355 = vmul.f32 %v170, %v351
    %v356 = vmul.f32 %v173, %v351
    %v357 = vmul.f32 %v176, %v351
    %v358 = vmul.f32 %v179, %v351
    %v359 = vmul.f32 %v182, %v351
    %v360 = vmul.f32 %v185, %v351
    %v361 = vmul.f32 %v188, %v351
    %v362 = vmul.f32 %v191, %v351
    %v363 = vmul.f32 %v194, %v351
    %v364 = vmul.f32 %v197, %v351
    %v365 = vmul.f32 %v200, %v351
    %v366 = vmul.f32 %v203, %v351
    %v367 = vmul.f32 %v206, %v351
    %v368 = vmul.f32 %v209, %v351
    %v369 = vmul.f32 %v212, %v351
    %v370 = vmul.f32 %v215, %v351
    %v371 = vmul.f32 %v218, %v351
    %v372 = vmul.f32 %v221, %v351
    %v373 = vmul.f32 %v224, %v351
    %v374 = vmul.f32 %v227, %v351
    %v375 = vmul.f32 %v230, %v351
    %v376 = vmul.f32 %v233, %v351
    %v377 = vmul.f32 %v236, %v351
    %v378 = vmul.f32 %v239, %v351
    %v379 = vmul.f32 %v242, %v351
    %v380 = vmul.f32 %v245, %v351
    %v381 = vmul.f32 %v248, %v351
    %v382 = vmul.f32 %v251, %v351
    %v383 = vmul.f32 %v254, %v351
    %v384 = vmul.f32 %v257, %v351
    %v385 = vmul.f32 %v260, %v351
    %v386 = vmul.f32 %v263, %v351
    %v387 = vmul.f32 %v266, %v351
    %v388 = vmul.f32 %v269, %v351
    %v389 = vmul.f32 %v272, %v351
    %v390 = vmul.f32 %v275, %v351
    %v391 = vmul.f32 %v278, %v351
    %v392 = vmul.f32 %v281, %v351
    %v393 = vmul.f32 %v284, %v351
    %v394 = vmul.f32 %v287, %v351
    %v395 = vmul.f32 %v290, %v351
    %v396 = vmul.f32 %v293, %v351
    %v397 = vmul.f32 %v296, %v351
    %v398 = vmul.f32 %v299, %v351
    %v399 = vmul.f32 %v302, %v351
    %v400 = vmul.f32 %v305, %v351
    %v401 = vmul.f32 %v308, %v351
    %v402 = vmul.f32 %v311, %v351
    %v403 = vmul.f32 %v314, %v351
    %v404 = vmul.f32 %v317, %v351
    %v405 = vmul.f32 %v320, %v351
    %v406 = vmul.f32 %v323, %v351
    %v407 = vmul.f32 %v326, %v351
    %v408 = vmul.f32 %v329, %v351
    %v409 = vmul.f32 %v332, %v351
    %v410 = vmul.f32 %v335, %v351
    %v411 = vmul.f32 %v338, %v351
    %v412 = vmul.f32 %v341, %v351
    %v413 = vmul.f32 %v344, %v351
    %v414 = vmul.f32 %v347, %v351
    %v415 = vmul.f32 %v350, %v351
    %v416 = vsub.f32 %v94, %v352
    %v417 = vsub.f32 %v95, %v353
    %v418 = vsub.f32 %v96, %v354
    %v419 = vsub.f32 %v97, %v355
    %v420 = vsub.f32 %v98, %v356
    %v421 = vsub.f32 %v99, %v357
    %v422 = vsub.f32 %v100, %v358
    %v423 = vsub.f32 %v101, %v359
    %v424 = vsub.f32 %v102, %v360
    %v425 = vsub.f32 %v103, %v361
    %v426 = vsub.f32 %v104, %v362
    %v427 = vsub.f32 %v105, %v363
    %v428 = vsub.f32 %v106, %v364
    %v429 = vsub.f32 %v107, %v365
    %v430 = vsub.f32 %v108, %v366
    %v431 = vsub.f32 %v109, %v367
    %v432 = vsub.f32 %v110, %v368
    %v433 = vsub.f32 %v111, %v369
    %v434 = vsub.f32 %v112, %v370
    %v435 = vsub.f32 %v113, %v371
    %v436 = vsub.f32 %v114, %v372
    %v437 = vsub.f32 %v115, %v373
    %v438 = vsub.f32 %v116, %v374
    %v439 = vsub.f32 %v117, %v375
    %v440 = vsub.f32 %v118, %v376
    %v441 = vsub.f32 %v119, %v377
    %v442 = vsub.f32 %v120, %v378
    %v443 = vsub.f32 %v121, %v379
    %v444 = vsub.f32 %v122, %v380
    %v445 = vsub.f32 %v123, %v381
    %v446 = vsub.f32 %v124, %v382
    %v447 = vsub.f32 %v125, %v383
    %v448 = vsub.f32 %v126, %v384
    %v449 = vsub.f32 %v127, %v385
    %v450 = vsub.f32 %v128, %v386
    %v451 = vsub.f32 %v129, %v387
    %v452 = vsub.f32 %v130, %v388
    %v453 = vsub.f32 %v131, %v389
    %v454 = vsub.f32 %v132, %v390
    %v455 = vsub.f32 %v133, %v391
    %v456 = vsub.f32 %v134, %v392
    %v457 = vsub.f32 %v135, %v393
    %v458 = vsub.f32 %v136, %v394
    %v459 = vsub.f32 %v137, %v395
    %v460 = vsub.f32 %v138, %v396
    %v461 = vsub.f32 %v139, %v397
    %v462 = vsub.f32 %v140, %v398
    %v463 = vsub.f32 %v141, %v399
    %v464 = vsub.f32 %v142, %v400
    %v465 = vsub.f32 %v143, %v401
    %v466 = vsub.f32 %v144, %v402
    %v467 = vsub.f32 %v145, %v403
    %v468 = vsub.f32 %v146, %v404
    %v469 = vsub.f32 %v147, %v405
    %v470 = vsub.f32 %v148, %v406
    %v471 = vsub.f32 %v149, %v407
    %v472 = vsub.f32 %v150, %v408
    %v473 = vsub.f32 %v151, %v409
    %v474 = vsub.f32 %v152, %v410
    %v475 = vsub.f32 %v153, %v411
    %v476 = vsub.f32 %v154, %v412
    %v477 = vsub.f32 %v155, %v413
    %v478 = vsub.f32 %v156, %v414
    %v479 = vsub.f32 %v157, %v415
    %v480 = vmul.f32 %v416, %v416
    %v481 = vmul.f32 %v417, %v417
    %v482 = vmul.f32 %v418, %v418
    %v483 = vmul.f32 %v419, %v419
    %v484 = vmul.f32 %v420, %v420
    %v485 = vmul.f32 %v421, %v421
    %v486 = vmul.f32 %v422, %v422
    %v487 = vmul.f32 %v423, %v423
    %v488 = vmul.f32 %v424, %v424
    %v489 = vmul.f32 %v425, %v425
    %v490 = vmul.f32 %v426, %v426
    %v491 = vmul.f32 %v427, %v427
    %v492 = vmul.f32 %v428, %v428
    %v493 = vmul.f32 %v429, %v429
    %v494 = vmul.f32 %v430, %v430
    %v495 = vmul.f32 %v431, %v431
    %v496 = vmul.f32 %v432, %v432
    %v497 = vmul.f32 %v433, %v433
    %v498 = vmul.f32 %v434, %v434
    %v499 = vmul.f32 %v435, %v435
    %v500 = vmul.f32 %v436, %v436
    %v501 = vmul.f32 %v437, %v437
    %v502 = vmul.f32 %v438, %v438
    %v503 = vmul.f32 %v439, %v439
    %v504 = vmul.f32 %v440, %v440
    %v505 = vmul.f32 %v441, %v441
    %v506 = vmul.f32 %v442, %v442
    %v507 = vmul.f32 %v443, %v443
    %v508 = vmul.f32 %v444, %v444
    %v509 = vmul.f32 %v445, %v445
    %v510 = vmul.f32 %v446, %v446
    %v511 = vmul.f32 %v447, %v447
    %v512 = vmul.f32 %v448, %v448
    %v513 = vmul.f32 %v449, %v449
    %v514 = vmul.f32 %v450, %v450
    %v515 = vmul.f32 %v451, %v451
    %v516 = vmul.f32 %v452, %v452
    %v517 = vmul.f32 %v453, %v453
    %v518 = vmul.f32 %v454, %v454
    %v519 = vmul.f32 %v455, %v455
    %v520 = vmul.f32 %v456, %v456
    %v521 = vmul.f32 %v457, %v457
    %v522 = vmul.f32 %v458, %v458
    %v523 = vmul.f32 %v459, %v459
    %v524 = vmul.f32 %v460, %v460
    %v525 = vmul.f32 %v461, %v461
    %v526 = vmul.f32 %v462, %v462
    %v527 = vmul.f32 %v463, %v463
    %v528 = vmul.f32 %v464, %v464
    %v529 = vmul.f32 %v465, %v465
    %v530 = vmul.f32 %v466, %v466
    %v531 = vmul.f32 %v467, %v467
    %v532 = vmul.f32 %v468, %v468
    %v533 = vmul.f32 %v469, %v469
    %v534 = vmul.f32 %v470, %v470
    %v535 = vmul.f32 %v471, %v471
    %v536 = vmul.f32 %v472, %v472
    %v537 = vmul.f32 %v473, %v473
    %v538 = vmul.f32 %v474, %v474
    %v539 = vmul.f32 %v475, %v475
    %v540 = vmul.f32 %v476, %v476
    %v541 = vmul.f32 %v477, %v477
    %v542 = vmul.f32 %v478, %v478
    %v543 = vmul.f32 %v479, %v479
    %v544 = vsel %vm158, %v480, 0.0
    %545 = vadd.xlane.f32.xlu0 %v544
    %v546 = vpop.xlane.xlu0 %545
    %v547 = vsel %vm158, %v481, 0.0
    %548 = vadd.xlane.f32.xlu0 %v547
    %v549 = vpop.xlane.xlu0 %548
    %v550 = vsel %vm158, %v482, 0.0
    %551 = vadd.xlane.f32.xlu0 %v550
    %v552 = vpop.xlane.xlu0 %551
    %v553 = vsel %vm158, %v483, 0.0
    %554 = vadd.xlane.f32.xlu0 %v553
    %v555 = vpop.xlane.xlu0 %554
    %v556 = vsel %vm158, %v484, 0.0
    %557 = vadd.xlane.f32.xlu0 %v556
    %v558 = vpop.xlane.xlu0 %557
    %v559 = vsel %vm158, %v485, 0.0
    %560 = vadd.xlane.f32.xlu0 %v559
    %v561 = vpop.xlane.xlu0 %560
    %v562 = vsel %vm158, %v486, 0.0
    %563 = vadd.xlane.f32.xlu0 %v562
    %v564 = vpop.xlane.xlu0 %563
    %v565 = vsel %vm158, %v487, 0.0
    %566 = vadd.xlane.f32.xlu0 %v565
    %v567 = vpop.xlane.xlu0 %566
    %v568 = vsel %vm158, %v488, 0.0
    %569 = vadd.xlane.f32.xlu0 %v568
    %v570 = vpop.xlane.xlu0 %569
    %v571 = vsel %vm158, %v489, 0.0
    %572 = vadd.xlane.f32.xlu0 %v571
    %v573 = vpop.xlane.xlu0 %572
    %v574 = vsel %vm158, %v490, 0.0
    %575 = vadd.xlane.f32.xlu0 %v574
    %v576 = vpop.xlane.xlu0 %575
    %v577 = vsel %vm158, %v491, 0.0
    %578 = vadd.xlane.f32.xlu0 %v577
    %v579 = vpop.xlane.xlu0 %578
    %v580 = vsel %vm158, %v492, 0.0
    %581 = vadd.xlane.f32.xlu0 %v580
    %v582 = vpop.xlane.xlu0 %581
    %v583 = vsel %vm158, %v493, 0.0
    %584 = vadd.xlane.f32.xlu0 %v583
    %v585 = vpop.xlane.xlu0 %584
    %v586 = vsel %vm158, %v494, 0.0
    %587 = vadd.xlane.f32.xlu0 %v586
    %v588 = vpop.xlane.xlu0 %587
    %v589 = vsel %vm158, %v495, 0.0
    %590 = vadd.xlane.f32.xlu0 %v589
    %v591 = vpop.xlane.xlu0 %590
    %v592 = vsel %vm158, %v496, 0.0
    %593 = vadd.xlane.f32.xlu0 %v592
    %v594 = vpop.xlane.xlu0 %593
    %v595 = vsel %vm158, %v497, 0.0
    %596 = vadd.xlane.f32.xlu0 %v595
    %v597 = vpop.xlane.xlu0 %596
    %v598 = vsel %vm158, %v498, 0.0
    %599 = vadd.xlane.f32.xlu0 %v598
    %v600 = vpop.xlane.xlu0 %599
    %v601 = vsel %vm158, %v499, 0.0
    %602 = vadd.xlane.f32.xlu0 %v601
    %v603 = vpop.xlane.xlu0 %602
    %v604 = vsel %vm158, %v500, 0.0
    %605 = vadd.xlane.f32.xlu0 %v604
    %v606 = vpop.xlane.xlu0 %605
    %v607 = vsel %vm158, %v501, 0.0
    %608 = vadd.xlane.f32.xlu0 %v607
    %v609 = vpop.xlane.xlu0 %608
    %v610 = vsel %vm158, %v502, 0.0
    %611 = vadd.xlane.f32.xlu0 %v610
    %v612 = vpop.xlane.xlu0 %611
    %v613 = vsel %vm158, %v503, 0.0
    %614 = vadd.xlane.f32.xlu0 %v613
    %v615 = vpop.xlane.xlu0 %614
    %v616 = vsel %vm158, %v504, 0.0
    %617 = vadd.xlane.f32.xlu0 %v616
    %v618 = vpop.xlane.xlu0 %617
    %v619 = vsel %vm158, %v505, 0.0
    %620 = vadd.xlane.f32.xlu0 %v619
    %v621 = vpop.xlane.xlu0 %620
    %v622 = vsel %vm158, %v506, 0.0
    %623 = vadd.xlane.f32.xlu0 %v622
    %v624 = vpop.xlane.xlu0 %623
    %v625 = vsel %vm158, %v507, 0.0
    %626 = vadd.xlane.f32.xlu0 %v625
    %v627 = vpop.xlane.xlu0 %626
    %v628 = vsel %vm158, %v508, 0.0
    %629 = vadd.xlane.f32.xlu0 %v628
    %v630 = vpop.xlane.xlu0 %629
    %v631 = vsel %vm158, %v509, 0.0
    %632 = vadd.xlane.f32.xlu0 %v631
    %v633 = vpop.xlane.xlu0 %632
    %v634 = vsel %vm158, %v510, 0.0
    %635 = vadd.xlane.f32.xlu0 %v634
    %v636 = vpop.xlane.xlu0 %635
    %v637 = vsel %vm158, %v511, 0.0
    %638 = vadd.xlane.f32.xlu0 %v637
    %v639 = vpop.xlane.xlu0 %638
    %v640 = vsel %vm158, %v512, 0.0
    %641 = vadd.xlane.f32.xlu0 %v640
    %v642 = vpop.xlane.xlu0 %641
    %v643 = vsel %vm158, %v513, 0.0
    %644 = vadd.xlane.f32.xlu0 %v643
    %v645 = vpop.xlane.xlu0 %644
    %v646 = vsel %vm158, %v514, 0.0
    %647 = vadd.xlane.f32.xlu0 %v646
    %v648 = vpop.xlane.xlu0 %647
    %v649 = vsel %vm158, %v515, 0.0
    %650 = vadd.xlane.f32.xlu0 %v649
    %v651 = vpop.xlane.xlu0 %650
    %v652 = vsel %vm158, %v516, 0.0
    %653 = vadd.xlane.f32.xlu0 %v652
    %v654 = vpop.xlane.xlu0 %653
    %v655 = vsel %vm158, %v517, 0.0
    %656 = vadd.xlane.f32.xlu0 %v655
    %v657 = vpop.xlane.xlu0 %656
    %v658 = vsel %vm158, %v518, 0.0
    %659 = vadd.xlane.f32.xlu0 %v658
    %v660 = vpop.xlane.xlu0 %659
    %v661 = vsel %vm158, %v519, 0.0
    %662 = vadd.xlane.f32.xlu0 %v661
    %v663 = vpop.xlane.xlu0 %662
    %v664 = vsel %vm158, %v520, 0.0
    %665 = vadd.xlane.f32.xlu0 %v664
    %v666 = vpop.xlane.xlu0 %665
    %v667 = vsel %vm158, %v521, 0.0
    %668 = vadd.xlane.f32.xlu0 %v667
    %v669 = vpop.xlane.xlu0 %668
    %v670 = vsel %vm158, %v522, 0.0
    %671 = vadd.xlane.f32.xlu0 %v670
    %v672 = vpop.xlane.xlu0 %671
    %v673 = vsel %vm158, %v523, 0.0
    %674 = vadd.xlane.f32.xlu0 %v673
    %v675 = vpop.xlane.xlu0 %674
    %v676 = vsel %vm158, %v524, 0.0
    %677 = vadd.xlane.f32.xlu0 %v676
    %v678 = vpop.xlane.xlu0 %677
    %v679 = vsel %vm158, %v525, 0.0
    %680 = vadd.xlane.f32.xlu0 %v679
    %v681 = vpop.xlane.xlu0 %680
    %v682 = vsel %vm158, %v526, 0.0
    %683 = vadd.xlane.f32.xlu0 %v682
    %v684 = vpop.xlane.xlu0 %683
    %v685 = vsel %vm158, %v527, 0.0
    %686 = vadd.xlane.f32.xlu0 %v685
    %v687 = vpop.xlane.xlu0 %686
    %v688 = vsel %vm158, %v528, 0.0
    %689 = vadd.xlane.f32.xlu0 %v688
    %v690 = vpop.xlane.xlu0 %689
    %v691 = vsel %vm158, %v529, 0.0
    %692 = vadd.xlane.f32.xlu0 %v691
    %v693 = vpop.xlane.xlu0 %692
    %v694 = vsel %vm158, %v530, 0.0
    %695 = vadd.xlane.f32.xlu0 %v694
    %v696 = vpop.xlane.xlu0 %695
    %v697 = vsel %vm158, %v531, 0.0
    %698 = vadd.xlane.f32.xlu0 %v697
    %v699 = vpop.xlane.xlu0 %698
    %v700 = vsel %vm158, %v532, 0.0
    %701 = vadd.xlane.f32.xlu0 %v700
    %v702 = vpop.xlane.xlu0 %701
    %v703 = vsel %vm158, %v533, 0.0
    %704 = vadd.xlane.f32.xlu0 %v703
    %v705 = vpop.xlane.xlu0 %704
    %v706 = vsel %vm158, %v534, 0.0
    %707 = vadd.xlane.f32.xlu0 %v706
    %v708 = vpop.xlane.xlu0 %707
    %v709 = vsel %vm158, %v535, 0.0
    %710 = vadd.xlane.f32.xlu0 %v709
    %v711 = vpop.xlane.xlu0 %710
    %v712 = vsel %vm158, %v536, 0.0
    %713 = vadd.xlane.f32.xlu0 %v712
    %v714 = vpop.xlane.xlu0 %713
    %v715 = vsel %vm158, %v537, 0.0
    %716 = vadd.xlane.f32.xlu0 %v715
    %v717 = vpop.xlane.xlu0 %716
    %v718 = vsel %vm158, %v538, 0.0
    %719 = vadd.xlane.f32.xlu0 %v718
    %v720 = vpop.xlane.xlu0 %719
    %v721 = vsel %vm158, %v539, 0.0
    %722 = vadd.xlane.f32.xlu0 %v721
    %v723 = vpop.xlane.xlu0 %722
    %v724 = vsel %vm158, %v540, 0.0
    %725 = vadd.xlane.f32.xlu0 %v724
    %v726 = vpop.xlane.xlu0 %725
    %v727 = vsel %vm158, %v541, 0.0
    %728 = vadd.xlane.f32.xlu0 %v727
    %v729 = vpop.xlane.xlu0 %728
    %v730 = vsel %vm158, %v542, 0.0
    %731 = vadd.xlane.f32.xlu0 %v730
    %v732 = vpop.xlane.xlu0 %731
    %v733 = vsel %vm158, %v543, 0.0
    %734 = vadd.xlane.f32.xlu0 %v733
    %v735 = vpop.xlane.xlu0 %734
    %v736 = vmul.f32 %v546, %v351
    %v737 = vmul.f32 %v549, %v351
    %v738 = vmul.f32 %v552, %v351
    %v739 = vmul.f32 %v555, %v351
    %v740 = vmul.f32 %v558, %v351
    %v741 = vmul.f32 %v561, %v351
    %v742 = vmul.f32 %v564, %v351
    %v743 = vmul.f32 %v567, %v351
    %v744 = vmul.f32 %v570, %v351
    %v745 = vmul.f32 %v573, %v351
    %v746 = vmul.f32 %v576, %v351
    %v747 = vmul.f32 %v579, %v351
    %v748 = vmul.f32 %v582, %v351
    %v749 = vmul.f32 %v585, %v351
    %v750 = vmul.f32 %v588, %v351
    %v751 = vmul.f32 %v591, %v351
    %v752 = vmul.f32 %v594, %v351
    %v753 = vmul.f32 %v597, %v351
    %v754 = vmul.f32 %v600, %v351
    %v755 = vmul.f32 %v603, %v351
    %v756 = vmul.f32 %v606, %v351
    %v757 = vmul.f32 %v609, %v351
    %v758 = vmul.f32 %v612, %v351
    %v759 = vmul.f32 %v615, %v351
    %v760 = vmul.f32 %v618, %v351
    %v761 = vmul.f32 %v621, %v351
    %v762 = vmul.f32 %v624, %v351
    %v763 = vmul.f32 %v627, %v351
    %v764 = vmul.f32 %v630, %v351
    %v765 = vmul.f32 %v633, %v351
    %v766 = vmul.f32 %v636, %v351
    %v767 = vmul.f32 %v639, %v351
    %v768 = vmul.f32 %v642, %v351
    %v769 = vmul.f32 %v645, %v351
    %v770 = vmul.f32 %v648, %v351
    %v771 = vmul.f32 %v651, %v351
    %v772 = vmul.f32 %v654, %v351
    %v773 = vmul.f32 %v657, %v351
    %v774 = vmul.f32 %v660, %v351
    %v775 = vmul.f32 %v663, %v351
    %v776 = vmul.f32 %v666, %v351
    %v777 = vmul.f32 %v669, %v351
    %v778 = vmul.f32 %v672, %v351
    %v779 = vmul.f32 %v675, %v351
    %v780 = vmul.f32 %v678, %v351
    %v781 = vmul.f32 %v681, %v351
    %v782 = vmul.f32 %v684, %v351
    %v783 = vmul.f32 %v687, %v351
    %v784 = vmul.f32 %v690, %v351
    %v785 = vmul.f32 %v693, %v351
    %v786 = vmul.f32 %v696, %v351
    %v787 = vmul.f32 %v699, %v351
    %v788 = vmul.f32 %v702, %v351
    %v789 = vmul.f32 %v705, %v351
    %v790 = vmul.f32 %v708, %v351
    %v791 = vmul.f32 %v711, %v351
    %v792 = vmul.f32 %v714, %v351
    %v793 = vmul.f32 %v717, %v351
    %v794 = vmul.f32 %v720, %v351
    %v795 = vmul.f32 %v723, %v351
    %v796 = vmul.f32 %v726, %v351
    %v797 = vmul.f32 %v729, %v351
    %v798 = vmul.f32 %v732, %v351
    %v799 = vmul.f32 %v735, %v351
    %v800 = vadd.f32 %v736, 1e-05
    %v801 = vadd.f32 %v737, 1e-05
    %v802 = vadd.f32 %v738, 1e-05
    %v803 = vadd.f32 %v739, 1e-05
    %v804 = vadd.f32 %v740, 1e-05
    %v805 = vadd.f32 %v741, 1e-05
    %v806 = vadd.f32 %v742, 1e-05
    %v807 = vadd.f32 %v743, 1e-05
    %v808 = vadd.f32 %v744, 1e-05
    %v809 = vadd.f32 %v745, 1e-05
    %v810 = vadd.f32 %v746, 1e-05
    %v811 = vadd.f32 %v747, 1e-05
    %v812 = vadd.f32 %v748, 1e-05
    %v813 = vadd.f32 %v749, 1e-05
    %v814 = vadd.f32 %v750, 1e-05
    %v815 = vadd.f32 %v751, 1e-05
    %v816 = vadd.f32 %v752, 1e-05
    %v817 = vadd.f32 %v753, 1e-05
    %v818 = vadd.f32 %v754, 1e-05
    %v819 = vadd.f32 %v755, 1e-05
    %v820 = vadd.f32 %v756, 1e-05
    %v821 = vadd.f32 %v757, 1e-05
    %v822 = vadd.f32 %v758, 1e-05
    %v823 = vadd.f32 %v759, 1e-05
    %v824 = vadd.f32 %v760, 1e-05
    %v825 = vadd.f32 %v761, 1e-05
    %v826 = vadd.f32 %v762, 1e-05
    %v827 = vadd.f32 %v763, 1e-05
    %v828 = vadd.f32 %v764, 1e-05
    %v829 = vadd.f32 %v765, 1e-05
    %v830 = vadd.f32 %v766, 1e-05
    %v831 = vadd.f32 %v767, 1e-05
    %v832 = vadd.f32 %v768, 1e-05
    %v833 = vadd.f32 %v769, 1e-05
    %v834 = vadd.f32 %v770, 1e-05
    %v835 = vadd.f32 %v771, 1e-05
    %v836 = vadd.f32 %v772, 1e-05
    %v837 = vadd.f32 %v773, 1e-05
    %v838 = vadd.f32 %v774, 1e-05
    %v839 = vadd.f32 %v775, 1e-05
    %v840 = vadd.f32 %v776, 1e-05
    %v841 = vadd.f32 %v777, 1e-05
    %v842 = vadd.f32 %v778, 1e-05
    %v843 = vadd.f32 %v779, 1e-05
    %v844 = vadd.f32 %v780, 1e-05
    %v845 = vadd.f32 %v781, 1e-05
    %v846 = vadd.f32 %v782, 1e-05
    %v847 = vadd.f32 %v783, 1e-05
    %v848 = vadd.f32 %v784, 1e-05
    %v849 = vadd.f32 %v785, 1e-05
    %v850 = vadd.f32 %v786, 1e-05
    %v851 = vadd.f32 %v787, 1e-05
    %v852 = vadd.f32 %v788, 1e-05
    %v853 = vadd.f32 %v789, 1e-05
    %v854 = vadd.f32 %v790, 1e-05
    %v855 = vadd.f32 %v791, 1e-05
    %v856 = vadd.f32 %v792, 1e-05
    %v857 = vadd.f32 %v793, 1e-05
    %v858 = vadd.f32 %v794, 1e-05
    %v859 = vadd.f32 %v795, 1e-05
    %v860 = vadd.f32 %v796, 1e-05
    %v861 = vadd.f32 %v797, 1e-05
    %v862 = vadd.f32 %v798, 1e-05
    %v863 = vadd.f32 %v799, 1e-05
    %v864 = vrsqrt.pop %v800
    %v865 = vrsqrt.pop %v801
    %v866 = vrsqrt.pop %v802
    %v867 = vrsqrt.pop %v803
    %v868 = vrsqrt.pop %v804
    %v869 = vrsqrt.pop %v805
    %v870 = vrsqrt.pop %v806
    %v871 = vrsqrt.pop %v807
    %v872 = vrsqrt.pop %v808
    %v873 = vrsqrt.pop %v809
    %v874 = vrsqrt.pop %v810
    %v875 = vrsqrt.pop %v811
    %v876 = vrsqrt.pop %v812
    %v877 = vrsqrt.pop %v813
    %v878 = vrsqrt.pop %v814
    %v879 = vrsqrt.pop %v815
    %v880 = vrsqrt.pop %v816
    %v881 = vrsqrt.pop %v817
    %v882 = vrsqrt.pop %v818
    %v883 = vrsqrt.pop %v819
    %v884 = vrsqrt.pop %v820
    %v885 = vrsqrt.pop %v821
    %v886 = vrsqrt.pop %v822
    %v887 = vrsqrt.pop %v823
    %v888 = vrsqrt.pop %v824
    %v889 = vrsqrt.pop %v825
    %v890 = vrsqrt.pop %v826
    %v891 = vrsqrt.pop %v827
    %v892 = vrsqrt.pop %v828
    %v893 = vrsqrt.pop %v829
    %v894 = vrsqrt.pop %v830
    %v895 = vrsqrt.pop %v831
    %v896 = vrsqrt.pop %v832
    %v897 = vrsqrt.pop %v833
    %v898 = vrsqrt.pop %v834
    %v899 = vrsqrt.pop %v835
    %v900 = vrsqrt.pop %v836
    %v901 = vrsqrt.pop %v837
    %v902 = vrsqrt.pop %v838
    %v903 = vrsqrt.pop %v839
    %v904 = vrsqrt.pop %v840
    %v905 = vrsqrt.pop %v841
    %v906 = vrsqrt.pop %v842
    %v907 = vrsqrt.pop %v843
    %v908 = vrsqrt.pop %v844
    %v909 = vrsqrt.pop %v845
    %v910 = vrsqrt.pop %v846
    %v911 = vrsqrt.pop %v847
    %v912 = vrsqrt.pop %v848
    %v913 = vrsqrt.pop %v849
    %v914 = vrsqrt.pop %v850
    %v915 = vrsqrt.pop %v851
    %v916 = vrsqrt.pop %v852
    %v917 = vrsqrt.pop %v853
    %v918 = vrsqrt.pop %v854
    %v919 = vrsqrt.pop %v855
    %v920 = vrsqrt.pop %v856
    %v921 = vrsqrt.pop %v857
    %v922 = vrsqrt.pop %v858
    %v923 = vrsqrt.pop %v859
    %v924 = vrsqrt.pop %v860
    %v925 = vrsqrt.pop %v861
    %v926 = vrsqrt.pop %v862
    %v927 = vrsqrt.pop %v863
    %v928 = vmul.f32 %v416, %v864
    %v929 = vmul.f32 %v417, %v865
    %v930 = vmul.f32 %v418, %v866
    %v931 = vmul.f32 %v419, %v867
    %v932 = vmul.f32 %v420, %v868
    %v933 = vmul.f32 %v421, %v869
    %v934 = vmul.f32 %v422, %v870
    %v935 = vmul.f32 %v423, %v871
    %v936 = vmul.f32 %v424, %v872
    %v937 = vmul.f32 %v425, %v873
    %v938 = vmul.f32 %v426, %v874
    %v939 = vmul.f32 %v427, %v875
    %v940 = vmul.f32 %v428, %v876
    %v941 = vmul.f32 %v429, %v877
    %v942 = vmul.f32 %v430, %v878
    %v943 = vmul.f32 %v431, %v879
    %v944 = vmul.f32 %v432, %v880
    %v945 = vmul.f32 %v433, %v881
    %v946 = vmul.f32 %v434, %v882
    %v947 = vmul.f32 %v435, %v883
    %v948 = vmul.f32 %v436, %v884
    %v949 = vmul.f32 %v437, %v885
    %v950 = vmul.f32 %v438, %v886
    %v951 = vmul.f32 %v439, %v887
    %v952 = vmul.f32 %v440, %v888
    %v953 = vmul.f32 %v441, %v889
    %v954 = vmul.f32 %v442, %v890
    %v955 = vmul.f32 %v443, %v891
    %v956 = vmul.f32 %v444, %v892
    %v957 = vmul.f32 %v445, %v893
    %v958 = vmul.f32 %v446, %v894
    %v959 = vmul.f32 %v447, %v895
    %v960 = vmul.f32 %v448, %v896
    %v961 = vmul.f32 %v449, %v897
    %v962 = vmul.f32 %v450, %v898
    %v963 = vmul.f32 %v451, %v899
    %v964 = vmul.f32 %v452, %v900
    %v965 = vmul.f32 %v453, %v901
    %v966 = vmul.f32 %v454, %v902
    %v967 = vmul.f32 %v455, %v903
    %v968 = vmul.f32 %v456, %v904
    %v969 = vmul.f32 %v457, %v905
    %v970 = vmul.f32 %v458, %v906
    %v971 = vmul.f32 %v459, %v907
    %v972 = vmul.f32 %v460, %v908
    %v973 = vmul.f32 %v461, %v909
    %v974 = vmul.f32 %v462, %v910
    %v975 = vmul.f32 %v463, %v911
    %v976 = vmul.f32 %v464, %v912
    %v977 = vmul.f32 %v465, %v913
    %v978 = vmul.f32 %v466, %v914
    %v979 = vmul.f32 %v467, %v915
    %v980 = vmul.f32 %v468, %v916
    %v981 = vmul.f32 %v469, %v917
    %v982 = vmul.f32 %v470, %v918
    %v983 = vmul.f32 %v471, %v919
    %v984 = vmul.f32 %v472, %v920
    %v985 = vmul.f32 %v473, %v921
    %v986 = vmul.f32 %v474, %v922
    %v987 = vmul.f32 %v475, %v923
    %v988 = vmul.f32 %v476, %v924
    %v989 = vmul.f32 %v477, %v925
    %v990 = vmul.f32 %v478, %v926
    %v991 = vmul.f32 %v479, %v927
    %v993 = vlaneseq
    %v994 = vshrl.u32 %v993, 7
    %v995 = vsub.s32 0, %v994
    %v996 = vrot.slane %v22, %v995
    %v998 = vmul.f32 %v928, %v996
    %v999 = vmul.f32 %v929, %v996
    %v1000 = vmul.f32 %v930, %v996
    %v1001 = vmul.f32 %v931, %v996
    %v1002 = vmul.f32 %v932, %v996
    %v1003 = vmul.f32 %v933, %v996
    %v1004 = vmul.f32 %v934, %v996
    %v1005 = vmul.f32 %v935, %v996
    %v1006 = vmul.f32 %v936, %v996
    %v1007 = vmul.f32 %v937, %v996
    %v1008 = vmul.f32 %v938, %v996
    %v1009 = vmul.f32 %v939, %v996
    %v1010 = vmul.f32 %v940, %v996
    %v1011 = vmul.f32 %v941, %v996
    %v1012 = vmul.f32 %v942, %v996
    %v1013 = vmul.f32 %v943, %v996
    %v1014 = vmul.f32 %v944, %v996
    %v1015 = vmul.f32 %v945, %v996
    %v1016 = vmul.f32 %v946, %v996
    %v1017 = vmul.f32 %v947, %v996
    %v1018 = vmul.f32 %v948, %v996
    %v1019 = vmul.f32 %v949, %v996
    %v1020 = vmul.f32 %v950, %v996
    %v1021 = vmul.f32 %v951, %v996
    %v1022 = vmul.f32 %v952, %v996
    %v1023 = vmul.f32 %v953, %v996
    %v1024 = vmul.f32 %v954, %v996
    %v1025 = vmul.f32 %v955, %v996
    %v1026 = vmul.f32 %v956, %v996
    %v1027 = vmul.f32 %v957, %v996
    %v1028 = vmul.f32 %v958, %v996
    %v1029 = vmul.f32 %v959, %v996
    %v1030 = vmul.f32 %v960, %v996
    %v1031 = vmul.f32 %v961, %v996
    %v1032 = vmul.f32 %v962, %v996
    %v1033 = vmul.f32 %v963, %v996
    %v1034 = vmul.f32 %v964, %v996
    %v1035 = vmul.f32 %v965, %v996
    %v1036 = vmul.f32 %v966, %v996
    %v1037 = vmul.f32 %v967, %v996
    %v1038 = vmul.f32 %v968, %v996
    %v1039 = vmul.f32 %v969, %v996
    %v1040 = vmul.f32 %v970, %v996
    %v1041 = vmul.f32 %v971, %v996
    %v1042 = vmul.f32 %v972, %v996
    %v1043 = vmul.f32 %v973, %v996
    %v1044 = vmul.f32 %v974, %v996
    %v1045 = vmul.f32 %v975, %v996
    %v1046 = vmul.f32 %v976, %v996
    %v1047 = vmul.f32 %v977, %v996
    %v1048 = vmul.f32 %v978, %v996
    %v1049 = vmul.f32 %v979, %v996
    %v1050 = vmul.f32 %v980, %v996
    %v1051 = vmul.f32 %v981, %v996
    %v1052 = vmul.f32 %v982, %v996
    %v1053 = vmul.f32 %v983, %v996
    %v1054 = vmul.f32 %v984, %v996
    %v1055 = vmul.f32 %v985, %v996
    %v1056 = vmul.f32 %v986, %v996
    %v1057 = vmul.f32 %v987, %v996
    %v1058 = vmul.f32 %v988, %v996
    %v1059 = vmul.f32 %v989, %v996
    %v1060 = vmul.f32 %v990, %v996
    %v1061 = vmul.f32 %v991, %v996
    %v1063 = vlaneseq
    %v1064 = vshrl.u32 %v1063, 7
    %v1065 = vsub.s32 0, %v1064
    %v1066 = vrot.slane %v23, %v1065
    %v1068 = vadd.f32 %v998, %v1066
    %v1069 = vadd.f32 %v999, %v1066
    %v1070 = vadd.f32 %v1000, %v1066
    %v1071 = vadd.f32 %v1001, %v1066
    %v1072 = vadd.f32 %v1002, %v1066
    %v1073 = vadd.f32 %v1003, %v1066
    %v1074 = vadd.f32 %v1004, %v1066
    %v1075 = vadd.f32 %v1005, %v1066
    %v1076 = vadd.f32 %v1006, %v1066
    %v1077 = vadd.f32 %v1007, %v1066
    %v1078 = vadd.f32 %v1008, %v1066
    %v1079 = vadd.f32 %v1009, %v1066
    %v1080 = vadd.f32 %v1010, %v1066
    %v1081 = vadd.f32 %v1011, %v1066
    %v1082 = vadd.f32 %v1012, %v1066
    %v1083 = vadd.f32 %v1013, %v1066
    %v1084 = vadd.f32 %v1014, %v1066
    %v1085 = vadd.f32 %v1015, %v1066
    %v1086 = vadd.f32 %v1016, %v1066
    %v1087 = vadd.f32 %v1017, %v1066
    %v1088 = vadd.f32 %v1018, %v1066
    %v1089 = vadd.f32 %v1019, %v1066
    %v1090 = vadd.f32 %v1020, %v1066
    %v1091 = vadd.f32 %v1021, %v1066
    %v1092 = vadd.f32 %v1022, %v1066
    %v1093 = vadd.f32 %v1023, %v1066
    %v1094 = vadd.f32 %v1024, %v1066
    %v1095 = vadd.f32 %v1025, %v1066
    %v1096 = vadd.f32 %v1026, %v1066
    %v1097 = vadd.f32 %v1027, %v1066
    %v1098 = vadd.f32 %v1028, %v1066
    %v1099 = vadd.f32 %v1029, %v1066
    %v1100 = vadd.f32 %v1030, %v1066
    %v1101 = vadd.f32 %v1031, %v1066
    %v1102 = vadd.f32 %v1032, %v1066
    %v1103 = vadd.f32 %v1033, %v1066
    %v1104 = vadd.f32 %v1034, %v1066
    %v1105 = vadd.f32 %v1035, %v1066
    %v1106 = vadd.f32 %v1036, %v1066
    %v1107 = vadd.f32 %v1037, %v1066
    %v1108 = vadd.f32 %v1038, %v1066
    %v1109 = vadd.f32 %v1039, %v1066
    %v1110 = vadd.f32 %v1040, %v1066
    %v1111 = vadd.f32 %v1041, %v1066
    %v1112 = vadd.f32 %v1042, %v1066
    %v1113 = vadd.f32 %v1043, %v1066
    %v1114 = vadd.f32 %v1044, %v1066
    %v1115 = vadd.f32 %v1045, %v1066
    %v1116 = vadd.f32 %v1046, %v1066
    %v1117 = vadd.f32 %v1047, %v1066
    %v1118 = vadd.f32 %v1048, %v1066
    %v1119 = vadd.f32 %v1049, %v1066
    %v1120 = vadd.f32 %v1050, %v1066
    %v1121 = vadd.f32 %v1051, %v1066
    %v1122 = vadd.f32 %v1052, %v1066
    %v1123 = vadd.f32 %v1053, %v1066
    %v1124 = vadd.f32 %v1054, %v1066
    %v1125 = vadd.f32 %v1055, %v1066
    %v1126 = vadd.f32 %v1056, %v1066
    %v1127 = vadd.f32 %v1057, %v1066
    %v1128 = vadd.f32 %v1058, %v1066
    %v1129 = vadd.f32 %v1059, %v1066
    %v1130 = vadd.f32 %v1060, %v1066
    %v1131 = vadd.f32 %v1061, %v1066
    %v1132 = vpack.c.bf16 %v1069, %v1068
    %v1133 = vpack.c.bf16 %v1071, %v1070
    %v1134 = vpack.c.bf16 %v1073, %v1072
    %v1135 = vpack.c.bf16 %v1075, %v1074
    %v1136 = vpack.c.bf16 %v1077, %v1076
    %v1137 = vpack.c.bf16 %v1079, %v1078
    %v1138 = vpack.c.bf16 %v1081, %v1080
    %v1139 = vpack.c.bf16 %v1083, %v1082
    %v1140 = vpack.c.bf16 %v1085, %v1084
    %v1141 = vpack.c.bf16 %v1087, %v1086
    %v1142 = vpack.c.bf16 %v1089, %v1088
    %v1143 = vpack.c.bf16 %v1091, %v1090
    %v1144 = vpack.c.bf16 %v1093, %v1092
    %v1145 = vpack.c.bf16 %v1095, %v1094
    %v1146 = vpack.c.bf16 %v1097, %v1096
    %v1147 = vpack.c.bf16 %v1099, %v1098
    %v1148 = vpack.c.bf16 %v1101, %v1100
    %v1149 = vpack.c.bf16 %v1103, %v1102
    %v1150 = vpack.c.bf16 %v1105, %v1104
    %v1151 = vpack.c.bf16 %v1107, %v1106
    %v1152 = vpack.c.bf16 %v1109, %v1108
    %v1153 = vpack.c.bf16 %v1111, %v1110
    %v1154 = vpack.c.bf16 %v1113, %v1112
    %v1155 = vpack.c.bf16 %v1115, %v1114
    %v1156 = vpack.c.bf16 %v1117, %v1116
    %v1157 = vpack.c.bf16 %v1119, %v1118
    %v1158 = vpack.c.bf16 %v1121, %v1120
    %v1159 = vpack.c.bf16 %v1123, %v1122
    %v1160 = vpack.c.bf16 %v1125, %v1124
    %v1161 = vpack.c.bf16 %v1127, %v1126
    %v1162 = vpack.c.bf16 %v1129, %v1128
    %v1163 = vpack.c.bf16 %v1131, %v1130
    %v1164 = vld [vmem:[%s1] sm:$0xff]
    %v1165 = vld [vmem:[%s1 + $0x8] sm:$0xf]
    %v1166 = vld [vmem:[%s1 + $0x14] sm:$0xff]
    %v1167 = vld [vmem:[%s1 + $0x1c] sm:$0xf]
    %v1168 = vld [vmem:[%s1 + $0x28] sm:$0xff]
    %v1169 = vld [vmem:[%s1 + $0x30] sm:$0xf]
    %v1170 = vld [vmem:[%s1 + $0x3c] sm:$0xff]
    %v1171 = vld [vmem:[%s1 + $0x44] sm:$0xf]
    %v1173 = vlaneseq
    %v1174 = vshrl.u32 %v1173, 7
    %v1175 = vsub.s32 0, %v1174
    %v1176 = vrot.slane %v26, %v1175
    %v1177 = vlaneseq
    %v1178 = vshrl.u32 %v1177, 7
    %v1179 = vsub.s32 1, %v1178
    %v1180 = vrot.slane %v26, %v1179
    %v1181 = vlaneseq
    %v1182 = vshrl.u32 %v1181, 7
    %v1183 = vsub.s32 2, %v1182
    %v1184 = vrot.slane %v26, %v1183
    %v1196 = vunpack.c.l.b16 %v1164
    %v1197 = vunpack.c.h.b16 %v1164
    %v1198 = vunpack.c.l.b16 %v1165
    %v1199 = vunpack.c.l.b16 %v1166
    %v1200 = vunpack.c.h.b16 %v1166
    %v1201 = vunpack.c.l.b16 %v1167
    %v1202 = vunpack.c.l.b16 %v1168
    %v1203 = vunpack.c.h.b16 %v1168
    %v1204 = vunpack.c.l.b16 %v1169
    %v1205 = vunpack.c.l.b16 %v1170
    %v1206 = vunpack.c.h.b16 %v1170
    %v1207 = vunpack.c.l.b16 %v1171
    %v1208 = vpack.c.b16 %v1199, %v1196
    %v1209 = vpack.c.b16 %v1200, %v1197
    %v1210 = vpack.c.b16 %v1201, %v1198
    %v1211 = vpack.c.b16 %v1205, %v1202
    %v1212 = vpack.c.b16 %v1206, %v1203
    %v1213 = vpack.c.b16 %v1207, %v1204
    %v1221 = vsel %vm158, %v1132, 0
    %v1224 = vsel %vm158, %v1133, 0
    %v1227 = vsel %vm158, %v1134, 0
    %v1230 = vsel %vm158, %v1135, 0
    %v1233 = vsel %vm158, %v1136, 0
    %v1236 = vsel %vm158, %v1137, 0
    %v1239 = vsel %vm158, %v1138, 0
    %v1242 = vsel %vm158, %v1139, 0
    %v1245 = vsel %vm158, %v1140, 0
    %v1248 = vsel %vm158, %v1141, 0
    %v1251 = vsel %vm158, %v1142, 0
    %v1254 = vsel %vm158, %v1143, 0
    %v1257 = vsel %vm158, %v1144, 0
    %v1260 = vsel %vm158, %v1145, 0
    %v1263 = vsel %vm158, %v1146, 0
    %v1266 = vsel %vm158, %v1147, 0
    %v1269 = vsel %vm158, %v1148, 0
    %v1272 = vsel %vm158, %v1149, 0
    %v1275 = vsel %vm158, %v1150, 0
    %v1278 = vsel %vm158, %v1151, 0
    %v1281 = vsel %vm158, %v1152, 0
    %v1284 = vsel %vm158, %v1153, 0
    %v1287 = vsel %vm158, %v1154, 0
    %v1290 = vsel %vm158, %v1155, 0
    %v1293 = vsel %vm158, %v1156, 0
    %v1296 = vsel %vm158, %v1157, 0
    %v1299 = vsel %vm158, %v1158, 0
    %v1302 = vsel %vm158, %v1159, 0
    %v1305 = vsel %vm158, %v1160, 0
    %v1308 = vsel %vm158, %v1161, 0
    %v1311 = vsel %vm158, %v1162, 0
    %v1314 = vsel %vm158, %v1163, 0
    %1316 = vmatprep.subr.bf16.mxu0 %v1209
    %1317 = vmatpush1.bf16.msra.mxu0 %v1208
    %1318 = vmatprep.subr.bf16.mxu0 %v1212
    %1319 = vmatpush1.bf16.msra.mxu0 %v1211
    %1320 = vmatprep.subr.bf16.mxu0 0
    %1321 = vmatpush1.bf16.msra.mxu0 0
    %1322 = vmatprep.subr.bf16.mxu0 0
    %1323 = vmatpush1.bf16.msra.mxu0 0
    %1324 = vmatprep.subr.bf16.mxu0 0
    %1325 = vmatpush1.bf16.msra.mxu0 0
    %1326 = vmatprep.subr.bf16.mxu0 0
    %1327 = vmatpush1.bf16.msra.mxu0 0
    %1328 = vmatprep.subr.bf16.mxu0 0
    %1329 = vmatpush1.bf16.msra.mxu0 0
    %1330 = vmatprep.subr.bf16.mxu0 0
    %1331 = vmatpush1.bf16.msra.mxu0 0
    %1332 = vmatprep.subr.bf16.mxu0 0
    %1333 = vmatpush1.bf16.msra.mxu0 0
    %1334 = vmatprep.subr.bf16.mxu0 0
    %1335 = vmatpush1.bf16.msra.mxu0 0
    %1336 = vmatprep.subr.bf16.mxu0 0
    %1337 = vmatpush1.bf16.msra.mxu0 0
    %1338 = vmatprep.subr.bf16.mxu0 0
    %1339 = vmatpush1.bf16.msra.mxu0 0
    %1340 = vmatprep.subr.bf16.mxu0 0
    %1341 = vmatpush1.bf16.msra.mxu0 0
    %1342 = vmatprep.subr.bf16.mxu0 0
    %1343 = vmatpush1.bf16.msra.mxu0 0
    %1344 = vmatprep.subr.bf16.mxu0 0
    %1345 = vmatpush1.bf16.msra.mxu0 0
    %1346 = vmatprep.subr.bf16.mxu0 0
    %1347 = vmatpush1.bf16.msra.mxu0 0
    %1348 = vmatprep.mubr.bf16.mxu0 0
    %1349 = vmatmul.mubr.bf16.gmra.mrb[0].mxu0 %v1221
    %v1350 = vpop.f32.mrb[0].mxu0
    %v1351 = vadd.f32 %v1176, %v1350
    %v1352 = vpop.f32.mrb[0].mxu0
    %v1353 = vadd.f32 %v1180, %v1352
    %v1354 = vpop.f32.mrb[0].mxu0
    %v1355 = vadd.f32 %v1176, %v1354
    %v1356 = vpop.f32.mrb[0].mxu0
    %v1357 = vadd.f32 %v1180, %v1356
    %1358 = vmatprep.mubr.bf16.mxu0 0
    %1359 = vmatmul.mubr.bf16.gmra.mrb[0].mxu0 %v1224
    %v1360 = vpop.f32.mrb[0].mxu0
    %v1361 = vadd.f32 %v1176, %v1360
    %v1362 = vpop.f32.mrb[0].mxu0
    %v1363 = vadd.f32 %v1180, %v1362
    %v1364 = vpop.f32.mrb[0].mxu0
    %v1365 = vadd.f32 %v1176, %v1364
    %v1366 = vpop.f32.mrb[0].mxu0
    %v1367 = vadd.f32 %v1180, %v1366
    %1368 = vmatprep.mubr.bf16.mxu0 0
    %1369 = vmatmul.mubr.bf16.gmra.mrb[0].mxu0 %v1227
    %v1370 = vpop.f32.mrb[0].mxu0
    %v1371 = vadd.f32 %v1176, %v1370
    %v1372 = vpop.f32.mrb[0].mxu0
    %v1373 = vadd.f32 %v1180, %v1372
    %v1374 = vpop.f32.mrb[0].mxu0
    %v1375 = vadd.f32 %v1176, %v1374
    %v1376 = vpop.f32.mrb[0].mxu0
    %v1377 = vadd.f32 %v1180, %v1376
    %1378 = vmatprep.mubr.bf16.mxu0 0
    %1379 = vmatmul.mubr.bf16.gmra.mrb[0].mxu0 %v1230
    %v1380 = vpop.f32.mrb[0].mxu0
    %v1381 = vadd.f32 %v1176, %v1380
    %v1382 = vpop.f32.mrb[0].mxu0
    %v1383 = vadd.f32 %v1180, %v1382
    %v1384 = vpop.f32.mrb[0].mxu0
    %v1385 = vadd.f32 %v1176, %v1384
    %v1386 = vpop.f32.mrb[0].mxu0
    %v1387 = vadd.f32 %v1180, %v1386
    %1388 = vmatprep.mubr.bf16.mxu0 0
    %1389 = vmatmul.mubr.bf16.gmra.mrb[0].mxu0 %v1233
    %v1390 = vpop.f32.mrb[0].mxu0
    %v1391 = vadd.f32 %v1176, %v1390
    %v1392 = vpop.f32.mrb[0].mxu0
    %v1393 = vadd.f32 %v1180, %v1392
    %v1394 = vpop.f32.mrb[0].mxu0
    %v1395 = vadd.f32 %v1176, %v1394
    %v1396 = vpop.f32.mrb[0].mxu0
    %v1397 = vadd.f32 %v1180, %v1396
    %1398 = vmatprep.mubr.bf16.mxu0 0
    %1399 = vmatmul.mubr.bf16.gmra.mrb[0].mxu0 %v1236
    %v1400 = vpop.f32.mrb[0].mxu0
    %v1401 = vadd.f32 %v1176, %v1400
    %v1402 = vpop.f32.mrb[0].mxu0
    %v1403 = vadd.f32 %v1180, %v1402
    %v1404 = vpop.f32.mrb[0].mxu0
    %v1405 = vadd.f32 %v1176, %v1404
    %v1406 = vpop.f32.mrb[0].mxu0
    %v1407 = vadd.f32 %v1180, %v1406
    %1408 = vmatprep.mubr.bf16.mxu0 0
    %1409 = vmatmul.mubr.bf16.gmra.mrb[0].mxu0 %v1239
    %v1410 = vpop.f32.mrb[0].mxu0
    %v1411 = vadd.f32 %v1176, %v1410
    %v1412 = vpop.f32.mrb[0].mxu0
    %v1413 = vadd.f32 %v1180, %v1412
    %v1414 = vpop.f32.mrb[0].mxu0
    %v1415 = vadd.f32 %v1176, %v1414
    %v1416 = vpop.f32.mrb[0].mxu0
    %v1417 = vadd.f32 %v1180, %v1416
    %1418 = vmatprep.mubr.bf16.mxu0 0
    %1419 = vmatmul.mubr.bf16.gmra.mrb[0].mxu0 %v1242
    %v1420 = vpop.f32.mrb[0].mxu0
    %v1421 = vadd.f32 %v1176, %v1420
    %v1422 = vpop.f32.mrb[0].mxu0
    %v1423 = vadd.f32 %v1180, %v1422
    %v1424 = vpop.f32.mrb[0].mxu0
    %v1425 = vadd.f32 %v1176, %v1424
    %v1426 = vpop.f32.mrb[0].mxu0
    %v1427 = vadd.f32 %v1180, %v1426
    %1428 = vmatprep.mubr.bf16.mxu0 0
    %1429 = vmatmul.mubr.bf16.gmra.mrb[0].mxu0 %v1245
    %v1430 = vpop.f32.mrb[0].mxu0
    %v1431 = vadd.f32 %v1176, %v1430
    %v1432 = vpop.f32.mrb[0].mxu0
    %v1433 = vadd.f32 %v1180, %v1432
    %v1434 = vpop.f32.mrb[0].mxu0
    %v1435 = vadd.f32 %v1176, %v1434
    %v1436 = vpop.f32.mrb[0].mxu0
    %v1437 = vadd.f32 %v1180, %v1436
    %1438 = vmatprep.mubr.bf16.mxu0 0
    %1439 = vmatmul.mubr.bf16.gmra.mrb[0].mxu0 %v1248
    %v1440 = vpop.f32.mrb[0].mxu0
    %v1441 = vadd.f32 %v1176, %v1440
    %v1442 = vpop.f32.mrb[0].mxu0
    %v1443 = vadd.f32 %v1180, %v1442
    %v1444 = vpop.f32.mrb[0].mxu0
    %v1445 = vadd.f32 %v1176, %v1444
    %v1446 = vpop.f32.mrb[0].mxu0
    %v1447 = vadd.f32 %v1180, %v1446
    %1448 = vmatprep.mubr.bf16.mxu0 0
    %1449 = vmatmul.mubr.bf16.gmra.mrb[0].mxu0 %v1251
    %v1450 = vpop.f32.mrb[0].mxu0
    %v1451 = vadd.f32 %v1176, %v1450
    %v1452 = vpop.f32.mrb[0].mxu0
    %v1453 = vadd.f32 %v1180, %v1452
    %v1454 = vpop.f32.mrb[0].mxu0
    %v1455 = vadd.f32 %v1176, %v1454
    %v1456 = vpop.f32.mrb[0].mxu0
    %v1457 = vadd.f32 %v1180, %v1456
    %1458 = vmatprep.mubr.bf16.mxu0 0
    %1459 = vmatmul.mubr.bf16.gmra.mrb[0].mxu0 %v1254
    %v1460 = vpop.f32.mrb[0].mxu0
    %v1461 = vadd.f32 %v1176, %v1460
    %v1462 = vpop.f32.mrb[0].mxu0
    %v1463 = vadd.f32 %v1180, %v1462
    %v1464 = vpop.f32.mrb[0].mxu0
    %v1465 = vadd.f32 %v1176, %v1464
    %v1466 = vpop.f32.mrb[0].mxu0
    %v1467 = vadd.f32 %v1180, %v1466
    %1468 = vmatprep.mubr.bf16.mxu0 0
    %1469 = vmatmul.mubr.bf16.gmra.mrb[0].mxu0 %v1257
    %v1470 = vpop.f32.mrb[0].mxu0
    %v1471 = vadd.f32 %v1176, %v1470
    %v1472 = vpop.f32.mrb[0].mxu0
    %v1473 = vadd.f32 %v1180, %v1472
    %v1474 = vpop.f32.mrb[0].mxu0
    %v1475 = vadd.f32 %v1176, %v1474
    %v1476 = vpop.f32.mrb[0].mxu0
    %v1477 = vadd.f32 %v1180, %v1476
    %1478 = vmatprep.mubr.bf16.mxu0 0
    %1479 = vmatmul.mubr.bf16.gmra.mrb[0].mxu0 %v1260
    %v1480 = vpop.f32.mrb[0].mxu0
    %v1481 = vadd.f32 %v1176, %v1480
    %v1482 = vpop.f32.mrb[0].mxu0
    %v1483 = vadd.f32 %v1180, %v1482
    %v1484 = vpop.f32.mrb[0].mxu0
    %v1485 = vadd.f32 %v1176, %v1484
    %v1486 = vpop.f32.mrb[0].mxu0
    %v1487 = vadd.f32 %v1180, %v1486
    %1488 = vmatprep.mubr.bf16.mxu0 0
    %1489 = vmatmul.mubr.bf16.gmra.mrb[0].mxu0 %v1263
    %v1490 = vpop.f32.mrb[0].mxu0
    %v1491 = vadd.f32 %v1176, %v1490
    %v1492 = vpop.f32.mrb[0].mxu0
    %v1493 = vadd.f32 %v1180, %v1492
    %v1494 = vpop.f32.mrb[0].mxu0
    %v1495 = vadd.f32 %v1176, %v1494
    %v1496 = vpop.f32.mrb[0].mxu0
    %v1497 = vadd.f32 %v1180, %v1496
    %1498 = vmatprep.mubr.bf16.mxu0 0
    %1499 = vmatmul.mubr.bf16.gmra.mrb[0].mxu0 %v1266
    %v1500 = vpop.f32.mrb[0].mxu0
    %v1501 = vadd.f32 %v1176, %v1500
    %v1502 = vpop.f32.mrb[0].mxu0
    %v1503 = vadd.f32 %v1180, %v1502
    %v1504 = vpop.f32.mrb[0].mxu0
    %v1505 = vadd.f32 %v1176, %v1504
    %v1506 = vpop.f32.mrb[0].mxu0
    %v1507 = vadd.f32 %v1180, %v1506
    %1508 = vmatprep.mubr.bf16.mxu0 0
    %1509 = vmatmul.mubr.bf16.gmra.mrb[0].mxu0 %v1269
    %v1510 = vpop.f32.mrb[0].mxu0
    %v1511 = vadd.f32 %v1176, %v1510
    %v1512 = vpop.f32.mrb[0].mxu0
    %v1513 = vadd.f32 %v1180, %v1512
    %v1514 = vpop.f32.mrb[0].mxu0
    %v1515 = vadd.f32 %v1176, %v1514
    %v1516 = vpop.f32.mrb[0].mxu0
    %v1517 = vadd.f32 %v1180, %v1516
    %1518 = vmatprep.mubr.bf16.mxu0 0
    %1519 = vmatmul.mubr.bf16.gmra.mrb[0].mxu0 %v1272
    %v1520 = vpop.f32.mrb[0].mxu0
    %v1521 = vadd.f32 %v1176, %v1520
    %v1522 = vpop.f32.mrb[0].mxu0
    %v1523 = vadd.f32 %v1180, %v1522
    %v1524 = vpop.f32.mrb[0].mxu0
    %v1525 = vadd.f32 %v1176, %v1524
    %v1526 = vpop.f32.mrb[0].mxu0
    %v1527 = vadd.f32 %v1180, %v1526
    %1528 = vmatprep.mubr.bf16.mxu0 0
    %1529 = vmatmul.mubr.bf16.gmra.mrb[0].mxu0 %v1275
    %v1530 = vpop.f32.mrb[0].mxu0
    %v1531 = vadd.f32 %v1176, %v1530
    %v1532 = vpop.f32.mrb[0].mxu0
    %v1533 = vadd.f32 %v1180, %v1532
    %v1534 = vpop.f32.mrb[0].mxu0
    %v1535 = vadd.f32 %v1176, %v1534
    %v1536 = vpop.f32.mrb[0].mxu0
    %v1537 = vadd.f32 %v1180, %v1536
    %1538 = vmatprep.mubr.bf16.mxu0 0
    %1539 = vmatmul.mubr.bf16.gmra.mrb[0].mxu0 %v1278
    %v1540 = vpop.f32.mrb[0].mxu0
    %v1541 = vadd.f32 %v1176, %v1540
    %v1542 = vpop.f32.mrb[0].mxu0
    %v1543 = vadd.f32 %v1180, %v1542
    %v1544 = vpop.f32.mrb[0].mxu0
    %v1545 = vadd.f32 %v1176, %v1544
    %v1546 = vpop.f32.mrb[0].mxu0
    %v1547 = vadd.f32 %v1180, %v1546
    %1548 = vmatprep.mubr.bf16.mxu0 0
    %1549 = vmatmul.mubr.bf16.gmra.mrb[0].mxu0 %v1281
    %v1550 = vpop.f32.mrb[0].mxu0
    %v1551 = vadd.f32 %v1176, %v1550
    %v1552 = vpop.f32.mrb[0].mxu0
    %v1553 = vadd.f32 %v1180, %v1552
    %v1554 = vpop.f32.mrb[0].mxu0
    %v1555 = vadd.f32 %v1176, %v1554
    %v1556 = vpop.f32.mrb[0].mxu0
    %v1557 = vadd.f32 %v1180, %v1556
    %1558 = vmatprep.mubr.bf16.mxu0 0
    %1559 = vmatmul.mubr.bf16.gmra.mrb[0].mxu0 %v1284
    %v1560 = vpop.f32.mrb[0].mxu0
    %v1561 = vadd.f32 %v1176, %v1560
    %v1562 = vpop.f32.mrb[0].mxu0
    %v1563 = vadd.f32 %v1180, %v1562
    %v1564 = vpop.f32.mrb[0].mxu0
    %v1565 = vadd.f32 %v1176, %v1564
    %v1566 = vpop.f32.mrb[0].mxu0
    %v1567 = vadd.f32 %v1180, %v1566
    %1568 = vmatprep.mubr.bf16.mxu0 0
    %1569 = vmatmul.mubr.bf16.gmra.mrb[0].mxu0 %v1287
    %v1570 = vpop.f32.mrb[0].mxu0
    %v1571 = vadd.f32 %v1176, %v1570
    %v1572 = vpop.f32.mrb[0].mxu0
    %v1573 = vadd.f32 %v1180, %v1572
    %v1574 = vpop.f32.mrb[0].mxu0
    %v1575 = vadd.f32 %v1176, %v1574
    %v1576 = vpop.f32.mrb[0].mxu0
    %v1577 = vadd.f32 %v1180, %v1576
    %1578 = vmatprep.mubr.bf16.mxu0 0
    %1579 = vmatmul.mubr.bf16.gmra.mrb[0].mxu0 %v1290
    %v1580 = vpop.f32.mrb[0].mxu0
    %v1581 = vadd.f32 %v1176, %v1580
    %v1582 = vpop.f32.mrb[0].mxu0
    %v1583 = vadd.f32 %v1180, %v1582
    %v1584 = vpop.f32.mrb[0].mxu0
    %v1585 = vadd.f32 %v1176, %v1584
    %v1586 = vpop.f32.mrb[0].mxu0
    %v1587 = vadd.f32 %v1180, %v1586
    %1588 = vmatprep.mubr.bf16.mxu0 0
    %1589 = vmatmul.mubr.bf16.gmra.mrb[0].mxu0 %v1293
    %v1590 = vpop.f32.mrb[0].mxu0
    %v1591 = vadd.f32 %v1176, %v1590
    %v1592 = vpop.f32.mrb[0].mxu0
    %v1593 = vadd.f32 %v1180, %v1592
    %v1594 = vpop.f32.mrb[0].mxu0
    %v1595 = vadd.f32 %v1176, %v1594
    %v1596 = vpop.f32.mrb[0].mxu0
    %v1597 = vadd.f32 %v1180, %v1596
    %1598 = vmatprep.mubr.bf16.mxu0 0
    %1599 = vmatmul.mubr.bf16.gmra.mrb[0].mxu0 %v1296
    %v1600 = vpop.f32.mrb[0].mxu0
    %v1601 = vadd.f32 %v1176, %v1600
    %v1602 = vpop.f32.mrb[0].mxu0
    %v1603 = vadd.f32 %v1180, %v1602
    %v1604 = vpop.f32.mrb[0].mxu0
    %v1605 = vadd.f32 %v1176, %v1604
    %v1606 = vpop.f32.mrb[0].mxu0
    %v1607 = vadd.f32 %v1180, %v1606
    %1608 = vmatprep.mubr.bf16.mxu0 0
    %1609 = vmatmul.mubr.bf16.gmra.mrb[0].mxu0 %v1299
    %v1610 = vpop.f32.mrb[0].mxu0
    %v1611 = vadd.f32 %v1176, %v1610
    %v1612 = vpop.f32.mrb[0].mxu0
    %v1613 = vadd.f32 %v1180, %v1612
    %v1614 = vpop.f32.mrb[0].mxu0
    %v1615 = vadd.f32 %v1176, %v1614
    %v1616 = vpop.f32.mrb[0].mxu0
    %v1617 = vadd.f32 %v1180, %v1616
    %1618 = vmatprep.mubr.bf16.mxu0 0
    %1619 = vmatmul.mubr.bf16.gmra.mrb[0].mxu0 %v1302
    %v1620 = vpop.f32.mrb[0].mxu0
    %v1621 = vadd.f32 %v1176, %v1620
    %v1622 = vpop.f32.mrb[0].mxu0
    %v1623 = vadd.f32 %v1180, %v1622
    %v1624 = vpop.f32.mrb[0].mxu0
    %v1625 = vadd.f32 %v1176, %v1624
    %v1626 = vpop.f32.mrb[0].mxu0
    %v1627 = vadd.f32 %v1180, %v1626
    %1628 = vmatprep.mubr.bf16.mxu0 0
    %1629 = vmatmul.mubr.bf16.gmra.mrb[0].mxu0 %v1305
    %v1630 = vpop.f32.mrb[0].mxu0
    %v1631 = vadd.f32 %v1176, %v1630
    %v1632 = vpop.f32.mrb[0].mxu0
    %v1633 = vadd.f32 %v1180, %v1632
    %v1634 = vpop.f32.mrb[0].mxu0
    %v1635 = vadd.f32 %v1176, %v1634
    %v1636 = vpop.f32.mrb[0].mxu0
    %v1637 = vadd.f32 %v1180, %v1636
    %1638 = vmatprep.mubr.bf16.mxu0 0
    %1639 = vmatmul.mubr.bf16.gmra.mrb[0].mxu0 %v1308
    %v1640 = vpop.f32.mrb[0].mxu0
    %v1641 = vadd.f32 %v1176, %v1640
    %v1642 = vpop.f32.mrb[0].mxu0
    %v1643 = vadd.f32 %v1180, %v1642
    %v1644 = vpop.f32.mrb[0].mxu0
    %v1645 = vadd.f32 %v1176, %v1644
    %v1646 = vpop.f32.mrb[0].mxu0
    %v1647 = vadd.f32 %v1180, %v1646
    %1648 = vmatprep.mubr.bf16.mxu0 0
    %1649 = vmatmul.mubr.bf16.gmra.mrb[0].mxu0 %v1311
    %v1650 = vpop.f32.mrb[0].mxu0
    %v1651 = vadd.f32 %v1176, %v1650
    %v1652 = vpop.f32.mrb[0].mxu0
    %v1653 = vadd.f32 %v1180, %v1652
    %v1654 = vpop.f32.mrb[0].mxu0
    %v1655 = vadd.f32 %v1176, %v1654
    %v1656 = vpop.f32.mrb[0].mxu0
    %v1657 = vadd.f32 %v1180, %v1656
    %1658 = vmatprep.mubr.bf16.mxu0 0
    %1659 = vmatmul.mubr.bf16.gmra.mrb[0].mxu0 %v1314
    %v1660 = vpop.f32.mrb[0].mxu0
    %v1661 = vadd.f32 %v1176, %v1660
    %v1662 = vpop.f32.mrb[0].mxu0
    %v1663 = vadd.f32 %v1180, %v1662
    %v1664 = vpop.f32.mrb[0].mxu0
    %v1665 = vadd.f32 %v1176, %v1664
    %v1666 = vpop.f32.mrb[0].mxu0
    %v1667 = vadd.f32 %v1180, %v1666
    %1668 = vdwg.mxu0
    %1669 = vmatprep.subr.bf16.mxu0 0
    %1670 = vmatpush1.bf16.msra.mxu0 %v1210
    %1671 = vmatprep.subr.bf16.mxu0 0
    %1672 = vmatpush1.bf16.msra.mxu0 %v1213
    %1673 = vmatprep.subr.bf16.mxu0 0
    %1674 = vmatpush1.bf16.msra.mxu0 0
    %1675 = vmatprep.subr.bf16.mxu0 0
    %1676 = vmatpush1.bf16.msra.mxu0 0
    %1677 = vmatprep.subr.bf16.mxu0 0
    %1678 = vmatpush1.bf16.msra.mxu0 0
    %1679 = vmatprep.subr.bf16.mxu0 0
    %1680 = vmatpush1.bf16.msra.mxu0 0
    %1681 = vmatprep.subr.bf16.mxu0 0
    %1682 = vmatpush1.bf16.msra.mxu0 0
    %1683 = vmatprep.subr.bf16.mxu0 0
    %1684 = vmatpush1.bf16.msra.mxu0 0
    %1685 = vmatprep.subr.bf16.mxu0 0
    %1686 = vmatpush1.bf16.msra.mxu0 0
    %1687 = vmatprep.subr.bf16.mxu0 0
    %1688 = vmatpush1.bf16.msra.mxu0 0
    %1689 = vmatprep.subr.bf16.mxu0 0
    %1690 = vmatpush1.bf16.msra.mxu0 0
    %1691 = vmatprep.subr.bf16.mxu0 0
    %1692 = vmatpush1.bf16.msra.mxu0 0
    %1693 = vmatprep.subr.bf16.mxu0 0
    %1694 = vmatpush1.bf16.msra.mxu0 0
    %1695 = vmatprep.subr.bf16.mxu0 0
    %1696 = vmatpush1.bf16.msra.mxu0 0
    %1697 = vmatprep.subr.bf16.mxu0 0
    %1698 = vmatpush1.bf16.msra.mxu0 0
    %1699 = vmatprep.subr.bf16.mxu0 0
    %1700 = vmatpush1.bf16.msra.mxu0 0
    %1701 = vmatprep.mubr.bf16.mxu0 0
    %1702 = vmatmul.mubr.bf16.gmra.mrb[0].mxu0 %v1221
    %v1703 = vpop.f32.mrb[0].mxu0
    %v1704 = vadd.f32 %v1184, %v1703
    %v1705 = vpop.f32.mrb[0].mxu0
    %v1706 = vpop.f32.mrb[0].mxu0
    %v1707 = vadd.f32 %v1184, %v1706
    %v1708 = vpop.f32.mrb[0].mxu0
    %1709 = vmatprep.mubr.bf16.mxu0 0
    %1710 = vmatmul.mubr.bf16.gmra.mrb[0].mxu0 %v1224
    %v1711 = vpop.f32.mrb[0].mxu0
    %v1712 = vadd.f32 %v1184, %v1711
    %v1713 = vpop.f32.mrb[0].mxu0
    %v1714 = vpop.f32.mrb[0].mxu0
    %v1715 = vadd.f32 %v1184, %v1714
    %v1716 = vpop.f32.mrb[0].mxu0
    %1717 = vmatprep.mubr.bf16.mxu0 0
    %1718 = vmatmul.mubr.bf16.gmra.mrb[0].mxu0 %v1227
    %v1719 = vpop.f32.mrb[0].mxu0
    %v1720 = vadd.f32 %v1184, %v1719
    %v1721 = vpop.f32.mrb[0].mxu0
    %v1722 = vpop.f32.mrb[0].mxu0
    %v1723 = vadd.f32 %v1184, %v1722
    %v1724 = vpop.f32.mrb[0].mxu0
    %1725 = vmatprep.mubr.bf16.mxu0 0
    %1726 = vmatmul.mubr.bf16.gmra.mrb[0].mxu0 %v1230
    %v1727 = vpop.f32.mrb[0].mxu0
    %v1728 = vadd.f32 %v1184, %v1727
    %v1729 = vpop.f32.mrb[0].mxu0
    %v1730 = vpop.f32.mrb[0].mxu0
    %v1731 = vadd.f32 %v1184, %v1730
    %v1732 = vpop.f32.mrb[0].mxu0
    %1733 = vmatprep.mubr.bf16.mxu0 0
    %1734 = vmatmul.mubr.bf16.gmra.mrb[0].mxu0 %v1233
    %v1735 = vpop.f32.mrb[0].mxu0
    %v1736 = vadd.f32 %v1184, %v1735
    %v1737 = vpop.f32.mrb[0].mxu0
    %v1738 = vpop.f32.mrb[0].mxu0
    %v1739 = vadd.f32 %v1184, %v1738
    %v1740 = vpop.f32.mrb[0].mxu0
    %1741 = vmatprep.mubr.bf16.mxu0 0
    %1742 = vmatmul.mubr.bf16.gmra.mrb[0].mxu0 %v1236
    %v1743 = vpop.f32.mrb[0].mxu0
    %v1744 = vadd.f32 %v1184, %v1743
    %v1745 = vpop.f32.mrb[0].mxu0
    %v1746 = vpop.f32.mrb[0].mxu0
    %v1747 = vadd.f32 %v1184, %v1746
    %v1748 = vpop.f32.mrb[0].mxu0
    %1749 = vmatprep.mubr.bf16.mxu0 0
    %1750 = vmatmul.mubr.bf16.gmra.mrb[0].mxu0 %v1239
    %v1751 = vpop.f32.mrb[0].mxu0
    %v1752 = vadd.f32 %v1184, %v1751
    %v1753 = vpop.f32.mrb[0].mxu0
    %v1754 = vpop.f32.mrb[0].mxu0
    %v1755 = vadd.f32 %v1184, %v1754
    %v1756 = vpop.f32.mrb[0].mxu0
    %1757 = vmatprep.mubr.bf16.mxu0 0
    %1758 = vmatmul.mubr.bf16.gmra.mrb[0].mxu0 %v1242
    %v1759 = vpop.f32.mrb[0].mxu0
    %v1760 = vadd.f32 %v1184, %v1759
    %v1761 = vpop.f32.mrb[0].mxu0
    %v1762 = vpop.f32.mrb[0].mxu0
    %v1763 = vadd.f32 %v1184, %v1762
    %v1764 = vpop.f32.mrb[0].mxu0
    %1765 = vmatprep.mubr.bf16.mxu0 0
    %1766 = vmatmul.mubr.bf16.gmra.mrb[0].mxu0 %v1245
    %v1767 = vpop.f32.mrb[0].mxu0
    %v1768 = vadd.f32 %v1184, %v1767
    %v1769 = vpop.f32.mrb[0].mxu0
    %v1770 = vpop.f32.mrb[0].mxu0
    %v1771 = vadd.f32 %v1184, %v1770
    %v1772 = vpop.f32.mrb[0].mxu0
    %1773 = vmatprep.mubr.bf16.mxu0 0
    %1774 = vmatmul.mubr.bf16.gmra.mrb[0].mxu0 %v1248
    %v1775 = vpop.f32.mrb[0].mxu0
    %v1776 = vadd.f32 %v1184, %v1775
    %v1777 = vpop.f32.mrb[0].mxu0
    %v1778 = vpop.f32.mrb[0].mxu0
    %v1779 = vadd.f32 %v1184, %v1778
    %v1780 = vpop.f32.mrb[0].mxu0
    %1781 = vmatprep.mubr.bf16.mxu0 0
    %1782 = vmatmul.mubr.bf16.gmra.mrb[0].mxu0 %v1251
    %v1783 = vpop.f32.mrb[0].mxu0
    %v1784 = vadd.f32 %v1184, %v1783
    %v1785 = vpop.f32.mrb[0].mxu0
    %v1786 = vpop.f32.mrb[0].mxu0
    %v1787 = vadd.f32 %v1184, %v1786
    %v1788 = vpop.f32.mrb[0].mxu0
    %1789 = vmatprep.mubr.bf16.mxu0 0
    %1790 = vmatmul.mubr.bf16.gmra.mrb[0].mxu0 %v1254
    %v1791 = vpop.f32.mrb[0].mxu0
    %v1792 = vadd.f32 %v1184, %v1791
    %v1793 = vpop.f32.mrb[0].mxu0
    %v1794 = vpop.f32.mrb[0].mxu0
    %v1795 = vadd.f32 %v1184, %v1794
    %v1796 = vpop.f32.mrb[0].mxu0
    %1797 = vmatprep.mubr.bf16.mxu0 0
    %1798 = vmatmul.mubr.bf16.gmra.mrb[0].mxu0 %v1257
    %v1799 = vpop.f32.mrb[0].mxu0
    %v1800 = vadd.f32 %v1184, %v1799
    %v1801 = vpop.f32.mrb[0].mxu0
    %v1802 = vpop.f32.mrb[0].mxu0
    %v1803 = vadd.f32 %v1184, %v1802
    %v1804 = vpop.f32.mrb[0].mxu0
    %1805 = vmatprep.mubr.bf16.mxu0 0
    %1806 = vmatmul.mubr.bf16.gmra.mrb[0].mxu0 %v1260
    %v1807 = vpop.f32.mrb[0].mxu0
    %v1808 = vadd.f32 %v1184, %v1807
    %v1809 = vpop.f32.mrb[0].mxu0
    %v1810 = vpop.f32.mrb[0].mxu0
    %v1811 = vadd.f32 %v1184, %v1810
    %v1812 = vpop.f32.mrb[0].mxu0
    %1813 = vmatprep.mubr.bf16.mxu0 0
    %1814 = vmatmul.mubr.bf16.gmra.mrb[0].mxu0 %v1263
    %v1815 = vpop.f32.mrb[0].mxu0
    %v1816 = vadd.f32 %v1184, %v1815
    %v1817 = vpop.f32.mrb[0].mxu0
    %v1818 = vpop.f32.mrb[0].mxu0
    %v1819 = vadd.f32 %v1184, %v1818
    %v1820 = vpop.f32.mrb[0].mxu0
    %1821 = vmatprep.mubr.bf16.mxu0 0
    %1822 = vmatmul.mubr.bf16.gmra.mrb[0].mxu0 %v1266
    %v1823 = vpop.f32.mrb[0].mxu0
    %v1824 = vadd.f32 %v1184, %v1823
    %v1825 = vpop.f32.mrb[0].mxu0
    %v1826 = vpop.f32.mrb[0].mxu0
    %v1827 = vadd.f32 %v1184, %v1826
    %v1828 = vpop.f32.mrb[0].mxu0
    %1829 = vmatprep.mubr.bf16.mxu0 0
    %1830 = vmatmul.mubr.bf16.gmra.mrb[0].mxu0 %v1269
    %v1831 = vpop.f32.mrb[0].mxu0
    %v1832 = vadd.f32 %v1184, %v1831
    %v1833 = vpop.f32.mrb[0].mxu0
    %v1834 = vpop.f32.mrb[0].mxu0
    %v1835 = vadd.f32 %v1184, %v1834
    %v1836 = vpop.f32.mrb[0].mxu0
    %1837 = vmatprep.mubr.bf16.mxu0 0
    %1838 = vmatmul.mubr.bf16.gmra.mrb[0].mxu0 %v1272
    %v1839 = vpop.f32.mrb[0].mxu0
    %v1840 = vadd.f32 %v1184, %v1839
    %v1841 = vpop.f32.mrb[0].mxu0
    %v1842 = vpop.f32.mrb[0].mxu0
    %v1843 = vadd.f32 %v1184, %v1842
    %v1844 = vpop.f32.mrb[0].mxu0
    %1845 = vmatprep.mubr.bf16.mxu0 0
    %1846 = vmatmul.mubr.bf16.gmra.mrb[0].mxu0 %v1275
    %v1847 = vpop.f32.mrb[0].mxu0
    %v1848 = vadd.f32 %v1184, %v1847
    %v1849 = vpop.f32.mrb[0].mxu0
    %v1850 = vpop.f32.mrb[0].mxu0
    %v1851 = vadd.f32 %v1184, %v1850
    %v1852 = vpop.f32.mrb[0].mxu0
    %1853 = vmatprep.mubr.bf16.mxu0 0
    %1854 = vmatmul.mubr.bf16.gmra.mrb[0].mxu0 %v1278
    %v1855 = vpop.f32.mrb[0].mxu0
    %v1856 = vadd.f32 %v1184, %v1855
    %v1857 = vpop.f32.mrb[0].mxu0
    %v1858 = vpop.f32.mrb[0].mxu0
    %v1859 = vadd.f32 %v1184, %v1858
    %v1860 = vpop.f32.mrb[0].mxu0
    %1861 = vmatprep.mubr.bf16.mxu0 0
    %1862 = vmatmul.mubr.bf16.gmra.mrb[0].mxu0 %v1281
    %v1863 = vpop.f32.mrb[0].mxu0
    %v1864 = vadd.f32 %v1184, %v1863
    %v1865 = vpop.f32.mrb[0].mxu0
    %v1866 = vpop.f32.mrb[0].mxu0
    %v1867 = vadd.f32 %v1184, %v1866
    %v1868 = vpop.f32.mrb[0].mxu0
    %1869 = vmatprep.mubr.bf16.mxu0 0
    %1870 = vmatmul.mubr.bf16.gmra.mrb[0].mxu0 %v1284
    %v1871 = vpop.f32.mrb[0].mxu0
    %v1872 = vadd.f32 %v1184, %v1871
    %v1873 = vpop.f32.mrb[0].mxu0
    %v1874 = vpop.f32.mrb[0].mxu0
    %v1875 = vadd.f32 %v1184, %v1874
    %v1876 = vpop.f32.mrb[0].mxu0
    %1877 = vmatprep.mubr.bf16.mxu0 0
    %1878 = vmatmul.mubr.bf16.gmra.mrb[0].mxu0 %v1287
    %v1879 = vpop.f32.mrb[0].mxu0
    %v1880 = vadd.f32 %v1184, %v1879
    %v1881 = vpop.f32.mrb[0].mxu0
    %v1882 = vpop.f32.mrb[0].mxu0
    %v1883 = vadd.f32 %v1184, %v1882
    %v1884 = vpop.f32.mrb[0].mxu0
    %1885 = vmatprep.mubr.bf16.mxu0 0
    %1886 = vmatmul.mubr.bf16.gmra.mrb[0].mxu0 %v1290
    %v1887 = vpop.f32.mrb[0].mxu0
    %v1888 = vadd.f32 %v1184, %v1887
    %v1889 = vpop.f32.mrb[0].mxu0
    %v1890 = vpop.f32.mrb[0].mxu0
    %v1891 = vadd.f32 %v1184, %v1890
    %v1892 = vpop.f32.mrb[0].mxu0
    %1893 = vmatprep.mubr.bf16.mxu0 0
    %1894 = vmatmul.mubr.bf16.gmra.mrb[0].mxu0 %v1293
    %v1895 = vpop.f32.mrb[0].mxu0
    %v1896 = vadd.f32 %v1184, %v1895
    %v1897 = vpop.f32.mrb[0].mxu0
    %v1898 = vpop.f32.mrb[0].mxu0
    %v1899 = vadd.f32 %v1184, %v1898
    %v1900 = vpop.f32.mrb[0].mxu0
    %1901 = vmatprep.mubr.bf16.mxu0 0
    %1902 = vmatmul.mubr.bf16.gmra.mrb[0].mxu0 %v1296
    %v1903 = vpop.f32.mrb[0].mxu0
    %v1904 = vadd.f32 %v1184, %v1903
    %v1905 = vpop.f32.mrb[0].mxu0
    %v1906 = vpop.f32.mrb[0].mxu0
    %v1907 = vadd.f32 %v1184, %v1906
    %v1908 = vpop.f32.mrb[0].mxu0
    %1909 = vmatprep.mubr.bf16.mxu0 0
    %1910 = vmatmul.mubr.bf16.gmra.mrb[0].mxu0 %v1299
    %v1911 = vpop.f32.mrb[0].mxu0
    %v1912 = vadd.f32 %v1184, %v1911
    %v1913 = vpop.f32.mrb[0].mxu0
    %v1914 = vpop.f32.mrb[0].mxu0
    %v1915 = vadd.f32 %v1184, %v1914
    %v1916 = vpop.f32.mrb[0].mxu0
    %1917 = vmatprep.mubr.bf16.mxu0 0
    %1918 = vmatmul.mubr.bf16.gmra.mrb[0].mxu0 %v1302
    %v1919 = vpop.f32.mrb[0].mxu0
    %v1920 = vadd.f32 %v1184, %v1919
    %v1921 = vpop.f32.mrb[0].mxu0
    %v1922 = vpop.f32.mrb[0].mxu0
    %v1923 = vadd.f32 %v1184, %v1922
    %v1924 = vpop.f32.mrb[0].mxu0
    %1925 = vmatprep.mubr.bf16.mxu0 0
    %1926 = vmatmul.mubr.bf16.gmra.mrb[0].mxu0 %v1305
    %v1927 = vpop.f32.mrb[0].mxu0
    %v1928 = vadd.f32 %v1184, %v1927
    %v1929 = vpop.f32.mrb[0].mxu0
    %v1930 = vpop.f32.mrb[0].mxu0
    %v1931 = vadd.f32 %v1184, %v1930
    %v1932 = vpop.f32.mrb[0].mxu0
    %1933 = vmatprep.mubr.bf16.mxu0 0
    %1934 = vmatmul.mubr.bf16.gmra.mrb[0].mxu0 %v1308
    %v1935 = vpop.f32.mrb[0].mxu0
    %v1936 = vadd.f32 %v1184, %v1935
    %v1937 = vpop.f32.mrb[0].mxu0
    %v1938 = vpop.f32.mrb[0].mxu0
    %v1939 = vadd.f32 %v1184, %v1938
    %v1940 = vpop.f32.mrb[0].mxu0
    %1941 = vmatprep.mubr.bf16.mxu0 0
    %1942 = vmatmul.mubr.bf16.gmra.mrb[0].mxu0 %v1311
    %v1943 = vpop.f32.mrb[0].mxu0
    %v1944 = vadd.f32 %v1184, %v1943
    %v1945 = vpop.f32.mrb[0].mxu0
    %v1946 = vpop.f32.mrb[0].mxu0
    %v1947 = vadd.f32 %v1184, %v1946
    %v1948 = vpop.f32.mrb[0].mxu0
    %1949 = vmatprep.mubr.bf16.mxu0 0
    %1950 = vmatmul.mubr.bf16.gmra.mrb[0].mxu0 %v1314
    %v1951 = vpop.f32.mrb[0].mxu0
    %v1952 = vadd.f32 %v1184, %v1951
    %v1953 = vpop.f32.mrb[0].mxu0
    %v1954 = vpop.f32.mrb[0].mxu0
    %v1955 = vadd.f32 %v1184, %v1954
    %v1956 = vpop.f32.mrb[0].mxu0
    %1957 = vdwg.mxu0
    %v1958 = vpack.c.bf16 %v1355, %v1351
    %v1959 = vpack.c.bf16 %v1365, %v1361
    %v1960 = vpack.c.bf16 %v1375, %v1371
    %v1961 = vpack.c.bf16 %v1385, %v1381
    %v1962 = vpack.c.bf16 %v1395, %v1391
    %v1963 = vpack.c.bf16 %v1405, %v1401
    %v1964 = vpack.c.bf16 %v1415, %v1411
    %v1965 = vpack.c.bf16 %v1425, %v1421
    %v1966 = vpack.c.bf16 %v1435, %v1431
    %v1967 = vpack.c.bf16 %v1445, %v1441
    %v1968 = vpack.c.bf16 %v1455, %v1451
    %v1969 = vpack.c.bf16 %v1465, %v1461
    %v1970 = vpack.c.bf16 %v1475, %v1471
    %v1971 = vpack.c.bf16 %v1485, %v1481
    %v1972 = vpack.c.bf16 %v1495, %v1491
    %v1973 = vpack.c.bf16 %v1505, %v1501
    %v1974 = vpack.c.bf16 %v1515, %v1511
    %v1975 = vpack.c.bf16 %v1525, %v1521
    %v1976 = vpack.c.bf16 %v1535, %v1531
    %v1977 = vpack.c.bf16 %v1545, %v1541
    %v1978 = vpack.c.bf16 %v1555, %v1551
    %v1979 = vpack.c.bf16 %v1565, %v1561
    %v1980 = vpack.c.bf16 %v1575, %v1571
    %v1981 = vpack.c.bf16 %v1585, %v1581
    %v1982 = vpack.c.bf16 %v1595, %v1591
    %v1983 = vpack.c.bf16 %v1605, %v1601
    %v1984 = vpack.c.bf16 %v1615, %v1611
    %v1985 = vpack.c.bf16 %v1625, %v1621
    %v1986 = vpack.c.bf16 %v1635, %v1631
    %v1987 = vpack.c.bf16 %v1645, %v1641
    %v1988 = vpack.c.bf16 %v1655, %v1651
    %v1989 = vpack.c.bf16 %v1665, %v1661
    %v1990 = vpack.c.bf16 %v1357, %v1353
    %v1991 = vpack.c.bf16 %v1367, %v1363
    %v1992 = vpack.c.bf16 %v1377, %v1373
    %v1993 = vpack.c.bf16 %v1387, %v1383
    %v1994 = vpack.c.bf16 %v1397, %v1393
    %v1995 = vpack.c.bf16 %v1407, %v1403
    %v1996 = vpack.c.bf16 %v1417, %v1413
    %v1997 = vpack.c.bf16 %v1427, %v1423
    %v1998 = vpack.c.bf16 %v1437, %v1433
    %v1999 = vpack.c.bf16 %v1447, %v1443
    %v2000 = vpack.c.bf16 %v1457, %v1453
    %v2001 = vpack.c.bf16 %v1467, %v1463
    %v2002 = vpack.c.bf16 %v1477, %v1473
    %v2003 = vpack.c.bf16 %v1487, %v1483
    %v2004 = vpack.c.bf16 %v1497, %v1493
    %v2005 = vpack.c.bf16 %v1507, %v1503
    %v2006 = vpack.c.bf16 %v1517, %v1513
    %v2007 = vpack.c.bf16 %v1527, %v1523
    %v2008 = vpack.c.bf16 %v1537, %v1533
    %v2009 = vpack.c.bf16 %v1547, %v1543
    %v2010 = vpack.c.bf16 %v1557, %v1553
    %v2011 = vpack.c.bf16 %v1567, %v1563
    %v2012 = vpack.c.bf16 %v1577, %v1573
    %v2013 = vpack.c.bf16 %v1587, %v1583
    %v2014 = vpack.c.bf16 %v1597, %v1593
    %v2015 = vpack.c.bf16 %v1607, %v1603
    %v2016 = vpack.c.bf16 %v1617, %v1613
    %v2017 = vpack.c.bf16 %v1627, %v1623
    %v2018 = vpack.c.bf16 %v1637, %v1633
    %v2019 = vpack.c.bf16 %v1647, %v1643
    %v2020 = vpack.c.bf16 %v1657, %v1653
    %v2021 = vpack.c.bf16 %v1667, %v1663
    %v2022 = vpack.c.bf16 %v1707, %v1704
    %v2023 = vpack.c.bf16 %v1715, %v1712
    %v2024 = vpack.c.bf16 %v1723, %v1720
    %v2025 = vpack.c.bf16 %v1731, %v1728
    %v2026 = vpack.c.bf16 %v1739, %v1736
    %v2027 = vpack.c.bf16 %v1747, %v1744
    %v2028 = vpack.c.bf16 %v1755, %v1752
    %v2029 = vpack.c.bf16 %v1763, %v1760
    %v2030 = vpack.c.bf16 %v1771, %v1768
    %v2031 = vpack.c.bf16 %v1779, %v1776
    %v2032 = vpack.c.bf16 %v1787, %v1784
    %v2033 = vpack.c.bf16 %v1795, %v1792
    %v2034 = vpack.c.bf16 %v1803, %v1800
    %v2035 = vpack.c.bf16 %v1811, %v1808
    %v2036 = vpack.c.bf16 %v1819, %v1816
    %v2037 = vpack.c.bf16 %v1827, %v1824
    %v2038 = vpack.c.bf16 %v1835, %v1832
    %v2039 = vpack.c.bf16 %v1843, %v1840
    %v2040 = vpack.c.bf16 %v1851, %v1848
    %v2041 = vpack.c.bf16 %v1859, %v1856
    %v2042 = vpack.c.bf16 %v1867, %v1864
    %v2043 = vpack.c.bf16 %v1875, %v1872
    %v2044 = vpack.c.bf16 %v1883, %v1880
    %v2045 = vpack.c.bf16 %v1891, %v1888
    %v2046 = vpack.c.bf16 %v1899, %v1896
    %v2047 = vpack.c.bf16 %v1907, %v1904
    %v2048 = vpack.c.bf16 %v1915, %v1912
    %v2049 = vpack.c.bf16 %v1923, %v1920
    %v2050 = vpack.c.bf16 %v1931, %v1928
    %v2051 = vpack.c.bf16 %v1939, %v1936
    %v2052 = vpack.c.bf16 %v1947, %v1944
    %v2053 = vpack.c.bf16 %v1955, %v1952
    %2054 = vmatprep.subr.bf16.mxu0 0
    %2055 = vmatpush1.bf16.xpose.msra.mxu0 %v1990
    %2056 = vmatprep.subr.bf16.mxu0 0
    %2057 = vmatpush1.bf16.xpose.msra.mxu0 %v1991
    %2058 = vmatprep.subr.bf16.mxu0 0
    %2059 = vmatpush1.bf16.xpose.msra.mxu0 %v1992
    %2060 = vmatprep.subr.bf16.mxu0 0
    %2061 = vmatpush1.bf16.xpose.msra.mxu0 %v1993
    %2062 = vmatprep.subr.bf16.mxu0 0
    %2063 = vmatpush1.bf16.xpose.msra.mxu0 0
    %2064 = vmatprep.subr.bf16.mxu0 0
    %2065 = vmatpush1.bf16.xpose.msra.mxu0 0
    %2066 = vmatprep.subr.bf16.mxu0 0
    %2067 = vmatpush1.bf16.xpose.msra.mxu0 0
    %2068 = vmatprep.subr.bf16.mxu0 0
    %2069 = vmatpush1.bf16.xpose.msra.mxu0 0
    %2070 = vmatprep.subr.bf16.mxu0 0
    %2071 = vmatpush1.bf16.xpose.msra.mxu0 0
    %2072 = vmatprep.subr.bf16.mxu0 0
    %2073 = vmatpush1.bf16.xpose.msra.mxu0 0
    %2074 = vmatprep.subr.bf16.mxu0 0
    %2075 = vmatpush1.bf16.xpose.msra.mxu0 0
    %2076 = vmatprep.subr.bf16.mxu0 0
    %2077 = vmatpush1.bf16.xpose.msra.mxu0 0
    %2078 = vmatprep.subr.bf16.mxu0 0
    %2079 = vmatpush1.bf16.xpose.msra.mxu0 0
    %2080 = vmatprep.subr.bf16.mxu0 0
    %2081 = vmatpush1.bf16.xpose.msra.mxu0 0
    %2082 = vmatprep.subr.bf16.mxu0 0
    %2083 = vmatpush1.bf16.xpose.msra.mxu0 0
    %2084 = vmatprep.subr.bf16.mxu0 0
    %2085 = vmatpush1.bf16.xpose.msra.mxu0 0
    %2086 = vmatprep.mubr.bf16.mxu0 0
    %2087 = vmatmul.mubr.bf16.gmra.mrb[0].mxu0 %v1958
    %v2088 = vpop.f32.mrb[0].mxu0
    %v2089 = vadd.f32 0.0, %v2088
    %v2090 = vpop.f32.mrb[0].mxu0
    %v2091 = vpop.f32.mrb[0].mxu0
    %v2092 = vadd.f32 0.0, %v2091
    %v2093 = vpop.f32.mrb[0].mxu0
    %2094 = vmatprep.mubr.bf16.mxu0 0
    %2095 = vmatmul.mubr.bf16.gmra.mrb[0].mxu0 %v1959
    %v2096 = vpop.f32.mrb[0].mxu0
    %v2097 = vadd.f32 0.0, %v2096
    %v2098 = vpop.f32.mrb[0].mxu0
    %v2099 = vpop.f32.mrb[0].mxu0
    %v2100 = vadd.f32 0.0, %v2099
    %v2101 = vpop.f32.mrb[0].mxu0
    %2102 = vmatprep.mubr.bf16.mxu0 0
    %2103 = vmatmul.mubr.bf16.gmra.mrb[0].mxu0 %v1960
    %v2104 = vpop.f32.mrb[0].mxu0
    %v2105 = vadd.f32 0.0, %v2104
    %v2106 = vpop.f32.mrb[0].mxu0
    %v2107 = vpop.f32.mrb[0].mxu0
    %v2108 = vadd.f32 0.0, %v2107
    %v2109 = vpop.f32.mrb[0].mxu0
    %2110 = vmatprep.mubr.bf16.mxu0 0
    %2111 = vmatmul.mubr.bf16.gmra.mrb[0].mxu0 %v1961
    %v2112 = vpop.f32.mrb[0].mxu0
    %v2113 = vadd.f32 0.0, %v2112
    %v2114 = vpop.f32.mrb[0].mxu0
    %v2115 = vpop.f32.mrb[0].mxu0
    %v2116 = vadd.f32 0.0, %v2115
    %v2117 = vpop.f32.mrb[0].mxu0
    %2118 = vdwg.mxu0
    %2119 = vmatprep.subr.bf16.mxu0 0
    %2120 = vmatpush1.bf16.xpose.msra.mxu0 %v1994
    %2121 = vmatprep.subr.bf16.mxu0 0
    %2122 = vmatpush1.bf16.xpose.msra.mxu0 %v1995
    %2123 = vmatprep.subr.bf16.mxu0 0
    %2124 = vmatpush1.bf16.xpose.msra.mxu0 %v1996
    %2125 = vmatprep.subr.bf16.mxu0 0
    %2126 = vmatpush1.bf16.xpose.msra.mxu0 %v1997
    %2127 = vmatprep.subr.bf16.mxu0 0
    %2128 = vmatpush1.bf16.xpose.msra.mxu0 0
    %2129 = vmatprep.subr.bf16.mxu0 0
    %2130 = vmatpush1.bf16.xpose.msra.mxu0 0
    %2131 = vmatprep.subr.bf16.mxu0 0
    %2132 = vmatpush1.bf16.xpose.msra.mxu0 0
    %2133 = vmatprep.subr.bf16.mxu0 0
    %2134 = vmatpush1.bf16.xpose.msra.mxu0 0
    %2135 = vmatprep.subr.bf16.mxu0 0
    %2136 = vmatpush1.bf16.xpose.msra.mxu0 0
    %2137 = vmatprep.subr.bf16.mxu0 0
    %2138 = vmatpush1.bf16.xpose.msra.mxu0 0
    %2139 = vmatprep.subr.bf16.mxu0 0
    %2140 = vmatpush1.bf16.xpose.msra.mxu0 0
    %2141 = vmatprep.subr.bf16.mxu0 0
    %2142 = vmatpush1.bf16.xpose.msra.mxu0 0
    %2143 = vmatprep.subr.bf16.mxu0 0
    %2144 = vmatpush1.bf16.xpose.msra.mxu0 0
    %2145 = vmatprep.subr.bf16.mxu0 0
    %2146 = vmatpush1.bf16.xpose.msra.mxu0 0
    %2147 = vmatprep.subr.bf16.mxu0 0
    %2148 = vmatpush1.bf16.xpose.msra.mxu0 0
    %2149 = vmatprep.subr.bf16.mxu0 0
    %2150 = vmatpush1.bf16.xpose.msra.mxu0 0
    %2151 = vmatprep.mubr.bf16.mxu0 0
    %2152 = vmatmul.mubr.bf16.gmra.mrb[0].mxu0 %v1962
    %v2153 = vpop.f32.mrb[0].mxu0
    %v2154 = vadd.f32 0.0, %v2153
    %v2155 = vpop.f32.mrb[0].mxu0
    %v2156 = vpop.f32.mrb[0].mxu0
    %v2157 = vadd.f32 0.0, %v2156
    %v2158 = vpop.f32.mrb[0].mxu0
    %2159 = vmatprep.mubr.bf16.mxu0 0
    %2160 = vmatmul.mubr.bf16.gmra.mrb[0].mxu0 %v1963
    %v2161 = vpop.f32.mrb[0].mxu0
    %v2162 = vadd.f32 0.0, %v2161
    %v2163 = vpop.f32.mrb[0].mxu0
    %v2164 = vpop.f32.mrb[0].mxu0
    %v2165 = vadd.f32 0.0, %v2164
    %v2166 = vpop.f32.mrb[0].mxu0
    %2167 = vmatprep.mubr.bf16.mxu0 0
    %2168 = vmatmul.mubr.bf16.gmra.mrb[0].mxu0 %v1964
    %v2169 = vpop.f32.mrb[0].mxu0
    %v2170 = vadd.f32 0.0, %v2169
    %v2171 = vpop.f32.mrb[0].mxu0
    %v2172 = vpop.f32.mrb[0].mxu0
    %v2173 = vadd.f32 0.0, %v2172
    %v2174 = vpop.f32.mrb[0].mxu0
    %2175 = vmatprep.mubr.bf16.mxu0 0
    %2176 = vmatmul.mubr.bf16.gmra.mrb[0].mxu0 %v1965
    %v2177 = vpop.f32.mrb[0].mxu0
    %v2178 = vadd.f32 0.0, %v2177
    %v2179 = vpop.f32.mrb[0].mxu0
    %v2180 = vpop.f32.mrb[0].mxu0
    %v2181 = vadd.f32 0.0, %v2180
    %v2182 = vpop.f32.mrb[0].mxu0
    %2183 = vdwg.mxu0
    %2184 = vmatprep.subr.bf16.mxu0 0
    %2185 = vmatpush1.bf16.xpose.msra.mxu0 %v1998
    %2186 = vmatprep.subr.bf16.mxu0 0
    %2187 = vmatpush1.bf16.xpose.msra.mxu0 %v1999
    %2188 = vmatprep.subr.bf16.mxu0 0
    %2189 = vmatpush1.bf16.xpose.msra.mxu0 %v2000
    %2190 = vmatprep.subr.bf16.mxu0 0
    %2191 = vmatpush1.bf16.xpose.msra.mxu0 %v2001
    %2192 = vmatprep.subr.bf16.mxu0 0
    %2193 = vmatpush1.bf16.xpose.msra.mxu0 0
    %2194 = vmatprep.subr.bf16.mxu0 0
    %2195 = vmatpush1.bf16.xpose.msra.mxu0 0
    %2196 = vmatprep.subr.bf16.mxu0 0
    %2197 = vmatpush1.bf16.xpose.msra.mxu0 0
    %2198 = vmatprep.subr.bf16.mxu0 0
    %2199 = vmatpush1.bf16.xpose.msra.mxu0 0
    %2200 = vmatprep.subr.bf16.mxu0 0
    %2201 = vmatpush1.bf16.xpose.msra.mxu0 0
    %2202 = vmatprep.subr.bf16.mxu0 0
    %2203 = vmatpush1.bf16.xpose.msra.mxu0 0
    %2204 = vmatprep.subr.bf16.mxu0 0
    %2205 = vmatpush1.bf16.xpose.msra.mxu0 0
    %2206 = vmatprep.subr.bf16.mxu0 0
    %2207 = vmatpush1.bf16.xpose.msra.mxu0 0
    %2208 = vmatprep.subr.bf16.mxu0 0
    %2209 = vmatpush1.bf16.xpose.msra.mxu0 0
    %2210 = vmatprep.subr.bf16.mxu0 0
    %2211 = vmatpush1.bf16.xpose.msra.mxu0 0
    %2212 = vmatprep.subr.bf16.mxu0 0
    %2213 = vmatpush1.bf16.xpose.msra.mxu0 0
    %2214 = vmatprep.subr.bf16.mxu0 0
    %2215 = vmatpush1.bf16.xpose.msra.mxu0 0
    %2216 = vmatprep.mubr.bf16.mxu0 0
    %2217 = vmatmul.mubr.bf16.gmra.mrb[0].mxu0 %v1966
    %v2218 = vpop.f32.mrb[0].mxu0
    %v2219 = vadd.f32 0.0, %v2218
    %v2220 = vpop.f32.mrb[0].mxu0
    %v2221 = vpop.f32.mrb[0].mxu0
    %v2222 = vadd.f32 0.0, %v2221
    %v2223 = vpop.f32.mrb[0].mxu0
    %2224 = vmatprep.mubr.bf16.mxu0 0
    %2225 = vmatmul.mubr.bf16.gmra.mrb[0].mxu0 %v1967
    %v2226 = vpop.f32.mrb[0].mxu0
    %v2227 = vadd.f32 0.0, %v2226
    %v2228 = vpop.f32.mrb[0].mxu0
    %v2229 = vpop.f32.mrb[0].mxu0
    %v2230 = vadd.f32 0.0, %v2229
    %v2231 = vpop.f32.mrb[0].mxu0
    %2232 = vmatprep.mubr.bf16.mxu0 0
    %2233 = vmatmul.mubr.bf16.gmra.mrb[0].mxu0 %v1968
    %v2234 = vpop.f32.mrb[0].mxu0
    %v2235 = vadd.f32 0.0, %v2234
    %v2236 = vpop.f32.mrb[0].mxu0
    %v2237 = vpop.f32.mrb[0].mxu0
    %v2238 = vadd.f32 0.0, %v2237
    %v2239 = vpop.f32.mrb[0].mxu0
    %2240 = vmatprep.mubr.bf16.mxu0 0
    %2241 = vmatmul.mubr.bf16.gmra.mrb[0].mxu0 %v1969
    %v2242 = vpop.f32.mrb[0].mxu0
    %v2243 = vadd.f32 0.0, %v2242
    %v2244 = vpop.f32.mrb[0].mxu0
    %v2245 = vpop.f32.mrb[0].mxu0
    %v2246 = vadd.f32 0.0, %v2245
    %v2247 = vpop.f32.mrb[0].mxu0
    %2248 = vdwg.mxu0
    %2249 = vmatprep.subr.bf16.mxu0 0
    %2250 = vmatpush1.bf16.xpose.msra.mxu0 %v2002
    %2251 = vmatprep.subr.bf16.mxu0 0
    %2252 = vmatpush1.bf16.xpose.msra.mxu0 %v2003
    %2253 = vmatprep.subr.bf16.mxu0 0
    %2254 = vmatpush1.bf16.xpose.msra.mxu0 %v2004
    %2255 = vmatprep.subr.bf16.mxu0 0
    %2256 = vmatpush1.bf16.xpose.msra.mxu0 %v2005
    %2257 = vmatprep.subr.bf16.mxu0 0
    %2258 = vmatpush1.bf16.xpose.msra.mxu0 0
    %2259 = vmatprep.subr.bf16.mxu0 0
    %2260 = vmatpush1.bf16.xpose.msra.mxu0 0
    %2261 = vmatprep.subr.bf16.mxu0 0
    %2262 = vmatpush1.bf16.xpose.msra.mxu0 0
    %2263 = vmatprep.subr.bf16.mxu0 0
    %2264 = vmatpush1.bf16.xpose.msra.mxu0 0
    %2265 = vmatprep.subr.bf16.mxu0 0
    %2266 = vmatpush1.bf16.xpose.msra.mxu0 0
    %2267 = vmatprep.subr.bf16.mxu0 0
    %2268 = vmatpush1.bf16.xpose.msra.mxu0 0
    %2269 = vmatprep.subr.bf16.mxu0 0
    %2270 = vmatpush1.bf16.xpose.msra.mxu0 0
    %2271 = vmatprep.subr.bf16.mxu0 0
    %2272 = vmatpush1.bf16.xpose.msra.mxu0 0
    %2273 = vmatprep.subr.bf16.mxu0 0
    %2274 = vmatpush1.bf16.xpose.msra.mxu0 0
    %2275 = vmatprep.subr.bf16.mxu0 0
    %2276 = vmatpush1.bf16.xpose.msra.mxu0 0
    %2277 = vmatprep.subr.bf16.mxu0 0
    %2278 = vmatpush1.bf16.xpose.msra.mxu0 0
    %2279 = vmatprep.subr.bf16.mxu0 0
    %2280 = vmatpush1.bf16.xpose.msra.mxu0 0
    %2281 = vmatprep.mubr.bf16.mxu0 0
    %2282 = vmatmul.mubr.bf16.gmra.mrb[0].mxu0 %v1970
    %v2283 = vpop.f32.mrb[0].mxu0
    %v2284 = vadd.f32 0.0, %v2283
    %v2285 = vpop.f32.mrb[0].mxu0
    %v2286 = vpop.f32.mrb[0].mxu0
    %v2287 = vadd.f32 0.0, %v2286
    %v2288 = vpop.f32.mrb[0].mxu0
    %2289 = vmatprep.mubr.bf16.mxu0 0
    %2290 = vmatmul.mubr.bf16.gmra.mrb[0].mxu0 %v1971
    %v2291 = vpop.f32.mrb[0].mxu0
    %v2292 = vadd.f32 0.0, %v2291
    %v2293 = vpop.f32.mrb[0].mxu0
    %v2294 = vpop.f32.mrb[0].mxu0
    %v2295 = vadd.f32 0.0, %v2294
    %v2296 = vpop.f32.mrb[0].mxu0
    %2297 = vmatprep.mubr.bf16.mxu0 0
    %2298 = vmatmul.mubr.bf16.gmra.mrb[0].mxu0 %v1972
    %v2299 = vpop.f32.mrb[0].mxu0
    %v2300 = vadd.f32 0.0, %v2299
    %v2301 = vpop.f32.mrb[0].mxu0
    %v2302 = vpop.f32.mrb[0].mxu0
    %v2303 = vadd.f32 0.0, %v2302
    %v2304 = vpop.f32.mrb[0].mxu0
    %2305 = vmatprep.mubr.bf16.mxu0 0
    %2306 = vmatmul.mubr.bf16.gmra.mrb[0].mxu0 %v1973
    %v2307 = vpop.f32.mrb[0].mxu0
    %v2308 = vadd.f32 0.0, %v2307
    %v2309 = vpop.f32.mrb[0].mxu0
    %v2310 = vpop.f32.mrb[0].mxu0
    %v2311 = vadd.f32 0.0, %v2310
    %v2312 = vpop.f32.mrb[0].mxu0
    %2313 = vdwg.mxu0
    %2314 = vmatprep.subr.bf16.mxu0 0
    %2315 = vmatpush1.bf16.xpose.msra.mxu0 %v2006
    %2316 = vmatprep.subr.bf16.mxu0 0
    %2317 = vmatpush1.bf16.xpose.msra.mxu0 %v2007
    %2318 = vmatprep.subr.bf16.mxu0 0
    %2319 = vmatpush1.bf16.xpose.msra.mxu0 %v2008
    %2320 = vmatprep.subr.bf16.mxu0 0
    %2321 = vmatpush1.bf16.xpose.msra.mxu0 %v2009
    %2322 = vmatprep.subr.bf16.mxu0 0
    %2323 = vmatpush1.bf16.xpose.msra.mxu0 0
    %2324 = vmatprep.subr.bf16.mxu0 0
    %2325 = vmatpush1.bf16.xpose.msra.mxu0 0
    %2326 = vmatprep.subr.bf16.mxu0 0
    %2327 = vmatpush1.bf16.xpose.msra.mxu0 0
    %2328 = vmatprep.subr.bf16.mxu0 0
    %2329 = vmatpush1.bf16.xpose.msra.mxu0 0
    %2330 = vmatprep.subr.bf16.mxu0 0
    %2331 = vmatpush1.bf16.xpose.msra.mxu0 0
    %2332 = vmatprep.subr.bf16.mxu0 0
    %2333 = vmatpush1.bf16.xpose.msra.mxu0 0
    %2334 = vmatprep.subr.bf16.mxu0 0
    %2335 = vmatpush1.bf16.xpose.msra.mxu0 0
    %2336 = vmatprep.subr.bf16.mxu0 0
    %2337 = vmatpush1.bf16.xpose.msra.mxu0 0
    %2338 = vmatprep.subr.bf16.mxu0 0
    %2339 = vmatpush1.bf16.xpose.msra.mxu0 0
    %2340 = vmatprep.subr.bf16.mxu0 0
    %2341 = vmatpush1.bf16.xpose.msra.mxu0 0
    %2342 = vmatprep.subr.bf16.mxu0 0
    %2343 = vmatpush1.bf16.xpose.msra.mxu0 0
    %2344 = vmatprep.subr.bf16.mxu0 0
    %2345 = vmatpush1.bf16.xpose.msra.mxu0 0
    %2346 = vmatprep.mubr.bf16.mxu0 0
    %2347 = vmatmul.mubr.bf16.gmra.mrb[0].mxu0 %v1974
    %v2348 = vpop.f32.mrb[0].mxu0
    %v2349 = vadd.f32 0.0, %v2348
    %v2350 = vpop.f32.mrb[0].mxu0
    %v2351 = vpop.f32.mrb[0].mxu0
    %v2352 = vadd.f32 0.0, %v2351
    %v2353 = vpop.f32.mrb[0].mxu0
    %2354 = vmatprep.mubr.bf16.mxu0 0
    %2355 = vmatmul.mubr.bf16.gmra.mrb[0].mxu0 %v1975
    %v2356 = vpop.f32.mrb[0].mxu0
    %v2357 = vadd.f32 0.0, %v2356
    %v2358 = vpop.f32.mrb[0].mxu0
    %v2359 = vpop.f32.mrb[0].mxu0
    %v2360 = vadd.f32 0.0, %v2359
    %v2361 = vpop.f32.mrb[0].mxu0
    %2362 = vmatprep.mubr.bf16.mxu0 0
    %2363 = vmatmul.mubr.bf16.gmra.mrb[0].mxu0 %v1976
    %v2364 = vpop.f32.mrb[0].mxu0
    %v2365 = vadd.f32 0.0, %v2364
    %v2366 = vpop.f32.mrb[0].mxu0
    %v2367 = vpop.f32.mrb[0].mxu0
    %v2368 = vadd.f32 0.0, %v2367
    %v2369 = vpop.f32.mrb[0].mxu0
    %2370 = vmatprep.mubr.bf16.mxu0 0
    %2371 = vmatmul.mubr.bf16.gmra.mrb[0].mxu0 %v1977
    %v2372 = vpop.f32.mrb[0].mxu0
    %v2373 = vadd.f32 0.0, %v2372
    %v2374 = vpop.f32.mrb[0].mxu0
    %v2375 = vpop.f32.mrb[0].mxu0
    %v2376 = vadd.f32 0.0, %v2375
    %v2377 = vpop.f32.mrb[0].mxu0
    %2378 = vdwg.mxu0
    %2379 = vmatprep.subr.bf16.mxu0 0
    %2380 = vmatpush1.bf16.xpose.msra.mxu0 %v2010
    %2381 = vmatprep.subr.bf16.mxu0 0
    %2382 = vmatpush1.bf16.xpose.msra.mxu0 %v2011
    %2383 = vmatprep.subr.bf16.mxu0 0
    %2384 = vmatpush1.bf16.xpose.msra.mxu0 %v2012
    %2385 = vmatprep.subr.bf16.mxu0 0
    %2386 = vmatpush1.bf16.xpose.msra.mxu0 %v2013
    %2387 = vmatprep.subr.bf16.mxu0 0
    %2388 = vmatpush1.bf16.xpose.msra.mxu0 0
    %2389 = vmatprep.subr.bf16.mxu0 0
    %2390 = vmatpush1.bf16.xpose.msra.mxu0 0
    %2391 = vmatprep.subr.bf16.mxu0 0
    %2392 = vmatpush1.bf16.xpose.msra.mxu0 0
    %2393 = vmatprep.subr.bf16.mxu0 0
    %2394 = vmatpush1.bf16.xpose.msra.mxu0 0
    %2395 = vmatprep.subr.bf16.mxu0 0
    %2396 = vmatpush1.bf16.xpose.msra.mxu0 0
    %2397 = vmatprep.subr.bf16.mxu0 0
    %2398 = vmatpush1.bf16.xpose.msra.mxu0 0
    %2399 = vmatprep.subr.bf16.mxu0 0
    %2400 = vmatpush1.bf16.xpose.msra.mxu0 0
    %2401 = vmatprep.subr.bf16.mxu0 0
    %2402 = vmatpush1.bf16.xpose.msra.mxu0 0
    %2403 = vmatprep.subr.bf16.mxu0 0
    %2404 = vmatpush1.bf16.xpose.msra.mxu0 0
    %2405 = vmatprep.subr.bf16.mxu0 0
    %2406 = vmatpush1.bf16.xpose.msra.mxu0 0
    %2407 = vmatprep.subr.bf16.mxu0 0
    %2408 = vmatpush1.bf16.xpose.msra.mxu0 0
    %2409 = vmatprep.subr.bf16.mxu0 0
    %2410 = vmatpush1.bf16.xpose.msra.mxu0 0
    %2411 = vmatprep.mubr.bf16.mxu0 0
    %2412 = vmatmul.mubr.bf16.gmra.mrb[0].mxu0 %v1978
    %v2413 = vpop.f32.mrb[0].mxu0
    %v2414 = vadd.f32 0.0, %v2413
    %v2415 = vpop.f32.mrb[0].mxu0
    %v2416 = vpop.f32.mrb[0].mxu0
    %v2417 = vadd.f32 0.0, %v2416
    %v2418 = vpop.f32.mrb[0].mxu0
    %2419 = vmatprep.mubr.bf16.mxu0 0
    %2420 = vmatmul.mubr.bf16.gmra.mrb[0].mxu0 %v1979
    %v2421 = vpop.f32.mrb[0].mxu0
    %v2422 = vadd.f32 0.0, %v2421
    %v2423 = vpop.f32.mrb[0].mxu0
    %v2424 = vpop.f32.mrb[0].mxu0
    %v2425 = vadd.f32 0.0, %v2424
    %v2426 = vpop.f32.mrb[0].mxu0
    %2427 = vmatprep.mubr.bf16.mxu0 0
    %2428 = vmatmul.mubr.bf16.gmra.mrb[0].mxu0 %v1980
    %v2429 = vpop.f32.mrb[0].mxu0
    %v2430 = vadd.f32 0.0, %v2429
    %v2431 = vpop.f32.mrb[0].mxu0
    %v2432 = vpop.f32.mrb[0].mxu0
    %v2433 = vadd.f32 0.0, %v2432
    %v2434 = vpop.f32.mrb[0].mxu0
    %2435 = vmatprep.mubr.bf16.mxu0 0
    %2436 = vmatmul.mubr.bf16.gmra.mrb[0].mxu0 %v1981
    %v2437 = vpop.f32.mrb[0].mxu0
    %v2438 = vadd.f32 0.0, %v2437
    %v2439 = vpop.f32.mrb[0].mxu0
    %v2440 = vpop.f32.mrb[0].mxu0
    %v2441 = vadd.f32 0.0, %v2440
    %v2442 = vpop.f32.mrb[0].mxu0
    %2443 = vdwg.mxu0
    %2444 = vmatprep.subr.bf16.mxu0 0
    %2445 = vmatpush1.bf16.xpose.msra.mxu0 %v2014
    %2446 = vmatprep.subr.bf16.mxu0 0
    %2447 = vmatpush1.bf16.xpose.msra.mxu0 %v2015
    %2448 = vmatprep.subr.bf16.mxu0 0
    %2449 = vmatpush1.bf16.xpose.msra.mxu0 %v2016
    %2450 = vmatprep.subr.bf16.mxu0 0
    %2451 = vmatpush1.bf16.xpose.msra.mxu0 %v2017
    %2452 = vmatprep.subr.bf16.mxu0 0
    %2453 = vmatpush1.bf16.xpose.msra.mxu0 0
    %2454 = vmatprep.subr.bf16.mxu0 0
    %2455 = vmatpush1.bf16.xpose.msra.mxu0 0
    %2456 = vmatprep.subr.bf16.mxu0 0
    %2457 = vmatpush1.bf16.xpose.msra.mxu0 0
    %2458 = vmatprep.subr.bf16.mxu0 0
    %2459 = vmatpush1.bf16.xpose.msra.mxu0 0
    %2460 = vmatprep.subr.bf16.mxu0 0
    %2461 = vmatpush1.bf16.xpose.msra.mxu0 0
    %2462 = vmatprep.subr.bf16.mxu0 0
    %2463 = vmatpush1.bf16.xpose.msra.mxu0 0
    %2464 = vmatprep.subr.bf16.mxu0 0
    %2465 = vmatpush1.bf16.xpose.msra.mxu0 0
    %2466 = vmatprep.subr.bf16.mxu0 0
    %2467 = vmatpush1.bf16.xpose.msra.mxu0 0
    %2468 = vmatprep.subr.bf16.mxu0 0
    %2469 = vmatpush1.bf16.xpose.msra.mxu0 0
    %2470 = vmatprep.subr.bf16.mxu0 0
    %2471 = vmatpush1.bf16.xpose.msra.mxu0 0
    %2472 = vmatprep.subr.bf16.mxu0 0
    %2473 = vmatpush1.bf16.xpose.msra.mxu0 0
    %2474 = vmatprep.subr.bf16.mxu0 0
    %2475 = vmatpush1.bf16.xpose.msra.mxu0 0
    %2476 = vmatprep.mubr.bf16.mxu0 0
    %2477 = vmatmul.mubr.bf16.gmra.mrb[0].mxu0 %v1982
    %v2478 = vpop.f32.mrb[0].mxu0
    %v2479 = vadd.f32 0.0, %v2478
    %v2480 = vpop.f32.mrb[0].mxu0
    %v2481 = vpop.f32.mrb[0].mxu0
    %v2482 = vadd.f32 0.0, %v2481
    %v2483 = vpop.f32.mrb[0].mxu0
    %2484 = vmatprep.mubr.bf16.mxu0 0
    %2485 = vmatmul.mubr.bf16.gmra.mrb[0].mxu0 %v1983
    %v2486 = vpop.f32.mrb[0].mxu0
    %v2487 = vadd.f32 0.0, %v2486
    %v2488 = vpop.f32.mrb[0].mxu0
    %v2489 = vpop.f32.mrb[0].mxu0
    %v2490 = vadd.f32 0.0, %v2489
    %v2491 = vpop.f32.mrb[0].mxu0
    %2492 = vmatprep.mubr.bf16.mxu0 0
    %2493 = vmatmul.mubr.bf16.gmra.mrb[0].mxu0 %v1984
    %v2494 = vpop.f32.mrb[0].mxu0
    %v2495 = vadd.f32 0.0, %v2494
    %v2496 = vpop.f32.mrb[0].mxu0
    %v2497 = vpop.f32.mrb[0].mxu0
    %v2498 = vadd.f32 0.0, %v2497
    %v2499 = vpop.f32.mrb[0].mxu0
    %2500 = vmatprep.mubr.bf16.mxu0 0
    %2501 = vmatmul.mubr.bf16.gmra.mrb[0].mxu0 %v1985
    %v2502 = vpop.f32.mrb[0].mxu0
    %v2503 = vadd.f32 0.0, %v2502
    %v2504 = vpop.f32.mrb[0].mxu0
    %v2505 = vpop.f32.mrb[0].mxu0
    %v2506 = vadd.f32 0.0, %v2505
    %v2507 = vpop.f32.mrb[0].mxu0
    %2508 = vdwg.mxu0
    %2509 = vmatprep.subr.bf16.mxu0 0
    %2510 = vmatpush1.bf16.xpose.msra.mxu0 %v2018
    %2511 = vmatprep.subr.bf16.mxu0 0
    %2512 = vmatpush1.bf16.xpose.msra.mxu0 %v2019
    %2513 = vmatprep.subr.bf16.mxu0 0
    %2514 = vmatpush1.bf16.xpose.msra.mxu0 %v2020
    %2515 = vmatprep.subr.bf16.mxu0 0
    %2516 = vmatpush1.bf16.xpose.msra.mxu0 %v2021
    %2517 = vmatprep.subr.bf16.mxu0 0
    %2518 = vmatpush1.bf16.xpose.msra.mxu0 0
    %2519 = vmatprep.subr.bf16.mxu0 0
    %2520 = vmatpush1.bf16.xpose.msra.mxu0 0
    %2521 = vmatprep.subr.bf16.mxu0 0
    %2522 = vmatpush1.bf16.xpose.msra.mxu0 0
    %2523 = vmatprep.subr.bf16.mxu0 0
    %2524 = vmatpush1.bf16.xpose.msra.mxu0 0
    %2525 = vmatprep.subr.bf16.mxu0 0
    %2526 = vmatpush1.bf16.xpose.msra.mxu0 0
    %2527 = vmatprep.subr.bf16.mxu0 0
    %2528 = vmatpush1.bf16.xpose.msra.mxu0 0
    %2529 = vmatprep.subr.bf16.mxu0 0
    %2530 = vmatpush1.bf16.xpose.msra.mxu0 0
    %2531 = vmatprep.subr.bf16.mxu0 0
    %2532 = vmatpush1.bf16.xpose.msra.mxu0 0
    %2533 = vmatprep.subr.bf16.mxu0 0
    %2534 = vmatpush1.bf16.xpose.msra.mxu0 0
    %2535 = vmatprep.subr.bf16.mxu0 0
    %2536 = vmatpush1.bf16.xpose.msra.mxu0 0
    %2537 = vmatprep.subr.bf16.mxu0 0
    %2538 = vmatpush1.bf16.xpose.msra.mxu0 0
    %2539 = vmatprep.subr.bf16.mxu0 0
    %2540 = vmatpush1.bf16.xpose.msra.mxu0 0
    %2541 = vmatprep.mubr.bf16.mxu0 0
    %2542 = vmatmul.mubr.bf16.gmra.mrb[0].mxu0 %v1986
    %v2543 = vpop.f32.mrb[0].mxu0
    %v2544 = vadd.f32 0.0, %v2543
    %v2545 = vpop.f32.mrb[0].mxu0
    %v2546 = vpop.f32.mrb[0].mxu0
    %v2547 = vadd.f32 0.0, %v2546
    %v2548 = vpop.f32.mrb[0].mxu0
    %2549 = vmatprep.mubr.bf16.mxu0 0
    %2550 = vmatmul.mubr.bf16.gmra.mrb[0].mxu0 %v1987
    %v2551 = vpop.f32.mrb[0].mxu0
    %v2552 = vadd.f32 0.0, %v2551
    %v2553 = vpop.f32.mrb[0].mxu0
    %v2554 = vpop.f32.mrb[0].mxu0
    %v2555 = vadd.f32 0.0, %v2554
    %v2556 = vpop.f32.mrb[0].mxu0
    %2557 = vmatprep.mubr.bf16.mxu0 0
    %2558 = vmatmul.mubr.bf16.gmra.mrb[0].mxu0 %v1988
    %v2559 = vpop.f32.mrb[0].mxu0
    %v2560 = vadd.f32 0.0, %v2559
    %v2561 = vpop.f32.mrb[0].mxu0
    %v2562 = vpop.f32.mrb[0].mxu0
    %v2563 = vadd.f32 0.0, %v2562
    %v2564 = vpop.f32.mrb[0].mxu0
    %2565 = vmatprep.mubr.bf16.mxu0 0
    %2566 = vmatmul.mubr.bf16.gmra.mrb[0].mxu0 %v1989
    %v2567 = vpop.f32.mrb[0].mxu0
    %v2568 = vadd.f32 0.0, %v2567
    %v2569 = vpop.f32.mrb[0].mxu0
    %v2570 = vpop.f32.mrb[0].mxu0
    %v2571 = vadd.f32 0.0, %v2570
    %v2572 = vpop.f32.mrb[0].mxu0
    %2573 = vdwg.mxu0
    %vm2574 = vcmask 523264
    %v2575 = vsel %vm2574, %v2089, -inf
    %2576 = vmax.xlane.f32.xlu0 %v2575
    %v2577 = vpop.xlane.xlu0 %2576
    %v2578 = vsel %vm2574, %v2092, -inf
    %2579 = vmax.xlane.f32.xlu0 %v2578
    %v2580 = vpop.xlane.xlu0 %2579
    %v2581 = vsel %vm2574, %v2097, -inf
    %2582 = vmax.xlane.f32.xlu0 %v2581
    %v2583 = vpop.xlane.xlu0 %2582
    %v2584 = vsel %vm2574, %v2100, -inf
    %2585 = vmax.xlane.f32.xlu0 %v2584
    %v2586 = vpop.xlane.xlu0 %2585
    %v2587 = vsel %vm2574, %v2105, -inf
    %2588 = vmax.xlane.f32.xlu0 %v2587
    %v2589 = vpop.xlane.xlu0 %2588
    %v2590 = vsel %vm2574, %v2108, -inf
    %2591 = vmax.xlane.f32.xlu0 %v2590
    %v2592 = vpop.xlane.xlu0 %2591
    %v2593 = vsel %vm2574, %v2113, -inf
    %2594 = vmax.xlane.f32.xlu0 %v2593
    %v2595 = vpop.xlane.xlu0 %2594
    %v2596 = vsel %vm2574, %v2116, -inf
    %2597 = vmax.xlane.f32.xlu0 %v2596
    %v2598 = vpop.xlane.xlu0 %2597
    %v2599 = vsel %vm2574, %v2154, -inf
    %2600 = vmax.xlane.f32.xlu0 %v2599
    %v2601 = vpop.xlane.xlu0 %2600
    %v2602 = vsel %vm2574, %v2157, -inf
    %2603 = vmax.xlane.f32.xlu0 %v2602
    %v2604 = vpop.xlane.xlu0 %2603
    %v2605 = vsel %vm2574, %v2162, -inf
    %2606 = vmax.xlane.f32.xlu0 %v2605
    %v2607 = vpop.xlane.xlu0 %2606
    %v2608 = vsel %vm2574, %v2165, -inf
    %2609 = vmax.xlane.f32.xlu0 %v2608
    %v2610 = vpop.xlane.xlu0 %2609
    %v2611 = vsel %vm2574, %v2170, -inf
    %2612 = vmax.xlane.f32.xlu0 %v2611
    %v2613 = vpop.xlane.xlu0 %2612
    %v2614 = vsel %vm2574, %v2173, -inf
    %2615 = vmax.xlane.f32.xlu0 %v2614
    %v2616 = vpop.xlane.xlu0 %2615
    %v2617 = vsel %vm2574, %v2178, -inf
    %2618 = vmax.xlane.f32.xlu0 %v2617
    %v2619 = vpop.xlane.xlu0 %2618
    %v2620 = vsel %vm2574, %v2181, -inf
    %2621 = vmax.xlane.f32.xlu0 %v2620
    %v2622 = vpop.xlane.xlu0 %2621
    %v2623 = vsel %vm2574, %v2219, -inf
    %2624 = vmax.xlane.f32.xlu0 %v2623
    %v2625 = vpop.xlane.xlu0 %2624
    %v2626 = vsel %vm2574, %v2222, -inf
    %2627 = vmax.xlane.f32.xlu0 %v2626
    %v2628 = vpop.xlane.xlu0 %2627
    %v2629 = vsel %vm2574, %v2227, -inf
    %2630 = vmax.xlane.f32.xlu0 %v2629
    %v2631 = vpop.xlane.xlu0 %2630
    %v2632 = vsel %vm2574, %v2230, -inf
    %2633 = vmax.xlane.f32.xlu0 %v2632
    %v2634 = vpop.xlane.xlu0 %2633
    %v2635 = vsel %vm2574, %v2235, -inf
    %2636 = vmax.xlane.f32.xlu0 %v2635
    %v2637 = vpop.xlane.xlu0 %2636
    %v2638 = vsel %vm2574, %v2238, -inf
    %2639 = vmax.xlane.f32.xlu0 %v2638
    %v2640 = vpop.xlane.xlu0 %2639
    %v2641 = vsel %vm2574, %v2243, -inf
    %2642 = vmax.xlane.f32.xlu0 %v2641
    %v2643 = vpop.xlane.xlu0 %2642
    %v2644 = vsel %vm2574, %v2246, -inf
    %2645 = vmax.xlane.f32.xlu0 %v2644
    %v2646 = vpop.xlane.xlu0 %2645
    %v2647 = vsel %vm2574, %v2284, -inf
    %2648 = vmax.xlane.f32.xlu0 %v2647
    %v2649 = vpop.xlane.xlu0 %2648
    %v2650 = vsel %vm2574, %v2287, -inf
    %2651 = vmax.xlane.f32.xlu0 %v2650
    %v2652 = vpop.xlane.xlu0 %2651
    %v2653 = vsel %vm2574, %v2292, -inf
    %2654 = vmax.xlane.f32.xlu0 %v2653
    %v2655 = vpop.xlane.xlu0 %2654
    %v2656 = vsel %vm2574, %v2295, -inf
    %2657 = vmax.xlane.f32.xlu0 %v2656
    %v2658 = vpop.xlane.xlu0 %2657
    %v2659 = vsel %vm2574, %v2300, -inf
    %2660 = vmax.xlane.f32.xlu0 %v2659
    %v2661 = vpop.xlane.xlu0 %2660
    %v2662 = vsel %vm2574, %v2303, -inf
    %2663 = vmax.xlane.f32.xlu0 %v2662
    %v2664 = vpop.xlane.xlu0 %2663
    %v2665 = vsel %vm2574, %v2308, -inf
    %2666 = vmax.xlane.f32.xlu0 %v2665
    %v2667 = vpop.xlane.xlu0 %2666
    %v2668 = vsel %vm2574, %v2311, -inf
    %2669 = vmax.xlane.f32.xlu0 %v2668
    %v2670 = vpop.xlane.xlu0 %2669
    %v2671 = vsel %vm2574, %v2349, -inf
    %2672 = vmax.xlane.f32.xlu0 %v2671
    %v2673 = vpop.xlane.xlu0 %2672
    %v2674 = vsel %vm2574, %v2352, -inf
    %2675 = vmax.xlane.f32.xlu0 %v2674
    %v2676 = vpop.xlane.xlu0 %2675
    %v2677 = vsel %vm2574, %v2357, -inf
    %2678 = vmax.xlane.f32.xlu0 %v2677
    %v2679 = vpop.xlane.xlu0 %2678
    %v2680 = vsel %vm2574, %v2360, -inf
    %2681 = vmax.xlane.f32.xlu0 %v2680
    %v2682 = vpop.xlane.xlu0 %2681
    %v2683 = vsel %vm2574, %v2365, -inf
    %2684 = vmax.xlane.f32.xlu0 %v2683
    %v2685 = vpop.xlane.xlu0 %2684
    %v2686 = vsel %vm2574, %v2368, -inf
    %2687 = vmax.xlane.f32.xlu0 %v2686
    %v2688 = vpop.xlane.xlu0 %2687
    %v2689 = vsel %vm2574, %v2373, -inf
    %2690 = vmax.xlane.f32.xlu0 %v2689
    %v2691 = vpop.xlane.xlu0 %2690
    %v2692 = vsel %vm2574, %v2376, -inf
    %2693 = vmax.xlane.f32.xlu0 %v2692
    %v2694 = vpop.xlane.xlu0 %2693
    %v2695 = vsel %vm2574, %v2414, -inf
    %2696 = vmax.xlane.f32.xlu0 %v2695
    %v2697 = vpop.xlane.xlu0 %2696
    %v2698 = vsel %vm2574, %v2417, -inf
    %2699 = vmax.xlane.f32.xlu0 %v2698
    %v2700 = vpop.xlane.xlu0 %2699
    %v2701 = vsel %vm2574, %v2422, -inf
    %2702 = vmax.xlane.f32.xlu0 %v2701
    %v2703 = vpop.xlane.xlu0 %2702
    %v2704 = vsel %vm2574, %v2425, -inf
    %2705 = vmax.xlane.f32.xlu0 %v2704
    %v2706 = vpop.xlane.xlu0 %2705
    %v2707 = vsel %vm2574, %v2430, -inf
    %2708 = vmax.xlane.f32.xlu0 %v2707
    %v2709 = vpop.xlane.xlu0 %2708
    %v2710 = vsel %vm2574, %v2433, -inf
    %2711 = vmax.xlane.f32.xlu0 %v2710
    %v2712 = vpop.xlane.xlu0 %2711
    %v2713 = vsel %vm2574, %v2438, -inf
    %2714 = vmax.xlane.f32.xlu0 %v2713
    %v2715 = vpop.xlane.xlu0 %2714
    %v2716 = vsel %vm2574, %v2441, -inf
    %2717 = vmax.xlane.f32.xlu0 %v2716
    %v2718 = vpop.xlane.xlu0 %2717
    %v2719 = vsel %vm2574, %v2479, -inf
    %2720 = vmax.xlane.f32.xlu0 %v2719
    %v2721 = vpop.xlane.xlu0 %2720
    %v2722 = vsel %vm2574, %v2482, -inf
    %2723 = vmax.xlane.f32.xlu0 %v2722
    %v2724 = vpop.xlane.xlu0 %2723
    %v2725 = vsel %vm2574, %v2487, -inf
    %2726 = vmax.xlane.f32.xlu0 %v2725
    %v2727 = vpop.xlane.xlu0 %2726
    %v2728 = vsel %vm2574, %v2490, -inf
    %2729 = vmax.xlane.f32.xlu0 %v2728
    %v2730 = vpop.xlane.xlu0 %2729
    %v2731 = vsel %vm2574, %v2495, -inf
    %2732 = vmax.xlane.f32.xlu0 %v2731
    %v2733 = vpop.xlane.xlu0 %2732
    %v2734 = vsel %vm2574, %v2498, -inf
    %2735 = vmax.xlane.f32.xlu0 %v2734
    %v2736 = vpop.xlane.xlu0 %2735
    %v2737 = vsel %vm2574, %v2503, -inf
    %2738 = vmax.xlane.f32.xlu0 %v2737
    %v2739 = vpop.xlane.xlu0 %2738
    %v2740 = vsel %vm2574, %v2506, -inf
    %2741 = vmax.xlane.f32.xlu0 %v2740
    %v2742 = vpop.xlane.xlu0 %2741
    %v2743 = vsel %vm2574, %v2544, -inf
    %2744 = vmax.xlane.f32.xlu0 %v2743
    %v2745 = vpop.xlane.xlu0 %2744
    %v2746 = vsel %vm2574, %v2547, -inf
    %2747 = vmax.xlane.f32.xlu0 %v2746
    %v2748 = vpop.xlane.xlu0 %2747
    %v2749 = vsel %vm2574, %v2552, -inf
    %2750 = vmax.xlane.f32.xlu0 %v2749
    %v2751 = vpop.xlane.xlu0 %2750
    %v2752 = vsel %vm2574, %v2555, -inf
    %2753 = vmax.xlane.f32.xlu0 %v2752
    %v2754 = vpop.xlane.xlu0 %2753
    %v2755 = vsel %vm2574, %v2560, -inf
    %2756 = vmax.xlane.f32.xlu0 %v2755
    %v2757 = vpop.xlane.xlu0 %2756
    %v2758 = vsel %vm2574, %v2563, -inf
    %2759 = vmax.xlane.f32.xlu0 %v2758
    %v2760 = vpop.xlane.xlu0 %2759
    %v2761 = vsel %vm2574, %v2568, -inf
    %2762 = vmax.xlane.f32.xlu0 %v2761
    %v2763 = vpop.xlane.xlu0 %2762
    %v2764 = vsel %vm2574, %v2571, -inf
    %2765 = vmax.xlane.f32.xlu0 %v2764
    %v2766 = vpop.xlane.xlu0 %2765
    %v2767 = vsub.f32 %v2089, %v2577
    %v2768 = vsub.f32 %v2092, %v2580
    %v2769 = vsub.f32 %v2097, %v2583
    %v2770 = vsub.f32 %v2100, %v2586
    %v2771 = vsub.f32 %v2105, %v2589
    %v2772 = vsub.f32 %v2108, %v2592
    %v2773 = vsub.f32 %v2113, %v2595
    %v2774 = vsub.f32 %v2116, %v2598
    %v2775 = vsub.f32 %v2154, %v2601
    %v2776 = vsub.f32 %v2157, %v2604
    %v2777 = vsub.f32 %v2162, %v2607
    %v2778 = vsub.f32 %v2165, %v2610
    %v2779 = vsub.f32 %v2170, %v2613
    %v2780 = vsub.f32 %v2173, %v2616
    %v2781 = vsub.f32 %v2178, %v2619
    %v2782 = vsub.f32 %v2181, %v2622
    %v2783 = vsub.f32 %v2219, %v2625
    %v2784 = vsub.f32 %v2222, %v2628
    %v2785 = vsub.f32 %v2227, %v2631
    %v2786 = vsub.f32 %v2230, %v2634
    %v2787 = vsub.f32 %v2235, %v2637
    %v2788 = vsub.f32 %v2238, %v2640
    %v2789 = vsub.f32 %v2243, %v2643
    %v2790 = vsub.f32 %v2246, %v2646
    %v2791 = vsub.f32 %v2284, %v2649
    %v2792 = vsub.f32 %v2287, %v2652
    %v2793 = vsub.f32 %v2292, %v2655
    %v2794 = vsub.f32 %v2295, %v2658
    %v2795 = vsub.f32 %v2300, %v2661
    %v2796 = vsub.f32 %v2303, %v2664
    %v2797 = vsub.f32 %v2308, %v2667
    %v2798 = vsub.f32 %v2311, %v2670
    %v2799 = vsub.f32 %v2349, %v2673
    %v2800 = vsub.f32 %v2352, %v2676
    %v2801 = vsub.f32 %v2357, %v2679
    %v2802 = vsub.f32 %v2360, %v2682
    %v2803 = vsub.f32 %v2365, %v2685
    %v2804 = vsub.f32 %v2368, %v2688
    %v2805 = vsub.f32 %v2373, %v2691
    %v2806 = vsub.f32 %v2376, %v2694
    %v2807 = vsub.f32 %v2414, %v2697
    %v2808 = vsub.f32 %v2417, %v2700
    %v2809 = vsub.f32 %v2422, %v2703
    %v2810 = vsub.f32 %v2425, %v2706
    %v2811 = vsub.f32 %v2430, %v2709
    %v2812 = vsub.f32 %v2433, %v2712
    %v2813 = vsub.f32 %v2438, %v2715
    %v2814 = vsub.f32 %v2441, %v2718
    %v2815 = vsub.f32 %v2479, %v2721
    %v2816 = vsub.f32 %v2482, %v2724
    %v2817 = vsub.f32 %v2487, %v2727
    %v2818 = vsub.f32 %v2490, %v2730
    %v2819 = vsub.f32 %v2495, %v2733
    %v2820 = vsub.f32 %v2498, %v2736
    %v2821 = vsub.f32 %v2503, %v2739
    %v2822 = vsub.f32 %v2506, %v2742
    %v2823 = vsub.f32 %v2544, %v2745
    %v2824 = vsub.f32 %v2547, %v2748
    %v2825 = vsub.f32 %v2552, %v2751
    %v2826 = vsub.f32 %v2555, %v2754
    %v2827 = vsub.f32 %v2560, %v2757
    %v2828 = vsub.f32 %v2563, %v2760
    %v2829 = vsub.f32 %v2568, %v2763
    %v2830 = vsub.f32 %v2571, %v2766
    %v2831 = vmul.f32 %v2767, 1.442695
    %v2832 = vpow.pop %v2831
    %v2833 = vmul.f32 %v2768, 1.442695
    %v2834 = vpow.pop %v2833
    %v2835 = vmul.f32 %v2769, 1.442695
    %v2836 = vpow.pop %v2835
    %v2837 = vmul.f32 %v2770, 1.442695
    %v2838 = vpow.pop %v2837
    %v2839 = vmul.f32 %v2771, 1.442695
    %v2840 = vpow.pop %v2839
    %v2841 = vmul.f32 %v2772, 1.442695
    %v2842 = vpow.pop %v2841
    %v2843 = vmul.f32 %v2773, 1.442695
    %v2844 = vpow.pop %v2843
    %v2845 = vmul.f32 %v2774, 1.442695
    %v2846 = vpow.pop %v2845
    %v2847 = vmul.f32 %v2775, 1.442695
    %v2848 = vpow.pop %v2847
    %v2849 = vmul.f32 %v2776, 1.442695
    %v2850 = vpow.pop %v2849
    %v2851 = vmul.f32 %v2777, 1.442695
    %v2852 = vpow.pop %v2851
    %v2853 = vmul.f32 %v2778, 1.442695
    %v2854 = vpow.pop %v2853
    %v2855 = vmul.f32 %v2779, 1.442695
    %v2856 = vpow.pop %v2855
    %v2857 = vmul.f32 %v2780, 1.442695
    %v2858 = vpow.pop %v2857
    %v2859 = vmul.f32 %v2781, 1.442695
    %v2860 = vpow.pop %v2859
    %v2861 = vmul.f32 %v2782, 1.442695
    %v2862 = vpow.pop %v2861
    %v2863 = vmul.f32 %v2783, 1.442695
    %v2864 = vpow.pop %v2863
    %v2865 = vmul.f32 %v2784, 1.442695
    %v2866 = vpow.pop %v2865
    %v2867 = vmul.f32 %v2785, 1.442695
    %v2868 = vpow.pop %v2867
    %v2869 = vmul.f32 %v2786, 1.442695
    %v2870 = vpow.pop %v2869
    %v2871 = vmul.f32 %v2787, 1.442695
    %v2872 = vpow.pop %v2871
    %v2873 = vmul.f32 %v2788, 1.442695
    %v2874 = vpow.pop %v2873
    %v2875 = vmul.f32 %v2789, 1.442695
    %v2876 = vpow.pop %v2875
    %v2877 = vmul.f32 %v2790, 1.442695
    %v2878 = vpow.pop %v2877
    %v2879 = vmul.f32 %v2791, 1.442695
    %v2880 = vpow.pop %v2879
    %v2881 = vmul.f32 %v2792, 1.442695
    %v2882 = vpow.pop %v2881
    %v2883 = vmul.f32 %v2793, 1.442695
    %v2884 = vpow.pop %v2883
    %v2885 = vmul.f32 %v2794, 1.442695
    %v2886 = vpow.pop %v2885
    %v2887 = vmul.f32 %v2795, 1.442695
    %v2888 = vpow.pop %v2887
    %v2889 = vmul.f32 %v2796, 1.442695
    %v2890 = vpow.pop %v2889
    %v2891 = vmul.f32 %v2797, 1.442695
    %v2892 = vpow.pop %v2891
    %v2893 = vmul.f32 %v2798, 1.442695
    %v2894 = vpow.pop %v2893
    %v2895 = vmul.f32 %v2799, 1.442695
    %v2896 = vpow.pop %v2895
    %v2897 = vmul.f32 %v2800, 1.442695
    %v2898 = vpow.pop %v2897
    %v2899 = vmul.f32 %v2801, 1.442695
    %v2900 = vpow.pop %v2899
    %v2901 = vmul.f32 %v2802, 1.442695
    %v2902 = vpow.pop %v2901
    %v2903 = vmul.f32 %v2803, 1.442695
    %v2904 = vpow.pop %v2903
    %v2905 = vmul.f32 %v2804, 1.442695
    %v2906 = vpow.pop %v2905
    %v2907 = vmul.f32 %v2805, 1.442695
    %v2908 = vpow.pop %v2907
    %v2909 = vmul.f32 %v2806, 1.442695
    %v2910 = vpow.pop %v2909
    %v2911 = vmul.f32 %v2807, 1.442695
    %v2912 = vpow.pop %v2911
    %v2913 = vmul.f32 %v2808, 1.442695
    %v2914 = vpow.pop %v2913
    %v2915 = vmul.f32 %v2809, 1.442695
    %v2916 = vpow.pop %v2915
    %v2917 = vmul.f32 %v2810, 1.442695
    %v2918 = vpow.pop %v2917
    %v2919 = vmul.f32 %v2811, 1.442695
    %v2920 = vpow.pop %v2919
    %v2921 = vmul.f32 %v2812, 1.442695
    %v2922 = vpow.pop %v2921
    %v2923 = vmul.f32 %v2813, 1.442695
    %v2924 = vpow.pop %v2923
    %v2925 = vmul.f32 %v2814, 1.442695
    %v2926 = vpow.pop %v2925
    %v2927 = vmul.f32 %v2815, 1.442695
    %v2928 = vpow.pop %v2927
    %v2929 = vmul.f32 %v2816, 1.442695
    %v2930 = vpow.pop %v2929
    %v2931 = vmul.f32 %v2817, 1.442695
    %v2932 = vpow.pop %v2931
    %v2933 = vmul.f32 %v2818, 1.442695
    %v2934 = vpow.pop %v2933
    %v2935 = vmul.f32 %v2819, 1.442695
    %v2936 = vpow.pop %v2935
    %v2937 = vmul.f32 %v2820, 1.442695
    %v2938 = vpow.pop %v2937
    %v2939 = vmul.f32 %v2821, 1.442695
    %v2940 = vpow.pop %v2939
    %v2941 = vmul.f32 %v2822, 1.442695
    %v2942 = vpow.pop %v2941
    %v2943 = vmul.f32 %v2823, 1.442695
    %v2944 = vpow.pop %v2943
    %v2945 = vmul.f32 %v2824, 1.442695
    %v2946 = vpow.pop %v2945
    %v2947 = vmul.f32 %v2825, 1.442695
    %v2948 = vpow.pop %v2947
    %v2949 = vmul.f32 %v2826, 1.442695
    %v2950 = vpow.pop %v2949
    %v2951 = vmul.f32 %v2827, 1.442695
    %v2952 = vpow.pop %v2951
    %v2953 = vmul.f32 %v2828, 1.442695
    %v2954 = vpow.pop %v2953
    %v2955 = vmul.f32 %v2829, 1.442695
    %v2956 = vpow.pop %v2955
    %v2957 = vmul.f32 %v2830, 1.442695
    %v2958 = vpow.pop %v2957
    %v2959 = vsel %vm2574, %v2832, 0.0
    %2960 = vadd.xlane.f32.xlu0 %v2959
    %v2961 = vpop.xlane.xlu0 %2960
    %v2962 = vsel %vm2574, %v2834, 0.0
    %2963 = vadd.xlane.f32.xlu0 %v2962
    %v2964 = vpop.xlane.xlu0 %2963
    %v2965 = vsel %vm2574, %v2836, 0.0
    %2966 = vadd.xlane.f32.xlu0 %v2965
    %v2967 = vpop.xlane.xlu0 %2966
    %v2968 = vsel %vm2574, %v2838, 0.0
    %2969 = vadd.xlane.f32.xlu0 %v2968
    %v2970 = vpop.xlane.xlu0 %2969
    %v2971 = vsel %vm2574, %v2840, 0.0
    %2972 = vadd.xlane.f32.xlu0 %v2971
    %v2973 = vpop.xlane.xlu0 %2972
    %v2974 = vsel %vm2574, %v2842, 0.0
    %2975 = vadd.xlane.f32.xlu0 %v2974
    %v2976 = vpop.xlane.xlu0 %2975
    %v2977 = vsel %vm2574, %v2844, 0.0
    %2978 = vadd.xlane.f32.xlu0 %v2977
    %v2979 = vpop.xlane.xlu0 %2978
    %v2980 = vsel %vm2574, %v2846, 0.0
    %2981 = vadd.xlane.f32.xlu0 %v2980
    %v2982 = vpop.xlane.xlu0 %2981
    %v2983 = vsel %vm2574, %v2848, 0.0
    %2984 = vadd.xlane.f32.xlu0 %v2983
    %v2985 = vpop.xlane.xlu0 %2984
    %v2986 = vsel %vm2574, %v2850, 0.0
    %2987 = vadd.xlane.f32.xlu0 %v2986
    %v2988 = vpop.xlane.xlu0 %2987
    %v2989 = vsel %vm2574, %v2852, 0.0
    %2990 = vadd.xlane.f32.xlu0 %v2989
    %v2991 = vpop.xlane.xlu0 %2990
    %v2992 = vsel %vm2574, %v2854, 0.0
    %2993 = vadd.xlane.f32.xlu0 %v2992
    %v2994 = vpop.xlane.xlu0 %2993
    %v2995 = vsel %vm2574, %v2856, 0.0
    %2996 = vadd.xlane.f32.xlu0 %v2995
    %v2997 = vpop.xlane.xlu0 %2996
    %v2998 = vsel %vm2574, %v2858, 0.0
    %2999 = vadd.xlane.f32.xlu0 %v2998
    %v3000 = vpop.xlane.xlu0 %2999
    %v3001 = vsel %vm2574, %v2860, 0.0
    %3002 = vadd.xlane.f32.xlu0 %v3001
    %v3003 = vpop.xlane.xlu0 %3002
    %v3004 = vsel %vm2574, %v2862, 0.0
    %3005 = vadd.xlane.f32.xlu0 %v3004
    %v3006 = vpop.xlane.xlu0 %3005
    %v3007 = vsel %vm2574, %v2864, 0.0
    %3008 = vadd.xlane.f32.xlu0 %v3007
    %v3009 = vpop.xlane.xlu0 %3008
    %v3010 = vsel %vm2574, %v2866, 0.0
    %3011 = vadd.xlane.f32.xlu0 %v3010
    %v3012 = vpop.xlane.xlu0 %3011
    %v3013 = vsel %vm2574, %v2868, 0.0
    %3014 = vadd.xlane.f32.xlu0 %v3013
    %v3015 = vpop.xlane.xlu0 %3014
    %v3016 = vsel %vm2574, %v2870, 0.0
    %3017 = vadd.xlane.f32.xlu0 %v3016
    %v3018 = vpop.xlane.xlu0 %3017
    %v3019 = vsel %vm2574, %v2872, 0.0
    %3020 = vadd.xlane.f32.xlu0 %v3019
    %v3021 = vpop.xlane.xlu0 %3020
    %v3022 = vsel %vm2574, %v2874, 0.0
    %3023 = vadd.xlane.f32.xlu0 %v3022
    %v3024 = vpop.xlane.xlu0 %3023
    %v3025 = vsel %vm2574, %v2876, 0.0
    %3026 = vadd.xlane.f32.xlu0 %v3025
    %v3027 = vpop.xlane.xlu0 %3026
    %v3028 = vsel %vm2574, %v2878, 0.0
    %3029 = vadd.xlane.f32.xlu0 %v3028
    %v3030 = vpop.xlane.xlu0 %3029
    %v3031 = vsel %vm2574, %v2880, 0.0
    %3032 = vadd.xlane.f32.xlu0 %v3031
    %v3033 = vpop.xlane.xlu0 %3032
    %v3034 = vsel %vm2574, %v2882, 0.0
    %3035 = vadd.xlane.f32.xlu0 %v3034
    %v3036 = vpop.xlane.xlu0 %3035
    %v3037 = vsel %vm2574, %v2884, 0.0
    %3038 = vadd.xlane.f32.xlu0 %v3037
    %v3039 = vpop.xlane.xlu0 %3038
    %v3040 = vsel %vm2574, %v2886, 0.0
    %3041 = vadd.xlane.f32.xlu0 %v3040
    %v3042 = vpop.xlane.xlu0 %3041
    %v3043 = vsel %vm2574, %v2888, 0.0
    %3044 = vadd.xlane.f32.xlu0 %v3043
    %v3045 = vpop.xlane.xlu0 %3044
    %v3046 = vsel %vm2574, %v2890, 0.0
    %3047 = vadd.xlane.f32.xlu0 %v3046
    %v3048 = vpop.xlane.xlu0 %3047
    %v3049 = vsel %vm2574, %v2892, 0.0
    %3050 = vadd.xlane.f32.xlu0 %v3049
    %v3051 = vpop.xlane.xlu0 %3050
    %v3052 = vsel %vm2574, %v2894, 0.0
    %3053 = vadd.xlane.f32.xlu0 %v3052
    %v3054 = vpop.xlane.xlu0 %3053
    %v3055 = vsel %vm2574, %v2896, 0.0
    %3056 = vadd.xlane.f32.xlu0 %v3055
    %v3057 = vpop.xlane.xlu0 %3056
    %v3058 = vsel %vm2574, %v2898, 0.0
    %3059 = vadd.xlane.f32.xlu0 %v3058
    %v3060 = vpop.xlane.xlu0 %3059
    %v3061 = vsel %vm2574, %v2900, 0.0
    %3062 = vadd.xlane.f32.xlu0 %v3061
    %v3063 = vpop.xlane.xlu0 %3062
    %v3064 = vsel %vm2574, %v2902, 0.0
    %3065 = vadd.xlane.f32.xlu0 %v3064
    %v3066 = vpop.xlane.xlu0 %3065
    %v3067 = vsel %vm2574, %v2904, 0.0
    %3068 = vadd.xlane.f32.xlu0 %v3067
    %v3069 = vpop.xlane.xlu0 %3068
    %v3070 = vsel %vm2574, %v2906, 0.0
    %3071 = vadd.xlane.f32.xlu0 %v3070
    %v3072 = vpop.xlane.xlu0 %3071
    %v3073 = vsel %vm2574, %v2908, 0.0
    %3074 = vadd.xlane.f32.xlu0 %v3073
    %v3075 = vpop.xlane.xlu0 %3074
    %v3076 = vsel %vm2574, %v2910, 0.0
    %3077 = vadd.xlane.f32.xlu0 %v3076
    %v3078 = vpop.xlane.xlu0 %3077
    %v3079 = vsel %vm2574, %v2912, 0.0
    %3080 = vadd.xlane.f32.xlu0 %v3079
    %v3081 = vpop.xlane.xlu0 %3080
    %v3082 = vsel %vm2574, %v2914, 0.0
    %3083 = vadd.xlane.f32.xlu0 %v3082
    %v3084 = vpop.xlane.xlu0 %3083
    %v3085 = vsel %vm2574, %v2916, 0.0
    %3086 = vadd.xlane.f32.xlu0 %v3085
    %v3087 = vpop.xlane.xlu0 %3086
    %v3088 = vsel %vm2574, %v2918, 0.0
    %3089 = vadd.xlane.f32.xlu0 %v3088
    %v3090 = vpop.xlane.xlu0 %3089
    %v3091 = vsel %vm2574, %v2920, 0.0
    %3092 = vadd.xlane.f32.xlu0 %v3091
    %v3093 = vpop.xlane.xlu0 %3092
    %v3094 = vsel %vm2574, %v2922, 0.0
    %3095 = vadd.xlane.f32.xlu0 %v3094
    %v3096 = vpop.xlane.xlu0 %3095
    %v3097 = vsel %vm2574, %v2924, 0.0
    %3098 = vadd.xlane.f32.xlu0 %v3097
    %v3099 = vpop.xlane.xlu0 %3098
    %v3100 = vsel %vm2574, %v2926, 0.0
    %3101 = vadd.xlane.f32.xlu0 %v3100
    %v3102 = vpop.xlane.xlu0 %3101
    %v3103 = vsel %vm2574, %v2928, 0.0
    %3104 = vadd.xlane.f32.xlu0 %v3103
    %v3105 = vpop.xlane.xlu0 %3104
    %v3106 = vsel %vm2574, %v2930, 0.0
    %3107 = vadd.xlane.f32.xlu0 %v3106
    %v3108 = vpop.xlane.xlu0 %3107
    %v3109 = vsel %vm2574, %v2932, 0.0
    %3110 = vadd.xlane.f32.xlu0 %v3109
    %v3111 = vpop.xlane.xlu0 %3110
    %v3112 = vsel %vm2574, %v2934, 0.0
    %3113 = vadd.xlane.f32.xlu0 %v3112
    %v3114 = vpop.xlane.xlu0 %3113
    %v3115 = vsel %vm2574, %v2936, 0.0
    %3116 = vadd.xlane.f32.xlu0 %v3115
    %v3117 = vpop.xlane.xlu0 %3116
    %v3118 = vsel %vm2574, %v2938, 0.0
    %3119 = vadd.xlane.f32.xlu0 %v3118
    %v3120 = vpop.xlane.xlu0 %3119
    %v3121 = vsel %vm2574, %v2940, 0.0
    %3122 = vadd.xlane.f32.xlu0 %v3121
    %v3123 = vpop.xlane.xlu0 %3122
    %v3124 = vsel %vm2574, %v2942, 0.0
    %3125 = vadd.xlane.f32.xlu0 %v3124
    %v3126 = vpop.xlane.xlu0 %3125
    %v3127 = vsel %vm2574, %v2944, 0.0
    %3128 = vadd.xlane.f32.xlu0 %v3127
    %v3129 = vpop.xlane.xlu0 %3128
    %v3130 = vsel %vm2574, %v2946, 0.0
    %3131 = vadd.xlane.f32.xlu0 %v3130
    %v3132 = vpop.xlane.xlu0 %3131
    %v3133 = vsel %vm2574, %v2948, 0.0
    %3134 = vadd.xlane.f32.xlu0 %v3133
    %v3135 = vpop.xlane.xlu0 %3134
    %v3136 = vsel %vm2574, %v2950, 0.0
    %3137 = vadd.xlane.f32.xlu0 %v3136
    %v3138 = vpop.xlane.xlu0 %3137
    %v3139 = vsel %vm2574, %v2952, 0.0
    %3140 = vadd.xlane.f32.xlu0 %v3139
    %v3141 = vpop.xlane.xlu0 %3140
    %v3142 = vsel %vm2574, %v2954, 0.0
    %3143 = vadd.xlane.f32.xlu0 %v3142
    %v3144 = vpop.xlane.xlu0 %3143
    %v3145 = vsel %vm2574, %v2956, 0.0
    %3146 = vadd.xlane.f32.xlu0 %v3145
    %v3147 = vpop.xlane.xlu0 %3146
    %v3148 = vsel %vm2574, %v2958, 0.0
    %3149 = vadd.xlane.f32.xlu0 %v3148
    %v3150 = vpop.xlane.xlu0 %3149
    %v3151 = vrcp.pop %v2961
    %v3152 = vmul.f32 %v2832, %v3151
    %v3153 = vrcp.pop %v2964
    %v3154 = vmul.f32 %v2834, %v3153
    %v3155 = vrcp.pop %v2967
    %v3156 = vmul.f32 %v2836, %v3155
    %v3157 = vrcp.pop %v2970
    %v3158 = vmul.f32 %v2838, %v3157
    %v3159 = vrcp.pop %v2973
    %v3160 = vmul.f32 %v2840, %v3159
    %v3161 = vrcp.pop %v2976
    %v3162 = vmul.f32 %v2842, %v3161
    %v3163 = vrcp.pop %v2979
    %v3164 = vmul.f32 %v2844, %v3163
    %v3165 = vrcp.pop %v2982
    %v3166 = vmul.f32 %v2846, %v3165
    %v3167 = vrcp.pop %v2985
    %v3168 = vmul.f32 %v2848, %v3167
    %v3169 = vrcp.pop %v2988
    %v3170 = vmul.f32 %v2850, %v3169
    %v3171 = vrcp.pop %v2991
    %v3172 = vmul.f32 %v2852, %v3171
    %v3173 = vrcp.pop %v2994
    %v3174 = vmul.f32 %v2854, %v3173
    %v3175 = vrcp.pop %v2997
    %v3176 = vmul.f32 %v2856, %v3175
    %v3177 = vrcp.pop %v3000
    %v3178 = vmul.f32 %v2858, %v3177
    %v3179 = vrcp.pop %v3003
    %v3180 = vmul.f32 %v2860, %v3179
    %v3181 = vrcp.pop %v3006
    %v3182 = vmul.f32 %v2862, %v3181
    %v3183 = vrcp.pop %v3009
    %v3184 = vmul.f32 %v2864, %v3183
    %v3185 = vrcp.pop %v3012
    %v3186 = vmul.f32 %v2866, %v3185
    %v3187 = vrcp.pop %v3015
    %v3188 = vmul.f32 %v2868, %v3187
    %v3189 = vrcp.pop %v3018
    %v3190 = vmul.f32 %v2870, %v3189
    %v3191 = vrcp.pop %v3021
    %v3192 = vmul.f32 %v2872, %v3191
    %v3193 = vrcp.pop %v3024
    %v3194 = vmul.f32 %v2874, %v3193
    %v3195 = vrcp.pop %v3027
    %v3196 = vmul.f32 %v2876, %v3195
    %v3197 = vrcp.pop %v3030
    %v3198 = vmul.f32 %v2878, %v3197
    %v3199 = vrcp.pop %v3033
    %v3200 = vmul.f32 %v2880, %v3199
    %v3201 = vrcp.pop %v3036
    %v3202 = vmul.f32 %v2882, %v3201
    %v3203 = vrcp.pop %v3039
    %v3204 = vmul.f32 %v2884, %v3203
    %v3205 = vrcp.pop %v3042
    %v3206 = vmul.f32 %v2886, %v3205
    %v3207 = vrcp.pop %v3045
    %v3208 = vmul.f32 %v2888, %v3207
    %v3209 = vrcp.pop %v3048
    %v3210 = vmul.f32 %v2890, %v3209
    %v3211 = vrcp.pop %v3051
    %v3212 = vmul.f32 %v2892, %v3211
    %v3213 = vrcp.pop %v3054
    %v3214 = vmul.f32 %v2894, %v3213
    %v3215 = vrcp.pop %v3057
    %v3216 = vmul.f32 %v2896, %v3215
    %v3217 = vrcp.pop %v3060
    %v3218 = vmul.f32 %v2898, %v3217
    %v3219 = vrcp.pop %v3063
    %v3220 = vmul.f32 %v2900, %v3219
    %v3221 = vrcp.pop %v3066
    %v3222 = vmul.f32 %v2902, %v3221
    %v3223 = vrcp.pop %v3069
    %v3224 = vmul.f32 %v2904, %v3223
    %v3225 = vrcp.pop %v3072
    %v3226 = vmul.f32 %v2906, %v3225
    %v3227 = vrcp.pop %v3075
    %v3228 = vmul.f32 %v2908, %v3227
    %v3229 = vrcp.pop %v3078
    %v3230 = vmul.f32 %v2910, %v3229
    %v3231 = vrcp.pop %v3081
    %v3232 = vmul.f32 %v2912, %v3231
    %v3233 = vrcp.pop %v3084
    %v3234 = vmul.f32 %v2914, %v3233
    %v3235 = vrcp.pop %v3087
    %v3236 = vmul.f32 %v2916, %v3235
    %v3237 = vrcp.pop %v3090
    %v3238 = vmul.f32 %v2918, %v3237
    %v3239 = vrcp.pop %v3093
    %v3240 = vmul.f32 %v2920, %v3239
    %v3241 = vrcp.pop %v3096
    %v3242 = vmul.f32 %v2922, %v3241
    %v3243 = vrcp.pop %v3099
    %v3244 = vmul.f32 %v2924, %v3243
    %v3245 = vrcp.pop %v3102
    %v3246 = vmul.f32 %v2926, %v3245
    %v3247 = vrcp.pop %v3105
    %v3248 = vmul.f32 %v2928, %v3247
    %v3249 = vrcp.pop %v3108
    %v3250 = vmul.f32 %v2930, %v3249
    %v3251 = vrcp.pop %v3111
    %v3252 = vmul.f32 %v2932, %v3251
    %v3253 = vrcp.pop %v3114
    %v3254 = vmul.f32 %v2934, %v3253
    %v3255 = vrcp.pop %v3117
    %v3256 = vmul.f32 %v2936, %v3255
    %v3257 = vrcp.pop %v3120
    %v3258 = vmul.f32 %v2938, %v3257
    %v3259 = vrcp.pop %v3123
    %v3260 = vmul.f32 %v2940, %v3259
    %v3261 = vrcp.pop %v3126
    %v3262 = vmul.f32 %v2942, %v3261
    %v3263 = vrcp.pop %v3129
    %v3264 = vmul.f32 %v2944, %v3263
    %v3265 = vrcp.pop %v3132
    %v3266 = vmul.f32 %v2946, %v3265
    %v3267 = vrcp.pop %v3135
    %v3268 = vmul.f32 %v2948, %v3267
    %v3269 = vrcp.pop %v3138
    %v3270 = vmul.f32 %v2950, %v3269
    %v3271 = vrcp.pop %v3141
    %v3272 = vmul.f32 %v2952, %v3271
    %v3273 = vrcp.pop %v3144
    %v3274 = vmul.f32 %v2954, %v3273
    %v3275 = vrcp.pop %v3147
    %v3276 = vmul.f32 %v2956, %v3275
    %v3277 = vrcp.pop %v3150
    %v3278 = vmul.f32 %v2958, %v3277
    %v3279 = vpack.c.bf16 %v3154, %v3152
    %v3280 = vpack.c.bf16 %v3158, %v3156
    %v3281 = vpack.c.bf16 %v3162, %v3160
    %v3282 = vpack.c.bf16 %v3166, %v3164
    %v3283 = vpack.c.bf16 %v3170, %v3168
    %v3284 = vpack.c.bf16 %v3174, %v3172
    %v3285 = vpack.c.bf16 %v3178, %v3176
    %v3286 = vpack.c.bf16 %v3182, %v3180
    %v3287 = vpack.c.bf16 %v3186, %v3184
    %v3288 = vpack.c.bf16 %v3190, %v3188
    %v3289 = vpack.c.bf16 %v3194, %v3192
    %v3290 = vpack.c.bf16 %v3198, %v3196
    %v3291 = vpack.c.bf16 %v3202, %v3200
    %v3292 = vpack.c.bf16 %v3206, %v3204
    %v3293 = vpack.c.bf16 %v3210, %v3208
    %v3294 = vpack.c.bf16 %v3214, %v3212
    %v3295 = vpack.c.bf16 %v3218, %v3216
    %v3296 = vpack.c.bf16 %v3222, %v3220
    %v3297 = vpack.c.bf16 %v3226, %v3224
    %v3298 = vpack.c.bf16 %v3230, %v3228
    %v3299 = vpack.c.bf16 %v3234, %v3232
    %v3300 = vpack.c.bf16 %v3238, %v3236
    %v3301 = vpack.c.bf16 %v3242, %v3240
    %v3302 = vpack.c.bf16 %v3246, %v3244
    %v3303 = vpack.c.bf16 %v3250, %v3248
    %v3304 = vpack.c.bf16 %v3254, %v3252
    %v3305 = vpack.c.bf16 %v3258, %v3256
    %v3306 = vpack.c.bf16 %v3262, %v3260
    %v3307 = vpack.c.bf16 %v3266, %v3264
    %v3308 = vpack.c.bf16 %v3270, %v3268
    %v3309 = vpack.c.bf16 %v3274, %v3272
    %v3310 = vpack.c.bf16 %v3278, %v3276
    %v3312 = vsel %vm2574, %v3279, 0
    %v3315 = vsel %vm2574, %v3280, 0
    %v3318 = vsel %vm2574, %v3281, 0
    %v3321 = vsel %vm2574, %v3282, 0
    %3323 = vmatprep.subr.bf16.mxu0 0
    %3324 = vmatpush1.bf16.msra.mxu0 %v2022
    %3325 = vmatprep.subr.bf16.mxu0 0
    %3326 = vmatpush1.bf16.msra.mxu0 %v2023
    %3327 = vmatprep.subr.bf16.mxu0 0
    %3328 = vmatpush1.bf16.msra.mxu0 %v2024
    %3329 = vmatprep.subr.bf16.mxu0 0
    %3330 = vmatpush1.bf16.msra.mxu0 %v2025
    %3331 = vmatprep.subr.bf16.mxu0 0
    %3332 = vmatpush1.bf16.msra.mxu0 0
    %3333 = vmatprep.subr.bf16.mxu0 0
    %3334 = vmatpush1.bf16.msra.mxu0 0
    %3335 = vmatprep.subr.bf16.mxu0 0
    %3336 = vmatpush1.bf16.msra.mxu0 0
    %3337 = vmatprep.subr.bf16.mxu0 0
    %3338 = vmatpush1.bf16.msra.mxu0 0
    %3339 = vmatprep.subr.bf16.mxu0 0
    %3340 = vmatpush1.bf16.msra.mxu0 0
    %3341 = vmatprep.subr.bf16.mxu0 0
    %3342 = vmatpush1.bf16.msra.mxu0 0
    %3343 = vmatprep.subr.bf16.mxu0 0
    %3344 = vmatpush1.bf16.msra.mxu0 0
    %3345 = vmatprep.subr.bf16.mxu0 0
    %3346 = vmatpush1.bf16.msra.mxu0 0
    %3347 = vmatprep.subr.bf16.mxu0 0
    %3348 = vmatpush1.bf16.msra.mxu0 0
    %3349 = vmatprep.subr.bf16.mxu0 0
    %3350 = vmatpush1.bf16.msra.mxu0 0
    %3351 = vmatprep.subr.bf16.mxu0 0
    %3352 = vmatpush1.bf16.msra.mxu0 0
    %3353 = vmatprep.subr.bf16.mxu0 0
    %3354 = vmatpush1.bf16.msra.mxu0 0
    %3355 = vmatprep.mubr.bf16.mxu0 0
    %3356 = vmatmul.mubr.bf16.gmra.mrb[0].mxu0 %v3312
    %v3357 = vpop.f32.mrb[0].mxu0
    %v3358 = vadd.f32 0.0, %v3357
    %v3359 = vpop.f32.mrb[0].mxu0
    %v3360 = vpop.f32.mrb[0].mxu0
    %v3361 = vadd.f32 0.0, %v3360
    %v3362 = vpop.f32.mrb[0].mxu0
    %3363 = vmatprep.mubr.bf16.mxu0 0
    %3364 = vmatmul.mubr.bf16.gmra.mrb[0].mxu0 %v3315
    %v3365 = vpop.f32.mrb[0].mxu0
    %v3366 = vadd.f32 0.0, %v3365
    %v3367 = vpop.f32.mrb[0].mxu0
    %v3368 = vpop.f32.mrb[0].mxu0
    %v3369 = vadd.f32 0.0, %v3368
    %v3370 = vpop.f32.mrb[0].mxu0
    %3371 = vmatprep.mubr.bf16.mxu0 0
    %3372 = vmatmul.mubr.bf16.gmra.mrb[0].mxu0 %v3318
    %v3373 = vpop.f32.mrb[0].mxu0
    %v3374 = vadd.f32 0.0, %v3373
    %v3375 = vpop.f32.mrb[0].mxu0
    %v3376 = vpop.f32.mrb[0].mxu0
    %v3377 = vadd.f32 0.0, %v3376
    %v3378 = vpop.f32.mrb[0].mxu0
    %3379 = vmatprep.mubr.bf16.mxu0 0
    %3380 = vmatmul.mubr.bf16.gmra.mrb[0].mxu0 %v3321
    %v3381 = vpop.f32.mrb[0].mxu0
    %v3382 = vadd.f32 0.0, %v3381
    %v3383 = vpop.f32.mrb[0].mxu0
    %v3384 = vpop.f32.mrb[0].mxu0
    %v3385 = vadd.f32 0.0, %v3384
    %v3386 = vpop.f32.mrb[0].mxu0
    %3387 = vdwg.mxu0
    %v3389 = vsel %vm2574, %v3283, 0
    %v3392 = vsel %vm2574, %v3284, 0
    %v3395 = vsel %vm2574, %v3285, 0
    %v3398 = vsel %vm2574, %v3286, 0
    %3400 = vmatprep.subr.bf16.mxu0 0
    %3401 = vmatpush1.bf16.msra.mxu0 %v2026
    %3402 = vmatprep.subr.bf16.mxu0 0
    %3403 = vmatpush1.bf16.msra.mxu0 %v2027
    %3404 = vmatprep.subr.bf16.mxu0 0
    %3405 = vmatpush1.bf16.msra.mxu0 %v2028
    %3406 = vmatprep.subr.bf16.mxu0 0
    %3407 = vmatpush1.bf16.msra.mxu0 %v2029
    %3408 = vmatprep.subr.bf16.mxu0 0
    %3409 = vmatpush1.bf16.msra.mxu0 0
    %3410 = vmatprep.subr.bf16.mxu0 0
    %3411 = vmatpush1.bf16.msra.mxu0 0
    %3412 = vmatprep.subr.bf16.mxu0 0
    %3413 = vmatpush1.bf16.msra.mxu0 0
    %3414 = vmatprep.subr.bf16.mxu0 0
    %3415 = vmatpush1.bf16.msra.mxu0 0
    %3416 = vmatprep.subr.bf16.mxu0 0
    %3417 = vmatpush1.bf16.msra.mxu0 0
    %3418 = vmatprep.subr.bf16.mxu0 0
    %3419 = vmatpush1.bf16.msra.mxu0 0
    %3420 = vmatprep.subr.bf16.mxu0 0
    %3421 = vmatpush1.bf16.msra.mxu0 0
    %3422 = vmatprep.subr.bf16.mxu0 0
    %3423 = vmatpush1.bf16.msra.mxu0 0
    %3424 = vmatprep.subr.bf16.mxu0 0
    %3425 = vmatpush1.bf16.msra.mxu0 0
    %3426 = vmatprep.subr.bf16.mxu0 0
    %3427 = vmatpush1.bf16.msra.mxu0 0
    %3428 = vmatprep.subr.bf16.mxu0 0
    %3429 = vmatpush1.bf16.msra.mxu0 0
    %3430 = vmatprep.subr.bf16.mxu0 0
    %3431 = vmatpush1.bf16.msra.mxu0 0
    %3432 = vmatprep.mubr.bf16.mxu0 0
    %3433 = vmatmul.mubr.bf16.gmra.mrb[0].mxu0 %v3389
    %v3434 = vpop.f32.mrb[0].mxu0
    %v3435 = vadd.f32 0.0, %v3434
    %v3436 = vpop.f32.mrb[0].mxu0
    %v3437 = vpop.f32.mrb[0].mxu0
    %v3438 = vadd.f32 0.0, %v3437
    %v3439 = vpop.f32.mrb[0].mxu0
    %3440 = vmatprep.mubr.bf16.mxu0 0
    %3441 = vmatmul.mubr.bf16.gmra.mrb[0].mxu0 %v3392
    %v3442 = vpop.f32.mrb[0].mxu0
    %v3443 = vadd.f32 0.0, %v3442
    %v3444 = vpop.f32.mrb[0].mxu0
    %v3445 = vpop.f32.mrb[0].mxu0
    %v3446 = vadd.f32 0.0, %v3445
    %v3447 = vpop.f32.mrb[0].mxu0
    %3448 = vmatprep.mubr.bf16.mxu0 0
    %3449 = vmatmul.mubr.bf16.gmra.mrb[0].mxu0 %v3395
    %v3450 = vpop.f32.mrb[0].mxu0
    %v3451 = vadd.f32 0.0, %v3450
    %v3452 = vpop.f32.mrb[0].mxu0
    %v3453 = vpop.f32.mrb[0].mxu0
    %v3454 = vadd.f32 0.0, %v3453
    %v3455 = vpop.f32.mrb[0].mxu0
    %3456 = vmatprep.mubr.bf16.mxu0 0
    %3457 = vmatmul.mubr.bf16.gmra.mrb[0].mxu0 %v3398
    %v3458 = vpop.f32.mrb[0].mxu0
    %v3459 = vadd.f32 0.0, %v3458
    %v3460 = vpop.f32.mrb[0].mxu0
    %v3461 = vpop.f32.mrb[0].mxu0
    %v3462 = vadd.f32 0.0, %v3461
    %v3463 = vpop.f32.mrb[0].mxu0
    %3464 = vdwg.mxu0
    %v3466 = vsel %vm2574, %v3287, 0
    %v3469 = vsel %vm2574, %v3288, 0
    %v3472 = vsel %vm2574, %v3289, 0
    %v3475 = vsel %vm2574, %v3290, 0
    %3477 = vmatprep.subr.bf16.mxu0 0
    %3478 = vmatpush1.bf16.msra.mxu0 %v2030
    %3479 = vmatprep.subr.bf16.mxu0 0
    %3480 = vmatpush1.bf16.msra.mxu0 %v2031
    %3481 = vmatprep.subr.bf16.mxu0 0
    %3482 = vmatpush1.bf16.msra.mxu0 %v2032
    %3483 = vmatprep.subr.bf16.mxu0 0
    %3484 = vmatpush1.bf16.msra.mxu0 %v2033
    %3485 = vmatprep.subr.bf16.mxu0 0
    %3486 = vmatpush1.bf16.msra.mxu0 0
    %3487 = vmatprep.subr.bf16.mxu0 0
    %3488 = vmatpush1.bf16.msra.mxu0 0
    %3489 = vmatprep.subr.bf16.mxu0 0
    %3490 = vmatpush1.bf16.msra.mxu0 0
    %3491 = vmatprep.subr.bf16.mxu0 0
    %3492 = vmatpush1.bf16.msra.mxu0 0
    %3493 = vmatprep.subr.bf16.mxu0 0
    %3494 = vmatpush1.bf16.msra.mxu0 0
    %3495 = vmatprep.subr.bf16.mxu0 0
    %3496 = vmatpush1.bf16.msra.mxu0 0
    %3497 = vmatprep.subr.bf16.mxu0 0
    %3498 = vmatpush1.bf16.msra.mxu0 0
    %3499 = vmatprep.subr.bf16.mxu0 0
    %3500 = vmatpush1.bf16.msra.mxu0 0
    %3501 = vmatprep.subr.bf16.mxu0 0
    %3502 = vmatpush1.bf16.msra.mxu0 0
    %3503 = vmatprep.subr.bf16.mxu0 0
    %3504 = vmatpush1.bf16.msra.mxu0 0
    %3505 = vmatprep.subr.bf16.mxu0 0
    %3506 = vmatpush1.bf16.msra.mxu0 0
    %3507 = vmatprep.subr.bf16.mxu0 0
    %3508 = vmatpush1.bf16.msra.mxu0 0
    %3509 = vmatprep.mubr.bf16.mxu0 0
    %3510 = vmatmul.mubr.bf16.gmra.mrb[0].mxu0 %v3466
    %v3511 = vpop.f32.mrb[0].mxu0
    %v3512 = vadd.f32 0.0, %v3511
    %v3513 = vpop.f32.mrb[0].mxu0
    %v3514 = vpop.f32.mrb[0].mxu0
    %v3515 = vadd.f32 0.0, %v3514
    %v3516 = vpop.f32.mrb[0].mxu0
    %3517 = vmatprep.mubr.bf16.mxu0 0
    %3518 = vmatmul.mubr.bf16.gmra.mrb[0].mxu0 %v3469
    %v3519 = vpop.f32.mrb[0].mxu0
    %v3520 = vadd.f32 0.0, %v3519
    %v3521 = vpop.f32.mrb[0].mxu0
    %v3522 = vpop.f32.mrb[0].mxu0
    %v3523 = vadd.f32 0.0, %v3522
    %v3524 = vpop.f32.mrb[0].mxu0
    %3525 = vmatprep.mubr.bf16.mxu0 0
    %3526 = vmatmul.mubr.bf16.gmra.mrb[0].mxu0 %v3472
    %v3527 = vpop.f32.mrb[0].mxu0
    %v3528 = vadd.f32 0.0, %v3527
    %v3529 = vpop.f32.mrb[0].mxu0
    %v3530 = vpop.f32.mrb[0].mxu0
    %v3531 = vadd.f32 0.0, %v3530
    %v3532 = vpop.f32.mrb[0].mxu0
    %3533 = vmatprep.mubr.bf16.mxu0 0
    %3534 = vmatmul.mubr.bf16.gmra.mrb[0].mxu0 %v3475
    %v3535 = vpop.f32.mrb[0].mxu0
    %v3536 = vadd.f32 0.0, %v3535
    %v3537 = vpop.f32.mrb[0].mxu0
    %v3538 = vpop.f32.mrb[0].mxu0
    %v3539 = vadd.f32 0.0, %v3538
    %v3540 = vpop.f32.mrb[0].mxu0
    %3541 = vdwg.mxu0
    %v3543 = vsel %vm2574, %v3291, 0
    %v3546 = vsel %vm2574, %v3292, 0
    %v3549 = vsel %vm2574, %v3293, 0
    %v3552 = vsel %vm2574, %v3294, 0
    %3554 = vmatprep.subr.bf16.mxu0 0
    %3555 = vmatpush1.bf16.msra.mxu0 %v2034
    %3556 = vmatprep.subr.bf16.mxu0 0
    %3557 = vmatpush1.bf16.msra.mxu0 %v2035
    %3558 = vmatprep.subr.bf16.mxu0 0
    %3559 = vmatpush1.bf16.msra.mxu0 %v2036
    %3560 = vmatprep.subr.bf16.mxu0 0
    %3561 = vmatpush1.bf16.msra.mxu0 %v2037
    %3562 = vmatprep.subr.bf16.mxu0 0
    %3563 = vmatpush1.bf16.msra.mxu0 0
    %3564 = vmatprep.subr.bf16.mxu0 0
    %3565 = vmatpush1.bf16.msra.mxu0 0
    %3566 = vmatprep.subr.bf16.mxu0 0
    %3567 = vmatpush1.bf16.msra.mxu0 0
    %3568 = vmatprep.subr.bf16.mxu0 0
    %3569 = vmatpush1.bf16.msra.mxu0 0
    %3570 = vmatprep.subr.bf16.mxu0 0
    %3571 = vmatpush1.bf16.msra.mxu0 0
    %3572 = vmatprep.subr.bf16.mxu0 0
    %3573 = vmatpush1.bf16.msra.mxu0 0
    %3574 = vmatprep.subr.bf16.mxu0 0
    %3575 = vmatpush1.bf16.msra.mxu0 0
    %3576 = vmatprep.subr.bf16.mxu0 0
    %3577 = vmatpush1.bf16.msra.mxu0 0
    %3578 = vmatprep.subr.bf16.mxu0 0
    %3579 = vmatpush1.bf16.msra.mxu0 0
    %3580 = vmatprep.subr.bf16.mxu0 0
    %3581 = vmatpush1.bf16.msra.mxu0 0
    %3582 = vmatprep.subr.bf16.mxu0 0
    %3583 = vmatpush1.bf16.msra.mxu0 0
    %3584 = vmatprep.subr.bf16.mxu0 0
    %3585 = vmatpush1.bf16.msra.mxu0 0
    %3586 = vmatprep.mubr.bf16.mxu0 0
    %3587 = vmatmul.mubr.bf16.gmra.mrb[0].mxu0 %v3543
    %v3588 = vpop.f32.mrb[0].mxu0
    %v3589 = vadd.f32 0.0, %v3588
    %v3590 = vpop.f32.mrb[0].mxu0
    %v3591 = vpop.f32.mrb[0].mxu0
    %v3592 = vadd.f32 0.0, %v3591
    %v3593 = vpop.f32.mrb[0].mxu0
    %3594 = vmatprep.mubr.bf16.mxu0 0
    %3595 = vmatmul.mubr.bf16.gmra.mrb[0].mxu0 %v3546
    %v3596 = vpop.f32.mrb[0].mxu0
    %v3597 = vadd.f32 0.0, %v3596
    %v3598 = vpop.f32.mrb[0].mxu0
    %v3599 = vpop.f32.mrb[0].mxu0
    %v3600 = vadd.f32 0.0, %v3599
    %v3601 = vpop.f32.mrb[0].mxu0
    %3602 = vmatprep.mubr.bf16.mxu0 0
    %3603 = vmatmul.mubr.bf16.gmra.mrb[0].mxu0 %v3549
    %v3604 = vpop.f32.mrb[0].mxu0
    %v3605 = vadd.f32 0.0, %v3604
    %v3606 = vpop.f32.mrb[0].mxu0
    %v3607 = vpop.f32.mrb[0].mxu0
    %v3608 = vadd.f32 0.0, %v3607
    %v3609 = vpop.f32.mrb[0].mxu0
    %3610 = vmatprep.mubr.bf16.mxu0 0
    %3611 = vmatmul.mubr.bf16.gmra.mrb[0].mxu0 %v3552
    %v3612 = vpop.f32.mrb[0].mxu0
    %v3613 = vadd.f32 0.0, %v3612
    %v3614 = vpop.f32.mrb[0].mxu0
    %v3615 = vpop.f32.mrb[0].mxu0
    %v3616 = vadd.f32 0.0, %v3615
    %v3617 = vpop.f32.mrb[0].mxu0
    %3618 = vdwg.mxu0
    %v3620 = vsel %vm2574, %v3295, 0
    %v3623 = vsel %vm2574, %v3296, 0
    %v3626 = vsel %vm2574, %v3297, 0
    %v3629 = vsel %vm2574, %v3298, 0
    %3631 = vmatprep.subr.bf16.mxu0 0
    %3632 = vmatpush1.bf16.msra.mxu0 %v2038
    %3633 = vmatprep.subr.bf16.mxu0 0
    %3634 = vmatpush1.bf16.msra.mxu0 %v2039
    %3635 = vmatprep.subr.bf16.mxu0 0
    %3636 = vmatpush1.bf16.msra.mxu0 %v2040
    %3637 = vmatprep.subr.bf16.mxu0 0
    %3638 = vmatpush1.bf16.msra.mxu0 %v2041
    %3639 = vmatprep.subr.bf16.mxu0 0
    %3640 = vmatpush1.bf16.msra.mxu0 0
    %3641 = vmatprep.subr.bf16.mxu0 0
    %3642 = vmatpush1.bf16.msra.mxu0 0
    %3643 = vmatprep.subr.bf16.mxu0 0
    %3644 = vmatpush1.bf16.msra.mxu0 0
    %3645 = vmatprep.subr.bf16.mxu0 0
    %3646 = vmatpush1.bf16.msra.mxu0 0
    %3647 = vmatprep.subr.bf16.mxu0 0
    %3648 = vmatpush1.bf16.msra.mxu0 0
    %3649 = vmatprep.subr.bf16.mxu0 0
    %3650 = vmatpush1.bf16.msra.mxu0 0
    %3651 = vmatprep.subr.bf16.mxu0 0
    %3652 = vmatpush1.bf16.msra.mxu0 0
    %3653 = vmatprep.subr.bf16.mxu0 0
    %3654 = vmatpush1.bf16.msra.mxu0 0
    %3655 = vmatprep.subr.bf16.mxu0 0
    %3656 = vmatpush1.bf16.msra.mxu0 0
    %3657 = vmatprep.subr.bf16.mxu0 0
    %3658 = vmatpush1.bf16.msra.mxu0 0
    %3659 = vmatprep.subr.bf16.mxu0 0
    %3660 = vmatpush1.bf16.msra.mxu0 0
    %3661 = vmatprep.subr.bf16.mxu0 0
    %3662 = vmatpush1.bf16.msra.mxu0 0
    %3663 = vmatprep.mubr.bf16.mxu0 0
    %3664 = vmatmul.mubr.bf16.gmra.mrb[0].mxu0 %v3620
    %v3665 = vpop.f32.mrb[0].mxu0
    %v3666 = vadd.f32 0.0, %v3665
    %v3667 = vpop.f32.mrb[0].mxu0
    %v3668 = vpop.f32.mrb[0].mxu0
    %v3669 = vadd.f32 0.0, %v3668
    %v3670 = vpop.f32.mrb[0].mxu0
    %3671 = vmatprep.mubr.bf16.mxu0 0
    %3672 = vmatmul.mubr.bf16.gmra.mrb[0].mxu0 %v3623
    %v3673 = vpop.f32.mrb[0].mxu0
    %v3674 = vadd.f32 0.0, %v3673
    %v3675 = vpop.f32.mrb[0].mxu0
    %v3676 = vpop.f32.mrb[0].mxu0
    %v3677 = vadd.f32 0.0, %v3676
    %v3678 = vpop.f32.mrb[0].mxu0
    %3679 = vmatprep.mubr.bf16.mxu0 0
    %3680 = vmatmul.mubr.bf16.gmra.mrb[0].mxu0 %v3626
    %v3681 = vpop.f32.mrb[0].mxu0
    %v3682 = vadd.f32 0.0, %v3681
    %v3683 = vpop.f32.mrb[0].mxu0
    %v3684 = vpop.f32.mrb[0].mxu0
    %v3685 = vadd.f32 0.0, %v3684
    %v3686 = vpop.f32.mrb[0].mxu0
    %3687 = vmatprep.mubr.bf16.mxu0 0
    %3688 = vmatmul.mubr.bf16.gmra.mrb[0].mxu0 %v3629
    %v3689 = vpop.f32.mrb[0].mxu0
    %v3690 = vadd.f32 0.0, %v3689
    %v3691 = vpop.f32.mrb[0].mxu0
    %v3692 = vpop.f32.mrb[0].mxu0
    %v3693 = vadd.f32 0.0, %v3692
    %v3694 = vpop.f32.mrb[0].mxu0
    %3695 = vdwg.mxu0
    %v3697 = vsel %vm2574, %v3299, 0
    %v3700 = vsel %vm2574, %v3300, 0
    %v3703 = vsel %vm2574, %v3301, 0
    %v3706 = vsel %vm2574, %v3302, 0
    %3708 = vmatprep.subr.bf16.mxu0 0
    %3709 = vmatpush1.bf16.msra.mxu0 %v2042
    %3710 = vmatprep.subr.bf16.mxu0 0
    %3711 = vmatpush1.bf16.msra.mxu0 %v2043
    %3712 = vmatprep.subr.bf16.mxu0 0
    %3713 = vmatpush1.bf16.msra.mxu0 %v2044
    %3714 = vmatprep.subr.bf16.mxu0 0
    %3715 = vmatpush1.bf16.msra.mxu0 %v2045
    %3716 = vmatprep.subr.bf16.mxu0 0
    %3717 = vmatpush1.bf16.msra.mxu0 0
    %3718 = vmatprep.subr.bf16.mxu0 0
    %3719 = vmatpush1.bf16.msra.mxu0 0
    %3720 = vmatprep.subr.bf16.mxu0 0
    %3721 = vmatpush1.bf16.msra.mxu0 0
    %3722 = vmatprep.subr.bf16.mxu0 0
    %3723 = vmatpush1.bf16.msra.mxu0 0
    %3724 = vmatprep.subr.bf16.mxu0 0
    %3725 = vmatpush1.bf16.msra.mxu0 0
    %3726 = vmatprep.subr.bf16.mxu0 0
    %3727 = vmatpush1.bf16.msra.mxu0 0
    %3728 = vmatprep.subr.bf16.mxu0 0
    %3729 = vmatpush1.bf16.msra.mxu0 0
    %3730 = vmatprep.subr.bf16.mxu0 0
    %3731 = vmatpush1.bf16.msra.mxu0 0
    %3732 = vmatprep.subr.bf16.mxu0 0
    %3733 = vmatpush1.bf16.msra.mxu0 0
    %3734 = vmatprep.subr.bf16.mxu0 0
    %3735 = vmatpush1.bf16.msra.mxu0 0
    %3736 = vmatprep.subr.bf16.mxu0 0
    %3737 = vmatpush1.bf16.msra.mxu0 0
    %3738 = vmatprep.subr.bf16.mxu0 0
    %3739 = vmatpush1.bf16.msra.mxu0 0
    %3740 = vmatprep.mubr.bf16.mxu0 0
    %3741 = vmatmul.mubr.bf16.gmra.mrb[0].mxu0 %v3697
    %v3742 = vpop.f32.mrb[0].mxu0
    %v3743 = vadd.f32 0.0, %v3742
    %v3744 = vpop.f32.mrb[0].mxu0
    %v3745 = vpop.f32.mrb[0].mxu0
    %v3746 = vadd.f32 0.0, %v3745
    %v3747 = vpop.f32.mrb[0].mxu0
    %3748 = vmatprep.mubr.bf16.mxu0 0
    %3749 = vmatmul.mubr.bf16.gmra.mrb[0].mxu0 %v3700
    %v3750 = vpop.f32.mrb[0].mxu0
    %v3751 = vadd.f32 0.0, %v3750
    %v3752 = vpop.f32.mrb[0].mxu0
    %v3753 = vpop.f32.mrb[0].mxu0
    %v3754 = vadd.f32 0.0, %v3753
    %v3755 = vpop.f32.mrb[0].mxu0
    %3756 = vmatprep.mubr.bf16.mxu0 0
    %3757 = vmatmul.mubr.bf16.gmra.mrb[0].mxu0 %v3703
    %v3758 = vpop.f32.mrb[0].mxu0
    %v3759 = vadd.f32 0.0, %v3758
    %v3760 = vpop.f32.mrb[0].mxu0
    %v3761 = vpop.f32.mrb[0].mxu0
    %v3762 = vadd.f32 0.0, %v3761
    %v3763 = vpop.f32.mrb[0].mxu0
    %3764 = vmatprep.mubr.bf16.mxu0 0
    %3765 = vmatmul.mubr.bf16.gmra.mrb[0].mxu0 %v3706
    %v3766 = vpop.f32.mrb[0].mxu0
    %v3767 = vadd.f32 0.0, %v3766
    %v3768 = vpop.f32.mrb[0].mxu0
    %v3769 = vpop.f32.mrb[0].mxu0
    %v3770 = vadd.f32 0.0, %v3769
    %v3771 = vpop.f32.mrb[0].mxu0
    %3772 = vdwg.mxu0
    %v3774 = vsel %vm2574, %v3303, 0
    %v3777 = vsel %vm2574, %v3304, 0
    %v3780 = vsel %vm2574, %v3305, 0
    %v3783 = vsel %vm2574, %v3306, 0
    %3785 = vmatprep.subr.bf16.mxu0 0
    %3786 = vmatpush1.bf16.msra.mxu0 %v2046
    %3787 = vmatprep.subr.bf16.mxu0 0
    %3788 = vmatpush1.bf16.msra.mxu0 %v2047
    %3789 = vmatprep.subr.bf16.mxu0 0
    %3790 = vmatpush1.bf16.msra.mxu0 %v2048
    %3791 = vmatprep.subr.bf16.mxu0 0
    %3792 = vmatpush1.bf16.msra.mxu0 %v2049
    %3793 = vmatprep.subr.bf16.mxu0 0
    %3794 = vmatpush1.bf16.msra.mxu0 0
    %3795 = vmatprep.subr.bf16.mxu0 0
    %3796 = vmatpush1.bf16.msra.mxu0 0
    %3797 = vmatprep.subr.bf16.mxu0 0
    %3798 = vmatpush1.bf16.msra.mxu0 0
    %3799 = vmatprep.subr.bf16.mxu0 0
    %3800 = vmatpush1.bf16.msra.mxu0 0
    %3801 = vmatprep.subr.bf16.mxu0 0
    %3802 = vmatpush1.bf16.msra.mxu0 0
    %3803 = vmatprep.subr.bf16.mxu0 0
    %3804 = vmatpush1.bf16.msra.mxu0 0
    %3805 = vmatprep.subr.bf16.mxu0 0
    %3806 = vmatpush1.bf16.msra.mxu0 0
    %3807 = vmatprep.subr.bf16.mxu0 0
    %3808 = vmatpush1.bf16.msra.mxu0 0
    %3809 = vmatprep.subr.bf16.mxu0 0
    %3810 = vmatpush1.bf16.msra.mxu0 0
    %3811 = vmatprep.subr.bf16.mxu0 0
    %3812 = vmatpush1.bf16.msra.mxu0 0
    %3813 = vmatprep.subr.bf16.mxu0 0
    %3814 = vmatpush1.bf16.msra.mxu0 0
    %3815 = vmatprep.subr.bf16.mxu0 0
    %3816 = vmatpush1.bf16.msra.mxu0 0
    %3817 = vmatprep.mubr.bf16.mxu0 0
    %3818 = vmatmul.mubr.bf16.gmra.mrb[0].mxu0 %v3774
    %v3819 = vpop.f32.mrb[0].mxu0
    %v3820 = vadd.f32 0.0, %v3819
    %v3821 = vpop.f32.mrb[0].mxu0
    %v3822 = vpop.f32.mrb[0].mxu0
    %v3823 = vadd.f32 0.0, %v3822
    %v3824 = vpop.f32.mrb[0].mxu0
    %3825 = vmatprep.mubr.bf16.mxu0 0
    %3826 = vmatmul.mubr.bf16.gmra.mrb[0].mxu0 %v3777
    %v3827 = vpop.f32.mrb[0].mxu0
    %v3828 = vadd.f32 0.0, %v3827
    %v3829 = vpop.f32.mrb[0].mxu0
    %v3830 = vpop.f32.mrb[0].mxu0
    %v3831 = vadd.f32 0.0, %v3830
    %v3832 = vpop.f32.mrb[0].mxu0
    %3833 = vmatprep.mubr.bf16.mxu0 0
    %3834 = vmatmul.mubr.bf16.gmra.mrb[0].mxu0 %v3780
    %v3835 = vpop.f32.mrb[0].mxu0
    %v3836 = vadd.f32 0.0, %v3835
    %v3837 = vpop.f32.mrb[0].mxu0
    %v3838 = vpop.f32.mrb[0].mxu0
    %v3839 = vadd.f32 0.0, %v3838
    %v3840 = vpop.f32.mrb[0].mxu0
    %3841 = vmatprep.mubr.bf16.mxu0 0
    %3842 = vmatmul.mubr.bf16.gmra.mrb[0].mxu0 %v3783
    %v3843 = vpop.f32.mrb[0].mxu0
    %v3844 = vadd.f32 0.0, %v3843
    %v3845 = vpop.f32.mrb[0].mxu0
    %v3846 = vpop.f32.mrb[0].mxu0
    %v3847 = vadd.f32 0.0, %v3846
    %v3848 = vpop.f32.mrb[0].mxu0
    %3849 = vdwg.mxu0
    %v3851 = vsel %vm2574, %v3307, 0
    %v3854 = vsel %vm2574, %v3308, 0
    %v3857 = vsel %vm2574, %v3309, 0
    %v3860 = vsel %vm2574, %v3310, 0
    %3862 = vmatprep.subr.bf16.mxu0 0
    %3863 = vmatpush1.bf16.msra.mxu0 %v2050
    %3864 = vmatprep.subr.bf16.mxu0 0
    %3865 = vmatpush1.bf16.msra.mxu0 %v2051
    %3866 = vmatprep.subr.bf16.mxu0 0
    %3867 = vmatpush1.bf16.msra.mxu0 %v2052
    %3868 = vmatprep.subr.bf16.mxu0 0
    %3869 = vmatpush1.bf16.msra.mxu0 %v2053
    %3870 = vmatprep.subr.bf16.mxu0 0
    %3871 = vmatpush1.bf16.msra.mxu0 0
    %3872 = vmatprep.subr.bf16.mxu0 0
    %3873 = vmatpush1.bf16.msra.mxu0 0
    %3874 = vmatprep.subr.bf16.mxu0 0
    %3875 = vmatpush1.bf16.msra.mxu0 0
    %3876 = vmatprep.subr.bf16.mxu0 0
    %3877 = vmatpush1.bf16.msra.mxu0 0
    %3878 = vmatprep.subr.bf16.mxu0 0
    %3879 = vmatpush1.bf16.msra.mxu0 0
    %3880 = vmatprep.subr.bf16.mxu0 0
    %3881 = vmatpush1.bf16.msra.mxu0 0
    %3882 = vmatprep.subr.bf16.mxu0 0
    %3883 = vmatpush1.bf16.msra.mxu0 0
    %3884 = vmatprep.subr.bf16.mxu0 0
    %3885 = vmatpush1.bf16.msra.mxu0 0
    %3886 = vmatprep.subr.bf16.mxu0 0
    %3887 = vmatpush1.bf16.msra.mxu0 0
    %3888 = vmatprep.subr.bf16.mxu0 0
    %3889 = vmatpush1.bf16.msra.mxu0 0
    %3890 = vmatprep.subr.bf16.mxu0 0
    %3891 = vmatpush1.bf16.msra.mxu0 0
    %3892 = vmatprep.subr.bf16.mxu0 0
    %3893 = vmatpush1.bf16.msra.mxu0 0
    %3894 = vmatprep.mubr.bf16.mxu0 0
    %3895 = vmatmul.mubr.bf16.gmra.mrb[0].mxu0 %v3851
    %v3896 = vpop.f32.mrb[0].mxu0
    %v3897 = vadd.f32 0.0, %v3896
    %v3898 = vpop.f32.mrb[0].mxu0
    %v3899 = vpop.f32.mrb[0].mxu0
    %v3900 = vadd.f32 0.0, %v3899
    %v3901 = vpop.f32.mrb[0].mxu0
    %3902 = vmatprep.mubr.bf16.mxu0 0
    %3903 = vmatmul.mubr.bf16.gmra.mrb[0].mxu0 %v3854
    %v3904 = vpop.f32.mrb[0].mxu0
    %v3905 = vadd.f32 0.0, %v3904
    %v3906 = vpop.f32.mrb[0].mxu0
    %v3907 = vpop.f32.mrb[0].mxu0
    %v3908 = vadd.f32 0.0, %v3907
    %v3909 = vpop.f32.mrb[0].mxu0
    %3910 = vmatprep.mubr.bf16.mxu0 0
    %3911 = vmatmul.mubr.bf16.gmra.mrb[0].mxu0 %v3857
    %v3912 = vpop.f32.mrb[0].mxu0
    %v3913 = vadd.f32 0.0, %v3912
    %v3914 = vpop.f32.mrb[0].mxu0
    %v3915 = vpop.f32.mrb[0].mxu0
    %v3916 = vadd.f32 0.0, %v3915
    %v3917 = vpop.f32.mrb[0].mxu0
    %3918 = vmatprep.mubr.bf16.mxu0 0
    %3919 = vmatmul.mubr.bf16.gmra.mrb[0].mxu0 %v3860
    %v3920 = vpop.f32.mrb[0].mxu0
    %v3921 = vadd.f32 0.0, %v3920
    %v3922 = vpop.f32.mrb[0].mxu0
    %v3923 = vpop.f32.mrb[0].mxu0
    %v3924 = vadd.f32 0.0, %v3923
    %v3925 = vpop.f32.mrb[0].mxu0
    %3926 = vdwg.mxu0
    %v3927 = vadd.f32 %v94, %v3358
    %v3928 = vadd.f32 %v95, %v3361
    %v3929 = vadd.f32 %v96, %v3366
    %v3930 = vadd.f32 %v97, %v3369
    %v3931 = vadd.f32 %v98, %v3374
    %v3932 = vadd.f32 %v99, %v3377
    %v3933 = vadd.f32 %v100, %v3382
    %v3934 = vadd.f32 %v101, %v3385
    %v3935 = vadd.f32 %v102, %v3435
    %v3936 = vadd.f32 %v103, %v3438
    %v3937 = vadd.f32 %v104, %v3443
    %v3938 = vadd.f32 %v105, %v3446
    %v3939 = vadd.f32 %v106, %v3451
    %v3940 = vadd.f32 %v107, %v3454
    %v3941 = vadd.f32 %v108, %v3459
    %v3942 = vadd.f32 %v109, %v3462
    %v3943 = vadd.f32 %v110, %v3512
    %v3944 = vadd.f32 %v111, %v3515
    %v3945 = vadd.f32 %v112, %v3520
    %v3946 = vadd.f32 %v113, %v3523
    %v3947 = vadd.f32 %v114, %v3528
    %v3948 = vadd.f32 %v115, %v3531
    %v3949 = vadd.f32 %v116, %v3536
    %v3950 = vadd.f32 %v117, %v3539
    %v3951 = vadd.f32 %v118, %v3589
    %v3952 = vadd.f32 %v119, %v3592
    %v3953 = vadd.f32 %v120, %v3597
    %v3954 = vadd.f32 %v121, %v3600
    %v3955 = vadd.f32 %v122, %v3605
    %v3956 = vadd.f32 %v123, %v3608
    %v3957 = vadd.f32 %v124, %v3613
    %v3958 = vadd.f32 %v125, %v3616
    %v3959 = vadd.f32 %v126, %v3666
    %v3960 = vadd.f32 %v127, %v3669
    %v3961 = vadd.f32 %v128, %v3674
    %v3962 = vadd.f32 %v129, %v3677
    %v3963 = vadd.f32 %v130, %v3682
    %v3964 = vadd.f32 %v131, %v3685
    %v3965 = vadd.f32 %v132, %v3690
    %v3966 = vadd.f32 %v133, %v3693
    %v3967 = vadd.f32 %v134, %v3743
    %v3968 = vadd.f32 %v135, %v3746
    %v3969 = vadd.f32 %v136, %v3751
    %v3970 = vadd.f32 %v137, %v3754
    %v3971 = vadd.f32 %v138, %v3759
    %v3972 = vadd.f32 %v139, %v3762
    %v3973 = vadd.f32 %v140, %v3767
    %v3974 = vadd.f32 %v141, %v3770
    %v3975 = vadd.f32 %v142, %v3820
    %v3976 = vadd.f32 %v143, %v3823
    %v3977 = vadd.f32 %v144, %v3828
    %v3978 = vadd.f32 %v145, %v3831
    %v3979 = vadd.f32 %v146, %v3836
    %v3980 = vadd.f32 %v147, %v3839
    %v3981 = vadd.f32 %v148, %v3844
    %v3982 = vadd.f32 %v149, %v3847
    %v3983 = vadd.f32 %v150, %v3897
    %v3984 = vadd.f32 %v151, %v3900
    %v3985 = vadd.f32 %v152, %v3905
    %v3986 = vadd.f32 %v153, %v3908
    %v3987 = vadd.f32 %v154, %v3913
    %v3988 = vadd.f32 %v155, %v3916
    %v3989 = vadd.f32 %v156, %v3921
    %v3990 = vadd.f32 %v157, %v3924
    %v3991 = vsel %vm158, %v3927, 0.0
    %3992 = vadd.xlane.f32.xlu0 %v3991
    %v3993 = vpop.xlane.xlu0 %3992
    %v3994 = vsel %vm158, %v3928, 0.0
    %3995 = vadd.xlane.f32.xlu0 %v3994
    %v3996 = vpop.xlane.xlu0 %3995
    %v3997 = vsel %vm158, %v3929, 0.0
    %3998 = vadd.xlane.f32.xlu0 %v3997
    %v3999 = vpop.xlane.xlu0 %3998
    %v4000 = vsel %vm158, %v3930, 0.0
    %4001 = vadd.xlane.f32.xlu0 %v4000
    %v4002 = vpop.xlane.xlu0 %4001
    %v4003 = vsel %vm158, %v3931, 0.0
    %4004 = vadd.xlane.f32.xlu0 %v4003
    %v4005 = vpop.xlane.xlu0 %4004
    %v4006 = vsel %vm158, %v3932, 0.0
    %4007 = vadd.xlane.f32.xlu0 %v4006
    %v4008 = vpop.xlane.xlu0 %4007
    %v4009 = vsel %vm158, %v3933, 0.0
    %4010 = vadd.xlane.f32.xlu0 %v4009
    %v4011 = vpop.xlane.xlu0 %4010
    %v4012 = vsel %vm158, %v3934, 0.0
    %4013 = vadd.xlane.f32.xlu0 %v4012
    %v4014 = vpop.xlane.xlu0 %4013
    %v4015 = vsel %vm158, %v3935, 0.0
    %4016 = vadd.xlane.f32.xlu0 %v4015
    %v4017 = vpop.xlane.xlu0 %4016
    %v4018 = vsel %vm158, %v3936, 0.0
    %4019 = vadd.xlane.f32.xlu0 %v4018
    %v4020 = vpop.xlane.xlu0 %4019
    %v4021 = vsel %vm158, %v3937, 0.0
    %4022 = vadd.xlane.f32.xlu0 %v4021
    %v4023 = vpop.xlane.xlu0 %4022
    %v4024 = vsel %vm158, %v3938, 0.0
    %4025 = vadd.xlane.f32.xlu0 %v4024
    %v4026 = vpop.xlane.xlu0 %4025
    %v4027 = vsel %vm158, %v3939, 0.0
    %4028 = vadd.xlane.f32.xlu0 %v4027
    %v4029 = vpop.xlane.xlu0 %4028
    %v4030 = vsel %vm158, %v3940, 0.0
    %4031 = vadd.xlane.f32.xlu0 %v4030
    %v4032 = vpop.xlane.xlu0 %4031
    %v4033 = vsel %vm158, %v3941, 0.0
    %4034 = vadd.xlane.f32.xlu0 %v4033
    %v4035 = vpop.xlane.xlu0 %4034
    %v4036 = vsel %vm158, %v3942, 0.0
    %4037 = vadd.xlane.f32.xlu0 %v4036
    %v4038 = vpop.xlane.xlu0 %4037
    %v4039 = vsel %vm158, %v3943, 0.0
    %4040 = vadd.xlane.f32.xlu0 %v4039
    %v4041 = vpop.xlane.xlu0 %4040
    %v4042 = vsel %vm158, %v3944, 0.0
    %4043 = vadd.xlane.f32.xlu0 %v4042
    %v4044 = vpop.xlane.xlu0 %4043
    %v4045 = vsel %vm158, %v3945, 0.0
    %4046 = vadd.xlane.f32.xlu0 %v4045
    %v4047 = vpop.xlane.xlu0 %4046
    %v4048 = vsel %vm158, %v3946, 0.0
    %4049 = vadd.xlane.f32.xlu0 %v4048
    %v4050 = vpop.xlane.xlu0 %4049
    %v4051 = vsel %vm158, %v3947, 0.0
    %4052 = vadd.xlane.f32.xlu0 %v4051
    %v4053 = vpop.xlane.xlu0 %4052
    %v4054 = vsel %vm158, %v3948, 0.0
    %4055 = vadd.xlane.f32.xlu0 %v4054
    %v4056 = vpop.xlane.xlu0 %4055
    %v4057 = vsel %vm158, %v3949, 0.0
    %4058 = vadd.xlane.f32.xlu0 %v4057
    %v4059 = vpop.xlane.xlu0 %4058
    %v4060 = vsel %vm158, %v3950, 0.0
    %4061 = vadd.xlane.f32.xlu0 %v4060
    %v4062 = vpop.xlane.xlu0 %4061
    %v4063 = vsel %vm158, %v3951, 0.0
    %4064 = vadd.xlane.f32.xlu0 %v4063
    %v4065 = vpop.xlane.xlu0 %4064
    %v4066 = vsel %vm158, %v3952, 0.0
    %4067 = vadd.xlane.f32.xlu0 %v4066
    %v4068 = vpop.xlane.xlu0 %4067
    %v4069 = vsel %vm158, %v3953, 0.0
    %4070 = vadd.xlane.f32.xlu0 %v4069
    %v4071 = vpop.xlane.xlu0 %4070
    %v4072 = vsel %vm158, %v3954, 0.0
    %4073 = vadd.xlane.f32.xlu0 %v4072
    %v4074 = vpop.xlane.xlu0 %4073
    %v4075 = vsel %vm158, %v3955, 0.0
    %4076 = vadd.xlane.f32.xlu0 %v4075
    %v4077 = vpop.xlane.xlu0 %4076
    %v4078 = vsel %vm158, %v3956, 0.0
    %4079 = vadd.xlane.f32.xlu0 %v4078
    %v4080 = vpop.xlane.xlu0 %4079
    %v4081 = vsel %vm158, %v3957, 0.0
    %4082 = vadd.xlane.f32.xlu0 %v4081
    %v4083 = vpop.xlane.xlu0 %4082
    %v4084 = vsel %vm158, %v3958, 0.0
    %4085 = vadd.xlane.f32.xlu0 %v4084
    %v4086 = vpop.xlane.xlu0 %4085
    %v4087 = vsel %vm158, %v3959, 0.0
    %4088 = vadd.xlane.f32.xlu0 %v4087
    %v4089 = vpop.xlane.xlu0 %4088
    %v4090 = vsel %vm158, %v3960, 0.0
    %4091 = vadd.xlane.f32.xlu0 %v4090
    %v4092 = vpop.xlane.xlu0 %4091
    %v4093 = vsel %vm158, %v3961, 0.0
    %4094 = vadd.xlane.f32.xlu0 %v4093
    %v4095 = vpop.xlane.xlu0 %4094
    %v4096 = vsel %vm158, %v3962, 0.0
    %4097 = vadd.xlane.f32.xlu0 %v4096
    %v4098 = vpop.xlane.xlu0 %4097
    %v4099 = vsel %vm158, %v3963, 0.0
    %4100 = vadd.xlane.f32.xlu0 %v4099
    %v4101 = vpop.xlane.xlu0 %4100
    %v4102 = vsel %vm158, %v3964, 0.0
    %4103 = vadd.xlane.f32.xlu0 %v4102
    %v4104 = vpop.xlane.xlu0 %4103
    %v4105 = vsel %vm158, %v3965, 0.0
    %4106 = vadd.xlane.f32.xlu0 %v4105
    %v4107 = vpop.xlane.xlu0 %4106
    %v4108 = vsel %vm158, %v3966, 0.0
    %4109 = vadd.xlane.f32.xlu0 %v4108
    %v4110 = vpop.xlane.xlu0 %4109
    %v4111 = vsel %vm158, %v3967, 0.0
    %4112 = vadd.xlane.f32.xlu0 %v4111
    %v4113 = vpop.xlane.xlu0 %4112
    %v4114 = vsel %vm158, %v3968, 0.0
    %4115 = vadd.xlane.f32.xlu0 %v4114
    %v4116 = vpop.xlane.xlu0 %4115
    %v4117 = vsel %vm158, %v3969, 0.0
    %4118 = vadd.xlane.f32.xlu0 %v4117
    %v4119 = vpop.xlane.xlu0 %4118
    %v4120 = vsel %vm158, %v3970, 0.0
    %4121 = vadd.xlane.f32.xlu0 %v4120
    %v4122 = vpop.xlane.xlu0 %4121
    %v4123 = vsel %vm158, %v3971, 0.0
    %4124 = vadd.xlane.f32.xlu0 %v4123
    %v4125 = vpop.xlane.xlu0 %4124
    %v4126 = vsel %vm158, %v3972, 0.0
    %4127 = vadd.xlane.f32.xlu0 %v4126
    %v4128 = vpop.xlane.xlu0 %4127
    %v4129 = vsel %vm158, %v3973, 0.0
    %4130 = vadd.xlane.f32.xlu0 %v4129
    %v4131 = vpop.xlane.xlu0 %4130
    %v4132 = vsel %vm158, %v3974, 0.0
    %4133 = vadd.xlane.f32.xlu0 %v4132
    %v4134 = vpop.xlane.xlu0 %4133
    %v4135 = vsel %vm158, %v3975, 0.0
    %4136 = vadd.xlane.f32.xlu0 %v4135
    %v4137 = vpop.xlane.xlu0 %4136
    %v4138 = vsel %vm158, %v3976, 0.0
    %4139 = vadd.xlane.f32.xlu0 %v4138
    %v4140 = vpop.xlane.xlu0 %4139
    %v4141 = vsel %vm158, %v3977, 0.0
    %4142 = vadd.xlane.f32.xlu0 %v4141
    %v4143 = vpop.xlane.xlu0 %4142
    %v4144 = vsel %vm158, %v3978, 0.0
    %4145 = vadd.xlane.f32.xlu0 %v4144
    %v4146 = vpop.xlane.xlu0 %4145
    %v4147 = vsel %vm158, %v3979, 0.0
    %4148 = vadd.xlane.f32.xlu0 %v4147
    %v4149 = vpop.xlane.xlu0 %4148
    %v4150 = vsel %vm158, %v3980, 0.0
    %4151 = vadd.xlane.f32.xlu0 %v4150
    %v4152 = vpop.xlane.xlu0 %4151
    %v4153 = vsel %vm158, %v3981, 0.0
    %4154 = vadd.xlane.f32.xlu0 %v4153
    %v4155 = vpop.xlane.xlu0 %4154
    %v4156 = vsel %vm158, %v3982, 0.0
    %4157 = vadd.xlane.f32.xlu0 %v4156
    %v4158 = vpop.xlane.xlu0 %4157
    %v4159 = vsel %vm158, %v3983, 0.0
    %4160 = vadd.xlane.f32.xlu0 %v4159
    %v4161 = vpop.xlane.xlu0 %4160
    %v4162 = vsel %vm158, %v3984, 0.0
    %4163 = vadd.xlane.f32.xlu0 %v4162
    %v4164 = vpop.xlane.xlu0 %4163
    %v4165 = vsel %vm158, %v3985, 0.0
    %4166 = vadd.xlane.f32.xlu0 %v4165
    %v4167 = vpop.xlane.xlu0 %4166
    %v4168 = vsel %vm158, %v3986, 0.0
    %4169 = vadd.xlane.f32.xlu0 %v4168
    %v4170 = vpop.xlane.xlu0 %4169
    %v4171 = vsel %vm158, %v3987, 0.0
    %4172 = vadd.xlane.f32.xlu0 %v4171
    %v4173 = vpop.xlane.xlu0 %4172
    %v4174 = vsel %vm158, %v3988, 0.0
    %4175 = vadd.xlane.f32.xlu0 %v4174
    %v4176 = vpop.xlane.xlu0 %4175
    %v4177 = vsel %vm158, %v3989, 0.0
    %4178 = vadd.xlane.f32.xlu0 %v4177
    %v4179 = vpop.xlane.xlu0 %4178
    %v4180 = vsel %vm158, %v3990, 0.0
    %4181 = vadd.xlane.f32.xlu0 %v4180
    %v4182 = vpop.xlane.xlu0 %4181
    %v4183 = vmul.f32 %v3993, %v351
    %v4184 = vmul.f32 %v3996, %v351
    %v4185 = vmul.f32 %v3999, %v351
    %v4186 = vmul.f32 %v4002, %v351
    %v4187 = vmul.f32 %v4005, %v351
    %v4188 = vmul.f32 %v4008, %v351
    %v4189 = vmul.f32 %v4011, %v351
    %v4190 = vmul.f32 %v4014, %v351
    %v4191 = vmul.f32 %v4017, %v351
    %v4192 = vmul.f32 %v4020, %v351
    %v4193 = vmul.f32 %v4023, %v351
    %v4194 = vmul.f32 %v4026, %v351
    %v4195 = vmul.f32 %v4029, %v351
    %v4196 = vmul.f32 %v4032, %v351
    %v4197 = vmul.f32 %v4035, %v351
    %v4198 = vmul.f32 %v4038, %v351
    %v4199 = vmul.f32 %v4041, %v351
    %v4200 = vmul.f32 %v4044, %v351
    %v4201 = vmul.f32 %v4047, %v351
    %v4202 = vmul.f32 %v4050, %v351
    %v4203 = vmul.f32 %v4053, %v351
    %v4204 = vmul.f32 %v4056, %v351
    %v4205 = vmul.f32 %v4059, %v351
    %v4206 = vmul.f32 %v4062, %v351
    %v4207 = vmul.f32 %v4065, %v351
    %v4208 = vmul.f32 %v4068, %v351
    %v4209 = vmul.f32 %v4071, %v351
    %v4210 = vmul.f32 %v4074, %v351
    %v4211 = vmul.f32 %v4077, %v351
    %v4212 = vmul.f32 %v4080, %v351
    %v4213 = vmul.f32 %v4083, %v351
    %v4214 = vmul.f32 %v4086, %v351
    %v4215 = vmul.f32 %v4089, %v351
    %v4216 = vmul.f32 %v4092, %v351
    %v4217 = vmul.f32 %v4095, %v351
    %v4218 = vmul.f32 %v4098, %v351
    %v4219 = vmul.f32 %v4101, %v351
    %v4220 = vmul.f32 %v4104, %v351
    %v4221 = vmul.f32 %v4107, %v351
    %v4222 = vmul.f32 %v4110, %v351
    %v4223 = vmul.f32 %v4113, %v351
    %v4224 = vmul.f32 %v4116, %v351
    %v4225 = vmul.f32 %v4119, %v351
    %v4226 = vmul.f32 %v4122, %v351
    %v4227 = vmul.f32 %v4125, %v351
    %v4228 = vmul.f32 %v4128, %v351
    %v4229 = vmul.f32 %v4131, %v351
    %v4230 = vmul.f32 %v4134, %v351
    %v4231 = vmul.f32 %v4137, %v351
    %v4232 = vmul.f32 %v4140, %v351
    %v4233 = vmul.f32 %v4143, %v351
    %v4234 = vmul.f32 %v4146, %v351
    %v4235 = vmul.f32 %v4149, %v351
    %v4236 = vmul.f32 %v4152, %v351
    %v4237 = vmul.f32 %v4155, %v351
    %v4238 = vmul.f32 %v4158, %v351
    %v4239 = vmul.f32 %v4161, %v351
    %v4240 = vmul.f32 %v4164, %v351
    %v4241 = vmul.f32 %v4167, %v351
    %v4242 = vmul.f32 %v4170, %v351
    %v4243 = vmul.f32 %v4173, %v351
    %v4244 = vmul.f32 %v4176, %v351
    %v4245 = vmul.f32 %v4179, %v351
    %v4246 = vmul.f32 %v4182, %v351
    %v4247 = vsub.f32 %v3927, %v4183
    %v4248 = vsub.f32 %v3928, %v4184
    %v4249 = vsub.f32 %v3929, %v4185
    %v4250 = vsub.f32 %v3930, %v4186
    %v4251 = vsub.f32 %v3931, %v4187
    %v4252 = vsub.f32 %v3932, %v4188
    %v4253 = vsub.f32 %v3933, %v4189
    %v4254 = vsub.f32 %v3934, %v4190
    %v4255 = vsub.f32 %v3935, %v4191
    %v4256 = vsub.f32 %v3936, %v4192
    %v4257 = vsub.f32 %v3937, %v4193
    %v4258 = vsub.f32 %v3938, %v4194
    %v4259 = vsub.f32 %v3939, %v4195
    %v4260 = vsub.f32 %v3940, %v4196
    %v4261 = vsub.f32 %v3941, %v4197
    %v4262 = vsub.f32 %v3942, %v4198
    %v4263 = vsub.f32 %v3943, %v4199
    %v4264 = vsub.f32 %v3944, %v4200
    %v4265 = vsub.f32 %v3945, %v4201
    %v4266 = vsub.f32 %v3946, %v4202
    %v4267 = vsub.f32 %v3947, %v4203
    %v4268 = vsub.f32 %v3948, %v4204
    %v4269 = vsub.f32 %v3949, %v4205
    %v4270 = vsub.f32 %v3950, %v4206
    %v4271 = vsub.f32 %v3951, %v4207
    %v4272 = vsub.f32 %v3952, %v4208
    %v4273 = vsub.f32 %v3953, %v4209
    %v4274 = vsub.f32 %v3954, %v4210
    %v4275 = vsub.f32 %v3955, %v4211
    %v4276 = vsub.f32 %v3956, %v4212
    %v4277 = vsub.f32 %v3957, %v4213
    %v4278 = vsub.f32 %v3958, %v4214
    %v4279 = vsub.f32 %v3959, %v4215
    %v4280 = vsub.f32 %v3960, %v4216
    %v4281 = vsub.f32 %v3961, %v4217
    %v4282 = vsub.f32 %v3962, %v4218
    %v4283 = vsub.f32 %v3963, %v4219
    %v4284 = vsub.f32 %v3964, %v4220
    %v4285 = vsub.f32 %v3965, %v4221
    %v4286 = vsub.f32 %v3966, %v4222
    %v4287 = vsub.f32 %v3967, %v4223
    %v4288 = vsub.f32 %v3968, %v4224
    %v4289 = vsub.f32 %v3969, %v4225
    %v4290 = vsub.f32 %v3970, %v4226
    %v4291 = vsub.f32 %v3971, %v4227
    %v4292 = vsub.f32 %v3972, %v4228
    %v4293 = vsub.f32 %v3973, %v4229
    %v4294 = vsub.f32 %v3974, %v4230
    %v4295 = vsub.f32 %v3975, %v4231
    %v4296 = vsub.f32 %v3976, %v4232
    %v4297 = vsub.f32 %v3977, %v4233
    %v4298 = vsub.f32 %v3978, %v4234
    %v4299 = vsub.f32 %v3979, %v4235
    %v4300 = vsub.f32 %v3980, %v4236
    %v4301 = vsub.f32 %v3981, %v4237
    %v4302 = vsub.f32 %v3982, %v4238
    %v4303 = vsub.f32 %v3983, %v4239
    %v4304 = vsub.f32 %v3984, %v4240
    %v4305 = vsub.f32 %v3985, %v4241
    %v4306 = vsub.f32 %v3986, %v4242
    %v4307 = vsub.f32 %v3987, %v4243
    %v4308 = vsub.f32 %v3988, %v4244
    %v4309 = vsub.f32 %v3989, %v4245
    %v4310 = vsub.f32 %v3990, %v4246
    %v4311 = vmul.f32 %v4247, %v4247
    %v4312 = vmul.f32 %v4248, %v4248
    %v4313 = vmul.f32 %v4249, %v4249
    %v4314 = vmul.f32 %v4250, %v4250
    %v4315 = vmul.f32 %v4251, %v4251
    %v4316 = vmul.f32 %v4252, %v4252
    %v4317 = vmul.f32 %v4253, %v4253
    %v4318 = vmul.f32 %v4254, %v4254
    %v4319 = vmul.f32 %v4255, %v4255
    %v4320 = vmul.f32 %v4256, %v4256
    %v4321 = vmul.f32 %v4257, %v4257
    %v4322 = vmul.f32 %v4258, %v4258
    %v4323 = vmul.f32 %v4259, %v4259
    %v4324 = vmul.f32 %v4260, %v4260
    %v4325 = vmul.f32 %v4261, %v4261
    %v4326 = vmul.f32 %v4262, %v4262
    %v4327 = vmul.f32 %v4263, %v4263
    %v4328 = vmul.f32 %v4264, %v4264
    %v4329 = vmul.f32 %v4265, %v4265
    %v4330 = vmul.f32 %v4266, %v4266
    %v4331 = vmul.f32 %v4267, %v4267
    %v4332 = vmul.f32 %v4268, %v4268
    %v4333 = vmul.f32 %v4269, %v4269
    %v4334 = vmul.f32 %v4270, %v4270
    %v4335 = vmul.f32 %v4271, %v4271
    %v4336 = vmul.f32 %v4272, %v4272
    %v4337 = vmul.f32 %v4273, %v4273
    %v4338 = vmul.f32 %v4274, %v4274
    %v4339 = vmul.f32 %v4275, %v4275
    %v4340 = vmul.f32 %v4276, %v4276
    %v4341 = vmul.f32 %v4277, %v4277
    %v4342 = vmul.f32 %v4278, %v4278
    %v4343 = vmul.f32 %v4279, %v4279
    %v4344 = vmul.f32 %v4280, %v4280
    %v4345 = vmul.f32 %v4281, %v4281
    %v4346 = vmul.f32 %v4282, %v4282
    %v4347 = vmul.f32 %v4283, %v4283
    %v4348 = vmul.f32 %v4284, %v4284
    %v4349 = vmul.f32 %v4285, %v4285
    %v4350 = vmul.f32 %v4286, %v4286
    %v4351 = vmul.f32 %v4287, %v4287
    %v4352 = vmul.f32 %v4288, %v4288
    %v4353 = vmul.f32 %v4289, %v4289
    %v4354 = vmul.f32 %v4290, %v4290
    %v4355 = vmul.f32 %v4291, %v4291
    %v4356 = vmul.f32 %v4292, %v4292
    %v4357 = vmul.f32 %v4293, %v4293
    %v4358 = vmul.f32 %v4294, %v4294
    %v4359 = vmul.f32 %v4295, %v4295
    %v4360 = vmul.f32 %v4296, %v4296
    %v4361 = vmul.f32 %v4297, %v4297
    %v4362 = vmul.f32 %v4298, %v4298
    %v4363 = vmul.f32 %v4299, %v4299
    %v4364 = vmul.f32 %v4300, %v4300
    %v4365 = vmul.f32 %v4301, %v4301
    %v4366 = vmul.f32 %v4302, %v4302
    %v4367 = vmul.f32 %v4303, %v4303
    %v4368 = vmul.f32 %v4304, %v4304
    %v4369 = vmul.f32 %v4305, %v4305
    %v4370 = vmul.f32 %v4306, %v4306
    %v4371 = vmul.f32 %v4307, %v4307
    %v4372 = vmul.f32 %v4308, %v4308
    %v4373 = vmul.f32 %v4309, %v4309
    %v4374 = vmul.f32 %v4310, %v4310
    %v4375 = vsel %vm158, %v4311, 0.0
    %4376 = vadd.xlane.f32.xlu0 %v4375
    %v4377 = vpop.xlane.xlu0 %4376
    %v4378 = vsel %vm158, %v4312, 0.0
    %4379 = vadd.xlane.f32.xlu0 %v4378
    %v4380 = vpop.xlane.xlu0 %4379
    %v4381 = vsel %vm158, %v4313, 0.0
    %4382 = vadd.xlane.f32.xlu0 %v4381
    %v4383 = vpop.xlane.xlu0 %4382
    %v4384 = vsel %vm158, %v4314, 0.0
    %4385 = vadd.xlane.f32.xlu0 %v4384
    %v4386 = vpop.xlane.xlu0 %4385
    %v4387 = vsel %vm158, %v4315, 0.0
    %4388 = vadd.xlane.f32.xlu0 %v4387
    %v4389 = vpop.xlane.xlu0 %4388
    %v4390 = vsel %vm158, %v4316, 0.0
    %4391 = vadd.xlane.f32.xlu0 %v4390
    %v4392 = vpop.xlane.xlu0 %4391
    %v4393 = vsel %vm158, %v4317, 0.0
    %4394 = vadd.xlane.f32.xlu0 %v4393
    %v4395 = vpop.xlane.xlu0 %4394
    %v4396 = vsel %vm158, %v4318, 0.0
    %4397 = vadd.xlane.f32.xlu0 %v4396
    %v4398 = vpop.xlane.xlu0 %4397
    %v4399 = vsel %vm158, %v4319, 0.0
    %4400 = vadd.xlane.f32.xlu0 %v4399
    %v4401 = vpop.xlane.xlu0 %4400
    %v4402 = vsel %vm158, %v4320, 0.0
    %4403 = vadd.xlane.f32.xlu0 %v4402
    %v4404 = vpop.xlane.xlu0 %4403
    %v4405 = vsel %vm158, %v4321, 0.0
    %4406 = vadd.xlane.f32.xlu0 %v4405
    %v4407 = vpop.xlane.xlu0 %4406
    %v4408 = vsel %vm158, %v4322, 0.0
    %4409 = vadd.xlane.f32.xlu0 %v4408
    %v4410 = vpop.xlane.xlu0 %4409
    %v4411 = vsel %vm158, %v4323, 0.0
    %4412 = vadd.xlane.f32.xlu0 %v4411
    %v4413 = vpop.xlane.xlu0 %4412
    %v4414 = vsel %vm158, %v4324, 0.0
    %4415 = vadd.xlane.f32.xlu0 %v4414
    %v4416 = vpop.xlane.xlu0 %4415
    %v4417 = vsel %vm158, %v4325, 0.0
    %4418 = vadd.xlane.f32.xlu0 %v4417
    %v4419 = vpop.xlane.xlu0 %4418
    %v4420 = vsel %vm158, %v4326, 0.0
    %4421 = vadd.xlane.f32.xlu0 %v4420
    %v4422 = vpop.xlane.xlu0 %4421
    %v4423 = vsel %vm158, %v4327, 0.0
    %4424 = vadd.xlane.f32.xlu0 %v4423
    %v4425 = vpop.xlane.xlu0 %4424
    %v4426 = vsel %vm158, %v4328, 0.0
    %4427 = vadd.xlane.f32.xlu0 %v4426
    %v4428 = vpop.xlane.xlu0 %4427
    %v4429 = vsel %vm158, %v4329, 0.0
    %4430 = vadd.xlane.f32.xlu0 %v4429
    %v4431 = vpop.xlane.xlu0 %4430
    %v4432 = vsel %vm158, %v4330, 0.0
    %4433 = vadd.xlane.f32.xlu0 %v4432
    %v4434 = vpop.xlane.xlu0 %4433
    %v4435 = vsel %vm158, %v4331, 0.0
    %4436 = vadd.xlane.f32.xlu0 %v4435
    %v4437 = vpop.xlane.xlu0 %4436
    %v4438 = vsel %vm158, %v4332, 0.0
    %4439 = vadd.xlane.f32.xlu0 %v4438
    %v4440 = vpop.xlane.xlu0 %4439
    %v4441 = vsel %vm158, %v4333, 0.0
    %4442 = vadd.xlane.f32.xlu0 %v4441
    %v4443 = vpop.xlane.xlu0 %4442
    %v4444 = vsel %vm158, %v4334, 0.0
    %4445 = vadd.xlane.f32.xlu0 %v4444
    %v4446 = vpop.xlane.xlu0 %4445
    %v4447 = vsel %vm158, %v4335, 0.0
    %4448 = vadd.xlane.f32.xlu0 %v4447
    %v4449 = vpop.xlane.xlu0 %4448
    %v4450 = vsel %vm158, %v4336, 0.0
    %4451 = vadd.xlane.f32.xlu0 %v4450
    %v4452 = vpop.xlane.xlu0 %4451
    %v4453 = vsel %vm158, %v4337, 0.0
    %4454 = vadd.xlane.f32.xlu0 %v4453
    %v4455 = vpop.xlane.xlu0 %4454
    %v4456 = vsel %vm158, %v4338, 0.0
    %4457 = vadd.xlane.f32.xlu0 %v4456
    %v4458 = vpop.xlane.xlu0 %4457
    %v4459 = vsel %vm158, %v4339, 0.0
    %4460 = vadd.xlane.f32.xlu0 %v4459
    %v4461 = vpop.xlane.xlu0 %4460
    %v4462 = vsel %vm158, %v4340, 0.0
    %4463 = vadd.xlane.f32.xlu0 %v4462
    %v4464 = vpop.xlane.xlu0 %4463
    %v4465 = vsel %vm158, %v4341, 0.0
    %4466 = vadd.xlane.f32.xlu0 %v4465
    %v4467 = vpop.xlane.xlu0 %4466
    %v4468 = vsel %vm158, %v4342, 0.0
    %4469 = vadd.xlane.f32.xlu0 %v4468
    %v4470 = vpop.xlane.xlu0 %4469
    %v4471 = vsel %vm158, %v4343, 0.0
    %4472 = vadd.xlane.f32.xlu0 %v4471
    %v4473 = vpop.xlane.xlu0 %4472
    %v4474 = vsel %vm158, %v4344, 0.0
    %4475 = vadd.xlane.f32.xlu0 %v4474
    %v4476 = vpop.xlane.xlu0 %4475
    %v4477 = vsel %vm158, %v4345, 0.0
    %4478 = vadd.xlane.f32.xlu0 %v4477
    %v4479 = vpop.xlane.xlu0 %4478
    %v4480 = vsel %vm158, %v4346, 0.0
    %4481 = vadd.xlane.f32.xlu0 %v4480
    %v4482 = vpop.xlane.xlu0 %4481
    %v4483 = vsel %vm158, %v4347, 0.0
    %4484 = vadd.xlane.f32.xlu0 %v4483
    %v4485 = vpop.xlane.xlu0 %4484
    %v4486 = vsel %vm158, %v4348, 0.0
    %4487 = vadd.xlane.f32.xlu0 %v4486
    %v4488 = vpop.xlane.xlu0 %4487
    %v4489 = vsel %vm158, %v4349, 0.0
    %4490 = vadd.xlane.f32.xlu0 %v4489
    %v4491 = vpop.xlane.xlu0 %4490
    %v4492 = vsel %vm158, %v4350, 0.0
    %4493 = vadd.xlane.f32.xlu0 %v4492
    %v4494 = vpop.xlane.xlu0 %4493
    %v4495 = vsel %vm158, %v4351, 0.0
    %4496 = vadd.xlane.f32.xlu0 %v4495
    %v4497 = vpop.xlane.xlu0 %4496
    %v4498 = vsel %vm158, %v4352, 0.0
    %4499 = vadd.xlane.f32.xlu0 %v4498
    %v4500 = vpop.xlane.xlu0 %4499
    %v4501 = vsel %vm158, %v4353, 0.0
    %4502 = vadd.xlane.f32.xlu0 %v4501
    %v4503 = vpop.xlane.xlu0 %4502
    %v4504 = vsel %vm158, %v4354, 0.0
    %4505 = vadd.xlane.f32.xlu0 %v4504
    %v4506 = vpop.xlane.xlu0 %4505
    %v4507 = vsel %vm158, %v4355, 0.0
    %4508 = vadd.xlane.f32.xlu0 %v4507
    %v4509 = vpop.xlane.xlu0 %4508
    %v4510 = vsel %vm158, %v4356, 0.0
    %4511 = vadd.xlane.f32.xlu0 %v4510
    %v4512 = vpop.xlane.xlu0 %4511
    %v4513 = vsel %vm158, %v4357, 0.0
    %4514 = vadd.xlane.f32.xlu0 %v4513
    %v4515 = vpop.xlane.xlu0 %4514
    %v4516 = vsel %vm158, %v4358, 0.0
    %4517 = vadd.xlane.f32.xlu0 %v4516
    %v4518 = vpop.xlane.xlu0 %4517
    %v4519 = vsel %vm158, %v4359, 0.0
    %4520 = vadd.xlane.f32.xlu0 %v4519
    %v4521 = vpop.xlane.xlu0 %4520
    %v4522 = vsel %vm158, %v4360, 0.0
    %4523 = vadd.xlane.f32.xlu0 %v4522
    %v4524 = vpop.xlane.xlu0 %4523
    %v4525 = vsel %vm158, %v4361, 0.0
    %4526 = vadd.xlane.f32.xlu0 %v4525
    %v4527 = vpop.xlane.xlu0 %4526
    %v4528 = vsel %vm158, %v4362, 0.0
    %4529 = vadd.xlane.f32.xlu0 %v4528
    %v4530 = vpop.xlane.xlu0 %4529
    %v4531 = vsel %vm158, %v4363, 0.0
    %4532 = vadd.xlane.f32.xlu0 %v4531
    %v4533 = vpop.xlane.xlu0 %4532
    %v4534 = vsel %vm158, %v4364, 0.0
    %4535 = vadd.xlane.f32.xlu0 %v4534
    %v4536 = vpop.xlane.xlu0 %4535
    %v4537 = vsel %vm158, %v4365, 0.0
    %4538 = vadd.xlane.f32.xlu0 %v4537
    %v4539 = vpop.xlane.xlu0 %4538
    %v4540 = vsel %vm158, %v4366, 0.0
    %4541 = vadd.xlane.f32.xlu0 %v4540
    %v4542 = vpop.xlane.xlu0 %4541
    %v4543 = vsel %vm158, %v4367, 0.0
    %4544 = vadd.xlane.f32.xlu0 %v4543
    %v4545 = vpop.xlane.xlu0 %4544
    %v4546 = vsel %vm158, %v4368, 0.0
    %4547 = vadd.xlane.f32.xlu0 %v4546
    %v4548 = vpop.xlane.xlu0 %4547
    %v4549 = vsel %vm158, %v4369, 0.0
    %4550 = vadd.xlane.f32.xlu0 %v4549
    %v4551 = vpop.xlane.xlu0 %4550
    %v4552 = vsel %vm158, %v4370, 0.0
    %4553 = vadd.xlane.f32.xlu0 %v4552
    %v4554 = vpop.xlane.xlu0 %4553
    %v4555 = vsel %vm158, %v4371, 0.0
    %4556 = vadd.xlane.f32.xlu0 %v4555
    %v4557 = vpop.xlane.xlu0 %4556
    %v4558 = vsel %vm158, %v4372, 0.0
    %4559 = vadd.xlane.f32.xlu0 %v4558
    %v4560 = vpop.xlane.xlu0 %4559
    %v4561 = vsel %vm158, %v4373, 0.0
    %4562 = vadd.xlane.f32.xlu0 %v4561
    %v4563 = vpop.xlane.xlu0 %4562
    %v4564 = vsel %vm158, %v4374, 0.0
    %4565 = vadd.xlane.f32.xlu0 %v4564
    %v4566 = vpop.xlane.xlu0 %4565
    %v4567 = vmul.f32 %v4377, %v351
    %v4568 = vmul.f32 %v4380, %v351
    %v4569 = vmul.f32 %v4383, %v351
    %v4570 = vmul.f32 %v4386, %v351
    %v4571 = vmul.f32 %v4389, %v351
    %v4572 = vmul.f32 %v4392, %v351
    %v4573 = vmul.f32 %v4395, %v351
    %v4574 = vmul.f32 %v4398, %v351
    %v4575 = vmul.f32 %v4401, %v351
    %v4576 = vmul.f32 %v4404, %v351
    %v4577 = vmul.f32 %v4407, %v351
    %v4578 = vmul.f32 %v4410, %v351
    %v4579 = vmul.f32 %v4413, %v351
    %v4580 = vmul.f32 %v4416, %v351
    %v4581 = vmul.f32 %v4419, %v351
    %v4582 = vmul.f32 %v4422, %v351
    %v4583 = vmul.f32 %v4425, %v351
    %v4584 = vmul.f32 %v4428, %v351
    %v4585 = vmul.f32 %v4431, %v351
    %v4586 = vmul.f32 %v4434, %v351
    %v4587 = vmul.f32 %v4437, %v351
    %v4588 = vmul.f32 %v4440, %v351
    %v4589 = vmul.f32 %v4443, %v351
    %v4590 = vmul.f32 %v4446, %v351
    %v4591 = vmul.f32 %v4449, %v351
    %v4592 = vmul.f32 %v4452, %v351
    %v4593 = vmul.f32 %v4455, %v351
    %v4594 = vmul.f32 %v4458, %v351
    %v4595 = vmul.f32 %v4461, %v351
    %v4596 = vmul.f32 %v4464, %v351
    %v4597 = vmul.f32 %v4467, %v351
    %v4598 = vmul.f32 %v4470, %v351
    %v4599 = vmul.f32 %v4473, %v351
    %v4600 = vmul.f32 %v4476, %v351
    %v4601 = vmul.f32 %v4479, %v351
    %v4602 = vmul.f32 %v4482, %v351
    %v4603 = vmul.f32 %v4485, %v351
    %v4604 = vmul.f32 %v4488, %v351
    %v4605 = vmul.f32 %v4491, %v351
    %v4606 = vmul.f32 %v4494, %v351
    %v4607 = vmul.f32 %v4497, %v351
    %v4608 = vmul.f32 %v4500, %v351
    %v4609 = vmul.f32 %v4503, %v351
    %v4610 = vmul.f32 %v4506, %v351
    %v4611 = vmul.f32 %v4509, %v351
    %v4612 = vmul.f32 %v4512, %v351
    %v4613 = vmul.f32 %v4515, %v351
    %v4614 = vmul.f32 %v4518, %v351
    %v4615 = vmul.f32 %v4521, %v351
    %v4616 = vmul.f32 %v4524, %v351
    %v4617 = vmul.f32 %v4527, %v351
    %v4618 = vmul.f32 %v4530, %v351
    %v4619 = vmul.f32 %v4533, %v351
    %v4620 = vmul.f32 %v4536, %v351
    %v4621 = vmul.f32 %v4539, %v351
    %v4622 = vmul.f32 %v4542, %v351
    %v4623 = vmul.f32 %v4545, %v351
    %v4624 = vmul.f32 %v4548, %v351
    %v4625 = vmul.f32 %v4551, %v351
    %v4626 = vmul.f32 %v4554, %v351
    %v4627 = vmul.f32 %v4557, %v351
    %v4628 = vmul.f32 %v4560, %v351
    %v4629 = vmul.f32 %v4563, %v351
    %v4630 = vmul.f32 %v4566, %v351
    %v4631 = vadd.f32 %v4567, 1e-05
    %v4632 = vadd.f32 %v4568, 1e-05
    %v4633 = vadd.f32 %v4569, 1e-05
    %v4634 = vadd.f32 %v4570, 1e-05
    %v4635 = vadd.f32 %v4571, 1e-05
    %v4636 = vadd.f32 %v4572, 1e-05
    %v4637 = vadd.f32 %v4573, 1e-05
    %v4638 = vadd.f32 %v4574, 1e-05
    %v4639 = vadd.f32 %v4575, 1e-05
    %v4640 = vadd.f32 %v4576, 1e-05
    %v4641 = vadd.f32 %v4577, 1e-05
    %v4642 = vadd.f32 %v4578, 1e-05
    %v4643 = vadd.f32 %v4579, 1e-05
    %v4644 = vadd.f32 %v4580, 1e-05
    %v4645 = vadd.f32 %v4581, 1e-05
    %v4646 = vadd.f32 %v4582, 1e-05
    %v4647 = vadd.f32 %v4583, 1e-05
    %v4648 = vadd.f32 %v4584, 1e-05
    %v4649 = vadd.f32 %v4585, 1e-05
    %v4650 = vadd.f32 %v4586, 1e-05
    %v4651 = vadd.f32 %v4587, 1e-05
    %v4652 = vadd.f32 %v4588, 1e-05
    %v4653 = vadd.f32 %v4589, 1e-05
    %v4654 = vadd.f32 %v4590, 1e-05
    %v4655 = vadd.f32 %v4591, 1e-05
    %v4656 = vadd.f32 %v4592, 1e-05
    %v4657 = vadd.f32 %v4593, 1e-05
    %v4658 = vadd.f32 %v4594, 1e-05
    %v4659 = vadd.f32 %v4595, 1e-05
    %v4660 = vadd.f32 %v4596, 1e-05
    %v4661 = vadd.f32 %v4597, 1e-05
    %v4662 = vadd.f32 %v4598, 1e-05
    %v4663 = vadd.f32 %v4599, 1e-05
    %v4664 = vadd.f32 %v4600, 1e-05
    %v4665 = vadd.f32 %v4601, 1e-05
    %v4666 = vadd.f32 %v4602, 1e-05
    %v4667 = vadd.f32 %v4603, 1e-05
    %v4668 = vadd.f32 %v4604, 1e-05
    %v4669 = vadd.f32 %v4605, 1e-05
    %v4670 = vadd.f32 %v4606, 1e-05
    %v4671 = vadd.f32 %v4607, 1e-05
    %v4672 = vadd.f32 %v4608, 1e-05
    %v4673 = vadd.f32 %v4609, 1e-05
    %v4674 = vadd.f32 %v4610, 1e-05
    %v4675 = vadd.f32 %v4611, 1e-05
    %v4676 = vadd.f32 %v4612, 1e-05
    %v4677 = vadd.f32 %v4613, 1e-05
    %v4678 = vadd.f32 %v4614, 1e-05
    %v4679 = vadd.f32 %v4615, 1e-05
    %v4680 = vadd.f32 %v4616, 1e-05
    %v4681 = vadd.f32 %v4617, 1e-05
    %v4682 = vadd.f32 %v4618, 1e-05
    %v4683 = vadd.f32 %v4619, 1e-05
    %v4684 = vadd.f32 %v4620, 1e-05
    %v4685 = vadd.f32 %v4621, 1e-05
    %v4686 = vadd.f32 %v4622, 1e-05
    %v4687 = vadd.f32 %v4623, 1e-05
    %v4688 = vadd.f32 %v4624, 1e-05
    %v4689 = vadd.f32 %v4625, 1e-05
    %v4690 = vadd.f32 %v4626, 1e-05
    %v4691 = vadd.f32 %v4627, 1e-05
    %v4692 = vadd.f32 %v4628, 1e-05
    %v4693 = vadd.f32 %v4629, 1e-05
    %v4694 = vadd.f32 %v4630, 1e-05
    %v4695 = vrsqrt.pop %v4631
    %v4696 = vrsqrt.pop %v4632
    %v4697 = vrsqrt.pop %v4633
    %v4698 = vrsqrt.pop %v4634
    %v4699 = vrsqrt.pop %v4635
    %v4700 = vrsqrt.pop %v4636
    %v4701 = vrsqrt.pop %v4637
    %v4702 = vrsqrt.pop %v4638
    %v4703 = vrsqrt.pop %v4639
    %v4704 = vrsqrt.pop %v4640
    %v4705 = vrsqrt.pop %v4641
    %v4706 = vrsqrt.pop %v4642
    %v4707 = vrsqrt.pop %v4643
    %v4708 = vrsqrt.pop %v4644
    %v4709 = vrsqrt.pop %v4645
    %v4710 = vrsqrt.pop %v4646
    %v4711 = vrsqrt.pop %v4647
    %v4712 = vrsqrt.pop %v4648
    %v4713 = vrsqrt.pop %v4649
    %v4714 = vrsqrt.pop %v4650
    %v4715 = vrsqrt.pop %v4651
    %v4716 = vrsqrt.pop %v4652
    %v4717 = vrsqrt.pop %v4653
    %v4718 = vrsqrt.pop %v4654
    %v4719 = vrsqrt.pop %v4655
    %v4720 = vrsqrt.pop %v4656
    %v4721 = vrsqrt.pop %v4657
    %v4722 = vrsqrt.pop %v4658
    %v4723 = vrsqrt.pop %v4659
    %v4724 = vrsqrt.pop %v4660
    %v4725 = vrsqrt.pop %v4661
    %v4726 = vrsqrt.pop %v4662
    %v4727 = vrsqrt.pop %v4663
    %v4728 = vrsqrt.pop %v4664
    %v4729 = vrsqrt.pop %v4665
    %v4730 = vrsqrt.pop %v4666
    %v4731 = vrsqrt.pop %v4667
    %v4732 = vrsqrt.pop %v4668
    %v4733 = vrsqrt.pop %v4669
    %v4734 = vrsqrt.pop %v4670
    %v4735 = vrsqrt.pop %v4671
    %v4736 = vrsqrt.pop %v4672
    %v4737 = vrsqrt.pop %v4673
    %v4738 = vrsqrt.pop %v4674
    %v4739 = vrsqrt.pop %v4675
    %v4740 = vrsqrt.pop %v4676
    %v4741 = vrsqrt.pop %v4677
    %v4742 = vrsqrt.pop %v4678
    %v4743 = vrsqrt.pop %v4679
    %v4744 = vrsqrt.pop %v4680
    %v4745 = vrsqrt.pop %v4681
    %v4746 = vrsqrt.pop %v4682
    %v4747 = vrsqrt.pop %v4683
    %v4748 = vrsqrt.pop %v4684
    %v4749 = vrsqrt.pop %v4685
    %v4750 = vrsqrt.pop %v4686
    %v4751 = vrsqrt.pop %v4687
    %v4752 = vrsqrt.pop %v4688
    %v4753 = vrsqrt.pop %v4689
    %v4754 = vrsqrt.pop %v4690
    %v4755 = vrsqrt.pop %v4691
    %v4756 = vrsqrt.pop %v4692
    %v4757 = vrsqrt.pop %v4693
    %v4758 = vrsqrt.pop %v4694
    %v4759 = vmul.f32 %v4247, %v4695
    %v4760 = vmul.f32 %v4248, %v4696
    %v4761 = vmul.f32 %v4249, %v4697
    %v4762 = vmul.f32 %v4250, %v4698
    %v4763 = vmul.f32 %v4251, %v4699
    %v4764 = vmul.f32 %v4252, %v4700
    %v4765 = vmul.f32 %v4253, %v4701
    %v4766 = vmul.f32 %v4254, %v4702
    %v4767 = vmul.f32 %v4255, %v4703
    %v4768 = vmul.f32 %v4256, %v4704
    %v4769 = vmul.f32 %v4257, %v4705
    %v4770 = vmul.f32 %v4258, %v4706
    %v4771 = vmul.f32 %v4259, %v4707
    %v4772 = vmul.f32 %v4260, %v4708
    %v4773 = vmul.f32 %v4261, %v4709
    %v4774 = vmul.f32 %v4262, %v4710
    %v4775 = vmul.f32 %v4263, %v4711
    %v4776 = vmul.f32 %v4264, %v4712
    %v4777 = vmul.f32 %v4265, %v4713
    %v4778 = vmul.f32 %v4266, %v4714
    %v4779 = vmul.f32 %v4267, %v4715
    %v4780 = vmul.f32 %v4268, %v4716
    %v4781 = vmul.f32 %v4269, %v4717
    %v4782 = vmul.f32 %v4270, %v4718
    %v4783 = vmul.f32 %v4271, %v4719
    %v4784 = vmul.f32 %v4272, %v4720
    %v4785 = vmul.f32 %v4273, %v4721
    %v4786 = vmul.f32 %v4274, %v4722
    %v4787 = vmul.f32 %v4275, %v4723
    %v4788 = vmul.f32 %v4276, %v4724
    %v4789 = vmul.f32 %v4277, %v4725
    %v4790 = vmul.f32 %v4278, %v4726
    %v4791 = vmul.f32 %v4279, %v4727
    %v4792 = vmul.f32 %v4280, %v4728
    %v4793 = vmul.f32 %v4281, %v4729
    %v4794 = vmul.f32 %v4282, %v4730
    %v4795 = vmul.f32 %v4283, %v4731
    %v4796 = vmul.f32 %v4284, %v4732
    %v4797 = vmul.f32 %v4285, %v4733
    %v4798 = vmul.f32 %v4286, %v4734
    %v4799 = vmul.f32 %v4287, %v4735
    %v4800 = vmul.f32 %v4288, %v4736
    %v4801 = vmul.f32 %v4289, %v4737
    %v4802 = vmul.f32 %v4290, %v4738
    %v4803 = vmul.f32 %v4291, %v4739
    %v4804 = vmul.f32 %v4292, %v4740
    %v4805 = vmul.f32 %v4293, %v4741
    %v4806 = vmul.f32 %v4294, %v4742
    %v4807 = vmul.f32 %v4295, %v4743
    %v4808 = vmul.f32 %v4296, %v4744
    %v4809 = vmul.f32 %v4297, %v4745
    %v4810 = vmul.f32 %v4298, %v4746
    %v4811 = vmul.f32 %v4299, %v4747
    %v4812 = vmul.f32 %v4300, %v4748
    %v4813 = vmul.f32 %v4301, %v4749
    %v4814 = vmul.f32 %v4302, %v4750
    %v4815 = vmul.f32 %v4303, %v4751
    %v4816 = vmul.f32 %v4304, %v4752
    %v4817 = vmul.f32 %v4305, %v4753
    %v4818 = vmul.f32 %v4306, %v4754
    %v4819 = vmul.f32 %v4307, %v4755
    %v4820 = vmul.f32 %v4308, %v4756
    %v4821 = vmul.f32 %v4309, %v4757
    %v4822 = vmul.f32 %v4310, %v4758
    %v4824 = vlaneseq
    %v4825 = vshrl.u32 %v4824, 7
    %v4826 = vsub.s32 0, %v4825
    %v4827 = vrot.slane %v24, %v4826
    %v4829 = vmul.f32 %v4759, %v4827
    %v4830 = vmul.f32 %v4760, %v4827
    %v4831 = vmul.f32 %v4761, %v4827
    %v4832 = vmul.f32 %v4762, %v4827
    %v4833 = vmul.f32 %v4763, %v4827
    %v4834 = vmul.f32 %v4764, %v4827
    %v4835 = vmul.f32 %v4765, %v4827
    %v4836 = vmul.f32 %v4766, %v4827
    %v4837 = vmul.f32 %v4767, %v4827
    %v4838 = vmul.f32 %v4768, %v4827
    %v4839 = vmul.f32 %v4769, %v4827
    %v4840 = vmul.f32 %v4770, %v4827
    %v4841 = vmul.f32 %v4771, %v4827
    %v4842 = vmul.f32 %v4772, %v4827
    %v4843 = vmul.f32 %v4773, %v4827
    %v4844 = vmul.f32 %v4774, %v4827
    %v4845 = vmul.f32 %v4775, %v4827
    %v4846 = vmul.f32 %v4776, %v4827
    %v4847 = vmul.f32 %v4777, %v4827
    %v4848 = vmul.f32 %v4778, %v4827
    %v4849 = vmul.f32 %v4779, %v4827
    %v4850 = vmul.f32 %v4780, %v4827
    %v4851 = vmul.f32 %v4781, %v4827
    %v4852 = vmul.f32 %v4782, %v4827
    %v4853 = vmul.f32 %v4783, %v4827
    %v4854 = vmul.f32 %v4784, %v4827
    %v4855 = vmul.f32 %v4785, %v4827
    %v4856 = vmul.f32 %v4786, %v4827
    %v4857 = vmul.f32 %v4787, %v4827
    %v4858 = vmul.f32 %v4788, %v4827
    %v4859 = vmul.f32 %v4789, %v4827
    %v4860 = vmul.f32 %v4790, %v4827
    %v4861 = vmul.f32 %v4791, %v4827
    %v4862 = vmul.f32 %v4792, %v4827
    %v4863 = vmul.f32 %v4793, %v4827
    %v4864 = vmul.f32 %v4794, %v4827
    %v4865 = vmul.f32 %v4795, %v4827
    %v4866 = vmul.f32 %v4796, %v4827
    %v4867 = vmul.f32 %v4797, %v4827
    %v4868 = vmul.f32 %v4798, %v4827
    %v4869 = vmul.f32 %v4799, %v4827
    %v4870 = vmul.f32 %v4800, %v4827
    %v4871 = vmul.f32 %v4801, %v4827
    %v4872 = vmul.f32 %v4802, %v4827
    %v4873 = vmul.f32 %v4803, %v4827
    %v4874 = vmul.f32 %v4804, %v4827
    %v4875 = vmul.f32 %v4805, %v4827
    %v4876 = vmul.f32 %v4806, %v4827
    %v4877 = vmul.f32 %v4807, %v4827
    %v4878 = vmul.f32 %v4808, %v4827
    %v4879 = vmul.f32 %v4809, %v4827
    %v4880 = vmul.f32 %v4810, %v4827
    %v4881 = vmul.f32 %v4811, %v4827
    %v4882 = vmul.f32 %v4812, %v4827
    %v4883 = vmul.f32 %v4813, %v4827
    %v4884 = vmul.f32 %v4814, %v4827
    %v4885 = vmul.f32 %v4815, %v4827
    %v4886 = vmul.f32 %v4816, %v4827
    %v4887 = vmul.f32 %v4817, %v4827
    %v4888 = vmul.f32 %v4818, %v4827
    %v4889 = vmul.f32 %v4819, %v4827
    %v4890 = vmul.f32 %v4820, %v4827
    %v4891 = vmul.f32 %v4821, %v4827
    %v4892 = vmul.f32 %v4822, %v4827
    %v4894 = vlaneseq
    %v4895 = vshrl.u32 %v4894, 7
    %v4896 = vsub.s32 0, %v4895
    %v4897 = vrot.slane %v25, %v4896
    %v4899 = vadd.f32 %v4829, %v4897
    %v4900 = vadd.f32 %v4830, %v4897
    %v4901 = vadd.f32 %v4831, %v4897
    %v4902 = vadd.f32 %v4832, %v4897
    %v4903 = vadd.f32 %v4833, %v4897
    %v4904 = vadd.f32 %v4834, %v4897
    %v4905 = vadd.f32 %v4835, %v4897
    %v4906 = vadd.f32 %v4836, %v4897
    %v4907 = vadd.f32 %v4837, %v4897
    %v4908 = vadd.f32 %v4838, %v4897
    %v4909 = vadd.f32 %v4839, %v4897
    %v4910 = vadd.f32 %v4840, %v4897
    %v4911 = vadd.f32 %v4841, %v4897
    %v4912 = vadd.f32 %v4842, %v4897
    %v4913 = vadd.f32 %v4843, %v4897
    %v4914 = vadd.f32 %v4844, %v4897
    %v4915 = vadd.f32 %v4845, %v4897
    %v4916 = vadd.f32 %v4846, %v4897
    %v4917 = vadd.f32 %v4847, %v4897
    %v4918 = vadd.f32 %v4848, %v4897
    %v4919 = vadd.f32 %v4849, %v4897
    %v4920 = vadd.f32 %v4850, %v4897
    %v4921 = vadd.f32 %v4851, %v4897
    %v4922 = vadd.f32 %v4852, %v4897
    %v4923 = vadd.f32 %v4853, %v4897
    %v4924 = vadd.f32 %v4854, %v4897
    %v4925 = vadd.f32 %v4855, %v4897
    %v4926 = vadd.f32 %v4856, %v4897
    %v4927 = vadd.f32 %v4857, %v4897
    %v4928 = vadd.f32 %v4858, %v4897
    %v4929 = vadd.f32 %v4859, %v4897
    %v4930 = vadd.f32 %v4860, %v4897
    %v4931 = vadd.f32 %v4861, %v4897
    %v4932 = vadd.f32 %v4862, %v4897
    %v4933 = vadd.f32 %v4863, %v4897
    %v4934 = vadd.f32 %v4864, %v4897
    %v4935 = vadd.f32 %v4865, %v4897
    %v4936 = vadd.f32 %v4866, %v4897
    %v4937 = vadd.f32 %v4867, %v4897
    %v4938 = vadd.f32 %v4868, %v4897
    %v4939 = vadd.f32 %v4869, %v4897
    %v4940 = vadd.f32 %v4870, %v4897
    %v4941 = vadd.f32 %v4871, %v4897
    %v4942 = vadd.f32 %v4872, %v4897
    %v4943 = vadd.f32 %v4873, %v4897
    %v4944 = vadd.f32 %v4874, %v4897
    %v4945 = vadd.f32 %v4875, %v4897
    %v4946 = vadd.f32 %v4876, %v4897
    %v4947 = vadd.f32 %v4877, %v4897
    %v4948 = vadd.f32 %v4878, %v4897
    %v4949 = vadd.f32 %v4879, %v4897
    %v4950 = vadd.f32 %v4880, %v4897
    %v4951 = vadd.f32 %v4881, %v4897
    %v4952 = vadd.f32 %v4882, %v4897
    %v4953 = vadd.f32 %v4883, %v4897
    %v4954 = vadd.f32 %v4884, %v4897
    %v4955 = vadd.f32 %v4885, %v4897
    %v4956 = vadd.f32 %v4886, %v4897
    %v4957 = vadd.f32 %v4887, %v4897
    %v4958 = vadd.f32 %v4888, %v4897
    %v4959 = vadd.f32 %v4889, %v4897
    %v4960 = vadd.f32 %v4890, %v4897
    %v4961 = vadd.f32 %v4891, %v4897
    %v4962 = vadd.f32 %v4892, %v4897
    %v4963 = vpack.c.bf16 %v4900, %v4899
    %v4964 = vpack.c.bf16 %v4902, %v4901
    %v4965 = vpack.c.bf16 %v4904, %v4903
    %v4966 = vpack.c.bf16 %v4906, %v4905
    %v4967 = vpack.c.bf16 %v4908, %v4907
    %v4968 = vpack.c.bf16 %v4910, %v4909
    %v4969 = vpack.c.bf16 %v4912, %v4911
    %v4970 = vpack.c.bf16 %v4914, %v4913
    %v4971 = vpack.c.bf16 %v4916, %v4915
    %v4972 = vpack.c.bf16 %v4918, %v4917
    %v4973 = vpack.c.bf16 %v4920, %v4919
    %v4974 = vpack.c.bf16 %v4922, %v4921
    %v4975 = vpack.c.bf16 %v4924, %v4923
    %v4976 = vpack.c.bf16 %v4926, %v4925
    %v4977 = vpack.c.bf16 %v4928, %v4927
    %v4978 = vpack.c.bf16 %v4930, %v4929
    %v4979 = vpack.c.bf16 %v4932, %v4931
    %v4980 = vpack.c.bf16 %v4934, %v4933
    %v4981 = vpack.c.bf16 %v4936, %v4935
    %v4982 = vpack.c.bf16 %v4938, %v4937
    %v4983 = vpack.c.bf16 %v4940, %v4939
    %v4984 = vpack.c.bf16 %v4942, %v4941
    %v4985 = vpack.c.bf16 %v4944, %v4943
    %v4986 = vpack.c.bf16 %v4946, %v4945
    %v4987 = vpack.c.bf16 %v4948, %v4947
    %v4988 = vpack.c.bf16 %v4950, %v4949
    %v4989 = vpack.c.bf16 %v4952, %v4951
    %v4990 = vpack.c.bf16 %v4954, %v4953
    %v4991 = vpack.c.bf16 %v4956, %v4955
    %v4992 = vpack.c.bf16 %v4958, %v4957
    %v4993 = vpack.c.bf16 %v4960, %v4959
    %v4994 = vpack.c.bf16 %v4962, %v4961
    %v4995 = vld [vmem:[%s1 + $0xc] sm:$0xf]
    %v4996 = vld [vmem:[%s1 + $0x20] sm:$0xf]
    %v4997 = vld [vmem:[%s1 + $0x34] sm:$0xf]
    %v4998 = vld [vmem:[%s1 + $0x48] sm:$0xf]
    %v5000 = vlaneseq
    %v5001 = vshrl.u32 %v5000, 7
    %v5002 = vsub.s32 0, %v5001
    %v5003 = vrot.slane %v27, %v5002
    %v5009 = vunpack.c.l.b16 %v4995
    %v5010 = vunpack.c.l.b16 %v4996
    %v5011 = vunpack.c.l.b16 %v4997
    %v5012 = vunpack.c.l.b16 %v4998
    %v5013 = vpack.c.b16 %v5010, %v5009
    %v5014 = vpack.c.b16 %v5012, %v5011
    %v5018 = vsel %vm158, %v4963, 0
    %v5021 = vsel %vm158, %v4964, 0
    %v5024 = vsel %vm158, %v4965, 0
    %v5027 = vsel %vm158, %v4966, 0
    %v5030 = vsel %vm158, %v4967, 0
    %v5033 = vsel %vm158, %v4968, 0
    %v5036 = vsel %vm158, %v4969, 0
    %v5039 = vsel %vm158, %v4970, 0
    %v5042 = vsel %vm158, %v4971, 0
    %v5045 = vsel %vm158, %v4972, 0
    %v5048 = vsel %vm158, %v4973, 0
    %v5051 = vsel %vm158, %v4974, 0
    %v5054 = vsel %vm158, %v4975, 0
    %v5057 = vsel %vm158, %v4976, 0
    %v5060 = vsel %vm158, %v4977, 0
    %v5063 = vsel %vm158, %v4978, 0
    %v5066 = vsel %vm158, %v4979, 0
    %v5069 = vsel %vm158, %v4980, 0
    %v5072 = vsel %vm158, %v4981, 0
    %v5075 = vsel %vm158, %v4982, 0
    %v5078 = vsel %vm158, %v4983, 0
    %v5081 = vsel %vm158, %v4984, 0
    %v5084 = vsel %vm158, %v4985, 0
    %v5087 = vsel %vm158, %v4986, 0
    %v5090 = vsel %vm158, %v4987, 0
    %v5093 = vsel %vm158, %v4988, 0
    %v5096 = vsel %vm158, %v4989, 0
    %v5099 = vsel %vm158, %v4990, 0
    %v5102 = vsel %vm158, %v4991, 0
    %v5105 = vsel %vm158, %v4992, 0
    %v5108 = vsel %vm158, %v4993, 0
    %v5111 = vsel %vm158, %v4994, 0
    %5113 = vmatprep.subr.bf16.mxu0 0
    %5114 = vmatpush1.bf16.msra.mxu0 %v5013
    %5115 = vmatprep.subr.bf16.mxu0 0
    %5116 = vmatpush1.bf16.msra.mxu0 %v5014
    %5117 = vmatprep.subr.bf16.mxu0 0
    %5118 = vmatpush1.bf16.msra.mxu0 0
    %5119 = vmatprep.subr.bf16.mxu0 0
    %5120 = vmatpush1.bf16.msra.mxu0 0
    %5121 = vmatprep.subr.bf16.mxu0 0
    %5122 = vmatpush1.bf16.msra.mxu0 0
    %5123 = vmatprep.subr.bf16.mxu0 0
    %5124 = vmatpush1.bf16.msra.mxu0 0
    %5125 = vmatprep.subr.bf16.mxu0 0
    %5126 = vmatpush1.bf16.msra.mxu0 0
    %5127 = vmatprep.subr.bf16.mxu0 0
    %5128 = vmatpush1.bf16.msra.mxu0 0
    %5129 = vmatprep.subr.bf16.mxu0 0
    %5130 = vmatpush1.bf16.msra.mxu0 0
    %5131 = vmatprep.subr.bf16.mxu0 0
    %5132 = vmatpush1.bf16.msra.mxu0 0
    %5133 = vmatprep.subr.bf16.mxu0 0
    %5134 = vmatpush1.bf16.msra.mxu0 0
    %5135 = vmatprep.subr.bf16.mxu0 0
    %5136 = vmatpush1.bf16.msra.mxu0 0
    %5137 = vmatprep.subr.bf16.mxu0 0
    %5138 = vmatpush1.bf16.msra.mxu0 0
    %5139 = vmatprep.subr.bf16.mxu0 0
    %5140 = vmatpush1.bf16.msra.mxu0 0
    %5141 = vmatprep.subr.bf16.mxu0 0
    %5142 = vmatpush1.bf16.msra.mxu0 0
    %5143 = vmatprep.subr.bf16.mxu0 0
    %5144 = vmatpush1.bf16.msra.mxu0 0
    %5145 = vmatprep.mubr.bf16.mxu0 0
    %5146 = vmatmul.mubr.bf16.gmra.mrb[0].mxu0 %v5018
    %v5147 = vpop.f32.mrb[0].mxu0
    %v5148 = vadd.f32 %v5003, %v5147
    %v5149 = vpop.f32.mrb[0].mxu0
    %v5150 = vpop.f32.mrb[0].mxu0
    %v5151 = vadd.f32 %v5003, %v5150
    %v5152 = vpop.f32.mrb[0].mxu0
    %5153 = vmatprep.mubr.bf16.mxu0 0
    %5154 = vmatmul.mubr.bf16.gmra.mrb[0].mxu0 %v5021
    %v5155 = vpop.f32.mrb[0].mxu0
    %v5156 = vadd.f32 %v5003, %v5155
    %v5157 = vpop.f32.mrb[0].mxu0
    %v5158 = vpop.f32.mrb[0].mxu0
    %v5159 = vadd.f32 %v5003, %v5158
    %v5160 = vpop.f32.mrb[0].mxu0
    %5161 = vmatprep.mubr.bf16.mxu0 0
    %5162 = vmatmul.mubr.bf16.gmra.mrb[0].mxu0 %v5024
    %v5163 = vpop.f32.mrb[0].mxu0
    %v5164 = vadd.f32 %v5003, %v5163
    %v5165 = vpop.f32.mrb[0].mxu0
    %v5166 = vpop.f32.mrb[0].mxu0
    %v5167 = vadd.f32 %v5003, %v5166
    %v5168 = vpop.f32.mrb[0].mxu0
    %5169 = vmatprep.mubr.bf16.mxu0 0
    %5170 = vmatmul.mubr.bf16.gmra.mrb[0].mxu0 %v5027
    %v5171 = vpop.f32.mrb[0].mxu0
    %v5172 = vadd.f32 %v5003, %v5171
    %v5173 = vpop.f32.mrb[0].mxu0
    %v5174 = vpop.f32.mrb[0].mxu0
    %v5175 = vadd.f32 %v5003, %v5174
    %v5176 = vpop.f32.mrb[0].mxu0
    %5177 = vmatprep.mubr.bf16.mxu0 0
    %5178 = vmatmul.mubr.bf16.gmra.mrb[0].mxu0 %v5030
    %v5179 = vpop.f32.mrb[0].mxu0
    %v5180 = vadd.f32 %v5003, %v5179
    %v5181 = vpop.f32.mrb[0].mxu0
    %v5182 = vpop.f32.mrb[0].mxu0
    %v5183 = vadd.f32 %v5003, %v5182
    %v5184 = vpop.f32.mrb[0].mxu0
    %5185 = vmatprep.mubr.bf16.mxu0 0
    %5186 = vmatmul.mubr.bf16.gmra.mrb[0].mxu0 %v5033
    %v5187 = vpop.f32.mrb[0].mxu0
    %v5188 = vadd.f32 %v5003, %v5187
    %v5189 = vpop.f32.mrb[0].mxu0
    %v5190 = vpop.f32.mrb[0].mxu0
    %v5191 = vadd.f32 %v5003, %v5190
    %v5192 = vpop.f32.mrb[0].mxu0
    %5193 = vmatprep.mubr.bf16.mxu0 0
    %5194 = vmatmul.mubr.bf16.gmra.mrb[0].mxu0 %v5036
    %v5195 = vpop.f32.mrb[0].mxu0
    %v5196 = vadd.f32 %v5003, %v5195
    %v5197 = vpop.f32.mrb[0].mxu0
    %v5198 = vpop.f32.mrb[0].mxu0
    %v5199 = vadd.f32 %v5003, %v5198
    %v5200 = vpop.f32.mrb[0].mxu0
    %5201 = vmatprep.mubr.bf16.mxu0 0
    %5202 = vmatmul.mubr.bf16.gmra.mrb[0].mxu0 %v5039
    %v5203 = vpop.f32.mrb[0].mxu0
    %v5204 = vadd.f32 %v5003, %v5203
    %v5205 = vpop.f32.mrb[0].mxu0
    %v5206 = vpop.f32.mrb[0].mxu0
    %v5207 = vadd.f32 %v5003, %v5206
    %v5208 = vpop.f32.mrb[0].mxu0
    %5209 = vmatprep.mubr.bf16.mxu0 0
    %5210 = vmatmul.mubr.bf16.gmra.mrb[0].mxu0 %v5042
    %v5211 = vpop.f32.mrb[0].mxu0
    %v5212 = vadd.f32 %v5003, %v5211
    %v5213 = vpop.f32.mrb[0].mxu0
    %v5214 = vpop.f32.mrb[0].mxu0
    %v5215 = vadd.f32 %v5003, %v5214
    %v5216 = vpop.f32.mrb[0].mxu0
    %5217 = vmatprep.mubr.bf16.mxu0 0
    %5218 = vmatmul.mubr.bf16.gmra.mrb[0].mxu0 %v5045
    %v5219 = vpop.f32.mrb[0].mxu0
    %v5220 = vadd.f32 %v5003, %v5219
    %v5221 = vpop.f32.mrb[0].mxu0
    %v5222 = vpop.f32.mrb[0].mxu0
    %v5223 = vadd.f32 %v5003, %v5222
    %v5224 = vpop.f32.mrb[0].mxu0
    %5225 = vmatprep.mubr.bf16.mxu0 0
    %5226 = vmatmul.mubr.bf16.gmra.mrb[0].mxu0 %v5048
    %v5227 = vpop.f32.mrb[0].mxu0
    %v5228 = vadd.f32 %v5003, %v5227
    %v5229 = vpop.f32.mrb[0].mxu0
    %v5230 = vpop.f32.mrb[0].mxu0
    %v5231 = vadd.f32 %v5003, %v5230
    %v5232 = vpop.f32.mrb[0].mxu0
    %5233 = vmatprep.mubr.bf16.mxu0 0
    %5234 = vmatmul.mubr.bf16.gmra.mrb[0].mxu0 %v5051
    %v5235 = vpop.f32.mrb[0].mxu0
    %v5236 = vadd.f32 %v5003, %v5235
    %v5237 = vpop.f32.mrb[0].mxu0
    %v5238 = vpop.f32.mrb[0].mxu0
    %v5239 = vadd.f32 %v5003, %v5238
    %v5240 = vpop.f32.mrb[0].mxu0
    %5241 = vmatprep.mubr.bf16.mxu0 0
    %5242 = vmatmul.mubr.bf16.gmra.mrb[0].mxu0 %v5054
    %v5243 = vpop.f32.mrb[0].mxu0
    %v5244 = vadd.f32 %v5003, %v5243
    %v5245 = vpop.f32.mrb[0].mxu0
    %v5246 = vpop.f32.mrb[0].mxu0
    %v5247 = vadd.f32 %v5003, %v5246
    %v5248 = vpop.f32.mrb[0].mxu0
    %5249 = vmatprep.mubr.bf16.mxu0 0
    %5250 = vmatmul.mubr.bf16.gmra.mrb[0].mxu0 %v5057
    %v5251 = vpop.f32.mrb[0].mxu0
    %v5252 = vadd.f32 %v5003, %v5251
    %v5253 = vpop.f32.mrb[0].mxu0
    %v5254 = vpop.f32.mrb[0].mxu0
    %v5255 = vadd.f32 %v5003, %v5254
    %v5256 = vpop.f32.mrb[0].mxu0
    %5257 = vmatprep.mubr.bf16.mxu0 0
    %5258 = vmatmul.mubr.bf16.gmra.mrb[0].mxu0 %v5060
    %v5259 = vpop.f32.mrb[0].mxu0
    %v5260 = vadd.f32 %v5003, %v5259
    %v5261 = vpop.f32.mrb[0].mxu0
    %v5262 = vpop.f32.mrb[0].mxu0
    %v5263 = vadd.f32 %v5003, %v5262
    %v5264 = vpop.f32.mrb[0].mxu0
    %5265 = vmatprep.mubr.bf16.mxu0 0
    %5266 = vmatmul.mubr.bf16.gmra.mrb[0].mxu0 %v5063
    %v5267 = vpop.f32.mrb[0].mxu0
    %v5268 = vadd.f32 %v5003, %v5267
    %v5269 = vpop.f32.mrb[0].mxu0
    %v5270 = vpop.f32.mrb[0].mxu0
    %v5271 = vadd.f32 %v5003, %v5270
    %v5272 = vpop.f32.mrb[0].mxu0
    %5273 = vmatprep.mubr.bf16.mxu0 0
    %5274 = vmatmul.mubr.bf16.gmra.mrb[0].mxu0 %v5066
    %v5275 = vpop.f32.mrb[0].mxu0
    %v5276 = vadd.f32 %v5003, %v5275
    %v5277 = vpop.f32.mrb[0].mxu0
    %v5278 = vpop.f32.mrb[0].mxu0
    %v5279 = vadd.f32 %v5003, %v5278
    %v5280 = vpop.f32.mrb[0].mxu0
    %5281 = vmatprep.mubr.bf16.mxu0 0
    %5282 = vmatmul.mubr.bf16.gmra.mrb[0].mxu0 %v5069
    %v5283 = vpop.f32.mrb[0].mxu0
    %v5284 = vadd.f32 %v5003, %v5283
    %v5285 = vpop.f32.mrb[0].mxu0
    %v5286 = vpop.f32.mrb[0].mxu0
    %v5287 = vadd.f32 %v5003, %v5286
    %v5288 = vpop.f32.mrb[0].mxu0
    %5289 = vmatprep.mubr.bf16.mxu0 0
    %5290 = vmatmul.mubr.bf16.gmra.mrb[0].mxu0 %v5072
    %v5291 = vpop.f32.mrb[0].mxu0
    %v5292 = vadd.f32 %v5003, %v5291
    %v5293 = vpop.f32.mrb[0].mxu0
    %v5294 = vpop.f32.mrb[0].mxu0
    %v5295 = vadd.f32 %v5003, %v5294
    %v5296 = vpop.f32.mrb[0].mxu0
    %5297 = vmatprep.mubr.bf16.mxu0 0
    %5298 = vmatmul.mubr.bf16.gmra.mrb[0].mxu0 %v5075
    %v5299 = vpop.f32.mrb[0].mxu0
    %v5300 = vadd.f32 %v5003, %v5299
    %v5301 = vpop.f32.mrb[0].mxu0
    %v5302 = vpop.f32.mrb[0].mxu0
    %v5303 = vadd.f32 %v5003, %v5302
    %v5304 = vpop.f32.mrb[0].mxu0
    %5305 = vmatprep.mubr.bf16.mxu0 0
    %5306 = vmatmul.mubr.bf16.gmra.mrb[0].mxu0 %v5078
    %v5307 = vpop.f32.mrb[0].mxu0
    %v5308 = vadd.f32 %v5003, %v5307
    %v5309 = vpop.f32.mrb[0].mxu0
    %v5310 = vpop.f32.mrb[0].mxu0
    %v5311 = vadd.f32 %v5003, %v5310
    %v5312 = vpop.f32.mrb[0].mxu0
    %5313 = vmatprep.mubr.bf16.mxu0 0
    %5314 = vmatmul.mubr.bf16.gmra.mrb[0].mxu0 %v5081
    %v5315 = vpop.f32.mrb[0].mxu0
    %v5316 = vadd.f32 %v5003, %v5315
    %v5317 = vpop.f32.mrb[0].mxu0
    %v5318 = vpop.f32.mrb[0].mxu0
    %v5319 = vadd.f32 %v5003, %v5318
    %v5320 = vpop.f32.mrb[0].mxu0
    %5321 = vmatprep.mubr.bf16.mxu0 0
    %5322 = vmatmul.mubr.bf16.gmra.mrb[0].mxu0 %v5084
    %v5323 = vpop.f32.mrb[0].mxu0
    %v5324 = vadd.f32 %v5003, %v5323
    %v5325 = vpop.f32.mrb[0].mxu0
    %v5326 = vpop.f32.mrb[0].mxu0
    %v5327 = vadd.f32 %v5003, %v5326
    %v5328 = vpop.f32.mrb[0].mxu0
    %5329 = vmatprep.mubr.bf16.mxu0 0
    %5330 = vmatmul.mubr.bf16.gmra.mrb[0].mxu0 %v5087
    %v5331 = vpop.f32.mrb[0].mxu0
    %v5332 = vadd.f32 %v5003, %v5331
    %v5333 = vpop.f32.mrb[0].mxu0
    %v5334 = vpop.f32.mrb[0].mxu0
    %v5335 = vadd.f32 %v5003, %v5334
    %v5336 = vpop.f32.mrb[0].mxu0
    %5337 = vmatprep.mubr.bf16.mxu0 0
    %5338 = vmatmul.mubr.bf16.gmra.mrb[0].mxu0 %v5090
    %v5339 = vpop.f32.mrb[0].mxu0
    %v5340 = vadd.f32 %v5003, %v5339
    %v5341 = vpop.f32.mrb[0].mxu0
    %v5342 = vpop.f32.mrb[0].mxu0
    %v5343 = vadd.f32 %v5003, %v5342
    %v5344 = vpop.f32.mrb[0].mxu0
    %5345 = vmatprep.mubr.bf16.mxu0 0
    %5346 = vmatmul.mubr.bf16.gmra.mrb[0].mxu0 %v5093
    %v5347 = vpop.f32.mrb[0].mxu0
    %v5348 = vadd.f32 %v5003, %v5347
    %v5349 = vpop.f32.mrb[0].mxu0
    %v5350 = vpop.f32.mrb[0].mxu0
    %v5351 = vadd.f32 %v5003, %v5350
    %v5352 = vpop.f32.mrb[0].mxu0
    %5353 = vmatprep.mubr.bf16.mxu0 0
    %5354 = vmatmul.mubr.bf16.gmra.mrb[0].mxu0 %v5096
    %v5355 = vpop.f32.mrb[0].mxu0
    %v5356 = vadd.f32 %v5003, %v5355
    %v5357 = vpop.f32.mrb[0].mxu0
    %v5358 = vpop.f32.mrb[0].mxu0
    %v5359 = vadd.f32 %v5003, %v5358
    %v5360 = vpop.f32.mrb[0].mxu0
    %5361 = vmatprep.mubr.bf16.mxu0 0
    %5362 = vmatmul.mubr.bf16.gmra.mrb[0].mxu0 %v5099
    %v5363 = vpop.f32.mrb[0].mxu0
    %v5364 = vadd.f32 %v5003, %v5363
    %v5365 = vpop.f32.mrb[0].mxu0
    %v5366 = vpop.f32.mrb[0].mxu0
    %v5367 = vadd.f32 %v5003, %v5366
    %v5368 = vpop.f32.mrb[0].mxu0
    %5369 = vmatprep.mubr.bf16.mxu0 0
    %5370 = vmatmul.mubr.bf16.gmra.mrb[0].mxu0 %v5102
    %v5371 = vpop.f32.mrb[0].mxu0
    %v5372 = vadd.f32 %v5003, %v5371
    %v5373 = vpop.f32.mrb[0].mxu0
    %v5374 = vpop.f32.mrb[0].mxu0
    %v5375 = vadd.f32 %v5003, %v5374
    %v5376 = vpop.f32.mrb[0].mxu0
    %5377 = vmatprep.mubr.bf16.mxu0 0
    %5378 = vmatmul.mubr.bf16.gmra.mrb[0].mxu0 %v5105
    %v5379 = vpop.f32.mrb[0].mxu0
    %v5380 = vadd.f32 %v5003, %v5379
    %v5381 = vpop.f32.mrb[0].mxu0
    %v5382 = vpop.f32.mrb[0].mxu0
    %v5383 = vadd.f32 %v5003, %v5382
    %v5384 = vpop.f32.mrb[0].mxu0
    %5385 = vmatprep.mubr.bf16.mxu0 0
    %5386 = vmatmul.mubr.bf16.gmra.mrb[0].mxu0 %v5108
    %v5387 = vpop.f32.mrb[0].mxu0
    %v5388 = vadd.f32 %v5003, %v5387
    %v5389 = vpop.f32.mrb[0].mxu0
    %v5390 = vpop.f32.mrb[0].mxu0
    %v5391 = vadd.f32 %v5003, %v5390
    %v5392 = vpop.f32.mrb[0].mxu0
    %5393 = vmatprep.mubr.bf16.mxu0 0
    %5394 = vmatmul.mubr.bf16.gmra.mrb[0].mxu0 %v5111
    %v5395 = vpop.f32.mrb[0].mxu0
    %v5396 = vadd.f32 %v5003, %v5395
    %v5397 = vpop.f32.mrb[0].mxu0
    %v5398 = vpop.f32.mrb[0].mxu0
    %v5399 = vadd.f32 %v5003, %v5398
    %v5400 = vpop.f32.mrb[0].mxu0
    %5401 = vdwg.mxu0
    %v5402 = vmul.f32 %v5148, %v5148
    %v5403 = vmul.f32 %v5151, %v5151
    %v5404 = vmul.f32 %v5156, %v5156
    %v5405 = vmul.f32 %v5159, %v5159
    %v5406 = vmul.f32 %v5164, %v5164
    %v5407 = vmul.f32 %v5167, %v5167
    %v5408 = vmul.f32 %v5172, %v5172
    %v5409 = vmul.f32 %v5175, %v5175
    %v5410 = vmul.f32 %v5180, %v5180
    %v5411 = vmul.f32 %v5183, %v5183
    %v5412 = vmul.f32 %v5188, %v5188
    %v5413 = vmul.f32 %v5191, %v5191
    %v5414 = vmul.f32 %v5196, %v5196
    %v5415 = vmul.f32 %v5199, %v5199
    %v5416 = vmul.f32 %v5204, %v5204
    %v5417 = vmul.f32 %v5207, %v5207
    %v5418 = vmul.f32 %v5212, %v5212
    %v5419 = vmul.f32 %v5215, %v5215
    %v5420 = vmul.f32 %v5220, %v5220
    %v5421 = vmul.f32 %v5223, %v5223
    %v5422 = vmul.f32 %v5228, %v5228
    %v5423 = vmul.f32 %v5231, %v5231
    %v5424 = vmul.f32 %v5236, %v5236
    %v5425 = vmul.f32 %v5239, %v5239
    %v5426 = vmul.f32 %v5244, %v5244
    %v5427 = vmul.f32 %v5247, %v5247
    %v5428 = vmul.f32 %v5252, %v5252
    %v5429 = vmul.f32 %v5255, %v5255
    %v5430 = vmul.f32 %v5260, %v5260
    %v5431 = vmul.f32 %v5263, %v5263
    %v5432 = vmul.f32 %v5268, %v5268
    %v5433 = vmul.f32 %v5271, %v5271
    %v5434 = vmul.f32 %v5276, %v5276
    %v5435 = vmul.f32 %v5279, %v5279
    %v5436 = vmul.f32 %v5284, %v5284
    %v5437 = vmul.f32 %v5287, %v5287
    %v5438 = vmul.f32 %v5292, %v5292
    %v5439 = vmul.f32 %v5295, %v5295
    %v5440 = vmul.f32 %v5300, %v5300
    %v5441 = vmul.f32 %v5303, %v5303
    %v5442 = vmul.f32 %v5308, %v5308
    %v5443 = vmul.f32 %v5311, %v5311
    %v5444 = vmul.f32 %v5316, %v5316
    %v5445 = vmul.f32 %v5319, %v5319
    %v5446 = vmul.f32 %v5324, %v5324
    %v5447 = vmul.f32 %v5327, %v5327
    %v5448 = vmul.f32 %v5332, %v5332
    %v5449 = vmul.f32 %v5335, %v5335
    %v5450 = vmul.f32 %v5340, %v5340
    %v5451 = vmul.f32 %v5343, %v5343
    %v5452 = vmul.f32 %v5348, %v5348
    %v5453 = vmul.f32 %v5351, %v5351
    %v5454 = vmul.f32 %v5356, %v5356
    %v5455 = vmul.f32 %v5359, %v5359
    %v5456 = vmul.f32 %v5364, %v5364
    %v5457 = vmul.f32 %v5367, %v5367
    %v5458 = vmul.f32 %v5372, %v5372
    %v5459 = vmul.f32 %v5375, %v5375
    %v5460 = vmul.f32 %v5380, %v5380
    %v5461 = vmul.f32 %v5383, %v5383
    %v5462 = vmul.f32 %v5388, %v5388
    %v5463 = vmul.f32 %v5391, %v5391
    %v5464 = vmul.f32 %v5396, %v5396
    %v5465 = vmul.f32 %v5399, %v5399
    %v5466 = vmul.f32 %v5148, %v5402
    %v5467 = vmul.f32 %v5151, %v5403
    %v5468 = vmul.f32 %v5156, %v5404
    %v5469 = vmul.f32 %v5159, %v5405
    %v5470 = vmul.f32 %v5164, %v5406
    %v5471 = vmul.f32 %v5167, %v5407
    %v5472 = vmul.f32 %v5172, %v5408
    %v5473 = vmul.f32 %v5175, %v5409
    %v5474 = vmul.f32 %v5180, %v5410
    %v5475 = vmul.f32 %v5183, %v5411
    %v5476 = vmul.f32 %v5188, %v5412
    %v5477 = vmul.f32 %v5191, %v5413
    %v5478 = vmul.f32 %v5196, %v5414
    %v5479 = vmul.f32 %v5199, %v5415
    %v5480 = vmul.f32 %v5204, %v5416
    %v5481 = vmul.f32 %v5207, %v5417
    %v5482 = vmul.f32 %v5212, %v5418
    %v5483 = vmul.f32 %v5215, %v5419
    %v5484 = vmul.f32 %v5220, %v5420
    %v5485 = vmul.f32 %v5223, %v5421
    %v5486 = vmul.f32 %v5228, %v5422
    %v5487 = vmul.f32 %v5231, %v5423
    %v5488 = vmul.f32 %v5236, %v5424
    %v5489 = vmul.f32 %v5239, %v5425
    %v5490 = vmul.f32 %v5244, %v5426
    %v5491 = vmul.f32 %v5247, %v5427
    %v5492 = vmul.f32 %v5252, %v5428
    %v5493 = vmul.f32 %v5255, %v5429
    %v5494 = vmul.f32 %v5260, %v5430
    %v5495 = vmul.f32 %v5263, %v5431
    %v5496 = vmul.f32 %v5268, %v5432
    %v5497 = vmul.f32 %v5271, %v5433
    %v5498 = vmul.f32 %v5276, %v5434
    %v5499 = vmul.f32 %v5279, %v5435
    %v5500 = vmul.f32 %v5284, %v5436
    %v5501 = vmul.f32 %v5287, %v5437
    %v5502 = vmul.f32 %v5292, %v5438
    %v5503 = vmul.f32 %v5295, %v5439
    %v5504 = vmul.f32 %v5300, %v5440
    %v5505 = vmul.f32 %v5303, %v5441
    %v5506 = vmul.f32 %v5308, %v5442
    %v5507 = vmul.f32 %v5311, %v5443
    %v5508 = vmul.f32 %v5316, %v5444
    %v5509 = vmul.f32 %v5319, %v5445
    %v5510 = vmul.f32 %v5324, %v5446
    %v5511 = vmul.f32 %v5327, %v5447
    %v5512 = vmul.f32 %v5332, %v5448
    %v5513 = vmul.f32 %v5335, %v5449
    %v5514 = vmul.f32 %v5340, %v5450
    %v5515 = vmul.f32 %v5343, %v5451
    %v5516 = vmul.f32 %v5348, %v5452
    %v5517 = vmul.f32 %v5351, %v5453
    %v5518 = vmul.f32 %v5356, %v5454
    %v5519 = vmul.f32 %v5359, %v5455
    %v5520 = vmul.f32 %v5364, %v5456
    %v5521 = vmul.f32 %v5367, %v5457
    %v5522 = vmul.f32 %v5372, %v5458
    %v5523 = vmul.f32 %v5375, %v5459
    %v5524 = vmul.f32 %v5380, %v5460
    %v5525 = vmul.f32 %v5383, %v5461
    %v5526 = vmul.f32 %v5388, %v5462
    %v5527 = vmul.f32 %v5391, %v5463
    %v5528 = vmul.f32 %v5396, %v5464
    %v5529 = vmul.f32 %v5399, %v5465
    %v5530 = vmul.f32 %v5466, 0.044715
    %v5531 = vmul.f32 %v5467, 0.044715
    %v5532 = vmul.f32 %v5468, 0.044715
    %v5533 = vmul.f32 %v5469, 0.044715
    %v5534 = vmul.f32 %v5470, 0.044715
    %v5535 = vmul.f32 %v5471, 0.044715
    %v5536 = vmul.f32 %v5472, 0.044715
    %v5537 = vmul.f32 %v5473, 0.044715
    %v5538 = vmul.f32 %v5474, 0.044715
    %v5539 = vmul.f32 %v5475, 0.044715
    %v5540 = vmul.f32 %v5476, 0.044715
    %v5541 = vmul.f32 %v5477, 0.044715
    %v5542 = vmul.f32 %v5478, 0.044715
    %v5543 = vmul.f32 %v5479, 0.044715
    %v5544 = vmul.f32 %v5480, 0.044715
    %v5545 = vmul.f32 %v5481, 0.044715
    %v5546 = vmul.f32 %v5482, 0.044715
    %v5547 = vmul.f32 %v5483, 0.044715
    %v5548 = vmul.f32 %v5484, 0.044715
    %v5549 = vmul.f32 %v5485, 0.044715
    %v5550 = vmul.f32 %v5486, 0.044715
    %v5551 = vmul.f32 %v5487, 0.044715
    %v5552 = vmul.f32 %v5488, 0.044715
    %v5553 = vmul.f32 %v5489, 0.044715
    %v5554 = vmul.f32 %v5490, 0.044715
    %v5555 = vmul.f32 %v5491, 0.044715
    %v5556 = vmul.f32 %v5492, 0.044715
    %v5557 = vmul.f32 %v5493, 0.044715
    %v5558 = vmul.f32 %v5494, 0.044715
    %v5559 = vmul.f32 %v5495, 0.044715
    %v5560 = vmul.f32 %v5496, 0.044715
    %v5561 = vmul.f32 %v5497, 0.044715
    %v5562 = vmul.f32 %v5498, 0.044715
    %v5563 = vmul.f32 %v5499, 0.044715
    %v5564 = vmul.f32 %v5500, 0.044715
    %v5565 = vmul.f32 %v5501, 0.044715
    %v5566 = vmul.f32 %v5502, 0.044715
    %v5567 = vmul.f32 %v5503, 0.044715
    %v5568 = vmul.f32 %v5504, 0.044715
    %v5569 = vmul.f32 %v5505, 0.044715
    %v5570 = vmul.f32 %v5506, 0.044715
    %v5571 = vmul.f32 %v5507, 0.044715
    %v5572 = vmul.f32 %v5508, 0.044715
    %v5573 = vmul.f32 %v5509, 0.044715
    %v5574 = vmul.f32 %v5510, 0.044715
    %v5575 = vmul.f32 %v5511, 0.044715
    %v5576 = vmul.f32 %v5512, 0.044715
    %v5577 = vmul.f32 %v5513, 0.044715
    %v5578 = vmul.f32 %v5514, 0.044715
    %v5579 = vmul.f32 %v5515, 0.044715
    %v5580 = vmul.f32 %v5516, 0.044715
    %v5581 = vmul.f32 %v5517, 0.044715
    %v5582 = vmul.f32 %v5518, 0.044715
    %v5583 = vmul.f32 %v5519, 0.044715
    %v5584 = vmul.f32 %v5520, 0.044715
    %v5585 = vmul.f32 %v5521, 0.044715
    %v5586 = vmul.f32 %v5522, 0.044715
    %v5587 = vmul.f32 %v5523, 0.044715
    %v5588 = vmul.f32 %v5524, 0.044715
    %v5589 = vmul.f32 %v5525, 0.044715
    %v5590 = vmul.f32 %v5526, 0.044715
    %v5591 = vmul.f32 %v5527, 0.044715
    %v5592 = vmul.f32 %v5528, 0.044715
    %v5593 = vmul.f32 %v5529, 0.044715
    %v5594 = vadd.f32 %v5148, %v5530
    %v5595 = vadd.f32 %v5151, %v5531
    %v5596 = vadd.f32 %v5156, %v5532
    %v5597 = vadd.f32 %v5159, %v5533
    %v5598 = vadd.f32 %v5164, %v5534
    %v5599 = vadd.f32 %v5167, %v5535
    %v5600 = vadd.f32 %v5172, %v5536
    %v5601 = vadd.f32 %v5175, %v5537
    %v5602 = vadd.f32 %v5180, %v5538
    %v5603 = vadd.f32 %v5183, %v5539
    %v5604 = vadd.f32 %v5188, %v5540
    %v5605 = vadd.f32 %v5191, %v5541
    %v5606 = vadd.f32 %v5196, %v5542
    %v5607 = vadd.f32 %v5199, %v5543
    %v5608 = vadd.f32 %v5204, %v5544
    %v5609 = vadd.f32 %v5207, %v5545
    %v5610 = vadd.f32 %v5212, %v5546
    %v5611 = vadd.f32 %v5215, %v5547
    %v5612 = vadd.f32 %v5220, %v5548
    %v5613 = vadd.f32 %v5223, %v5549
    %v5614 = vadd.f32 %v5228, %v5550
    %v5615 = vadd.f32 %v5231, %v5551
    %v5616 = vadd.f32 %v5236, %v5552
    %v5617 = vadd.f32 %v5239, %v5553
    %v5618 = vadd.f32 %v5244, %v5554
    %v5619 = vadd.f32 %v5247, %v5555
    %v5620 = vadd.f32 %v5252, %v5556
    %v5621 = vadd.f32 %v5255, %v5557
    %v5622 = vadd.f32 %v5260, %v5558
    %v5623 = vadd.f32 %v5263, %v5559
    %v5624 = vadd.f32 %v5268, %v5560
    %v5625 = vadd.f32 %v5271, %v5561
    %v5626 = vadd.f32 %v5276, %v5562
    %v5627 = vadd.f32 %v5279, %v5563
    %v5628 = vadd.f32 %v5284, %v5564
    %v5629 = vadd.f32 %v5287, %v5565
    %v5630 = vadd.f32 %v5292, %v5566
    %v5631 = vadd.f32 %v5295, %v5567
    %v5632 = vadd.f32 %v5300, %v5568
    %v5633 = vadd.f32 %v5303, %v5569
    %v5634 = vadd.f32 %v5308, %v5570
    %v5635 = vadd.f32 %v5311, %v5571
    %v5636 = vadd.f32 %v5316, %v5572
    %v5637 = vadd.f32 %v5319, %v5573
    %v5638 = vadd.f32 %v5324, %v5574
    %v5639 = vadd.f32 %v5327, %v5575
    %v5640 = vadd.f32 %v5332, %v5576
    %v5641 = vadd.f32 %v5335, %v5577
    %v5642 = vadd.f32 %v5340, %v5578
    %v5643 = vadd.f32 %v5343, %v5579
    %v5644 = vadd.f32 %v5348, %v5580
    %v5645 = vadd.f32 %v5351, %v5581
    %v5646 = vadd.f32 %v5356, %v5582
    %v5647 = vadd.f32 %v5359, %v5583
    %v5648 = vadd.f32 %v5364, %v5584
    %v5649 = vadd.f32 %v5367, %v5585
    %v5650 = vadd.f32 %v5372, %v5586
    %v5651 = vadd.f32 %v5375, %v5587
    %v5652 = vadd.f32 %v5380, %v5588
    %v5653 = vadd.f32 %v5383, %v5589
    %v5654 = vadd.f32 %v5388, %v5590
    %v5655 = vadd.f32 %v5391, %v5591
    %v5656 = vadd.f32 %v5396, %v5592
    %v5657 = vadd.f32 %v5399, %v5593
    %v5658 = vmul.f32 %v5594, 0.7978846
    %v5659 = vmul.f32 %v5595, 0.7978846
    %v5660 = vmul.f32 %v5596, 0.7978846
    %v5661 = vmul.f32 %v5597, 0.7978846
    %v5662 = vmul.f32 %v5598, 0.7978846
    %v5663 = vmul.f32 %v5599, 0.7978846
    %v5664 = vmul.f32 %v5600, 0.7978846
    %v5665 = vmul.f32 %v5601, 0.7978846
    %v5666 = vmul.f32 %v5602, 0.7978846
    %v5667 = vmul.f32 %v5603, 0.7978846
    %v5668 = vmul.f32 %v5604, 0.7978846
    %v5669 = vmul.f32 %v5605, 0.7978846
    %v5670 = vmul.f32 %v5606, 0.7978846
    %v5671 = vmul.f32 %v5607, 0.7978846
    %v5672 = vmul.f32 %v5608, 0.7978846
    %v5673 = vmul.f32 %v5609, 0.7978846
    %v5674 = vmul.f32 %v5610, 0.7978846
    %v5675 = vmul.f32 %v5611, 0.7978846
    %v5676 = vmul.f32 %v5612, 0.7978846
    %v5677 = vmul.f32 %v5613, 0.7978846
    %v5678 = vmul.f32 %v5614, 0.7978846
    %v5679 = vmul.f32 %v5615, 0.7978846
    %v5680 = vmul.f32 %v5616, 0.7978846
    %v5681 = vmul.f32 %v5617, 0.7978846
    %v5682 = vmul.f32 %v5618, 0.7978846
    %v5683 = vmul.f32 %v5619, 0.7978846
    %v5684 = vmul.f32 %v5620, 0.7978846
    %v5685 = vmul.f32 %v5621, 0.7978846
    %v5686 = vmul.f32 %v5622, 0.7978846
    %v5687 = vmul.f32 %v5623, 0.7978846
    %v5688 = vmul.f32 %v5624, 0.7978846
    %v5689 = vmul.f32 %v5625, 0.7978846
    %v5690 = vmul.f32 %v5626, 0.7978846
    %v5691 = vmul.f32 %v5627, 0.7978846
    %v5692 = vmul.f32 %v5628, 0.7978846
    %v5693 = vmul.f32 %v5629, 0.7978846
    %v5694 = vmul.f32 %v5630, 0.7978846
    %v5695 = vmul.f32 %v5631, 0.7978846
    %v5696 = vmul.f32 %v5632, 0.7978846
    %v5697 = vmul.f32 %v5633, 0.7978846
    %v5698 = vmul.f32 %v5634, 0.7978846
    %v5699 = vmul.f32 %v5635, 0.7978846
    %v5700 = vmul.f32 %v5636, 0.7978846
    %v5701 = vmul.f32 %v5637, 0.7978846
    %v5702 = vmul.f32 %v5638, 0.7978846
    %v5703 = vmul.f32 %v5639, 0.7978846
    %v5704 = vmul.f32 %v5640, 0.7978846
    %v5705 = vmul.f32 %v5641, 0.7978846
    %v5706 = vmul.f32 %v5642, 0.7978846
    %v5707 = vmul.f32 %v5643, 0.7978846
    %v5708 = vmul.f32 %v5644, 0.7978846
    %v5709 = vmul.f32 %v5645, 0.7978846
    %v5710 = vmul.f32 %v5646, 0.7978846
    %v5711 = vmul.f32 %v5647, 0.7978846
    %v5712 = vmul.f32 %v5648, 0.7978846
    %v5713 = vmul.f32 %v5649, 0.7978846
    %v5714 = vmul.f32 %v5650, 0.7978846
    %v5715 = vmul.f32 %v5651, 0.7978846
    %v5716 = vmul.f32 %v5652, 0.7978846
    %v5717 = vmul.f32 %v5653, 0.7978846
    %v5718 = vmul.f32 %v5654, 0.7978846
    %v5719 = vmul.f32 %v5655, 0.7978846
    %v5720 = vmul.f32 %v5656, 0.7978846
    %v5721 = vmul.f32 %v5657, 0.7978846
    %v5722 = vtanh.pop %v5658
    %v5723 = vtanh.pop %v5659
    %v5724 = vtanh.pop %v5660
    %v5725 = vtanh.pop %v5661
    %v5726 = vtanh.pop %v5662
    %v5727 = vtanh.pop %v5663
    %v5728 = vtanh.pop %v5664
    %v5729 = vtanh.pop %v5665
    %v5730 = vtanh.pop %v5666
    %v5731 = vtanh.pop %v5667
    %v5732 = vtanh.pop %v5668
    %v5733 = vtanh.pop %v5669
    %v5734 = vtanh.pop %v5670
    %v5735 = vtanh.pop %v5671
    %v5736 = vtanh.pop %v5672
    %v5737 = vtanh.pop %v5673
    %v5738 = vtanh.pop %v5674
    %v5739 = vtanh.pop %v5675
    %v5740 = vtanh.pop %v5676
    %v5741 = vtanh.pop %v5677
    %v5742 = vtanh.pop %v5678
    %v5743 = vtanh.pop %v5679
    %v5744 = vtanh.pop %v5680
    %v5745 = vtanh.pop %v5681
    %v5746 = vtanh.pop %v5682
    %v5747 = vtanh.pop %v5683
    %v5748 = vtanh.pop %v5684
    %v5749 = vtanh.pop %v5685
    %v5750 = vtanh.pop %v5686
    %v5751 = vtanh.pop %v5687
    %v5752 = vtanh.pop %v5688
    %v5753 = vtanh.pop %v5689
    %v5754 = vtanh.pop %v5690
    %v5755 = vtanh.pop %v5691
    %v5756 = vtanh.pop %v5692
    %v5757 = vtanh.pop %v5693
    %v5758 = vtanh.pop %v5694
    %v5759 = vtanh.pop %v5695
    %v5760 = vtanh.pop %v5696
    %v5761 = vtanh.pop %v5697
    %v5762 = vtanh.pop %v5698
    %v5763 = vtanh.pop %v5699
    %v5764 = vtanh.pop %v5700
    %v5765 = vtanh.pop %v5701
    %v5766 = vtanh.pop %v5702
    %v5767 = vtanh.pop %v5703
    %v5768 = vtanh.pop %v5704
    %v5769 = vtanh.pop %v5705
    %v5770 = vtanh.pop %v5706
    %v5771 = vtanh.pop %v5707
    %v5772 = vtanh.pop %v5708
    %v5773 = vtanh.pop %v5709
    %v5774 = vtanh.pop %v5710
    %v5775 = vtanh.pop %v5711
    %v5776 = vtanh.pop %v5712
    %v5777 = vtanh.pop %v5713
    %v5778 = vtanh.pop %v5714
    %v5779 = vtanh.pop %v5715
    %v5780 = vtanh.pop %v5716
    %v5781 = vtanh.pop %v5717
    %v5782 = vtanh.pop %v5718
    %v5783 = vtanh.pop %v5719
    %v5784 = vtanh.pop %v5720
    %v5785 = vtanh.pop %v5721
    %v5786 = vadd.f32 %v5722, 1.0
    %v5787 = vadd.f32 %v5723, 1.0
    %v5788 = vadd.f32 %v5724, 1.0
    %v5789 = vadd.f32 %v5725, 1.0
    %v5790 = vadd.f32 %v5726, 1.0
    %v5791 = vadd.f32 %v5727, 1.0
    %v5792 = vadd.f32 %v5728, 1.0
    %v5793 = vadd.f32 %v5729, 1.0
    %v5794 = vadd.f32 %v5730, 1.0
    %v5795 = vadd.f32 %v5731, 1.0
    %v5796 = vadd.f32 %v5732, 1.0
    %v5797 = vadd.f32 %v5733, 1.0
    %v5798 = vadd.f32 %v5734, 1.0
    %v5799 = vadd.f32 %v5735, 1.0
    %v5800 = vadd.f32 %v5736, 1.0
    %v5801 = vadd.f32 %v5737, 1.0
    %v5802 = vadd.f32 %v5738, 1.0
    %v5803 = vadd.f32 %v5739, 1.0
    %v5804 = vadd.f32 %v5740, 1.0
    %v5805 = vadd.f32 %v5741, 1.0
    %v5806 = vadd.f32 %v5742, 1.0
    %v5807 = vadd.f32 %v5743, 1.0
    %v5808 = vadd.f32 %v5744, 1.0
    %v5809 = vadd.f32 %v5745, 1.0
    %v5810 = vadd.f32 %v5746, 1.0
    %v5811 = vadd.f32 %v5747, 1.0
    %v5812 = vadd.f32 %v5748, 1.0
    %v5813 = vadd.f32 %v5749, 1.0
    %v5814 = vadd.f32 %v5750, 1.0
    %v5815 = vadd.f32 %v5751, 1.0
    %v5816 = vadd.f32 %v5752, 1.0
    %v5817 = vadd.f32 %v5753, 1.0
    %v5818 = vadd.f32 %v5754, 1.0
    %v5819 = vadd.f32 %v5755, 1.0
    %v5820 = vadd.f32 %v5756, 1.0
    %v5821 = vadd.f32 %v5757, 1.0
    %v5822 = vadd.f32 %v5758, 1.0
    %v5823 = vadd.f32 %v5759, 1.0
    %v5824 = vadd.f32 %v5760, 1.0
    %v5825 = vadd.f32 %v5761, 1.0
    %v5826 = vadd.f32 %v5762, 1.0
    %v5827 = vadd.f32 %v5763, 1.0
    %v5828 = vadd.f32 %v5764, 1.0
    %v5829 = vadd.f32 %v5765, 1.0
    %v5830 = vadd.f32 %v5766, 1.0
    %v5831 = vadd.f32 %v5767, 1.0
    %v5832 = vadd.f32 %v5768, 1.0
    %v5833 = vadd.f32 %v5769, 1.0
    %v5834 = vadd.f32 %v5770, 1.0
    %v5835 = vadd.f32 %v5771, 1.0
    %v5836 = vadd.f32 %v5772, 1.0
    %v5837 = vadd.f32 %v5773, 1.0
    %v5838 = vadd.f32 %v5774, 1.0
    %v5839 = vadd.f32 %v5775, 1.0
    %v5840 = vadd.f32 %v5776, 1.0
    %v5841 = vadd.f32 %v5777, 1.0
    %v5842 = vadd.f32 %v5778, 1.0
    %v5843 = vadd.f32 %v5779, 1.0
    %v5844 = vadd.f32 %v5780, 1.0
    %v5845 = vadd.f32 %v5781, 1.0
    %v5846 = vadd.f32 %v5782, 1.0
    %v5847 = vadd.f32 %v5783, 1.0
    %v5848 = vadd.f32 %v5784, 1.0
    %v5849 = vadd.f32 %v5785, 1.0
    %v5850 = vmul.f32 %v5786, 0.5
    %v5851 = vmul.f32 %v5787, 0.5
    %v5852 = vmul.f32 %v5788, 0.5
    %v5853 = vmul.f32 %v5789, 0.5
    %v5854 = vmul.f32 %v5790, 0.5
    %v5855 = vmul.f32 %v5791, 0.5
    %v5856 = vmul.f32 %v5792, 0.5
    %v5857 = vmul.f32 %v5793, 0.5
    %v5858 = vmul.f32 %v5794, 0.5
    %v5859 = vmul.f32 %v5795, 0.5
    %v5860 = vmul.f32 %v5796, 0.5
    %v5861 = vmul.f32 %v5797, 0.5
    %v5862 = vmul.f32 %v5798, 0.5
    %v5863 = vmul.f32 %v5799, 0.5
    %v5864 = vmul.f32 %v5800, 0.5
    %v5865 = vmul.f32 %v5801, 0.5
    %v5866 = vmul.f32 %v5802, 0.5
    %v5867 = vmul.f32 %v5803, 0.5
    %v5868 = vmul.f32 %v5804, 0.5
    %v5869 = vmul.f32 %v5805, 0.5
    %v5870 = vmul.f32 %v5806, 0.5
    %v5871 = vmul.f32 %v5807, 0.5
    %v5872 = vmul.f32 %v5808, 0.5
    %v5873 = vmul.f32 %v5809, 0.5
    %v5874 = vmul.f32 %v5810, 0.5
    %v5875 = vmul.f32 %v5811, 0.5
    %v5876 = vmul.f32 %v5812, 0.5
    %v5877 = vmul.f32 %v5813, 0.5
    %v5878 = vmul.f32 %v5814, 0.5
    %v5879 = vmul.f32 %v5815, 0.5
    %v5880 = vmul.f32 %v5816, 0.5
    %v5881 = vmul.f32 %v5817, 0.5
    %v5882 = vmul.f32 %v5818, 0.5
    %v5883 = vmul.f32 %v5819, 0.5
    %v5884 = vmul.f32 %v5820, 0.5
    %v5885 = vmul.f32 %v5821, 0.5
    %v5886 = vmul.f32 %v5822, 0.5
    %v5887 = vmul.f32 %v5823, 0.5
    %v5888 = vmul.f32 %v5824, 0.5
    %v5889 = vmul.f32 %v5825, 0.5
    %v5890 = vmul.f32 %v5826, 0.5
    %v5891 = vmul.f32 %v5827, 0.5
    %v5892 = vmul.f32 %v5828, 0.5
    %v5893 = vmul.f32 %v5829, 0.5
    %v5894 = vmul.f32 %v5830, 0.5
    %v5895 = vmul.f32 %v5831, 0.5
    %v5896 = vmul.f32 %v5832, 0.5
    %v5897 = vmul.f32 %v5833, 0.5
    %v5898 = vmul.f32 %v5834, 0.5
    %v5899 = vmul.f32 %v5835, 0.5
    %v5900 = vmul.f32 %v5836, 0.5
    %v5901 = vmul.f32 %v5837, 0.5
    %v5902 = vmul.f32 %v5838, 0.5
    %v5903 = vmul.f32 %v5839, 0.5
    %v5904 = vmul.f32 %v5840, 0.5
    %v5905 = vmul.f32 %v5841, 0.5
    %v5906 = vmul.f32 %v5842, 0.5
    %v5907 = vmul.f32 %v5843, 0.5
    %v5908 = vmul.f32 %v5844, 0.5
    %v5909 = vmul.f32 %v5845, 0.5
    %v5910 = vmul.f32 %v5846, 0.5
    %v5911 = vmul.f32 %v5847, 0.5
    %v5912 = vmul.f32 %v5848, 0.5
    %v5913 = vmul.f32 %v5849, 0.5
    %v5914 = vmul.f32 %v5148, %v5850
    %v5915 = vmul.f32 %v5151, %v5851
    %v5916 = vmul.f32 %v5156, %v5852
    %v5917 = vmul.f32 %v5159, %v5853
    %v5918 = vmul.f32 %v5164, %v5854
    %v5919 = vmul.f32 %v5167, %v5855
    %v5920 = vmul.f32 %v5172, %v5856
    %v5921 = vmul.f32 %v5175, %v5857
    %v5922 = vmul.f32 %v5180, %v5858
    %v5923 = vmul.f32 %v5183, %v5859
    %v5924 = vmul.f32 %v5188, %v5860
    %v5925 = vmul.f32 %v5191, %v5861
    %v5926 = vmul.f32 %v5196, %v5862
    %v5927 = vmul.f32 %v5199, %v5863
    %v5928 = vmul.f32 %v5204, %v5864
    %v5929 = vmul.f32 %v5207, %v5865
    %v5930 = vmul.f32 %v5212, %v5866
    %v5931 = vmul.f32 %v5215, %v5867
    %v5932 = vmul.f32 %v5220, %v5868
    %v5933 = vmul.f32 %v5223, %v5869
    %v5934 = vmul.f32 %v5228, %v5870
    %v5935 = vmul.f32 %v5231, %v5871
    %v5936 = vmul.f32 %v5236, %v5872
    %v5937 = vmul.f32 %v5239, %v5873
    %v5938 = vmul.f32 %v5244, %v5874
    %v5939 = vmul.f32 %v5247, %v5875
    %v5940 = vmul.f32 %v5252, %v5876
    %v5941 = vmul.f32 %v5255, %v5877
    %v5942 = vmul.f32 %v5260, %v5878
    %v5943 = vmul.f32 %v5263, %v5879
    %v5944 = vmul.f32 %v5268, %v5880
    %v5945 = vmul.f32 %v5271, %v5881
    %v5946 = vmul.f32 %v5276, %v5882
    %v5947 = vmul.f32 %v5279, %v5883
    %v5948 = vmul.f32 %v5284, %v5884
    %v5949 = vmul.f32 %v5287, %v5885
    %v5950 = vmul.f32 %v5292, %v5886
    %v5951 = vmul.f32 %v5295, %v5887
    %v5952 = vmul.f32 %v5300, %v5888
    %v5953 = vmul.f32 %v5303, %v5889
    %v5954 = vmul.f32 %v5308, %v5890
    %v5955 = vmul.f32 %v5311, %v5891
    %v5956 = vmul.f32 %v5316, %v5892
    %v5957 = vmul.f32 %v5319, %v5893
    %v5958 = vmul.f32 %v5324, %v5894
    %v5959 = vmul.f32 %v5327, %v5895
    %v5960 = vmul.f32 %v5332, %v5896
    %v5961 = vmul.f32 %v5335, %v5897
    %v5962 = vmul.f32 %v5340, %v5898
    %v5963 = vmul.f32 %v5343, %v5899
    %v5964 = vmul.f32 %v5348, %v5900
    %v5965 = vmul.f32 %v5351, %v5901
    %v5966 = vmul.f32 %v5356, %v5902
    %v5967 = vmul.f32 %v5359, %v5903
    %v5968 = vmul.f32 %v5364, %v5904
    %v5969 = vmul.f32 %v5367, %v5905
    %v5970 = vmul.f32 %v5372, %v5906
    %v5971 = vmul.f32 %v5375, %v5907
    %v5972 = vmul.f32 %v5380, %v5908
    %v5973 = vmul.f32 %v5383, %v5909
    %v5974 = vmul.f32 %v5388, %v5910
    %v5975 = vmul.f32 %v5391, %v5911
    %v5976 = vmul.f32 %v5396, %v5912
    %v5977 = vmul.f32 %v5399, %v5913
    %v5978 = vpack.c.bf16 %v5915, %v5914
    %v5979 = vpack.c.bf16 %v5917, %v5916
    %v5980 = vpack.c.bf16 %v5919, %v5918
    %v5981 = vpack.c.bf16 %v5921, %v5920
    %v5982 = vpack.c.bf16 %v5923, %v5922
    %v5983 = vpack.c.bf16 %v5925, %v5924
    %v5984 = vpack.c.bf16 %v5927, %v5926
    %v5985 = vpack.c.bf16 %v5929, %v5928
    %v5986 = vpack.c.bf16 %v5931, %v5930
    %v5987 = vpack.c.bf16 %v5933, %v5932
    %v5988 = vpack.c.bf16 %v5935, %v5934
    %v5989 = vpack.c.bf16 %v5937, %v5936
    %v5990 = vpack.c.bf16 %v5939, %v5938
    %v5991 = vpack.c.bf16 %v5941, %v5940
    %v5992 = vpack.c.bf16 %v5943, %v5942
    %v5993 = vpack.c.bf16 %v5945, %v5944
    %v5994 = vpack.c.bf16 %v5947, %v5946
    %v5995 = vpack.c.bf16 %v5949, %v5948
    %v5996 = vpack.c.bf16 %v5951, %v5950
    %v5997 = vpack.c.bf16 %v5953, %v5952
    %v5998 = vpack.c.bf16 %v5955, %v5954
    %v5999 = vpack.c.bf16 %v5957, %v5956
    %v6000 = vpack.c.bf16 %v5959, %v5958
    %v6001 = vpack.c.bf16 %v5961, %v5960
    %v6002 = vpack.c.bf16 %v5963, %v5962
    %v6003 = vpack.c.bf16 %v5965, %v5964
    %v6004 = vpack.c.bf16 %v5967, %v5966
    %v6005 = vpack.c.bf16 %v5969, %v5968
    %v6006 = vpack.c.bf16 %v5971, %v5970
    %v6007 = vpack.c.bf16 %v5973, %v5972
    %v6008 = vpack.c.bf16 %v5975, %v5974
    %v6009 = vpack.c.bf16 %v5977, %v5976
    %v6010 = vld [vmem:[%s2] sm:$0xf]
    %v6011 = vld [vmem:[%s2 + $0x4] sm:$0xf]
    %v6012 = vld [vmem:[%s2 + $0x8] sm:$0xf]
    %v6013 = vld [vmem:[%s2 + $0xc] sm:$0xf]
    %v6014 = vld [vmem:[%s2 + $0x10] sm:$0xf]
    %v6015 = vld [vmem:[%s2 + $0x14] sm:$0xf]
    %v6016 = vld [vmem:[%s2 + $0x18] sm:$0xf]
    %v6017 = vld [vmem:[%s2 + $0x1c] sm:$0xf]
    %v6018 = vld [vmem:[%s2 + $0x20] sm:$0xf]
    %v6019 = vld [vmem:[%s2 + $0x24] sm:$0xf]
    %v6020 = vld [vmem:[%s2 + $0x28] sm:$0xf]
    %v6021 = vld [vmem:[%s2 + $0x2c] sm:$0xf]
    %v6022 = vld [vmem:[%s2 + $0x30] sm:$0xf]
    %v6023 = vld [vmem:[%s2 + $0x34] sm:$0xf]
    %v6024 = vld [vmem:[%s2 + $0x38] sm:$0xf]
    %v6025 = vld [vmem:[%s2 + $0x3c] sm:$0xf]
    %v6027 = vlaneseq
    %v6028 = vshrl.u32 %v6027, 7
    %v6029 = vsub.s32 0, %v6028
    %v6030 = vrot.slane %v28, %v6029
    %v6048 = vunpack.c.l.b16 %v6010
    %v6049 = vunpack.c.l.b16 %v6011
    %v6050 = vunpack.c.l.b16 %v6012
    %v6051 = vunpack.c.l.b16 %v6013
    %v6052 = vunpack.c.l.b16 %v6014
    %v6053 = vunpack.c.l.b16 %v6015
    %v6054 = vunpack.c.l.b16 %v6016
    %v6055 = vunpack.c.l.b16 %v6017
    %v6056 = vunpack.c.l.b16 %v6018
    %v6057 = vunpack.c.l.b16 %v6019
    %v6058 = vunpack.c.l.b16 %v6020
    %v6059 = vunpack.c.l.b16 %v6021
    %v6060 = vunpack.c.l.b16 %v6022
    %v6061 = vunpack.c.l.b16 %v6023
    %v6062 = vunpack.c.l.b16 %v6024
    %v6063 = vunpack.c.l.b16 %v6025
    %v6064 = vpack.c.b16 %v6049, %v6048
    %v6065 = vpack.c.b16 %v6051, %v6050
    %v6066 = vpack.c.b16 %v6053, %v6052
    %v6067 = vpack.c.b16 %v6055, %v6054
    %v6068 = vpack.c.b16 %v6057, %v6056
    %v6069 = vpack.c.b16 %v6059, %v6058
    %v6070 = vpack.c.b16 %v6061, %v6060
    %v6071 = vpack.c.b16 %v6063, %v6062
    %6080 = vmatprep.subr.bf16.mxu0 0
    %6081 = vmatpush1.bf16.msra.mxu0 %v6064
    %6082 = vmatprep.subr.bf16.mxu0 0
    %6083 = vmatpush1.bf16.msra.mxu0 %v6065
    %6084 = vmatprep.subr.bf16.mxu0 0
    %6085 = vmatpush1.bf16.msra.mxu0 %v6066
    %6086 = vmatprep.subr.bf16.mxu0 0
    %6087 = vmatpush1.bf16.msra.mxu0 %v6067
    %6088 = vmatprep.subr.bf16.mxu0 0
    %6089 = vmatpush1.bf16.msra.mxu0 %v6068
    %6090 = vmatprep.subr.bf16.mxu0 0
    %6091 = vmatpush1.bf16.msra.mxu0 %v6069
    %6092 = vmatprep.subr.bf16.mxu0 0
    %6093 = vmatpush1.bf16.msra.mxu0 %v6070
    %6094 = vmatprep.subr.bf16.mxu0 0
    %6095 = vmatpush1.bf16.msra.mxu0 %v6071
    %6096 = vmatprep.subr.bf16.mxu0 0
    %6097 = vmatpush1.bf16.msra.mxu0 0
    %6098 = vmatprep.subr.bf16.mxu0 0
    %6099 = vmatpush1.bf16.msra.mxu0 0
    %6100 = vmatprep.subr.bf16.mxu0 0
    %6101 = vmatpush1.bf16.msra.mxu0 0
    %6102 = vmatprep.subr.bf16.mxu0 0
    %6103 = vmatpush1.bf16.msra.mxu0 0
    %6104 = vmatprep.subr.bf16.mxu0 0
    %6105 = vmatpush1.bf16.msra.mxu0 0
    %6106 = vmatprep.subr.bf16.mxu0 0
    %6107 = vmatpush1.bf16.msra.mxu0 0
    %6108 = vmatprep.subr.bf16.mxu0 0
    %6109 = vmatpush1.bf16.msra.mxu0 0
    %6110 = vmatprep.subr.bf16.mxu0 0
    %6111 = vmatpush1.bf16.msra.mxu0 0
    %6112 = vmatprep.mubr.bf16.mxu0 0
    %6113 = vmatmul.mubr.bf16.gmra.mrb[0].mxu0 %v5978
    %v6114 = vpop.f32.mrb[0].mxu0
    %v6115 = vadd.f32 %v6030, %v6114
    %v6116 = vpop.f32.mrb[0].mxu0
    %v6117 = vpop.f32.mrb[0].mxu0
    %v6118 = vadd.f32 %v6030, %v6117
    %v6119 = vpop.f32.mrb[0].mxu0
    %6120 = vmatprep.mubr.bf16.mxu0 0
    %6121 = vmatmul.mubr.bf16.gmra.mrb[0].mxu0 %v5979
    %v6122 = vpop.f32.mrb[0].mxu0
    %v6123 = vadd.f32 %v6030, %v6122
    %v6124 = vpop.f32.mrb[0].mxu0
    %v6125 = vpop.f32.mrb[0].mxu0
    %v6126 = vadd.f32 %v6030, %v6125
    %v6127 = vpop.f32.mrb[0].mxu0
    %6128 = vmatprep.mubr.bf16.mxu0 0
    %6129 = vmatmul.mubr.bf16.gmra.mrb[0].mxu0 %v5980
    %v6130 = vpop.f32.mrb[0].mxu0
    %v6131 = vadd.f32 %v6030, %v6130
    %v6132 = vpop.f32.mrb[0].mxu0
    %v6133 = vpop.f32.mrb[0].mxu0
    %v6134 = vadd.f32 %v6030, %v6133
    %v6135 = vpop.f32.mrb[0].mxu0
    %6136 = vmatprep.mubr.bf16.mxu0 0
    %6137 = vmatmul.mubr.bf16.gmra.mrb[0].mxu0 %v5981
    %v6138 = vpop.f32.mrb[0].mxu0
    %v6139 = vadd.f32 %v6030, %v6138
    %v6140 = vpop.f32.mrb[0].mxu0
    %v6141 = vpop.f32.mrb[0].mxu0
    %v6142 = vadd.f32 %v6030, %v6141
    %v6143 = vpop.f32.mrb[0].mxu0
    %6144 = vmatprep.mubr.bf16.mxu0 0
    %6145 = vmatmul.mubr.bf16.gmra.mrb[0].mxu0 %v5982
    %v6146 = vpop.f32.mrb[0].mxu0
    %v6147 = vadd.f32 %v6030, %v6146
    %v6148 = vpop.f32.mrb[0].mxu0
    %v6149 = vpop.f32.mrb[0].mxu0
    %v6150 = vadd.f32 %v6030, %v6149
    %v6151 = vpop.f32.mrb[0].mxu0
    %6152 = vmatprep.mubr.bf16.mxu0 0
    %6153 = vmatmul.mubr.bf16.gmra.mrb[0].mxu0 %v5983
    %v6154 = vpop.f32.mrb[0].mxu0
    %v6155 = vadd.f32 %v6030, %v6154
    %v6156 = vpop.f32.mrb[0].mxu0
    %v6157 = vpop.f32.mrb[0].mxu0
    %v6158 = vadd.f32 %v6030, %v6157
    %v6159 = vpop.f32.mrb[0].mxu0
    %6160 = vmatprep.mubr.bf16.mxu0 0
    %6161 = vmatmul.mubr.bf16.gmra.mrb[0].mxu0 %v5984
    %v6162 = vpop.f32.mrb[0].mxu0
    %v6163 = vadd.f32 %v6030, %v6162
    %v6164 = vpop.f32.mrb[0].mxu0
    %v6165 = vpop.f32.mrb[0].mxu0
    %v6166 = vadd.f32 %v6030, %v6165
    %v6167 = vpop.f32.mrb[0].mxu0
    %6168 = vmatprep.mubr.bf16.mxu0 0
    %6169 = vmatmul.mubr.bf16.gmra.mrb[0].mxu0 %v5985
    %v6170 = vpop.f32.mrb[0].mxu0
    %v6171 = vadd.f32 %v6030, %v6170
    %v6172 = vpop.f32.mrb[0].mxu0
    %v6173 = vpop.f32.mrb[0].mxu0
    %v6174 = vadd.f32 %v6030, %v6173
    %v6175 = vpop.f32.mrb[0].mxu0
    %6176 = vmatprep.mubr.bf16.mxu0 0
    %6177 = vmatmul.mubr.bf16.gmra.mrb[0].mxu0 %v5986
    %v6178 = vpop.f32.mrb[0].mxu0
    %v6179 = vadd.f32 %v6030, %v6178
    %v6180 = vpop.f32.mrb[0].mxu0
    %v6181 = vpop.f32.mrb[0].mxu0
    %v6182 = vadd.f32 %v6030, %v6181
    %v6183 = vpop.f32.mrb[0].mxu0
    %6184 = vmatprep.mubr.bf16.mxu0 0
    %6185 = vmatmul.mubr.bf16.gmra.mrb[0].mxu0 %v5987
    %v6186 = vpop.f32.mrb[0].mxu0
    %v6187 = vadd.f32 %v6030, %v6186
    %v6188 = vpop.f32.mrb[0].mxu0
    %v6189 = vpop.f32.mrb[0].mxu0
    %v6190 = vadd.f32 %v6030, %v6189
    %v6191 = vpop.f32.mrb[0].mxu0
    %6192 = vmatprep.mubr.bf16.mxu0 0
    %6193 = vmatmul.mubr.bf16.gmra.mrb[0].mxu0 %v5988
    %v6194 = vpop.f32.mrb[0].mxu0
    %v6195 = vadd.f32 %v6030, %v6194
    %v6196 = vpop.f32.mrb[0].mxu0
    %v6197 = vpop.f32.mrb[0].mxu0
    %v6198 = vadd.f32 %v6030, %v6197
    %v6199 = vpop.f32.mrb[0].mxu0
    %6200 = vmatprep.mubr.bf16.mxu0 0
    %6201 = vmatmul.mubr.bf16.gmra.mrb[0].mxu0 %v5989
    %v6202 = vpop.f32.mrb[0].mxu0
    %v6203 = vadd.f32 %v6030, %v6202
    %v6204 = vpop.f32.mrb[0].mxu0
    %v6205 = vpop.f32.mrb[0].mxu0
    %v6206 = vadd.f32 %v6030, %v6205
    %v6207 = vpop.f32.mrb[0].mxu0
    %6208 = vmatprep.mubr.bf16.mxu0 0
    %6209 = vmatmul.mubr.bf16.gmra.mrb[0].mxu0 %v5990
    %v6210 = vpop.f32.mrb[0].mxu0
    %v6211 = vadd.f32 %v6030, %v6210
    %v6212 = vpop.f32.mrb[0].mxu0
    %v6213 = vpop.f32.mrb[0].mxu0
    %v6214 = vadd.f32 %v6030, %v6213
    %v6215 = vpop.f32.mrb[0].mxu0
    %6216 = vmatprep.mubr.bf16.mxu0 0
    %6217 = vmatmul.mubr.bf16.gmra.mrb[0].mxu0 %v5991
    %v6218 = vpop.f32.mrb[0].mxu0
    %v6219 = vadd.f32 %v6030, %v6218
    %v6220 = vpop.f32.mrb[0].mxu0
    %v6221 = vpop.f32.mrb[0].mxu0
    %v6222 = vadd.f32 %v6030, %v6221
    %v6223 = vpop.f32.mrb[0].mxu0
    %6224 = vmatprep.mubr.bf16.mxu0 0
    %6225 = vmatmul.mubr.bf16.gmra.mrb[0].mxu0 %v5992
    %v6226 = vpop.f32.mrb[0].mxu0
    %v6227 = vadd.f32 %v6030, %v6226
    %v6228 = vpop.f32.mrb[0].mxu0
    %v6229 = vpop.f32.mrb[0].mxu0
    %v6230 = vadd.f32 %v6030, %v6229
    %v6231 = vpop.f32.mrb[0].mxu0
    %6232 = vmatprep.mubr.bf16.mxu0 0
    %6233 = vmatmul.mubr.bf16.gmra.mrb[0].mxu0 %v5993
    %v6234 = vpop.f32.mrb[0].mxu0
    %v6235 = vadd.f32 %v6030, %v6234
    %v6236 = vpop.f32.mrb[0].mxu0
    %v6237 = vpop.f32.mrb[0].mxu0
    %v6238 = vadd.f32 %v6030, %v6237
    %v6239 = vpop.f32.mrb[0].mxu0
    %6240 = vmatprep.mubr.bf16.mxu0 0
    %6241 = vmatmul.mubr.bf16.gmra.mrb[0].mxu0 %v5994
    %v6242 = vpop.f32.mrb[0].mxu0
    %v6243 = vadd.f32 %v6030, %v6242
    %v6244 = vpop.f32.mrb[0].mxu0
    %v6245 = vpop.f32.mrb[0].mxu0
    %v6246 = vadd.f32 %v6030, %v6245
    %v6247 = vpop.f32.mrb[0].mxu0
    %6248 = vmatprep.mubr.bf16.mxu0 0
    %6249 = vmatmul.mubr.bf16.gmra.mrb[0].mxu0 %v5995
    %v6250 = vpop.f32.mrb[0].mxu0
    %v6251 = vadd.f32 %v6030, %v6250
    %v6252 = vpop.f32.mrb[0].mxu0
    %v6253 = vpop.f32.mrb[0].mxu0
    %v6254 = vadd.f32 %v6030, %v6253
    %v6255 = vpop.f32.mrb[0].mxu0
    %6256 = vmatprep.mubr.bf16.mxu0 0
    %6257 = vmatmul.mubr.bf16.gmra.mrb[0].mxu0 %v5996
    %v6258 = vpop.f32.mrb[0].mxu0
    %v6259 = vadd.f32 %v6030, %v6258
    %v6260 = vpop.f32.mrb[0].mxu0
    %v6261 = vpop.f32.mrb[0].mxu0
    %v6262 = vadd.f32 %v6030, %v6261
    %v6263 = vpop.f32.mrb[0].mxu0
    %6264 = vmatprep.mubr.bf16.mxu0 0
    %6265 = vmatmul.mubr.bf16.gmra.mrb[0].mxu0 %v5997
    %v6266 = vpop.f32.mrb[0].mxu0
    %v6267 = vadd.f32 %v6030, %v6266
    %v6268 = vpop.f32.mrb[0].mxu0
    %v6269 = vpop.f32.mrb[0].mxu0
    %v6270 = vadd.f32 %v6030, %v6269
    %v6271 = vpop.f32.mrb[0].mxu0
    %6272 = vmatprep.mubr.bf16.mxu0 0
    %6273 = vmatmul.mubr.bf16.gmra.mrb[0].mxu0 %v5998
    %v6274 = vpop.f32.mrb[0].mxu0
    %v6275 = vadd.f32 %v6030, %v6274
    %v6276 = vpop.f32.mrb[0].mxu0
    %v6277 = vpop.f32.mrb[0].mxu0
    %v6278 = vadd.f32 %v6030, %v6277
    %v6279 = vpop.f32.mrb[0].mxu0
    %6280 = vmatprep.mubr.bf16.mxu0 0
    %6281 = vmatmul.mubr.bf16.gmra.mrb[0].mxu0 %v5999
    %v6282 = vpop.f32.mrb[0].mxu0
    %v6283 = vadd.f32 %v6030, %v6282
    %v6284 = vpop.f32.mrb[0].mxu0
    %v6285 = vpop.f32.mrb[0].mxu0
    %v6286 = vadd.f32 %v6030, %v6285
    %v6287 = vpop.f32.mrb[0].mxu0
    %6288 = vmatprep.mubr.bf16.mxu0 0
    %6289 = vmatmul.mubr.bf16.gmra.mrb[0].mxu0 %v6000
    %v6290 = vpop.f32.mrb[0].mxu0
    %v6291 = vadd.f32 %v6030, %v6290
    %v6292 = vpop.f32.mrb[0].mxu0
    %v6293 = vpop.f32.mrb[0].mxu0
    %v6294 = vadd.f32 %v6030, %v6293
    %v6295 = vpop.f32.mrb[0].mxu0
    %6296 = vmatprep.mubr.bf16.mxu0 0
    %6297 = vmatmul.mubr.bf16.gmra.mrb[0].mxu0 %v6001
    %v6298 = vpop.f32.mrb[0].mxu0
    %v6299 = vadd.f32 %v6030, %v6298
    %v6300 = vpop.f32.mrb[0].mxu0
    %v6301 = vpop.f32.mrb[0].mxu0
    %v6302 = vadd.f32 %v6030, %v6301
    %v6303 = vpop.f32.mrb[0].mxu0
    %6304 = vmatprep.mubr.bf16.mxu0 0
    %6305 = vmatmul.mubr.bf16.gmra.mrb[0].mxu0 %v6002
    %v6306 = vpop.f32.mrb[0].mxu0
    %v6307 = vadd.f32 %v6030, %v6306
    %v6308 = vpop.f32.mrb[0].mxu0
    %v6309 = vpop.f32.mrb[0].mxu0
    %v6310 = vadd.f32 %v6030, %v6309
    %v6311 = vpop.f32.mrb[0].mxu0
    %6312 = vmatprep.mubr.bf16.mxu0 0
    %6313 = vmatmul.mubr.bf16.gmra.mrb[0].mxu0 %v6003
    %v6314 = vpop.f32.mrb[0].mxu0
    %v6315 = vadd.f32 %v6030, %v6314
    %v6316 = vpop.f32.mrb[0].mxu0
    %v6317 = vpop.f32.mrb[0].mxu0
    %v6318 = vadd.f32 %v6030, %v6317
    %v6319 = vpop.f32.mrb[0].mxu0
    %6320 = vmatprep.mubr.bf16.mxu0 0
    %6321 = vmatmul.mubr.bf16.gmra.mrb[0].mxu0 %v6004
    %v6322 = vpop.f32.mrb[0].mxu0
    %v6323 = vadd.f32 %v6030, %v6322
    %v6324 = vpop.f32.mrb[0].mxu0
    %v6325 = vpop.f32.mrb[0].mxu0
    %v6326 = vadd.f32 %v6030, %v6325
    %v6327 = vpop.f32.mrb[0].mxu0
    %6328 = vmatprep.mubr.bf16.mxu0 0
    %6329 = vmatmul.mubr.bf16.gmra.mrb[0].mxu0 %v6005
    %v6330 = vpop.f32.mrb[0].mxu0
    %v6331 = vadd.f32 %v6030, %v6330
    %v6332 = vpop.f32.mrb[0].mxu0
    %v6333 = vpop.f32.mrb[0].mxu0
    %v6334 = vadd.f32 %v6030, %v6333
    %v6335 = vpop.f32.mrb[0].mxu0
    %6336 = vmatprep.mubr.bf16.mxu0 0
    %6337 = vmatmul.mubr.bf16.gmra.mrb[0].mxu0 %v6006
    %v6338 = vpop.f32.mrb[0].mxu0
    %v6339 = vadd.f32 %v6030, %v6338
    %v6340 = vpop.f32.mrb[0].mxu0
    %v6341 = vpop.f32.mrb[0].mxu0
    %v6342 = vadd.f32 %v6030, %v6341
    %v6343 = vpop.f32.mrb[0].mxu0
    %6344 = vmatprep.mubr.bf16.mxu0 0
    %6345 = vmatmul.mubr.bf16.gmra.mrb[0].mxu0 %v6007
    %v6346 = vpop.f32.mrb[0].mxu0
    %v6347 = vadd.f32 %v6030, %v6346
    %v6348 = vpop.f32.mrb[0].mxu0
    %v6349 = vpop.f32.mrb[0].mxu0
    %v6350 = vadd.f32 %v6030, %v6349
    %v6351 = vpop.f32.mrb[0].mxu0
    %6352 = vmatprep.mubr.bf16.mxu0 0
    %6353 = vmatmul.mubr.bf16.gmra.mrb[0].mxu0 %v6008
    %v6354 = vpop.f32.mrb[0].mxu0
    %v6355 = vadd.f32 %v6030, %v6354
    %v6356 = vpop.f32.mrb[0].mxu0
    %v6357 = vpop.f32.mrb[0].mxu0
    %v6358 = vadd.f32 %v6030, %v6357
    %v6359 = vpop.f32.mrb[0].mxu0
    %6360 = vmatprep.mubr.bf16.mxu0 0
    %6361 = vmatmul.mubr.bf16.gmra.mrb[0].mxu0 %v6009
    %v6362 = vpop.f32.mrb[0].mxu0
    %v6363 = vadd.f32 %v6030, %v6362
    %v6364 = vpop.f32.mrb[0].mxu0
    %v6365 = vpop.f32.mrb[0].mxu0
    %v6366 = vadd.f32 %v6030, %v6365
    %v6367 = vpop.f32.mrb[0].mxu0
    %6368 = vdwg.mxu0
    %v6369 = vadd.f32 %v3927, %v6115
    %v6370 = vadd.f32 %v3928, %v6118
    %v6371 = vadd.f32 %v3929, %v6123
    %v6372 = vadd.f32 %v3930, %v6126
    %v6373 = vadd.f32 %v3931, %v6131
    %v6374 = vadd.f32 %v3932, %v6134
    %v6375 = vadd.f32 %v3933, %v6139
    %v6376 = vadd.f32 %v3934, %v6142
    %v6377 = vadd.f32 %v3935, %v6147
    %v6378 = vadd.f32 %v3936, %v6150
    %v6379 = vadd.f32 %v3937, %v6155
    %v6380 = vadd.f32 %v3938, %v6158
    %v6381 = vadd.f32 %v3939, %v6163
    %v6382 = vadd.f32 %v3940, %v6166
    %v6383 = vadd.f32 %v3941, %v6171
    %v6384 = vadd.f32 %v3942, %v6174
    %v6385 = vadd.f32 %v3943, %v6179
    %v6386 = vadd.f32 %v3944, %v6182
    %v6387 = vadd.f32 %v3945, %v6187
    %v6388 = vadd.f32 %v3946, %v6190
    %v6389 = vadd.f32 %v3947, %v6195
    %v6390 = vadd.f32 %v3948, %v6198
    %v6391 = vadd.f32 %v3949, %v6203
    %v6392 = vadd.f32 %v3950, %v6206
    %v6393 = vadd.f32 %v3951, %v6211
    %v6394 = vadd.f32 %v3952, %v6214
    %v6395 = vadd.f32 %v3953, %v6219
    %v6396 = vadd.f32 %v3954, %v6222
    %v6397 = vadd.f32 %v3955, %v6227
    %v6398 = vadd.f32 %v3956, %v6230
    %v6399 = vadd.f32 %v3957, %v6235
    %v6400 = vadd.f32 %v3958, %v6238
    %v6401 = vadd.f32 %v3959, %v6243
    %v6402 = vadd.f32 %v3960, %v6246
    %v6403 = vadd.f32 %v3961, %v6251
    %v6404 = vadd.f32 %v3962, %v6254
    %v6405 = vadd.f32 %v3963, %v6259
    %v6406 = vadd.f32 %v3964, %v6262
    %v6407 = vadd.f32 %v3965, %v6267
    %v6408 = vadd.f32 %v3966, %v6270
    %v6409 = vadd.f32 %v3967, %v6275
    %v6410 = vadd.f32 %v3968, %v6278
    %v6411 = vadd.f32 %v3969, %v6283
    %v6412 = vadd.f32 %v3970, %v6286
    %v6413 = vadd.f32 %v3971, %v6291
    %v6414 = vadd.f32 %v3972, %v6294
    %v6415 = vadd.f32 %v3973, %v6299
    %v6416 = vadd.f32 %v3974, %v6302
    %v6417 = vadd.f32 %v3975, %v6307
    %v6418 = vadd.f32 %v3976, %v6310
    %v6419 = vadd.f32 %v3977, %v6315
    %v6420 = vadd.f32 %v3978, %v6318
    %v6421 = vadd.f32 %v3979, %v6323
    %v6422 = vadd.f32 %v3980, %v6326
    %v6423 = vadd.f32 %v3981, %v6331
    %v6424 = vadd.f32 %v3982, %v6334
    %v6425 = vadd.f32 %v3983, %v6339
    %v6426 = vadd.f32 %v3984, %v6342
    %v6427 = vadd.f32 %v3985, %v6347
    %v6428 = vadd.f32 %v3986, %v6350
    %v6429 = vadd.f32 %v3987, %v6355
    %v6430 = vadd.f32 %v3988, %v6358
    %v6431 = vadd.f32 %v3989, %v6363
    %v6432 = vadd.f32 %v3990, %v6366
    %v6433 = vld [vmem:[%s4] sm:$0xf]
    %v6434 = vld [vmem:[%s4 + $0x4] sm:$0xf]
    %v6435 = vpack.c.bf16 %v6370, %v6369
    %v6436 = vpack.c.bf16 %v6372, %v6371
    %v6437 = vpack.c.bf16 %v6374, %v6373
    %v6438 = vpack.c.bf16 %v6376, %v6375
    %v6439 = vpack.c.bf16 %v6378, %v6377
    %v6440 = vpack.c.bf16 %v6380, %v6379
    %v6441 = vpack.c.bf16 %v6382, %v6381
    %v6442 = vpack.c.bf16 %v6384, %v6383
    %v6443 = vpack.c.bf16 %v6386, %v6385
    %v6444 = vpack.c.bf16 %v6388, %v6387
    %v6445 = vpack.c.bf16 %v6390, %v6389
    %v6446 = vpack.c.bf16 %v6392, %v6391
    %v6447 = vpack.c.bf16 %v6394, %v6393
    %v6448 = vpack.c.bf16 %v6396, %v6395
    %v6449 = vpack.c.bf16 %v6398, %v6397
    %v6450 = vpack.c.bf16 %v6400, %v6399
    %v6451 = vpack.c.bf16 %v6402, %v6401
    %v6452 = vpack.c.bf16 %v6404, %v6403
    %v6453 = vpack.c.bf16 %v6406, %v6405
    %v6454 = vpack.c.bf16 %v6408, %v6407
    %v6455 = vpack.c.bf16 %v6410, %v6409
    %v6456 = vpack.c.bf16 %v6412, %v6411
    %v6457 = vpack.c.bf16 %v6414, %v6413
    %v6458 = vpack.c.bf16 %v6416, %v6415
    %v6459 = vpack.c.bf16 %v6418, %v6417
    %v6460 = vpack.c.bf16 %v6420, %v6419
    %v6461 = vpack.c.bf16 %v6422, %v6421
    %v6462 = vpack.c.bf16 %v6424, %v6423
    %v6463 = vpack.c.bf16 %v6426, %v6425
    %v6464 = vpack.c.bf16 %v6428, %v6427
    %v6465 = vpack.c.bf16 %v6430, %v6429
    %v6466 = vpack.c.bf16 %v6432, %v6431
    %v6469 = vunpack.c.l.b16 %v6433
    %v6470 = vunpack.c.l.b16 %v6434
    %v6471 = vpack.c.b16 %v6470, %v6469
    %v6473 = vsel %vm2574, %v6471, 0
    %6475 = vmatprep.subr.bf16.mxu0 0
    %6476 = vmatpush1.bf16.msra.mxu0 %v6435
    %6477 = vmatprep.subr.bf16.mxu0 0
    %6478 = vmatpush1.bf16.msra.mxu0 %v6436
    %6479 = vmatprep.subr.bf16.mxu0 0
    %6480 = vmatpush1.bf16.msra.mxu0 %v6437
    %6481 = vmatprep.subr.bf16.mxu0 0
    %6482 = vmatpush1.bf16.msra.mxu0 %v6438
    %6483 = vmatprep.subr.bf16.mxu0 0
    %6484 = vmatpush1.bf16.msra.mxu0 0
    %6485 = vmatprep.subr.bf16.mxu0 0
    %6486 = vmatpush1.bf16.msra.mxu0 0
    %6487 = vmatprep.subr.bf16.mxu0 0
    %6488 = vmatpush1.bf16.msra.mxu0 0
    %6489 = vmatprep.subr.bf16.mxu0 0
    %6490 = vmatpush1.bf16.msra.mxu0 0
    %6491 = vmatprep.subr.bf16.mxu0 0
    %6492 = vmatpush1.bf16.msra.mxu0 0
    %6493 = vmatprep.subr.bf16.mxu0 0
    %6494 = vmatpush1.bf16.msra.mxu0 0
    %6495 = vmatprep.subr.bf16.mxu0 0
    %6496 = vmatpush1.bf16.msra.mxu0 0
    %6497 = vmatprep.subr.bf16.mxu0 0
    %6498 = vmatpush1.bf16.msra.mxu0 0
    %6499 = vmatprep.subr.bf16.mxu0 0
    %6500 = vmatpush1.bf16.msra.mxu0 0
    %6501 = vmatprep.subr.bf16.mxu0 0
    %6502 = vmatpush1.bf16.msra.mxu0 0
    %6503 = vmatprep.subr.bf16.mxu0 0
    %6504 = vmatpush1.bf16.msra.mxu0 0
    %6505 = vmatprep.subr.bf16.mxu0 0
    %6506 = vmatpush1.bf16.msra.mxu0 0
    %6507 = vmatprep.mubr.bf16.mxu0 0
    %6508 = vmatmul.mubr.bf16.gmra.mrb[0].mxu0 %v6473
    %v6509 = vpop.f32.mrb[0].mxu0
    %v6510 = vadd.f32 0.0, %v6509
    %v6511 = vpop.f32.mrb[0].mxu0
    %v6512 = vpop.f32.mrb[0].mxu0
    %v6513 = vadd.f32 0.0, %v6512
    %v6514 = vpop.f32.mrb[0].mxu0
    %6515 = vdwg.mxu0
    %6516 = vmatprep.subr.bf16.mxu0 0
    %6517 = vmatpush1.bf16.msra.mxu0 %v6439
    %6518 = vmatprep.subr.bf16.mxu0 0
    %6519 = vmatpush1.bf16.msra.mxu0 %v6440
    %6520 = vmatprep.subr.bf16.mxu0 0
    %6521 = vmatpush1.bf16.msra.mxu0 %v6441
    %6522 = vmatprep.subr.bf16.mxu0 0
    %6523 = vmatpush1.bf16.msra.mxu0 %v6442
    %6524 = vmatprep.subr.bf16.mxu0 0
    %6525 = vmatpush1.bf16.msra.mxu0 0
    %6526 = vmatprep.subr.bf16.mxu0 0
    %6527 = vmatpush1.bf16.msra.mxu0 0
    %6528 = vmatprep.subr.bf16.mxu0 0
    %6529 = vmatpush1.bf16.msra.mxu0 0
    %6530 = vmatprep.subr.bf16.mxu0 0
    %6531 = vmatpush1.bf16.msra.mxu0 0
    %6532 = vmatprep.subr.bf16.mxu0 0
    %6533 = vmatpush1.bf16.msra.mxu0 0
    %6534 = vmatprep.subr.bf16.mxu0 0
    %6535 = vmatpush1.bf16.msra.mxu0 0
    %6536 = vmatprep.subr.bf16.mxu0 0
    %6537 = vmatpush1.bf16.msra.mxu0 0
    %6538 = vmatprep.subr.bf16.mxu0 0
    %6539 = vmatpush1.bf16.msra.mxu0 0
    %6540 = vmatprep.subr.bf16.mxu0 0
    %6541 = vmatpush1.bf16.msra.mxu0 0
    %6542 = vmatprep.subr.bf16.mxu0 0
    %6543 = vmatpush1.bf16.msra.mxu0 0
    %6544 = vmatprep.subr.bf16.mxu0 0
    %6545 = vmatpush1.bf16.msra.mxu0 0
    %6546 = vmatprep.subr.bf16.mxu0 0
    %6547 = vmatpush1.bf16.msra.mxu0 0
    %6548 = vmatprep.mubr.bf16.mxu0 0
    %6549 = vmatmul.mubr.bf16.gmra.mrb[0].mxu0 %v6473
    %v6550 = vpop.f32.mrb[0].mxu0
    %v6551 = vadd.f32 0.0, %v6550
    %v6552 = vpop.f32.mrb[0].mxu0
    %v6553 = vpop.f32.mrb[0].mxu0
    %v6554 = vadd.f32 0.0, %v6553
    %v6555 = vpop.f32.mrb[0].mxu0
    %6556 = vdwg.mxu0
    %6557 = vmatprep.subr.bf16.mxu0 0
    %6558 = vmatpush1.bf16.msra.mxu0 %v6443
    %6559 = vmatprep.subr.bf16.mxu0 0
    %6560 = vmatpush1.bf16.msra.mxu0 %v6444
    %6561 = vmatprep.subr.bf16.mxu0 0
    %6562 = vmatpush1.bf16.msra.mxu0 %v6445
    %6563 = vmatprep.subr.bf16.mxu0 0
    %6564 = vmatpush1.bf16.msra.mxu0 %v6446
    %6565 = vmatprep.subr.bf16.mxu0 0
    %6566 = vmatpush1.bf16.msra.mxu0 0
    %6567 = vmatprep.subr.bf16.mxu0 0
    %6568 = vmatpush1.bf16.msra.mxu0 0
    %6569 = vmatprep.subr.bf16.mxu0 0
    %6570 = vmatpush1.bf16.msra.mxu0 0
    %6571 = vmatprep.subr.bf16.mxu0 0
    %6572 = vmatpush1.bf16.msra.mxu0 0
    %6573 = vmatprep.subr.bf16.mxu0 0
    %6574 = vmatpush1.bf16.msra.mxu0 0
    %6575 = vmatprep.subr.bf16.mxu0 0
    %6576 = vmatpush1.bf16.msra.mxu0 0
    %6577 = vmatprep.subr.bf16.mxu0 0
    %6578 = vmatpush1.bf16.msra.mxu0 0
    %6579 = vmatprep.subr.bf16.mxu0 0
    %6580 = vmatpush1.bf16.msra.mxu0 0
    %6581 = vmatprep.subr.bf16.mxu0 0
    %6582 = vmatpush1.bf16.msra.mxu0 0
    %6583 = vmatprep.subr.bf16.mxu0 0
    %6584 = vmatpush1.bf16.msra.mxu0 0
    %6585 = vmatprep.subr.bf16.mxu0 0
    %6586 = vmatpush1.bf16.msra.mxu0 0
    %6587 = vmatprep.subr.bf16.mxu0 0
    %6588 = vmatpush1.bf16.msra.mxu0 0
    %6589 = vmatprep.mubr.bf16.mxu0 0
    %6590 = vmatmul.mubr.bf16.gmra.mrb[0].mxu0 %v6473
    %v6591 = vpop.f32.mrb[0].mxu0
    %v6592 = vadd.f32 0.0, %v6591
    %v6593 = vpop.f32.mrb[0].mxu0
    %v6594 = vpop.f32.mrb[0].mxu0
    %v6595 = vadd.f32 0.0, %v6594
    %v6596 = vpop.f32.mrb[0].mxu0
    %6597 = vdwg.mxu0
    %6598 = vmatprep.subr.bf16.mxu0 0
    %6599 = vmatpush1.bf16.msra.mxu0 %v6447
    %6600 = vmatprep.subr.bf16.mxu0 0
    %6601 = vmatpush1.bf16.msra.mxu0 %v6448
    %6602 = vmatprep.subr.bf16.mxu0 0
    %6603 = vmatpush1.bf16.msra.mxu0 %v6449
    %6604 = vmatprep.subr.bf16.mxu0 0
    %6605 = vmatpush1.bf16.msra.mxu0 %v6450
    %6606 = vmatprep.subr.bf16.mxu0 0
    %6607 = vmatpush1.bf16.msra.mxu0 0
    %6608 = vmatprep.subr.bf16.mxu0 0
    %6609 = vmatpush1.bf16.msra.mxu0 0
    %6610 = vmatprep.subr.bf16.mxu0 0
    %6611 = vmatpush1.bf16.msra.mxu0 0
    %6612 = vmatprep.subr.bf16.mxu0 0
    %6613 = vmatpush1.bf16.msra.mxu0 0
    %6614 = vmatprep.subr.bf16.mxu0 0
    %6615 = vmatpush1.bf16.msra.mxu0 0
    %6616 = vmatprep.subr.bf16.mxu0 0
    %6617 = vmatpush1.bf16.msra.mxu0 0
    %6618 = vmatprep.subr.bf16.mxu0 0
    %6619 = vmatpush1.bf16.msra.mxu0 0
    %6620 = vmatprep.subr.bf16.mxu0 0
    %6621 = vmatpush1.bf16.msra.mxu0 0
    %6622 = vmatprep.subr.bf16.mxu0 0
    %6623 = vmatpush1.bf16.msra.mxu0 0
    %6624 = vmatprep.subr.bf16.mxu0 0
    %6625 = vmatpush1.bf16.msra.mxu0 0
    %6626 = vmatprep.subr.bf16.mxu0 0
    %6627 = vmatpush1.bf16.msra.mxu0 0
    %6628 = vmatprep.subr.bf16.mxu0 0
    %6629 = vmatpush1.bf16.msra.mxu0 0
    %6630 = vmatprep.mubr.bf16.mxu0 0
    %6631 = vmatmul.mubr.bf16.gmra.mrb[0].mxu0 %v6473
    %v6632 = vpop.f32.mrb[0].mxu0
    %v6633 = vadd.f32 0.0, %v6632
    %v6634 = vpop.f32.mrb[0].mxu0
    %v6635 = vpop.f32.mrb[0].mxu0
    %v6636 = vadd.f32 0.0, %v6635
    %v6637 = vpop.f32.mrb[0].mxu0
    %6638 = vdwg.mxu0
    %6639 = vmatprep.subr.bf16.mxu0 0
    %6640 = vmatpush1.bf16.msra.mxu0 %v6451
    %6641 = vmatprep.subr.bf16.mxu0 0
    %6642 = vmatpush1.bf16.msra.mxu0 %v6452
    %6643 = vmatprep.subr.bf16.mxu0 0
    %6644 = vmatpush1.bf16.msra.mxu0 %v6453
    %6645 = vmatprep.subr.bf16.mxu0 0
    %6646 = vmatpush1.bf16.msra.mxu0 %v6454
    %6647 = vmatprep.subr.bf16.mxu0 0
    %6648 = vmatpush1.bf16.msra.mxu0 0
    %6649 = vmatprep.subr.bf16.mxu0 0
    %6650 = vmatpush1.bf16.msra.mxu0 0
    %6651 = vmatprep.subr.bf16.mxu0 0
    %6652 = vmatpush1.bf16.msra.mxu0 0
    %6653 = vmatprep.subr.bf16.mxu0 0
    %6654 = vmatpush1.bf16.msra.mxu0 0
    %6655 = vmatprep.subr.bf16.mxu0 0
    %6656 = vmatpush1.bf16.msra.mxu0 0
    %6657 = vmatprep.subr.bf16.mxu0 0
    %6658 = vmatpush1.bf16.msra.mxu0 0
    %6659 = vmatprep.subr.bf16.mxu0 0
    %6660 = vmatpush1.bf16.msra.mxu0 0
    %6661 = vmatprep.subr.bf16.mxu0 0
    %6662 = vmatpush1.bf16.msra.mxu0 0
    %6663 = vmatprep.subr.bf16.mxu0 0
    %6664 = vmatpush1.bf16.msra.mxu0 0
    %6665 = vmatprep.subr.bf16.mxu0 0
    %6666 = vmatpush1.bf16.msra.mxu0 0
    %6667 = vmatprep.subr.bf16.mxu0 0
    %6668 = vmatpush1.bf16.msra.mxu0 0
    %6669 = vmatprep.subr.bf16.mxu0 0
    %6670 = vmatpush1.bf16.msra.mxu0 0
    %6671 = vmatprep.mubr.bf16.mxu0 0
    %6672 = vmatmul.mubr.bf16.gmra.mrb[0].mxu0 %v6473
    %v6673 = vpop.f32.mrb[0].mxu0
    %v6674 = vadd.f32 0.0, %v6673
    %v6675 = vpop.f32.mrb[0].mxu0
    %v6676 = vpop.f32.mrb[0].mxu0
    %v6677 = vadd.f32 0.0, %v6676
    %v6678 = vpop.f32.mrb[0].mxu0
    %6679 = vdwg.mxu0
    %6680 = vmatprep.subr.bf16.mxu0 0
    %6681 = vmatpush1.bf16.msra.mxu0 %v6455
    %6682 = vmatprep.subr.bf16.mxu0 0
    %6683 = vmatpush1.bf16.msra.mxu0 %v6456
    %6684 = vmatprep.subr.bf16.mxu0 0
    %6685 = vmatpush1.bf16.msra.mxu0 %v6457
    %6686 = vmatprep.subr.bf16.mxu0 0
    %6687 = vmatpush1.bf16.msra.mxu0 %v6458
    %6688 = vmatprep.subr.bf16.mxu0 0
    %6689 = vmatpush1.bf16.msra.mxu0 0
    %6690 = vmatprep.subr.bf16.mxu0 0
    %6691 = vmatpush1.bf16.msra.mxu0 0
    %6692 = vmatprep.subr.bf16.mxu0 0
    %6693 = vmatpush1.bf16.msra.mxu0 0
    %6694 = vmatprep.subr.bf16.mxu0 0
    %6695 = vmatpush1.bf16.msra.mxu0 0
    %6696 = vmatprep.subr.bf16.mxu0 0
    %6697 = vmatpush1.bf16.msra.mxu0 0
    %6698 = vmatprep.subr.bf16.mxu0 0
    %6699 = vmatpush1.bf16.msra.mxu0 0
    %6700 = vmatprep.subr.bf16.mxu0 0
    %6701 = vmatpush1.bf16.msra.mxu0 0
    %6702 = vmatprep.subr.bf16.mxu0 0
    %6703 = vmatpush1.bf16.msra.mxu0 0
    %6704 = vmatprep.subr.bf16.mxu0 0
    %6705 = vmatpush1.bf16.msra.mxu0 0
    %6706 = vmatprep.subr.bf16.mxu0 0
    %6707 = vmatpush1.bf16.msra.mxu0 0
    %6708 = vmatprep.subr.bf16.mxu0 0
    %6709 = vmatpush1.bf16.msra.mxu0 0
    %6710 = vmatprep.subr.bf16.mxu0 0
    %6711 = vmatpush1.bf16.msra.mxu0 0
    %6712 = vmatprep.mubr.bf16.mxu0 0
    %6713 = vmatmul.mubr.bf16.gmra.mrb[0].mxu0 %v6473
    %v6714 = vpop.f32.mrb[0].mxu0
    %v6715 = vadd.f32 0.0, %v6714
    %v6716 = vpop.f32.mrb[0].mxu0
    %v6717 = vpop.f32.mrb[0].mxu0
    %v6718 = vadd.f32 0.0, %v6717
    %v6719 = vpop.f32.mrb[0].mxu0
    %6720 = vdwg.mxu0
    %6721 = vmatprep.subr.bf16.mxu0 0
    %6722 = vmatpush1.bf16.msra.mxu0 %v6459
    %6723 = vmatprep.subr.bf16.mxu0 0
    %6724 = vmatpush1.bf16.msra.mxu0 %v6460
    %6725 = vmatprep.subr.bf16.mxu0 0
    %6726 = vmatpush1.bf16.msra.mxu0 %v6461
    %6727 = vmatprep.subr.bf16.mxu0 0
    %6728 = vmatpush1.bf16.msra.mxu0 %v6462
    %6729 = vmatprep.subr.bf16.mxu0 0
    %6730 = vmatpush1.bf16.msra.mxu0 0
    %6731 = vmatprep.subr.bf16.mxu0 0
    %6732 = vmatpush1.bf16.msra.mxu0 0
    %6733 = vmatprep.subr.bf16.mxu0 0
    %6734 = vmatpush1.bf16.msra.mxu0 0
    %6735 = vmatprep.subr.bf16.mxu0 0
    %6736 = vmatpush1.bf16.msra.mxu0 0
    %6737 = vmatprep.subr.bf16.mxu0 0
    %6738 = vmatpush1.bf16.msra.mxu0 0
    %6739 = vmatprep.subr.bf16.mxu0 0
    %6740 = vmatpush1.bf16.msra.mxu0 0
    %6741 = vmatprep.subr.bf16.mxu0 0
    %6742 = vmatpush1.bf16.msra.mxu0 0
    %6743 = vmatprep.subr.bf16.mxu0 0
    %6744 = vmatpush1.bf16.msra.mxu0 0
    %6745 = vmatprep.subr.bf16.mxu0 0
    %6746 = vmatpush1.bf16.msra.mxu0 0
    %6747 = vmatprep.subr.bf16.mxu0 0
    %6748 = vmatpush1.bf16.msra.mxu0 0
    %6749 = vmatprep.subr.bf16.mxu0 0
    %6750 = vmatpush1.bf16.msra.mxu0 0
    %6751 = vmatprep.subr.bf16.mxu0 0
    %6752 = vmatpush1.bf16.msra.mxu0 0
    %6753 = vmatprep.mubr.bf16.mxu0 0
    %6754 = vmatmul.mubr.bf16.gmra.mrb[0].mxu0 %v6473
    %v6755 = vpop.f32.mrb[0].mxu0
    %v6756 = vadd.f32 0.0, %v6755
    %v6757 = vpop.f32.mrb[0].mxu0
    %v6758 = vpop.f32.mrb[0].mxu0
    %v6759 = vadd.f32 0.0, %v6758
    %v6760 = vpop.f32.mrb[0].mxu0
    %6761 = vdwg.mxu0
    %6762 = vmatprep.subr.bf16.mxu0 0
    %6763 = vmatpush1.bf16.msra.mxu0 %v6463
    %6764 = vmatprep.subr.bf16.mxu0 0
    %6765 = vmatpush1.bf16.msra.mxu0 %v6464
    %6766 = vmatprep.subr.bf16.mxu0 0
    %6767 = vmatpush1.bf16.msra.mxu0 %v6465
    %6768 = vmatprep.subr.bf16.mxu0 0
    %6769 = vmatpush1.bf16.msra.mxu0 %v6466
    %6770 = vmatprep.subr.bf16.mxu0 0
    %6771 = vmatpush1.bf16.msra.mxu0 0
    %6772 = vmatprep.subr.bf16.mxu0 0
    %6773 = vmatpush1.bf16.msra.mxu0 0
    %6774 = vmatprep.subr.bf16.mxu0 0
    %6775 = vmatpush1.bf16.msra.mxu0 0
    %6776 = vmatprep.subr.bf16.mxu0 0
    %6777 = vmatpush1.bf16.msra.mxu0 0
    %6778 = vmatprep.subr.bf16.mxu0 0
    %6779 = vmatpush1.bf16.msra.mxu0 0
    %6780 = vmatprep.subr.bf16.mxu0 0
    %6781 = vmatpush1.bf16.msra.mxu0 0
    %6782 = vmatprep.subr.bf16.mxu0 0
    %6783 = vmatpush1.bf16.msra.mxu0 0
    %6784 = vmatprep.subr.bf16.mxu0 0
    %6785 = vmatpush1.bf16.msra.mxu0 0
    %6786 = vmatprep.subr.bf16.mxu0 0
    %6787 = vmatpush1.bf16.msra.mxu0 0
    %6788 = vmatprep.subr.bf16.mxu0 0
    %6789 = vmatpush1.bf16.msra.mxu0 0
    %6790 = vmatprep.subr.bf16.mxu0 0
    %6791 = vmatpush1.bf16.msra.mxu0 0
    %6792 = vmatprep.subr.bf16.mxu0 0
    %6793 = vmatpush1.bf16.msra.mxu0 0
    %6794 = vmatprep.mubr.bf16.mxu0 0
    %6795 = vmatmul.mubr.bf16.gmra.mrb[0].mxu0 %v6473
    %v6796 = vpop.f32.mrb[0].mxu0
    %v6797 = vadd.f32 0.0, %v6796
    %v6798 = vpop.f32.mrb[0].mxu0
    %v6799 = vpop.f32.mrb[0].mxu0
    %v6800 = vadd.f32 0.0, %v6799
    %v6801 = vpop.f32.mrb[0].mxu0
    %6802 = vdwg.mxu0
    %v6803 = vpack.c.bf16 %v6513, %v6510
    %v6804 = vpack.c.bf16 %v6554, %v6551
    %v6805 = vpack.c.bf16 %v6595, %v6592
    %v6806 = vpack.c.bf16 %v6636, %v6633
    %v6807 = vpack.c.bf16 %v6677, %v6674
    %v6808 = vpack.c.bf16 %v6718, %v6715
    %v6809 = vpack.c.bf16 %v6759, %v6756
    %v6810 = vpack.c.bf16 %v6800, %v6797
    %v6811 = vld [vmem:[%s1 + $0x10] sm:$0xf]
    %v6812 = vld [vmem:[%s1 + $0x24] sm:$0xf]
    %v6813 = vld [vmem:[%s1 + $0x38] sm:$0xf]
    %v6814 = vld [vmem:[%s1 + $0x4c] sm:$0xf]
    %v6816 = vlaneseq
    %v6817 = vshrl.u32 %v6816, 7
    %v6818 = vsub.s32 0, %v6817
    %v6819 = vrot.slane %v29, %v6818
    %v6825 = vunpack.c.l.b16 %v6811
    %v6826 = vunpack.c.l.b16 %v6812
    %v6827 = vunpack.c.l.b16 %v6813
    %v6828 = vunpack.c.l.b16 %v6814
    %v6829 = vpack.c.b16 %v6826, %v6825
    %v6830 = vpack.c.b16 %v6828, %v6827
    %v6834 = vsel %vm158, %v6803, 0
    %v6837 = vsel %vm158, %v6804, 0
    %v6840 = vsel %vm158, %v6805, 0
    %v6843 = vsel %vm158, %v6806, 0
    %v6846 = vsel %vm158, %v6807, 0
    %v6849 = vsel %vm158, %v6808, 0
    %v6852 = vsel %vm158, %v6809, 0
    %v6855 = vsel %vm158, %v6810, 0
    %6857 = vmatprep.subr.bf16.mxu0 0
    %6858 = vmatpush1.bf16.msra.mxu0 %v6829
    %6859 = vmatprep.subr.bf16.mxu0 0
    %6860 = vmatpush1.bf16.msra.mxu0 %v6830
    %6861 = vmatprep.subr.bf16.mxu0 0
    %6862 = vmatpush1.bf16.msra.mxu0 0
    %6863 = vmatprep.subr.bf16.mxu0 0
    %6864 = vmatpush1.bf16.msra.mxu0 0
    %6865 = vmatprep.subr.bf16.mxu0 0
    %6866 = vmatpush1.bf16.msra.mxu0 0
    %6867 = vmatprep.subr.bf16.mxu0 0
    %6868 = vmatpush1.bf16.msra.mxu0 0
    %6869 = vmatprep.subr.bf16.mxu0 0
    %6870 = vmatpush1.bf16.msra.mxu0 0
    %6871 = vmatprep.subr.bf16.mxu0 0
    %6872 = vmatpush1.bf16.msra.mxu0 0
    %6873 = vmatprep.subr.bf16.mxu0 0
    %6874 = vmatpush1.bf16.msra.mxu0 0
    %6875 = vmatprep.subr.bf16.mxu0 0
    %6876 = vmatpush1.bf16.msra.mxu0 0
    %6877 = vmatprep.subr.bf16.mxu0 0
    %6878 = vmatpush1.bf16.msra.mxu0 0
    %6879 = vmatprep.subr.bf16.mxu0 0
    %6880 = vmatpush1.bf16.msra.mxu0 0
    %6881 = vmatprep.subr.bf16.mxu0 0
    %6882 = vmatpush1.bf16.msra.mxu0 0
    %6883 = vmatprep.subr.bf16.mxu0 0
    %6884 = vmatpush1.bf16.msra.mxu0 0
    %6885 = vmatprep.subr.bf16.mxu0 0
    %6886 = vmatpush1.bf16.msra.mxu0 0
    %6887 = vmatprep.subr.bf16.mxu0 0
    %6888 = vmatpush1.bf16.msra.mxu0 0
    %6889 = vmatprep.mubr.bf16.mxu0 0
    %6890 = vmatmul.mubr.bf16.gmra.mrb[0].mxu0 %v6834
    %v6891 = vpop.f32.mrb[0].mxu0
    %v6892 = vadd.f32 %v6819, %v6891
    %v6893 = vpop.f32.mrb[0].mxu0
    %v6894 = vpop.f32.mrb[0].mxu0
    %v6895 = vadd.f32 %v6819, %v6894
    %v6896 = vpop.f32.mrb[0].mxu0
    %6897 = vmatprep.mubr.bf16.mxu0 0
    %6898 = vmatmul.mubr.bf16.gmra.mrb[0].mxu0 %v6837
    %v6899 = vpop.f32.mrb[0].mxu0
    %v6900 = vadd.f32 %v6819, %v6899
    %v6901 = vpop.f32.mrb[0].mxu0
    %v6902 = vpop.f32.mrb[0].mxu0
    %v6903 = vadd.f32 %v6819, %v6902
    %v6904 = vpop.f32.mrb[0].mxu0
    %6905 = vmatprep.mubr.bf16.mxu0 0
    %6906 = vmatmul.mubr.bf16.gmra.mrb[0].mxu0 %v6840
    %v6907 = vpop.f32.mrb[0].mxu0
    %v6908 = vadd.f32 %v6819, %v6907
    %v6909 = vpop.f32.mrb[0].mxu0
    %v6910 = vpop.f32.mrb[0].mxu0
    %v6911 = vadd.f32 %v6819, %v6910
    %v6912 = vpop.f32.mrb[0].mxu0
    %6913 = vmatprep.mubr.bf16.mxu0 0
    %6914 = vmatmul.mubr.bf16.gmra.mrb[0].mxu0 %v6843
    %v6915 = vpop.f32.mrb[0].mxu0
    %v6916 = vadd.f32 %v6819, %v6915
    %v6917 = vpop.f32.mrb[0].mxu0
    %v6918 = vpop.f32.mrb[0].mxu0
    %v6919 = vadd.f32 %v6819, %v6918
    %v6920 = vpop.f32.mrb[0].mxu0
    %6921 = vmatprep.mubr.bf16.mxu0 0
    %6922 = vmatmul.mubr.bf16.gmra.mrb[0].mxu0 %v6846
    %v6923 = vpop.f32.mrb[0].mxu0
    %v6924 = vadd.f32 %v6819, %v6923
    %v6925 = vpop.f32.mrb[0].mxu0
    %v6926 = vpop.f32.mrb[0].mxu0
    %v6927 = vadd.f32 %v6819, %v6926
    %v6928 = vpop.f32.mrb[0].mxu0
    %6929 = vmatprep.mubr.bf16.mxu0 0
    %6930 = vmatmul.mubr.bf16.gmra.mrb[0].mxu0 %v6849
    %v6931 = vpop.f32.mrb[0].mxu0
    %v6932 = vadd.f32 %v6819, %v6931
    %v6933 = vpop.f32.mrb[0].mxu0
    %v6934 = vpop.f32.mrb[0].mxu0
    %v6935 = vadd.f32 %v6819, %v6934
    %v6936 = vpop.f32.mrb[0].mxu0
    %6937 = vmatprep.mubr.bf16.mxu0 0
    %6938 = vmatmul.mubr.bf16.gmra.mrb[0].mxu0 %v6852
    %v6939 = vpop.f32.mrb[0].mxu0
    %v6940 = vadd.f32 %v6819, %v6939
    %v6941 = vpop.f32.mrb[0].mxu0
    %v6942 = vpop.f32.mrb[0].mxu0
    %v6943 = vadd.f32 %v6819, %v6942
    %v6944 = vpop.f32.mrb[0].mxu0
    %6945 = vmatprep.mubr.bf16.mxu0 0
    %6946 = vmatmul.mubr.bf16.gmra.mrb[0].mxu0 %v6855
    %v6947 = vpop.f32.mrb[0].mxu0
    %v6948 = vadd.f32 %v6819, %v6947
    %v6949 = vpop.f32.mrb[0].mxu0
    %v6950 = vpop.f32.mrb[0].mxu0
    %v6951 = vadd.f32 %v6819, %v6950
    %v6952 = vpop.f32.mrb[0].mxu0
    %6953 = vdwg.mxu0
    %6954 = vst [vmem:[#allocation2] sm:$0xff] %v6892
    %6955 = vst [vmem:[#allocation2 + $0x8] sm:$0xff] %v6895
    %6956 = vst [vmem:[#allocation2 + $0x10] sm:$0xff] %v6900
    %6957 = vst [vmem:[#allocation2 + $0x18] sm:$0xff] %v6903
    %6958 = vst [vmem:[#allocation2 + $0x20] sm:$0xff] %v6908
    %6959 = vst [vmem:[#allocation2 + $0x28] sm:$0xff] %v6911
    %6960 = vst [vmem:[#allocation2 + $0x30] sm:$0xff] %v6916
    %6961 = vst [vmem:[#allocation2 + $0x38] sm:$0xff] %v6919
    %6962 = vst [vmem:[#allocation2 + $0x40] sm:$0xff] %v6924
    %6963 = vst [vmem:[#allocation2 + $0x48] sm:$0xff] %v6927
    %6964 = vst [vmem:[#allocation2 + $0x50] sm:$0xff] %v6932
    %6965 = vst [vmem:[#allocation2 + $0x58] sm:$0xff] %v6935
    %6966 = vst [vmem:[#allocation2 + $0x60] sm:$0xff] %v6940
    %6967 = vst [vmem:[#allocation2 + $0x68] sm:$0xff] %v6943
    %6968 = vst [vmem:[#allocation2 + $0x70] sm:$0xff] %v6948
    %6969 = vst [vmem:[#allocation2 + $0x78] sm:$0xff] %v6951
    // Predicated region
    $region22: #{tpu_custom_call.1} parent=1 // pred_check
      _
    $region23: #{tpu_custom_call.1} parent=1 // pred_check_branch
      %6971 = sbr.rel (0) target = $region25
    $region24: #{tpu_custom_call.1} parent=1 // pred_region
      %s6973 = ssub.s32 2048, 2048
      %6974 = vsyncadd [#allocation3], %s6973
      %s6975 = sshll.u32 [#allocation2], 4
      %s6976 = int_to_ptr.vmem [resolvable:$true] %s6975
      %6981 = dma.vmem_to_hbm [thread:$0]  %s6976, 2048, %s5, [#allocation3], 128, 128, 8
    $region25: #{tpu_custom_call.1} parent=1 // pred_fallthru
      _
    // Predicated region
    $region26: #{tpu_custom_call.1} parent=1 // pred_check
      _
    $region27: #{tpu_custom_call.1} parent=1 // pred_check_branch
      %6983 = sbr.rel (0) target = $region29
    $region28: #{tpu_custom_call.1} parent=1 // pred_region
      %6984 = dma.done [#allocation3], 2048
    $region29: #{tpu_custom_call.1} parent=1 // pred_fallthru
      _
    %6985 = vsyncpa [#allocation3], 1

</llo_original>
